<compile_context>
chip_gen: v5e
topology: v5e:2x2
jax: 0.10.0
libtpu: 0.0.40
codegen_flags: <defaults>
</compile_context>

<pallas_src>
import jax
import jax.numpy as jnp
import numpy as np
from jax.experimental import pallas as pl
from jax.experimental.pallas import tpu as pltpu

N_CLASS_PAD = 128   # lane-dense classifier width (real classes live in [:n_classes])


# ----------------------------- kernel helpers ------------------------------
def _maxpool2x2_s1(y):
    """MaxPool2d(kernel_size=2, stride=1) on (B, H, W, C) (C on lanes)."""
    return jnp.maximum(jnp.maximum(y[:, :-1, :-1, :], y[:, :-1, 1:, :]),
                       jnp.maximum(y[:, 1:, :-1, :], y[:, 1:, 1:, :]))


def _im2col_2x2(y):
    """(B, Hin, Win, C) -> (B*Ho*Wo, 4*C) slab for a 2x2 stride-1 valid conv."""
    B, Hin, Win, C = y.shape
    Ho, Wo = Hin - 1, Win - 1
    taps = [y[:, di:di + Ho, dj:dj + Wo, :]
            for di in range(2) for dj in range(2)]
    slab = jnp.concatenate(taps, axis=-1)            # (B, Ho, Wo, 4*C)
    return slab.reshape(B * Ho * Wo, 4 * C)


# -------------------------------- kernel -----------------------------------
def _make_kernel(Bt, H, W):
    Ho1, Wo1 = H - 1, W - 1          # conv1 out
    Hp1, Wp1 = Ho1 - 1, Wo1 - 1      # pool1 out
    Ho2, Wo2 = Hp1 - 1, Wp1 - 1      # conv2 out
    Hp2, Wp2 = Ho2 - 1, Wo2 - 1      # pool2 out
    Ho3, Wo3 = Hp2 - 1, Wp2 - 1      # conv3 out
    inv_hw3 = 1.0 / float(Ho3 * Wo3)

    def kernel(xcol_ref, w1_ref, s1_ref, b1_ref, w2_ref, s2_ref, b2_ref,
               w3_ref, s3_ref, b3_ref, lw_ref, lb_ref, o_ref):
        c1 = w1_ref.shape[1]
        c2 = w2_ref.shape[1]
        c3 = w3_ref.shape[1]

        # ---- conv1 + BN + ReLU: one matmul, M = Bt*Ho1*Wo1, K = 4 ----
        slab1 = xcol_ref[...].reshape(Bt * Ho1 * Wo1, 4)
        y1 = jnp.dot(slab1, w1_ref[...], preferred_element_type=jnp.float32)
        y1 = jnp.maximum(y1 * s1_ref[...] + b1_ref[...], 0.0)
        y1 = y1.reshape(Bt, Ho1, Wo1, c1)

        p1 = _maxpool2x2_s1(y1)                      # (Bt, Hp1, Wp1, 16)

        # ---- conv2 + BN + ReLU: M = Bt*Ho2*Wo2, K = 64 ----
        slab2 = _im2col_2x2(p1)
        y2 = jnp.dot(slab2, w2_ref[...], preferred_element_type=jnp.float32)
        y2 = jnp.maximum(y2 * s2_ref[...] + b2_ref[...], 0.0)
        y2 = y2.reshape(Bt, Ho2, Wo2, c2)

        p2 = _maxpool2x2_s1(y2)                      # (Bt, Hp2, Wp2, 32)

        # ---- conv3 + BN + ReLU: M = Bt*Ho3*Wo3, K = 128 ----
        slab3 = _im2col_2x2(p2)
        y3 = jnp.dot(slab3, w3_ref[...], preferred_element_type=jnp.float32)
        y3 = jnp.maximum(y3 * s3_ref[...] + b3_ref[...], 0.0)   # (Bt*Ho3*Wo3, 64)

        # ---- global average pool -> (Bt, 64) ----
        gap = jnp.sum(y3.reshape(Bt, Ho3 * Wo3, c3), axis=1) * inv_hw3

        # ---- linear (padded to 128 lanes) + softmax(dim=1) ----
        # Padded columns carry zero weights and a -1e30 bias, so their
        # softmax contribution is exactly 0 and real classes are unaffected.
        logits = jnp.dot(gap, lw_ref[...],
                         preferred_element_type=jnp.float32) + lb_ref[...]
        m = jnp.max(logits, axis=1, keepdims=True)
        e = jnp.exp(logits - m)
        o_ref[...] = e / jnp.sum(e, axis=1, keepdims=True)   # (Bt, N_CLASS_PAD)

    return kernel


# ------------------------------- wrapper ------------------------------------
def cnn_forward(x_nchw, params):
    x = x_nchw.astype(jnp.float32)                   # (B, 1, H, W)
    B, _, H, W = x.shape
    (w1, s1, b1), (w2, s2, b2), (w3, s3, b3), (lw, lb) = params
    n_classes = lw.shape[1]

    # Layer-1 im2col in the wrapper (layout plumbing; Cin == 1).
    Ho1, Wo1 = H - 1, W - 1
    x2 = x[:, 0]                                     # (B, H, W)
    taps = [x2[:, di:di + Ho1, dj:dj + Wo1]
            for di in range(2) for dj in range(2)]
    xcol = jnp.stack(taps, axis=-1).reshape(B, Ho1 * Wo1, 4)

    # Pad classifier to a full 128-lane output slab (unmasked final store,
    # MXU-friendly (64, 128) weight tile).
    lw_p = jnp.zeros((lw.shape[0], N_CLASS_PAD), jnp.float32).at[:, :n_classes].set(lw)
    lb_p = jnp.full((1, N_CLASS_PAD), -1e30, jnp.float32).at[:, :n_classes].set(lb)

    # Batch tiling: big M for the MXU, few grid steps; several steps when B is
    # large so megacore / both v7x TensorCores get work.
    B_TILE = min(B, 32)
    Bp = ((B + B_TILE - 1) // B_TILE) * B_TILE
    if Bp != B:
        xcol = jnp.pad(xcol, ((0, Bp - B), (0, 0), (0, 0)))
    grid = (Bp // B_TILE,)

    kernel = _make_kernel(B_TILE, H, W)
    out = pl.pallas_call(
        kernel,
        out_shape=jax.ShapeDtypeStruct((Bp, N_CLASS_PAD), jnp.float32),
        grid_spec=pltpu.PrefetchScalarGridSpec(
            num_scalar_prefetch=0,
            grid=grid,
            in_specs=[
                pl.BlockSpec((B_TILE, Ho1 * Wo1, 4), lambda b: (b, 0, 0)),
                pl.BlockSpec(w1.shape, lambda b: (0, 0)),
                pl.BlockSpec(s1.shape, lambda b: (0, 0)),
                pl.BlockSpec(b1.shape, lambda b: (0, 0)),
                pl.BlockSpec(w2.shape, lambda b: (0, 0)),
                pl.BlockSpec(s2.shape, lambda b: (0, 0)),
                pl.BlockSpec(b2.shape, lambda b: (0, 0)),
                pl.BlockSpec(w3.shape, lambda b: (0, 0)),
                pl.BlockSpec(s3.shape, lambda b: (0, 0)),
                pl.BlockSpec(b3.shape, lambda b: (0, 0)),
                pl.BlockSpec(lw_p.shape, lambda b: (0, 0)),
                pl.BlockSpec(lb_p.shape, lambda b: (0, 0)),
            ],
            out_specs=pl.BlockSpec((B_TILE, N_CLASS_PAD), lambda b: (b, 0)),
        ),
        compiler_params=pltpu.CompilerParams(
            dimension_semantics=("parallel",)),
    )(xcol, w1, s1, b1, w2, s2, b2, w3, s3, b3, lw_p, lb_p)
    return out[:B, :n_classes]                        # (B, n_classes)


# --------------------------- deterministic params ---------------------------
def init_params(key, n_classes=5):
    eps = 1e-5

    def conv_bn(key, cin, cout):
        kw, kb, kg, kbe, km, kv = jax.random.split(key, 6)
        bound = 1.0 / np.sqrt(cin * 4)
        w = jax.random.uniform(kw, (cout, cin, 2, 2), jnp.float32, -bound, bound)  # OIHW
        b = jax.random.uniform(kb, (cout,), jnp.float32, -bound, bound)
        gamma = jax.random.uniform(kg, (cout,), jnp.float32, 0.5, 1.5)
        beta = jax.random.uniform(kbe, (cout,), jnp.float32, -0.5, 0.5)
        mean = jax.random.uniform(km, (cout,), jnp.float32, -0.5, 0.5)
        var = jax.random.uniform(kv, (cout,), jnp.float32, 0.5, 1.5)
        # OIHW -> (kh, kw, cin, cout) -> im2col matrix (4*cin, cout)
        wcol = jnp.transpose(w, (2, 3, 1, 0)).reshape(4 * cin, cout)
        scale = gamma / jnp.sqrt(var + eps)
        bias = (b - mean) * scale + beta
        return wcol, scale[None, :], bias[None, :]

    k1, k2, k3, k4 = jax.random.split(key, 4)
    c1 = conv_bn(k1, 1, 16)
    c2 = conv_bn(k2, 16, 32)
    c3 = conv_bn(k3, 32, 64)
    klw, klb = jax.random.split(k4)
    bound = 1.0 / np.sqrt(64)
    lw = jax.random.uniform(klw, (64, n_classes), jnp.float32, -bound, bound)
    lb = jax.random.uniform(klb, (1, n_classes), jnp.float32, -bound, bound)
    return c1, c2, c3, (lw, lb)


# ------------------------------ JAX reference --------------------------------
def ref_forward(x_nchw, params):
    x = jnp.transpose(x_nchw, (0, 2, 3, 1)).astype(jnp.float32)   # NHWC
    (w1, s1, b1), (w2, s2, b2), (w3, s3, b3), (lw, lb) = params

    def conv(y, wcol, scale, bias):
        cin = y.shape[-1]
        w = wcol.reshape(2, 2, cin, -1)
        Ho, Wo = y.shape[1] - 1, y.shape[2] - 1
        acc = 0.0
        for di in range(2):
            for dj in range(2):
                acc = acc + jnp.einsum('bhwc,cd->bhwd',
                                       y[:, di:di + Ho, dj:dj + Wo, :],
                                       w[di, dj])
        return jnp.maximum(acc * scale + bias, 0.0)

    def pool(y):
        return jnp.maximum(jnp.maximum(y[:, :-1, :-1, :], y[:, :-1, 1:, :]),
                           jnp.maximum(y[:, 1:, :-1, :], y[:, 1:, 1:, :]))

    y = pool(conv(x, w1, s1, b1))
    y = pool(conv(y, w2, s2, b2))
    y = conv(y, w3, s3, b3)
    gap = jnp.mean(y, axis=(1, 2))
    logits = gap @ lw + lb
    return jax.nn.softmax(logits, axis=1)


if __name__ == "__main__":
    key = jax.random.PRNGKey(0)
    kx, kp = jax.random.split(key)
    B, H, W = 2, 16, 16
    x = jax.random.normal(kx, (B, 1, H, W), jnp.float32)   # PyTorch-style NCHW
    params = init_params(kp, n_classes=5)

    out = jax.block_until_ready(cnn_forward(x, params))
    ref = jax.block_until_ready(ref_forward(x, params))

    assert out.shape == (B, 5), out.shape
    np.testing.assert_allclose(np.asarray(out), np.asarray(ref),
                               rtol=1e-4, atol=1e-5)
    print("KERNEL_OK")
</pallas_src>

<mosaic_0001>
module attributes {stable_mosaic.version = 11 : i64} {
  func.func @kernel(%arg0: i32, %arg1: memref<2x225x4xf32, #tpu.memory_space<vmem>>, %arg2: memref<4x16xf32, #tpu.memory_space<vmem>>, %arg3: memref<1x16xf32, #tpu.memory_space<vmem>>, %arg4: memref<1x16xf32, #tpu.memory_space<vmem>>, %arg5: memref<64x32xf32, #tpu.memory_space<vmem>>, %arg6: memref<1x32xf32, #tpu.memory_space<vmem>>, %arg7: memref<1x32xf32, #tpu.memory_space<vmem>>, %arg8: memref<128x64xf32, #tpu.memory_space<vmem>>, %arg9: memref<1x64xf32, #tpu.memory_space<vmem>>, %arg10: memref<1x64xf32, #tpu.memory_space<vmem>>, %arg11: memref<64x128xf32, #tpu.memory_space<vmem>>, %arg12: memref<1x128xf32, #tpu.memory_space<vmem>>, %arg13: memref<2x128xf32, #tpu.memory_space<vmem>>) attributes {dimension_semantics = [#tpu.dimension_semantics<parallel>], iteration_bounds = array<i64: 1>, scalar_prefetch = 0 : i64, scratch_operands = 0 : i64, tpu.core_type = #tpu.core_type<tc>, window_params = [{transform_indices = @transform_0, window_bounds = array<i64: 2, 225, 4>}, {pipeline_mode = #tpu.pipeline_mode<synchronous>, transform_indices = @transform_1, window_bounds = array<i64: 4, 16>}, {pipeline_mode = #tpu.pipeline_mode<synchronous>, transform_indices = @transform_2, window_bounds = array<i64: 1, 16>}, {pipeline_mode = #tpu.pipeline_mode<synchronous>, transform_indices = @transform_3, window_bounds = array<i64: 1, 16>}, {pipeline_mode = #tpu.pipeline_mode<synchronous>, transform_indices = @transform_4, window_bounds = array<i64: 64, 32>}, {pipeline_mode = #tpu.pipeline_mode<synchronous>, transform_indices = @transform_5, window_bounds = array<i64: 1, 32>}, {pipeline_mode = #tpu.pipeline_mode<synchronous>, transform_indices = @transform_6, window_bounds = array<i64: 1, 32>}, {pipeline_mode = #tpu.pipeline_mode<synchronous>, transform_indices = @transform_7, window_bounds = array<i64: 128, 64>}, {pipeline_mode = #tpu.pipeline_mode<synchronous>, transform_indices = @transform_8, window_bounds = array<i64: 1, 64>}, {pipeline_mode = #tpu.pipeline_mode<synchronous>, transform_indices = @transform_9, window_bounds = array<i64: 1, 64>}, {pipeline_mode = #tpu.pipeline_mode<synchronous>, transform_indices = @transform_10, window_bounds = array<i64: 64, 128>}, {pipeline_mode = #tpu.pipeline_mode<synchronous>, transform_indices = @transform_11, window_bounds = array<i64: 1, 128>}, {transform_indices = @transform_12, window_bounds = array<i64: 2, 128>}]} {
    %c0 = arith.constant 0 : index
    %c0_0 = arith.constant 0 : index
    %c0_1 = arith.constant 0 : index
    %0 = vector.load %arg1[%c0, %c0_0, %c0_1] : memref<2x225x4xf32, #tpu.memory_space<vmem>>, vector<2x225x4xf32>
    %1 = vector.shape_cast %0 : vector<2x225x4xf32> to vector<450x4xf32>
    %c0_2 = arith.constant 0 : index
    %c0_3 = arith.constant 0 : index
    %2 = vector.load %arg2[%c0_2, %c0_3] : memref<4x16xf32, #tpu.memory_space<vmem>>, vector<4x16xf32>
    %cst = arith.constant dense<0.000000e+00> : vector<450x16xf32>
    %3 = tpu.matmul %1, %2, %cst {dimension_numbers = #tpu.dot_dimension_numbers<[1], [0], [0], [1], [0, 0, 1, 1], [], []>} : vector<450x4xf32>, vector<4x16xf32>, vector<450x16xf32> -> vector<450x16xf32>
    %c0_4 = arith.constant 0 : index
    %c0_5 = arith.constant 0 : index
    %4 = vector.load %arg3[%c0_4, %c0_5] : memref<1x16xf32, #tpu.memory_space<vmem>>, vector<1x16xf32>
    %5 = vector.broadcast %4 : vector<1x16xf32> to vector<450x16xf32>
    %6 = arith.mulf %3, %5 : vector<450x16xf32>
    %c0_6 = arith.constant 0 : index
    %c0_7 = arith.constant 0 : index
    %7 = vector.load %arg4[%c0_6, %c0_7] : memref<1x16xf32, #tpu.memory_space<vmem>>, vector<1x16xf32>
    %8 = vector.broadcast %7 : vector<1x16xf32> to vector<450x16xf32>
    %9 = arith.addf %6, %8 : vector<450x16xf32>
    %cst_8 = arith.constant 0.000000e+00 : f32
    %10 = vector.broadcast %cst_8 : f32 to vector<450x16xf32>
    %11 = arith.maximumf %9, %10 : vector<450x16xf32>
    %12 = vector.shape_cast %11 : vector<450x16xf32> to vector<2x15x15x16xf32>
    %13 = vector.extract_strided_slice %12 {offsets = [0, 0, 0, 0], sizes = [2, 14, 14, 16], strides = [1, 1, 1, 1]} : vector<2x15x15x16xf32> to vector<2x14x14x16xf32>
    %14 = vector.extract_strided_slice %12 {offsets = [0, 0, 1, 0], sizes = [2, 14, 14, 16], strides = [1, 1, 1, 1]} : vector<2x15x15x16xf32> to vector<2x14x14x16xf32>
    %15 = arith.maximumf %13, %14 : vector<2x14x14x16xf32>
    %16 = vector.extract_strided_slice %12 {offsets = [0, 1, 0, 0], sizes = [2, 14, 14, 16], strides = [1, 1, 1, 1]} : vector<2x15x15x16xf32> to vector<2x14x14x16xf32>
    %17 = vector.extract_strided_slice %12 {offsets = [0, 1, 1, 0], sizes = [2, 14, 14, 16], strides = [1, 1, 1, 1]} : vector<2x15x15x16xf32> to vector<2x14x14x16xf32>
    %18 = arith.maximumf %16, %17 : vector<2x14x14x16xf32>
    %19 = arith.maximumf %15, %18 : vector<2x14x14x16xf32>
    %20 = vector.extract_strided_slice %19 {offsets = [0, 0, 0, 0], sizes = [2, 13, 13, 16], strides = [1, 1, 1, 1]} : vector<2x14x14x16xf32> to vector<2x13x13x16xf32>
    %21 = vector.extract_strided_slice %19 {offsets = [0, 0, 1, 0], sizes = [2, 13, 13, 16], strides = [1, 1, 1, 1]} : vector<2x14x14x16xf32> to vector<2x13x13x16xf32>
    %22 = vector.extract_strided_slice %19 {offsets = [0, 1, 0, 0], sizes = [2, 13, 13, 16], strides = [1, 1, 1, 1]} : vector<2x14x14x16xf32> to vector<2x13x13x16xf32>
    %23 = vector.extract_strided_slice %19 {offsets = [0, 1, 1, 0], sizes = [2, 13, 13, 16], strides = [1, 1, 1, 1]} : vector<2x14x14x16xf32> to vector<2x13x13x16xf32>
    %24 = tpu.concatenate %20, %21, %22, %23 in 3 : vector<2x13x13x16xf32>, vector<2x13x13x16xf32>, vector<2x13x13x16xf32>, vector<2x13x13x16xf32> -> vector<2x13x13x64xf32>
    %25 = vector.shape_cast %24 : vector<2x13x13x64xf32> to vector<338x64xf32>
    %c0_9 = arith.constant 0 : index
    %c0_10 = arith.constant 0 : index
    %26 = vector.load %arg5[%c0_9, %c0_10] : memref<64x32xf32, #tpu.memory_space<vmem>>, vector<64x32xf32>
    %cst_11 = arith.constant dense<0.000000e+00> : vector<338x32xf32>
    %27 = tpu.matmul %25, %26, %cst_11 {dimension_numbers = #tpu.dot_dimension_numbers<[1], [0], [0], [1], [0, 0, 1, 1], [], []>} : vector<338x64xf32>, vector<64x32xf32>, vector<338x32xf32> -> vector<338x32xf32>
    %c0_12 = arith.constant 0 : index
    %c0_13 = arith.constant 0 : index
    %28 = vector.load %arg6[%c0_12, %c0_13] : memref<1x32xf32, #tpu.memory_space<vmem>>, vector<1x32xf32>
    %29 = vector.broadcast %28 : vector<1x32xf32> to vector<338x32xf32>
    %30 = arith.mulf %27, %29 : vector<338x32xf32>
    %c0_14 = arith.constant 0 : index
    %c0_15 = arith.constant 0 : index
    %31 = vector.load %arg7[%c0_14, %c0_15] : memref<1x32xf32, #tpu.memory_space<vmem>>, vector<1x32xf32>
    %32 = vector.broadcast %31 : vector<1x32xf32> to vector<338x32xf32>
    %33 = arith.addf %30, %32 : vector<338x32xf32>
    %cst_16 = arith.constant 0.000000e+00 : f32
    %34 = vector.broadcast %cst_16 : f32 to vector<338x32xf32>
    %35 = arith.maximumf %33, %34 : vector<338x32xf32>
    %36 = vector.shape_cast %35 : vector<338x32xf32> to vector<2x13x13x32xf32>
    %37 = vector.extract_strided_slice %36 {offsets = [0, 0, 0, 0], sizes = [2, 12, 12, 32], strides = [1, 1, 1, 1]} : vector<2x13x13x32xf32> to vector<2x12x12x32xf32>
    %38 = vector.extract_strided_slice %36 {offsets = [0, 0, 1, 0], sizes = [2, 12, 12, 32], strides = [1, 1, 1, 1]} : vector<2x13x13x32xf32> to vector<2x12x12x32xf32>
    %39 = arith.maximumf %37, %38 : vector<2x12x12x32xf32>
    %40 = vector.extract_strided_slice %36 {offsets = [0, 1, 0, 0], sizes = [2, 12, 12, 32], strides = [1, 1, 1, 1]} : vector<2x13x13x32xf32> to vector<2x12x12x32xf32>
    %41 = vector.extract_strided_slice %36 {offsets = [0, 1, 1, 0], sizes = [2, 12, 12, 32], strides = [1, 1, 1, 1]} : vector<2x13x13x32xf32> to vector<2x12x12x32xf32>
    %42 = arith.maximumf %40, %41 : vector<2x12x12x32xf32>
    %43 = arith.maximumf %39, %42 : vector<2x12x12x32xf32>
    %44 = vector.extract_strided_slice %43 {offsets = [0, 0, 0, 0], sizes = [2, 11, 11, 32], strides = [1, 1, 1, 1]} : vector<2x12x12x32xf32> to vector<2x11x11x32xf32>
    %45 = vector.extract_strided_slice %43 {offsets = [0, 0, 1, 0], sizes = [2, 11, 11, 32], strides = [1, 1, 1, 1]} : vector<2x12x12x32xf32> to vector<2x11x11x32xf32>
    %46 = vector.extract_strided_slice %43 {offsets = [0, 1, 0, 0], sizes = [2, 11, 11, 32], strides = [1, 1, 1, 1]} : vector<2x12x12x32xf32> to vector<2x11x11x32xf32>
    %47 = vector.extract_strided_slice %43 {offsets = [0, 1, 1, 0], sizes = [2, 11, 11, 32], strides = [1, 1, 1, 1]} : vector<2x12x12x32xf32> to vector<2x11x11x32xf32>
    %48 = tpu.concatenate %44, %45, %46, %47 in 3 : vector<2x11x11x32xf32>, vector<2x11x11x32xf32>, vector<2x11x11x32xf32>, vector<2x11x11x32xf32> -> vector<2x11x11x128xf32>
    %49 = vector.shape_cast %48 : vector<2x11x11x128xf32> to vector<242x128xf32>
    %c0_17 = arith.constant 0 : index
    %c0_18 = arith.constant 0 : index
    %50 = vector.load %arg8[%c0_17, %c0_18] : memref<128x64xf32, #tpu.memory_space<vmem>>, vector<128x64xf32>
    %cst_19 = arith.constant dense<0.000000e+00> : vector<242x64xf32>
    %51 = tpu.matmul %49, %50, %cst_19 {dimension_numbers = #tpu.dot_dimension_numbers<[1], [0], [0], [1], [0, 0, 1, 1], [], []>} : vector<242x128xf32>, vector<128x64xf32>, vector<242x64xf32> -> vector<242x64xf32>
    %c0_20 = arith.constant 0 : index
    %c0_21 = arith.constant 0 : index
    %52 = vector.load %arg9[%c0_20, %c0_21] : memref<1x64xf32, #tpu.memory_space<vmem>>, vector<1x64xf32>
    %53 = vector.broadcast %52 : vector<1x64xf32> to vector<242x64xf32>
    %54 = arith.mulf %51, %53 : vector<242x64xf32>
    %c0_22 = arith.constant 0 : index
    %c0_23 = arith.constant 0 : index
    %55 = vector.load %arg10[%c0_22, %c0_23] : memref<1x64xf32, #tpu.memory_space<vmem>>, vector<1x64xf32>
    %56 = vector.broadcast %55 : vector<1x64xf32> to vector<242x64xf32>
    %57 = arith.addf %54, %56 : vector<242x64xf32>
    %cst_24 = arith.constant 0.000000e+00 : f32
    %58 = vector.broadcast %cst_24 : f32 to vector<242x64xf32>
    %59 = arith.maximumf %57, %58 : vector<242x64xf32>
    %60 = vector.shape_cast %59 : vector<242x64xf32> to vector<2x121x64xf32>
    %cst_25 = arith.constant dense<0.000000e+00> : vector<2x64xf32>
    %61 = vector.multi_reduction <add>, %60, %cst_25 [1] : vector<2x121x64xf32> to vector<2x64xf32>
    %cst_26 = arith.constant 0.00826446246 : f32
    %62 = vector.broadcast %cst_26 : f32 to vector<2x64xf32>
    %63 = arith.mulf %61, %62 : vector<2x64xf32>
    %c0_27 = arith.constant 0 : index
    %c0_28 = arith.constant 0 : index
    %64 = vector.load %arg11[%c0_27, %c0_28] : memref<64x128xf32, #tpu.memory_space<vmem>>, vector<64x128xf32>
    %cst_29 = arith.constant dense<0.000000e+00> : vector<2x128xf32>
    %65 = tpu.matmul %63, %64, %cst_29 {dimension_numbers = #tpu.dot_dimension_numbers<[1], [0], [0], [1], [0, 0, 1, 1], [], []>} : vector<2x64xf32>, vector<64x128xf32>, vector<2x128xf32> -> vector<2x128xf32>
    %c0_30 = arith.constant 0 : index
    %c0_31 = arith.constant 0 : index
    %66 = vector.load %arg12[%c0_30, %c0_31] : memref<1x128xf32, #tpu.memory_space<vmem>>, vector<1x128xf32>
    %67 = vector.broadcast %66 : vector<1x128xf32> to vector<2x128xf32>
    %68 = arith.addf %65, %67 : vector<2x128xf32>
    %cst_32 = arith.constant dense<0xFF800000> : vector<2xf32>
    %69 = vector.multi_reduction <maximumf>, %68, %cst_32 [1] : vector<2x128xf32> to vector<2xf32>
    %70 = vector.shape_cast %69 : vector<2xf32> to vector<2x1xf32>
    %71 = vector.broadcast %70 : vector<2x1xf32> to vector<2x128xf32>
    %72 = arith.subf %68, %71 : vector<2x128xf32>
    %73 = math.exp %72 : vector<2x128xf32>
    %cst_33 = arith.constant dense<0.000000e+00> : vector<2xf32>
    %74 = vector.multi_reduction <add>, %73, %cst_33 [1] : vector<2x128xf32> to vector<2xf32>
    %75 = vector.shape_cast %74 : vector<2xf32> to vector<2x1xf32>
    %76 = vector.broadcast %75 : vector<2x1xf32> to vector<2x128xf32>
    %77 = arith.divf %73, %76 : vector<2x128xf32>
    %c0_34 = arith.constant 0 : index
    %c0_35 = arith.constant 0 : index
    %78 = vector.load %arg13[%c0_34, %c0_35] : memref<2x128xf32, #tpu.memory_space<vmem>>, vector<2x128xf32>
    tpu.vector_store %arg13[%c0_34, %c0_35], %77 {strides = array<i32>} : memref<2x128xf32, #tpu.memory_space<vmem>>, vector<2x128xf32>,
    return
  }
  func.func @transform_0(%arg0: i32) -> (i32, i32, i32) {
    %c0_i32 = arith.constant 0 : i32
    %c0_i32_0 = arith.constant 0 : i32
    %c0_i32_1 = arith.constant 0 : i32
    return %arg0, %c0_i32, %c0_i32_0 : i32, i32, i32
  }
  func.func @transform_1(%arg0: i32) -> (i32, i32) {
    %c0_i32 = arith.constant 0 : i32
    %c0_i32_0 = arith.constant 0 : i32
    %c0_i32_1 = arith.constant 0 : i32
    return %c0_i32, %c0_i32_0 : i32, i32
  }
  func.func @transform_2(%arg0: i32) -> (i32, i32) {
    %c0_i32 = arith.constant 0 : i32
    %c0_i32_0 = arith.constant 0 : i32
    %c0_i32_1 = arith.constant 0 : i32
    return %c0_i32, %c0_i32_0 : i32, i32
  }
  func.func @transform_3(%arg0: i32) -> (i32, i32) {
    %c0_i32 = arith.constant 0 : i32
    %c0_i32_0 = arith.constant 0 : i32
    %c0_i32_1 = arith.constant 0 : i32
    return %c0_i32, %c0_i32_0 : i32, i32
  }
  func.func @transform_4(%arg0: i32) -> (i32, i32) {
    %c0_i32 = arith.constant 0 : i32
    %c0_i32_0 = arith.constant 0 : i32
    %c0_i32_1 = arith.constant 0 : i32
    return %c0_i32, %c0_i32_0 : i32, i32
  }
  func.func @transform_5(%arg0: i32) -> (i32, i32) {
    %c0_i32 = arith.constant 0 : i32
    %c0_i32_0 = arith.constant 0 : i32
    %c0_i32_1 = arith.constant 0 : i32
    return %c0_i32, %c0_i32_0 : i32, i32
  }
  func.func @transform_6(%arg0: i32) -> (i32, i32) {
    %c0_i32 = arith.constant 0 : i32
    %c0_i32_0 = arith.constant 0 : i32
    %c0_i32_1 = arith.constant 0 : i32
    return %c0_i32, %c0_i32_0 : i32, i32
  }
  func.func @transform_7(%arg0: i32) -> (i32, i32) {
    %c0_i32 = arith.constant 0 : i32
    %c0_i32_0 = arith.constant 0 : i32
    %c0_i32_1 = arith.constant 0 : i32
    return %c0_i32, %c0_i32_0 : i32, i32
  }
  func.func @transform_8(%arg0: i32) -> (i32, i32) {
    %c0_i32 = arith.constant 0 : i32
    %c0_i32_0 = arith.constant 0 : i32
    %c0_i32_1 = arith.constant 0 : i32
    return %c0_i32, %c0_i32_0 : i32, i32
  }
  func.func @transform_9(%arg0: i32) -> (i32, i32) {
    %c0_i32 = arith.constant 0 : i32
    %c0_i32_0 = arith.constant 0 : i32
    %c0_i32_1 = arith.constant 0 : i32
    return %c0_i32, %c0_i32_0 : i32, i32
  }
  func.func @transform_10(%arg0: i32) -> (i32, i32) {
    %c0_i32 = arith.constant 0 : i32
    %c0_i32_0 = arith.constant 0 : i32
    %c0_i32_1 = arith.constant 0 : i32
    return %c0_i32, %c0_i32_0 : i32, i32
  }
  func.func @transform_11(%arg0: i32) -> (i32, i32) {
    %c0_i32 = arith.constant 0 : i32
    %c0_i32_0 = arith.constant 0 : i32
    %c0_i32_1 = arith.constant 0 : i32
    return %c0_i32, %c0_i32_0 : i32, i32
  }
  func.func @transform_12(%arg0: i32) -> (i32, i32) {
    %c0_i32 = arith.constant 0 : i32
    %c0_i32_0 = arith.constant 0 : i32
    return %arg0, %c0_i32 : i32, i32
  }
}

</mosaic_0001>

<llo_original>
// kernel: tpu_custom_call.1
$region0: #{tpu_custom_call.1}
  #allocation0 [shape = 'u32[]', space=smem, size = 0x4, offset = 0x4, fixed_abs, tag = 'smem constant byte address 0x4 - core index']
  #allocation1 [shape = 'u32[72,128]{1,0:T(1,128)}', space=vmem, size = 0x9000, scoped, tag = 'internal scratch']
  %s0 = inlined_call_operand.vmem [shape: f32[2,225,4], index: 0, kind: input, shape index: {}]
  %s1 = inlined_call_operand.vmem [shape: f32[4,16], index: 1, kind: input, shape index: {}]
  %s2 = inlined_call_operand.vmem [shape: f32[1,16], index: 2, kind: input, shape index: {}]
  %s3 = inlined_call_operand.vmem [shape: f32[1,16], index: 3, kind: input, shape index: {}]
  %s4 = inlined_call_operand.vmem [shape: f32[64,32], index: 4, kind: input, shape index: {}]
  %s5 = inlined_call_operand.vmem [shape: f32[1,32], index: 5, kind: input, shape index: {}]
  %s6 = inlined_call_operand.vmem [shape: f32[1,32], index: 6, kind: input, shape index: {}]
  %s7 = inlined_call_operand.vmem [shape: f32[128,64], index: 7, kind: input, shape index: {}]
  %s8 = inlined_call_operand.vmem [shape: f32[1,64], index: 8, kind: input, shape index: {}]
  %s9 = inlined_call_operand.vmem [shape: f32[1,64], index: 9, kind: input, shape index: {}]
  %s10 = inlined_call_operand.vmem [shape: f32[64,128], index: 10, kind: input, shape index: {}]
  %s11 = inlined_call_operand.vmem [shape: f32[1,128], index: 11, kind: input, shape index: {}]
  %s12 = inlined_call_operand.hbm [shape: f32[2,128], index: 12, kind: output, shape index: {}]
  %s13 = sld [smem:[#allocation0]]
  $region58: #{tpu_custom_call.1} parent=0
    _
  %s15 = ssub.s32 1, %s13
  %s16 = scalar_select 0, %s15, %s13
  $region1: #{tpu_custom_call.1} parent=0
    #allocation2 [shape = 'u8[1024]{0}', space=vmem, size = 0x400, scoped, tag = 'output window, operand 0, single buffered']
    #allocation3 [shape = 's32[1]{0}', space=sflag, size = 0x4, scoped, tag = 'scoped memory for tpu_custom_call.1']
    %17 = vsyncpa [#allocation3], 0
    // Predicated region
    $region2: #{tpu_custom_call.1} parent=1 // pred_check
      _
    $region3: #{tpu_custom_call.1} parent=1 // pred_check_branch
      %19 = sbr.rel (0) target = $region5
    $region4: #{tpu_custom_call.1} parent=1 // pred_region
      _
    $region5: #{tpu_custom_call.1} parent=1 // pred_fallthru
      _
    // Predicated region
    $region6: #{tpu_custom_call.1} parent=1 // pred_check
      _
    $region7: #{tpu_custom_call.1} parent=1 // pred_check_branch
      %21 = sbr.rel (0) target = $region9
    $region8: #{tpu_custom_call.1} parent=1 // pred_region
      _
    $region9: #{tpu_custom_call.1} parent=1 // pred_fallthru
      _
    // Predicated region
    $region10: #{tpu_custom_call.1} parent=1 // pred_check
      _
    $region11: #{tpu_custom_call.1} parent=1 // pred_check_branch
      %23 = sbr.rel (0) target = $region13
    $region12: #{tpu_custom_call.1} parent=1 // pred_region
      _
    $region13: #{tpu_custom_call.1} parent=1 // pred_fallthru
      _
    // Predicated region
    $region14: #{tpu_custom_call.1} parent=1 // pred_check
      _
    $region15: #{tpu_custom_call.1} parent=1 // pred_check_branch
      %25 = sbr.rel (0) target = $region17
    $region16: #{tpu_custom_call.1} parent=1 // pred_region
      _
    $region17: #{tpu_custom_call.1} parent=1 // pred_fallthru
      _
    // Predicated region
    $region18: #{tpu_custom_call.1} parent=1 // pred_check
      _
    $region19: #{tpu_custom_call.1} parent=1 // pred_check_branch
      %27 = sbr.rel (0) target = $region21
    $region20: #{tpu_custom_call.1} parent=1 // pred_region
      _
    $region21: #{tpu_custom_call.1} parent=1 // pred_fallthru
      _
    // Predicated region
    $region22: #{tpu_custom_call.1} parent=1 // pred_check
      _
    $region23: #{tpu_custom_call.1} parent=1 // pred_check_branch
      %29 = sbr.rel (0) target = $region25
    $region24: #{tpu_custom_call.1} parent=1 // pred_region
      _
    $region25: #{tpu_custom_call.1} parent=1 // pred_fallthru
      _
    // Predicated region
    $region26: #{tpu_custom_call.1} parent=1 // pred_check
      _
    $region27: #{tpu_custom_call.1} parent=1 // pred_check_branch
      %31 = sbr.rel (0) target = $region29
    $region28: #{tpu_custom_call.1} parent=1 // pred_region
      _
    $region29: #{tpu_custom_call.1} parent=1 // pred_fallthru
      _
    // Predicated region
    $region30: #{tpu_custom_call.1} parent=1 // pred_check
      _
    $region31: #{tpu_custom_call.1} parent=1 // pred_check_branch
      %33 = sbr.rel (0) target = $region33
    $region32: #{tpu_custom_call.1} parent=1 // pred_region
      _
    $region33: #{tpu_custom_call.1} parent=1 // pred_fallthru
      _
    // Predicated region
    $region34: #{tpu_custom_call.1} parent=1 // pred_check
      _
    $region35: #{tpu_custom_call.1} parent=1 // pred_check_branch
      %35 = sbr.rel (0) target = $region37
    $region36: #{tpu_custom_call.1} parent=1 // pred_region
      _
    $region37: #{tpu_custom_call.1} parent=1 // pred_fallthru
      _
    // Predicated region
    $region38: #{tpu_custom_call.1} parent=1 // pred_check
      _
    $region39: #{tpu_custom_call.1} parent=1 // pred_check_branch
      %37 = sbr.rel (0) target = $region41
    $region40: #{tpu_custom_call.1} parent=1 // pred_region
      _
    $region41: #{tpu_custom_call.1} parent=1 // pred_fallthru
      _
    // Predicated region
    $region42: #{tpu_custom_call.1} parent=1 // pred_check
      _
    $region43: #{tpu_custom_call.1} parent=1 // pred_check_branch
      %39 = sbr.rel (0) target = $region45
    $region44: #{tpu_custom_call.1} parent=1 // pred_region
      _
    $region45: #{tpu_custom_call.1} parent=1 // pred_fallthru
      _
    // Predicated region
    $region46: #{tpu_custom_call.1} parent=1 // pred_check
      _
    $region47: #{tpu_custom_call.1} parent=1 // pred_check_branch
      %41 = sbr.rel (0) target = $region49
    $region48: #{tpu_custom_call.1} parent=1 // pred_region
      _
    $region49: #{tpu_custom_call.1} parent=1 // pred_fallthru
      _
    %v42 = vld [vmem:[%s0] sm:$0xff]
    %v43 = vld [vmem:[%s0 + $0x8] sm:$0xff]
    %v44 = vld [vmem:[%s0 + $0x10] sm:$0xff]
    %v45 = vld [vmem:[%s0 + $0x18] sm:$0xff]
    %v46 = vld [vmem:[%s0 + $0x20] sm:$0xff]
    %v47 = vld [vmem:[%s0 + $0x28] sm:$0xff]
    %v48 = vld [vmem:[%s0 + $0x30] sm:$0xff]
    %v49 = vld [vmem:[%s0 + $0x38] sm:$0xff]
    %v50 = vld [vmem:[%s0 + $0x40] sm:$0xff]
    %v51 = vld [vmem:[%s0 + $0x48] sm:$0xff]
    %v52 = vld [vmem:[%s0 + $0x50] sm:$0xff]
    %v53 = vld [vmem:[%s0 + $0x58] sm:$0xff]
    %v54 = vld [vmem:[%s0 + $0x60] sm:$0xff]
    %v55 = vld [vmem:[%s0 + $0x68] sm:$0xff]
    %v56 = vld [vmem:[%s0 + $0x70] sm:$0xff]
    %v57 = vld [vmem:[%s0 + $0x78] sm:$0xff]
    %v58 = vld [vmem:[%s0 + $0x80] sm:$0xff]
    %v59 = vld [vmem:[%s0 + $0x88] sm:$0xff]
    %v60 = vld [vmem:[%s0 + $0x90] sm:$0xff]
    %v61 = vld [vmem:[%s0 + $0x98] sm:$0xff]
    %v62 = vld [vmem:[%s0 + $0xa0] sm:$0xff]
    %v63 = vld [vmem:[%s0 + $0xa8] sm:$0xff]
    %v64 = vld [vmem:[%s0 + $0xb0] sm:$0xff]
    %v65 = vld [vmem:[%s0 + $0xb8] sm:$0xff]
    %v66 = vld [vmem:[%s0 + $0xc0] sm:$0xff]
    %v67 = vld [vmem:[%s0 + $0xc8] sm:$0xff]
    %v68 = vld [vmem:[%s0 + $0xd0] sm:$0xff]
    %v69 = vld [vmem:[%s0 + $0xd8] sm:$0xff]
    %v70 = vld [vmem:[%s0 + $0xe0] sm:$0x1]
    %v71 = vld [vmem:[%s0 + $0xe8] sm:$0xff]
    %v72 = vld [vmem:[%s0 + $0xf0] sm:$0xff]
    %v73 = vld [vmem:[%s0 + $0xf8] sm:$0xff]
    %v74 = vld [vmem:[%s0 + $0x100] sm:$0xff]
    %v75 = vld [vmem:[%s0 + $0x108] sm:$0xff]
    %v76 = vld [vmem:[%s0 + $0x110] sm:$0xff]
    %v77 = vld [vmem:[%s0 + $0x118] sm:$0xff]
    %v78 = vld [vmem:[%s0 + $0x120] sm:$0xff]
    %v79 = vld [vmem:[%s0 + $0x128] sm:$0xff]
    %v80 = vld [vmem:[%s0 + $0x130] sm:$0xff]
    %v81 = vld [vmem:[%s0 + $0x138] sm:$0xff]
    %v82 = vld [vmem:[%s0 + $0x140] sm:$0xff]
    %v83 = vld [vmem:[%s0 + $0x148] sm:$0xff]
    %v84 = vld [vmem:[%s0 + $0x150] sm:$0xff]
    %v85 = vld [vmem:[%s0 + $0x158] sm:$0xff]
    %v86 = vld [vmem:[%s0 + $0x160] sm:$0xff]
    %v87 = vld [vmem:[%s0 + $0x168] sm:$0xff]
    %v88 = vld [vmem:[%s0 + $0x170] sm:$0xff]
    %v89 = vld [vmem:[%s0 + $0x178] sm:$0xff]
    %v90 = vld [vmem:[%s0 + $0x180] sm:$0xff]
    %v91 = vld [vmem:[%s0 + $0x188] sm:$0xff]
    %v92 = vld [vmem:[%s0 + $0x190] sm:$0xff]
    %v93 = vld [vmem:[%s0 + $0x198] sm:$0xff]
    %v94 = vld [vmem:[%s0 + $0x1a0] sm:$0xff]
    %v95 = vld [vmem:[%s0 + $0x1a8] sm:$0xff]
    %v96 = vld [vmem:[%s0 + $0x1b0] sm:$0xff]
    %v97 = vld [vmem:[%s0 + $0x1b8] sm:$0xff]
    %v98 = vld [vmem:[%s0 + $0x1c0] sm:$0xff]
    %v99 = vld [vmem:[%s0 + $0x1c8] sm:$0x1]
    %v158 = vrot.slane %v42, 1
    %v159 = vrot.slane %v42, 2
    %v160 = vrot.slane %v42, 3
    %v161 = vrot.slane %v42, 4
    %v162 = vrot.slane %v42, 5
    %v163 = vrot.slane %v42, 6
    %v164 = vrot.slane %v42, 7
    %v165 = vrot.slane %v43, 1
    %v166 = vrot.slane %v43, 2
    %v167 = vrot.slane %v43, 3
    %v168 = vrot.slane %v43, 4
    %v169 = vrot.slane %v43, 5
    %v170 = vrot.slane %v43, 6
    %v171 = vrot.slane %v43, 7
    %v172 = vrot.slane %v44, 1
    %v173 = vrot.slane %v44, 2
    %v174 = vrot.slane %v44, 3
    %v175 = vrot.slane %v44, 4
    %v176 = vrot.slane %v44, 5
    %v177 = vrot.slane %v44, 6
    %v178 = vrot.slane %v44, 7
    %v179 = vrot.slane %v45, 1
    %v180 = vrot.slane %v45, 2
    %v181 = vrot.slane %v45, 3
    %v182 = vrot.slane %v45, 4
    %v183 = vrot.slane %v45, 5
    %v184 = vrot.slane %v45, 6
    %v185 = vrot.slane %v45, 7
    %v186 = vrot.slane %v46, 1
    %v187 = vrot.slane %v46, 2
    %v188 = vrot.slane %v46, 3
    %v189 = vrot.slane %v46, 4
    %v190 = vrot.slane %v46, 5
    %v191 = vrot.slane %v46, 6
    %v192 = vrot.slane %v46, 7
    %v193 = vrot.slane %v47, 1
    %v194 = vrot.slane %v47, 2
    %v195 = vrot.slane %v47, 3
    %v196 = vrot.slane %v47, 4
    %v197 = vrot.slane %v47, 5
    %v198 = vrot.slane %v47, 6
    %v199 = vrot.slane %v47, 7
    %v200 = vrot.slane %v48, 1
    %v201 = vrot.slane %v48, 2
    %v202 = vrot.slane %v48, 3
    %v203 = vrot.slane %v48, 4
    %v204 = vrot.slane %v48, 5
    %v205 = vrot.slane %v48, 6
    %v206 = vrot.slane %v48, 7
    %v207 = vrot.slane %v49, 1
    %v208 = vrot.slane %v49, 2
    %v209 = vrot.slane %v49, 3
    %v210 = vrot.slane %v49, 4
    %v211 = vrot.slane %v49, 5
    %v212 = vrot.slane %v49, 6
    %v213 = vrot.slane %v49, 7
    %v214 = vrot.slane %v50, 1
    %v215 = vrot.slane %v50, 2
    %v216 = vrot.slane %v50, 3
    %v217 = vrot.slane %v50, 4
    %v218 = vrot.slane %v50, 5
    %v219 = vrot.slane %v50, 6
    %v220 = vrot.slane %v50, 7
    %v221 = vrot.slane %v51, 1
    %v222 = vrot.slane %v51, 2
    %v223 = vrot.slane %v51, 3
    %v224 = vrot.slane %v51, 4
    %v225 = vrot.slane %v51, 5
    %v226 = vrot.slane %v51, 6
    %v227 = vrot.slane %v51, 7
    %v228 = vrot.slane %v52, 1
    %v229 = vrot.slane %v52, 2
    %v230 = vrot.slane %v52, 3
    %v231 = vrot.slane %v52, 4
    %v232 = vrot.slane %v52, 5
    %v233 = vrot.slane %v52, 6
    %v234 = vrot.slane %v52, 7
    %v235 = vrot.slane %v53, 1
    %v236 = vrot.slane %v53, 2
    %v237 = vrot.slane %v53, 3
    %v238 = vrot.slane %v53, 4
    %v239 = vrot.slane %v53, 5
    %v240 = vrot.slane %v53, 6
    %v241 = vrot.slane %v53, 7
    %v242 = vrot.slane %v54, 1
    %v243 = vrot.slane %v54, 2
    %v244 = vrot.slane %v54, 3
    %v245 = vrot.slane %v54, 4
    %v246 = vrot.slane %v54, 5
    %v247 = vrot.slane %v54, 6
    %v248 = vrot.slane %v54, 7
    %v249 = vrot.slane %v55, 1
    %v250 = vrot.slane %v55, 2
    %v251 = vrot.slane %v55, 3
    %v252 = vrot.slane %v55, 4
    %v253 = vrot.slane %v55, 5
    %v254 = vrot.slane %v55, 6
    %v255 = vrot.slane %v55, 7
    %v256 = vrot.slane %v56, 1
    %v257 = vrot.slane %v56, 2
    %v258 = vrot.slane %v56, 3
    %v259 = vrot.slane %v56, 4
    %v260 = vrot.slane %v56, 5
    %v261 = vrot.slane %v56, 6
    %v262 = vrot.slane %v56, 7
    %v263 = vrot.slane %v57, 1
    %v264 = vrot.slane %v57, 2
    %v265 = vrot.slane %v57, 3
    %v266 = vrot.slane %v57, 4
    %v267 = vrot.slane %v57, 5
    %v268 = vrot.slane %v57, 6
    %v269 = vrot.slane %v57, 7
    %v270 = vrot.slane %v58, 1
    %v271 = vrot.slane %v58, 2
    %v272 = vrot.slane %v58, 3
    %v273 = vrot.slane %v58, 4
    %v274 = vrot.slane %v58, 5
    %v275 = vrot.slane %v58, 6
    %v276 = vrot.slane %v58, 7
    %v277 = vrot.slane %v59, 1
    %v278 = vrot.slane %v59, 2
    %v279 = vrot.slane %v59, 3
    %v280 = vrot.slane %v59, 4
    %v281 = vrot.slane %v59, 5
    %v282 = vrot.slane %v59, 6
    %v283 = vrot.slane %v59, 7
    %v284 = vrot.slane %v60, 1
    %v285 = vrot.slane %v60, 2
    %v286 = vrot.slane %v60, 3
    %v287 = vrot.slane %v60, 4
    %v288 = vrot.slane %v60, 5
    %v289 = vrot.slane %v60, 6
    %v290 = vrot.slane %v60, 7
    %v291 = vrot.slane %v61, 1
    %v292 = vrot.slane %v61, 2
    %v293 = vrot.slane %v61, 3
    %v294 = vrot.slane %v61, 4
    %v295 = vrot.slane %v61, 5
    %v296 = vrot.slane %v61, 6
    %v297 = vrot.slane %v61, 7
    %v298 = vrot.slane %v62, 1
    %v299 = vrot.slane %v62, 2
    %v300 = vrot.slane %v62, 3
    %v301 = vrot.slane %v62, 4
    %v302 = vrot.slane %v62, 5
    %v303 = vrot.slane %v62, 6
    %v304 = vrot.slane %v62, 7
    %v305 = vrot.slane %v63, 1
    %v306 = vrot.slane %v63, 2
    %v307 = vrot.slane %v63, 3
    %v308 = vrot.slane %v63, 4
    %v309 = vrot.slane %v63, 5
    %v310 = vrot.slane %v63, 6
    %v311 = vrot.slane %v63, 7
    %v312 = vrot.slane %v64, 1
    %v313 = vrot.slane %v64, 2
    %v314 = vrot.slane %v64, 3
    %v315 = vrot.slane %v64, 4
    %v316 = vrot.slane %v64, 5
    %v317 = vrot.slane %v64, 6
    %v318 = vrot.slane %v64, 7
    %v319 = vrot.slane %v65, 1
    %v320 = vrot.slane %v65, 2
    %v321 = vrot.slane %v65, 3
    %v322 = vrot.slane %v65, 4
    %v323 = vrot.slane %v65, 5
    %v324 = vrot.slane %v65, 6
    %v325 = vrot.slane %v65, 7
    %v326 = vrot.slane %v66, 1
    %v327 = vrot.slane %v66, 2
    %v328 = vrot.slane %v66, 3
    %v329 = vrot.slane %v66, 4
    %v330 = vrot.slane %v66, 5
    %v331 = vrot.slane %v66, 6
    %v332 = vrot.slane %v66, 7
    %v333 = vrot.slane %v67, 1
    %v334 = vrot.slane %v67, 2
    %v335 = vrot.slane %v67, 3
    %v336 = vrot.slane %v67, 4
    %v337 = vrot.slane %v67, 5
    %v338 = vrot.slane %v67, 6
    %v339 = vrot.slane %v67, 7
    %v340 = vrot.slane %v68, 1
    %v341 = vrot.slane %v68, 2
    %v342 = vrot.slane %v68, 3
    %v343 = vrot.slane %v68, 4
    %v344 = vrot.slane %v68, 5
    %v345 = vrot.slane %v68, 6
    %v346 = vrot.slane %v68, 7
    %v347 = vrot.slane %v69, 1
    %v348 = vrot.slane %v69, 2
    %v349 = vrot.slane %v69, 3
    %v350 = vrot.slane %v69, 4
    %v351 = vrot.slane %v69, 5
    %v352 = vrot.slane %v69, 6
    %v353 = vrot.slane %v69, 7
    %v354 = vrot.slane %v71, 1
    %v355 = vrot.slane %v71, 2
    %v356 = vrot.slane %v71, 3
    %v357 = vrot.slane %v71, 4
    %v358 = vrot.slane %v71, 5
    %v359 = vrot.slane %v71, 6
    %v360 = vrot.slane %v71, 7
    %v361 = vrot.slane %v72, 1
    %v362 = vrot.slane %v72, 2
    %v363 = vrot.slane %v72, 3
    %v364 = vrot.slane %v72, 4
    %v365 = vrot.slane %v72, 5
    %v366 = vrot.slane %v72, 6
    %v367 = vrot.slane %v72, 7
    %v368 = vrot.slane %v73, 1
    %v369 = vrot.slane %v73, 2
    %v370 = vrot.slane %v73, 3
    %v371 = vrot.slane %v73, 4
    %v372 = vrot.slane %v73, 5
    %v373 = vrot.slane %v73, 6
    %v374 = vrot.slane %v73, 7
    %v375 = vrot.slane %v74, 1
    %v376 = vrot.slane %v74, 2
    %v377 = vrot.slane %v74, 3
    %v378 = vrot.slane %v74, 4
    %v379 = vrot.slane %v74, 5
    %v380 = vrot.slane %v74, 6
    %v381 = vrot.slane %v74, 7
    %v382 = vrot.slane %v75, 1
    %v383 = vrot.slane %v75, 2
    %v384 = vrot.slane %v75, 3
    %v385 = vrot.slane %v75, 4
    %v386 = vrot.slane %v75, 5
    %v387 = vrot.slane %v75, 6
    %v388 = vrot.slane %v75, 7
    %v389 = vrot.slane %v76, 1
    %v390 = vrot.slane %v76, 2
    %v391 = vrot.slane %v76, 3
    %v392 = vrot.slane %v76, 4
    %v393 = vrot.slane %v76, 5
    %v394 = vrot.slane %v76, 6
    %v395 = vrot.slane %v76, 7
    %v396 = vrot.slane %v77, 1
    %v397 = vrot.slane %v77, 2
    %v398 = vrot.slane %v77, 3
    %v399 = vrot.slane %v77, 4
    %v400 = vrot.slane %v77, 5
    %v401 = vrot.slane %v77, 6
    %v402 = vrot.slane %v77, 7
    %v403 = vrot.slane %v78, 1
    %v404 = vrot.slane %v78, 2
    %v405 = vrot.slane %v78, 3
    %v406 = vrot.slane %v78, 4
    %v407 = vrot.slane %v78, 5
    %v408 = vrot.slane %v78, 6
    %v409 = vrot.slane %v78, 7
    %v410 = vrot.slane %v79, 1
    %v411 = vrot.slane %v79, 2
    %v412 = vrot.slane %v79, 3
    %v413 = vrot.slane %v79, 4
    %v414 = vrot.slane %v79, 5
    %v415 = vrot.slane %v79, 6
    %v416 = vrot.slane %v79, 7
    %v417 = vrot.slane %v80, 1
    %v418 = vrot.slane %v80, 2
    %v419 = vrot.slane %v80, 3
    %v420 = vrot.slane %v80, 4
    %v421 = vrot.slane %v80, 5
    %v422 = vrot.slane %v80, 6
    %v423 = vrot.slane %v80, 7
    %v424 = vrot.slane %v81, 1
    %v425 = vrot.slane %v81, 2
    %v426 = vrot.slane %v81, 3
    %v427 = vrot.slane %v81, 4
    %v428 = vrot.slane %v81, 5
    %v429 = vrot.slane %v81, 6
    %v430 = vrot.slane %v81, 7
    %v431 = vrot.slane %v82, 1
    %v432 = vrot.slane %v82, 2
    %v433 = vrot.slane %v82, 3
    %v434 = vrot.slane %v82, 4
    %v435 = vrot.slane %v82, 5
    %v436 = vrot.slane %v82, 6
    %v437 = vrot.slane %v82, 7
    %v438 = vrot.slane %v83, 1
    %v439 = vrot.slane %v83, 2
    %v440 = vrot.slane %v83, 3
    %v441 = vrot.slane %v83, 4
    %v442 = vrot.slane %v83, 5
    %v443 = vrot.slane %v83, 6
    %v444 = vrot.slane %v83, 7
    %v445 = vrot.slane %v84, 1
    %v446 = vrot.slane %v84, 2
    %v447 = vrot.slane %v84, 3
    %v448 = vrot.slane %v84, 4
    %v449 = vrot.slane %v84, 5
    %v450 = vrot.slane %v84, 6
    %v451 = vrot.slane %v84, 7
    %v452 = vrot.slane %v85, 1
    %v453 = vrot.slane %v85, 2
    %v454 = vrot.slane %v85, 3
    %v455 = vrot.slane %v85, 4
    %v456 = vrot.slane %v85, 5
    %v457 = vrot.slane %v85, 6
    %v458 = vrot.slane %v85, 7
    %v459 = vrot.slane %v86, 1
    %v460 = vrot.slane %v86, 2
    %v461 = vrot.slane %v86, 3
    %v462 = vrot.slane %v86, 4
    %v463 = vrot.slane %v86, 5
    %v464 = vrot.slane %v86, 6
    %v465 = vrot.slane %v86, 7
    %v466 = vrot.slane %v87, 1
    %v467 = vrot.slane %v87, 2
    %v468 = vrot.slane %v87, 3
    %v469 = vrot.slane %v87, 4
    %v470 = vrot.slane %v87, 5
    %v471 = vrot.slane %v87, 6
    %v472 = vrot.slane %v87, 7
    %v473 = vrot.slane %v88, 1
    %v474 = vrot.slane %v88, 2
    %v475 = vrot.slane %v88, 3
    %v476 = vrot.slane %v88, 4
    %v477 = vrot.slane %v88, 5
    %v478 = vrot.slane %v88, 6
    %v479 = vrot.slane %v88, 7
    %v480 = vrot.slane %v89, 1
    %v481 = vrot.slane %v89, 2
    %v482 = vrot.slane %v89, 3
    %v483 = vrot.slane %v89, 4
    %v484 = vrot.slane %v89, 5
    %v485 = vrot.slane %v89, 6
    %v486 = vrot.slane %v89, 7
    %v487 = vrot.slane %v90, 1
    %v488 = vrot.slane %v90, 2
    %v489 = vrot.slane %v90, 3
    %v490 = vrot.slane %v90, 4
    %v491 = vrot.slane %v90, 5
    %v492 = vrot.slane %v90, 6
    %v493 = vrot.slane %v90, 7
    %v494 = vrot.slane %v91, 1
    %v495 = vrot.slane %v91, 2
    %v496 = vrot.slane %v91, 3
    %v497 = vrot.slane %v91, 4
    %v498 = vrot.slane %v91, 5
    %v499 = vrot.slane %v91, 6
    %v500 = vrot.slane %v91, 7
    %v501 = vrot.slane %v92, 1
    %v502 = vrot.slane %v92, 2
    %v503 = vrot.slane %v92, 3
    %v504 = vrot.slane %v92, 4
    %v505 = vrot.slane %v92, 5
    %v506 = vrot.slane %v92, 6
    %v507 = vrot.slane %v92, 7
    %v508 = vrot.slane %v93, 1
    %v509 = vrot.slane %v93, 2
    %v510 = vrot.slane %v93, 3
    %v511 = vrot.slane %v93, 4
    %v512 = vrot.slane %v93, 5
    %v513 = vrot.slane %v93, 6
    %v514 = vrot.slane %v93, 7
    %v515 = vrot.slane %v94, 1
    %v516 = vrot.slane %v94, 2
    %v517 = vrot.slane %v94, 3
    %v518 = vrot.slane %v94, 4
    %v519 = vrot.slane %v94, 5
    %v520 = vrot.slane %v94, 6
    %v521 = vrot.slane %v94, 7
    %v522 = vrot.slane %v95, 1
    %v523 = vrot.slane %v95, 2
    %v524 = vrot.slane %v95, 3
    %v525 = vrot.slane %v95, 4
    %v526 = vrot.slane %v95, 5
    %v527 = vrot.slane %v95, 6
    %v528 = vrot.slane %v95, 7
    %v529 = vrot.slane %v96, 1
    %v530 = vrot.slane %v96, 2
    %v531 = vrot.slane %v96, 3
    %v532 = vrot.slane %v96, 4
    %v533 = vrot.slane %v96, 5
    %v534 = vrot.slane %v96, 6
    %v535 = vrot.slane %v96, 7
    %v536 = vrot.slane %v97, 1
    %v537 = vrot.slane %v97, 2
    %v538 = vrot.slane %v97, 3
    %v539 = vrot.slane %v97, 4
    %v540 = vrot.slane %v97, 5
    %v541 = vrot.slane %v97, 6
    %v542 = vrot.slane %v97, 7
    %v543 = vrot.slane %v98, 1
    %v544 = vrot.slane %v98, 2
    %v545 = vrot.slane %v98, 3
    %v546 = vrot.slane %v98, 4
    %v547 = vrot.slane %v98, 5
    %v548 = vrot.slane %v98, 6
    %v549 = vrot.slane %v98, 7
    %v550 = vld [vmem:[%s1] sm:$0xf]
    %551 = vst [vmem:[#allocation1] ss:$9 sm:$0xff] %v42
    %s552 = scalar_lea.vmem [#allocation1], 1
    %553 = vst [vmem:[%s552] ss:$9 sm:$0xff] %v158
    %s554 = scalar_lea.vmem [#allocation1], 2
    %555 = vst [vmem:[%s554] ss:$9 sm:$0xff] %v159
    %s556 = scalar_lea.vmem [#allocation1], 3
    %557 = vst [vmem:[%s556] ss:$9 sm:$0xff] %v160
    %s558 = scalar_lea.vmem [#allocation1], 4
    %559 = vst [vmem:[%s558] ss:$9 sm:$0xff] %v161
    %s560 = scalar_lea.vmem [#allocation1], 5
    %561 = vst [vmem:[%s560] ss:$9 sm:$0xff] %v162
    %s562 = scalar_lea.vmem [#allocation1], 6
    %563 = vst [vmem:[%s562] ss:$9 sm:$0xff] %v163
    %s564 = scalar_lea.vmem [#allocation1], 7
    %565 = vst [vmem:[%s564] ss:$9 sm:$0xff] %v164
    %v566 = vld [vmem:[#allocation1] sm:$0xff]
    %567 = vst [vmem:[#allocation1] ss:$9 sm:$0xff] %v43
    %568 = vst [vmem:[%s552] ss:$9 sm:$0xff] %v165
    %569 = vst [vmem:[%s554] ss:$9 sm:$0xff] %v166
    %570 = vst [vmem:[%s556] ss:$9 sm:$0xff] %v167
    %571 = vst [vmem:[%s558] ss:$9 sm:$0xff] %v168
    %572 = vst [vmem:[%s560] ss:$9 sm:$0xff] %v169
    %573 = vst [vmem:[%s562] ss:$9 sm:$0xff] %v170
    %574 = vst [vmem:[%s564] ss:$9 sm:$0xff] %v171
    %v575 = vld [vmem:[#allocation1] sm:$0xff]
    %576 = vst [vmem:[#allocation1] ss:$9 sm:$0xff] %v44
    %577 = vst [vmem:[%s552] ss:$9 sm:$0xff] %v172
    %578 = vst [vmem:[%s554] ss:$9 sm:$0xff] %v173
    %579 = vst [vmem:[%s556] ss:$9 sm:$0xff] %v174
    %580 = vst [vmem:[%s558] ss:$9 sm:$0xff] %v175
    %581 = vst [vmem:[%s560] ss:$9 sm:$0xff] %v176
    %582 = vst [vmem:[%s562] ss:$9 sm:$0xff] %v177
    %583 = vst [vmem:[%s564] ss:$9 sm:$0xff] %v178
    %v584 = vld [vmem:[#allocation1] sm:$0xff]
    %585 = vst [vmem:[#allocation1] ss:$9 sm:$0xff] %v45
    %586 = vst [vmem:[%s552] ss:$9 sm:$0xff] %v179
    %587 = vst [vmem:[%s554] ss:$9 sm:$0xff] %v180
    %588 = vst [vmem:[%s556] ss:$9 sm:$0xff] %v181
    %589 = vst [vmem:[%s558] ss:$9 sm:$0xff] %v182
    %590 = vst [vmem:[%s560] ss:$9 sm:$0xff] %v183
    %591 = vst [vmem:[%s562] ss:$9 sm:$0xff] %v184
    %592 = vst [vmem:[%s564] ss:$9 sm:$0xff] %v185
    %v593 = vld [vmem:[#allocation1] sm:$0xff]
    %594 = vst [vmem:[#allocation1] ss:$9 sm:$0xff] %v46
    %595 = vst [vmem:[%s552] ss:$9 sm:$0xff] %v186
    %596 = vst [vmem:[%s554] ss:$9 sm:$0xff] %v187
    %597 = vst [vmem:[%s556] ss:$9 sm:$0xff] %v188
    %598 = vst [vmem:[%s558] ss:$9 sm:$0xff] %v189
    %599 = vst [vmem:[%s560] ss:$9 sm:$0xff] %v190
    %600 = vst [vmem:[%s562] ss:$9 sm:$0xff] %v191
    %601 = vst [vmem:[%s564] ss:$9 sm:$0xff] %v192
    %v602 = vld [vmem:[#allocation1] sm:$0xff]
    %603 = vst [vmem:[#allocation1] ss:$9 sm:$0xff] %v47
    %604 = vst [vmem:[%s552] ss:$9 sm:$0xff] %v193
    %605 = vst [vmem:[%s554] ss:$9 sm:$0xff] %v194
    %606 = vst [vmem:[%s556] ss:$9 sm:$0xff] %v195
    %607 = vst [vmem:[%s558] ss:$9 sm:$0xff] %v196
    %608 = vst [vmem:[%s560] ss:$9 sm:$0xff] %v197
    %609 = vst [vmem:[%s562] ss:$9 sm:$0xff] %v198
    %610 = vst [vmem:[%s564] ss:$9 sm:$0xff] %v199
    %v611 = vld [vmem:[#allocation1] sm:$0xff]
    %612 = vst [vmem:[#allocation1] ss:$9 sm:$0xff] %v48
    %613 = vst [vmem:[%s552] ss:$9 sm:$0xff] %v200
    %614 = vst [vmem:[%s554] ss:$9 sm:$0xff] %v201
    %615 = vst [vmem:[%s556] ss:$9 sm:$0xff] %v202
    %616 = vst [vmem:[%s558] ss:$9 sm:$0xff] %v203
    %617 = vst [vmem:[%s560] ss:$9 sm:$0xff] %v204
    %618 = vst [vmem:[%s562] ss:$9 sm:$0xff] %v205
    %619 = vst [vmem:[%s564] ss:$9 sm:$0xff] %v206
    %v620 = vld [vmem:[#allocation1] sm:$0xff]
    %621 = vst [vmem:[#allocation1] ss:$9 sm:$0xff] %v49
    %622 = vst [vmem:[%s552] ss:$9 sm:$0xff] %v207
    %623 = vst [vmem:[%s554] ss:$9 sm:$0xff] %v208
    %624 = vst [vmem:[%s556] ss:$9 sm:$0xff] %v209
    %625 = vst [vmem:[%s558] ss:$9 sm:$0xff] %v210
    %626 = vst [vmem:[%s560] ss:$9 sm:$0xff] %v211
    %627 = vst [vmem:[%s562] ss:$9 sm:$0xff] %v212
    %628 = vst [vmem:[%s564] ss:$9 sm:$0xff] %v213
    %v629 = vld [vmem:[#allocation1] sm:$0xff]
    %630 = vst [vmem:[#allocation1] ss:$9 sm:$0xff] %v50
    %631 = vst [vmem:[%s552] ss:$9 sm:$0xff] %v214
    %632 = vst [vmem:[%s554] ss:$9 sm:$0xff] %v215
    %633 = vst [vmem:[%s556] ss:$9 sm:$0xff] %v216
    %634 = vst [vmem:[%s558] ss:$9 sm:$0xff] %v217
    %635 = vst [vmem:[%s560] ss:$9 sm:$0xff] %v218
    %636 = vst [vmem:[%s562] ss:$9 sm:$0xff] %v219
    %637 = vst [vmem:[%s564] ss:$9 sm:$0xff] %v220
    %v638 = vld [vmem:[#allocation1] sm:$0xff]
    %639 = vst [vmem:[#allocation1] ss:$9 sm:$0xff] %v51
    %640 = vst [vmem:[%s552] ss:$9 sm:$0xff] %v221
    %641 = vst [vmem:[%s554] ss:$9 sm:$0xff] %v222
    %642 = vst [vmem:[%s556] ss:$9 sm:$0xff] %v223
    %643 = vst [vmem:[%s558] ss:$9 sm:$0xff] %v224
    %644 = vst [vmem:[%s560] ss:$9 sm:$0xff] %v225
    %645 = vst [vmem:[%s562] ss:$9 sm:$0xff] %v226
    %646 = vst [vmem:[%s564] ss:$9 sm:$0xff] %v227
    %v647 = vld [vmem:[#allocation1] sm:$0xff]
    %648 = vst [vmem:[#allocation1] ss:$9 sm:$0xff] %v52
    %649 = vst [vmem:[%s552] ss:$9 sm:$0xff] %v228
    %650 = vst [vmem:[%s554] ss:$9 sm:$0xff] %v229
    %651 = vst [vmem:[%s556] ss:$9 sm:$0xff] %v230
    %652 = vst [vmem:[%s558] ss:$9 sm:$0xff] %v231
    %653 = vst [vmem:[%s560] ss:$9 sm:$0xff] %v232
    %654 = vst [vmem:[%s562] ss:$9 sm:$0xff] %v233
    %655 = vst [vmem:[%s564] ss:$9 sm:$0xff] %v234
    %v656 = vld [vmem:[#allocation1] sm:$0xff]
    %657 = vst [vmem:[#allocation1] ss:$9 sm:$0xff] %v53
    %658 = vst [vmem:[%s552] ss:$9 sm:$0xff] %v235
    %659 = vst [vmem:[%s554] ss:$9 sm:$0xff] %v236
    %660 = vst [vmem:[%s556] ss:$9 sm:$0xff] %v237
    %661 = vst [vmem:[%s558] ss:$9 sm:$0xff] %v238
    %662 = vst [vmem:[%s560] ss:$9 sm:$0xff] %v239
    %663 = vst [vmem:[%s562] ss:$9 sm:$0xff] %v240
    %664 = vst [vmem:[%s564] ss:$9 sm:$0xff] %v241
    %v665 = vld [vmem:[#allocation1] sm:$0xff]
    %666 = vst [vmem:[#allocation1] ss:$9 sm:$0xff] %v54
    %667 = vst [vmem:[%s552] ss:$9 sm:$0xff] %v242
    %668 = vst [vmem:[%s554] ss:$9 sm:$0xff] %v243
    %669 = vst [vmem:[%s556] ss:$9 sm:$0xff] %v244
    %670 = vst [vmem:[%s558] ss:$9 sm:$0xff] %v245
    %671 = vst [vmem:[%s560] ss:$9 sm:$0xff] %v246
    %672 = vst [vmem:[%s562] ss:$9 sm:$0xff] %v247
    %673 = vst [vmem:[%s564] ss:$9 sm:$0xff] %v248
    %v674 = vld [vmem:[#allocation1] sm:$0xff]
    %675 = vst [vmem:[#allocation1] ss:$9 sm:$0xff] %v55
    %676 = vst [vmem:[%s552] ss:$9 sm:$0xff] %v249
    %677 = vst [vmem:[%s554] ss:$9 sm:$0xff] %v250
    %678 = vst [vmem:[%s556] ss:$9 sm:$0xff] %v251
    %679 = vst [vmem:[%s558] ss:$9 sm:$0xff] %v252
    %680 = vst [vmem:[%s560] ss:$9 sm:$0xff] %v253
    %681 = vst [vmem:[%s562] ss:$9 sm:$0xff] %v254
    %682 = vst [vmem:[%s564] ss:$9 sm:$0xff] %v255
    %v683 = vld [vmem:[#allocation1] sm:$0xff]
    %684 = vst [vmem:[#allocation1] ss:$9 sm:$0xff] %v56
    %685 = vst [vmem:[%s552] ss:$9 sm:$0xff] %v256
    %686 = vst [vmem:[%s554] ss:$9 sm:$0xff] %v257
    %687 = vst [vmem:[%s556] ss:$9 sm:$0xff] %v258
    %688 = vst [vmem:[%s558] ss:$9 sm:$0xff] %v259
    %689 = vst [vmem:[%s560] ss:$9 sm:$0xff] %v260
    %690 = vst [vmem:[%s562] ss:$9 sm:$0xff] %v261
    %691 = vst [vmem:[%s564] ss:$9 sm:$0xff] %v262
    %v692 = vld [vmem:[#allocation1] sm:$0xff]
    %693 = vst [vmem:[#allocation1] ss:$9 sm:$0xff] %v57
    %694 = vst [vmem:[%s552] ss:$9 sm:$0xff] %v263
    %695 = vst [vmem:[%s554] ss:$9 sm:$0xff] %v264
    %696 = vst [vmem:[%s556] ss:$9 sm:$0xff] %v265
    %697 = vst [vmem:[%s558] ss:$9 sm:$0xff] %v266
    %698 = vst [vmem:[%s560] ss:$9 sm:$0xff] %v267
    %699 = vst [vmem:[%s562] ss:$9 sm:$0xff] %v268
    %700 = vst [vmem:[%s564] ss:$9 sm:$0xff] %v269
    %v701 = vld [vmem:[#allocation1] sm:$0xff]
    %702 = vst [vmem:[#allocation1] ss:$9 sm:$0xff] %v58
    %703 = vst [vmem:[%s552] ss:$9 sm:$0xff] %v270
    %704 = vst [vmem:[%s554] ss:$9 sm:$0xff] %v271
    %705 = vst [vmem:[%s556] ss:$9 sm:$0xff] %v272
    %706 = vst [vmem:[%s558] ss:$9 sm:$0xff] %v273
    %707 = vst [vmem:[%s560] ss:$9 sm:$0xff] %v274
    %708 = vst [vmem:[%s562] ss:$9 sm:$0xff] %v275
    %709 = vst [vmem:[%s564] ss:$9 sm:$0xff] %v276
    %v710 = vld [vmem:[#allocation1] sm:$0xff]
    %711 = vst [vmem:[#allocation1] ss:$9 sm:$0xff] %v59
    %712 = vst [vmem:[%s552] ss:$9 sm:$0xff] %v277
    %713 = vst [vmem:[%s554] ss:$9 sm:$0xff] %v278
    %714 = vst [vmem:[%s556] ss:$9 sm:$0xff] %v279
    %715 = vst [vmem:[%s558] ss:$9 sm:$0xff] %v280
    %716 = vst [vmem:[%s560] ss:$9 sm:$0xff] %v281
    %717 = vst [vmem:[%s562] ss:$9 sm:$0xff] %v282
    %718 = vst [vmem:[%s564] ss:$9 sm:$0xff] %v283
    %v719 = vld [vmem:[#allocation1] sm:$0xff]
    %720 = vst [vmem:[#allocation1] ss:$9 sm:$0xff] %v60
    %721 = vst [vmem:[%s552] ss:$9 sm:$0xff] %v284
    %722 = vst [vmem:[%s554] ss:$9 sm:$0xff] %v285
    %723 = vst [vmem:[%s556] ss:$9 sm:$0xff] %v286
    %724 = vst [vmem:[%s558] ss:$9 sm:$0xff] %v287
    %725 = vst [vmem:[%s560] ss:$9 sm:$0xff] %v288
    %726 = vst [vmem:[%s562] ss:$9 sm:$0xff] %v289
    %727 = vst [vmem:[%s564] ss:$9 sm:$0xff] %v290
    %v728 = vld [vmem:[#allocation1] sm:$0xff]
    %729 = vst [vmem:[#allocation1] ss:$9 sm:$0xff] %v61
    %730 = vst [vmem:[%s552] ss:$9 sm:$0xff] %v291
    %731 = vst [vmem:[%s554] ss:$9 sm:$0xff] %v292
    %732 = vst [vmem:[%s556] ss:$9 sm:$0xff] %v293
    %733 = vst [vmem:[%s558] ss:$9 sm:$0xff] %v294
    %734 = vst [vmem:[%s560] ss:$9 sm:$0xff] %v295
    %735 = vst [vmem:[%s562] ss:$9 sm:$0xff] %v296
    %736 = vst [vmem:[%s564] ss:$9 sm:$0xff] %v297
    %v737 = vld [vmem:[#allocation1] sm:$0xff]
    %738 = vst [vmem:[#allocation1] ss:$9 sm:$0xff] %v62
    %739 = vst [vmem:[%s552] ss:$9 sm:$0xff] %v298
    %740 = vst [vmem:[%s554] ss:$9 sm:$0xff] %v299
    %741 = vst [vmem:[%s556] ss:$9 sm:$0xff] %v300
    %742 = vst [vmem:[%s558] ss:$9 sm:$0xff] %v301
    %743 = vst [vmem:[%s560] ss:$9 sm:$0xff] %v302
    %744 = vst [vmem:[%s562] ss:$9 sm:$0xff] %v303
    %745 = vst [vmem:[%s564] ss:$9 sm:$0xff] %v304
    %v746 = vld [vmem:[#allocation1] sm:$0xff]
    %747 = vst [vmem:[#allocation1] ss:$9 sm:$0xff] %v63
    %748 = vst [vmem:[%s552] ss:$9 sm:$0xff] %v305
    %749 = vst [vmem:[%s554] ss:$9 sm:$0xff] %v306
    %750 = vst [vmem:[%s556] ss:$9 sm:$0xff] %v307
    %751 = vst [vmem:[%s558] ss:$9 sm:$0xff] %v308
    %752 = vst [vmem:[%s560] ss:$9 sm:$0xff] %v309
    %753 = vst [vmem:[%s562] ss:$9 sm:$0xff] %v310
    %754 = vst [vmem:[%s564] ss:$9 sm:$0xff] %v311
    %v755 = vld [vmem:[#allocation1] sm:$0xff]
    %756 = vst [vmem:[#allocation1] ss:$9 sm:$0xff] %v64
    %757 = vst [vmem:[%s552] ss:$9 sm:$0xff] %v312
    %758 = vst [vmem:[%s554] ss:$9 sm:$0xff] %v313
    %759 = vst [vmem:[%s556] ss:$9 sm:$0xff] %v314
    %760 = vst [vmem:[%s558] ss:$9 sm:$0xff] %v315
    %761 = vst [vmem:[%s560] ss:$9 sm:$0xff] %v316
    %762 = vst [vmem:[%s562] ss:$9 sm:$0xff] %v317
    %763 = vst [vmem:[%s564] ss:$9 sm:$0xff] %v318
    %v764 = vld [vmem:[#allocation1] sm:$0xff]
    %765 = vst [vmem:[#allocation1] ss:$9 sm:$0xff] %v65
    %766 = vst [vmem:[%s552] ss:$9 sm:$0xff] %v319
    %767 = vst [vmem:[%s554] ss:$9 sm:$0xff] %v320
    %768 = vst [vmem:[%s556] ss:$9 sm:$0xff] %v321
    %769 = vst [vmem:[%s558] ss:$9 sm:$0xff] %v322
    %770 = vst [vmem:[%s560] ss:$9 sm:$0xff] %v323
    %771 = vst [vmem:[%s562] ss:$9 sm:$0xff] %v324
    %772 = vst [vmem:[%s564] ss:$9 sm:$0xff] %v325
    %v773 = vld [vmem:[#allocation1] sm:$0xff]
    %774 = vst [vmem:[#allocation1] ss:$9 sm:$0xff] %v66
    %775 = vst [vmem:[%s552] ss:$9 sm:$0xff] %v326
    %776 = vst [vmem:[%s554] ss:$9 sm:$0xff] %v327
    %777 = vst [vmem:[%s556] ss:$9 sm:$0xff] %v328
    %778 = vst [vmem:[%s558] ss:$9 sm:$0xff] %v329
    %779 = vst [vmem:[%s560] ss:$9 sm:$0xff] %v330
    %780 = vst [vmem:[%s562] ss:$9 sm:$0xff] %v331
    %781 = vst [vmem:[%s564] ss:$9 sm:$0xff] %v332
    %v782 = vld [vmem:[#allocation1] sm:$0xff]
    %783 = vst [vmem:[#allocation1] ss:$9 sm:$0xff] %v67
    %784 = vst [vmem:[%s552] ss:$9 sm:$0xff] %v333
    %785 = vst [vmem:[%s554] ss:$9 sm:$0xff] %v334
    %786 = vst [vmem:[%s556] ss:$9 sm:$0xff] %v335
    %787 = vst [vmem:[%s558] ss:$9 sm:$0xff] %v336
    %788 = vst [vmem:[%s560] ss:$9 sm:$0xff] %v337
    %789 = vst [vmem:[%s562] ss:$9 sm:$0xff] %v338
    %790 = vst [vmem:[%s564] ss:$9 sm:$0xff] %v339
    %v791 = vld [vmem:[#allocation1] sm:$0xff]
    %792 = vst [vmem:[#allocation1] ss:$9 sm:$0xff] %v68
    %793 = vst [vmem:[%s552] ss:$9 sm:$0xff] %v340
    %794 = vst [vmem:[%s554] ss:$9 sm:$0xff] %v341
    %795 = vst [vmem:[%s556] ss:$9 sm:$0xff] %v342
    %796 = vst [vmem:[%s558] ss:$9 sm:$0xff] %v343
    %797 = vst [vmem:[%s560] ss:$9 sm:$0xff] %v344
    %798 = vst [vmem:[%s562] ss:$9 sm:$0xff] %v345
    %799 = vst [vmem:[%s564] ss:$9 sm:$0xff] %v346
    %v800 = vld [vmem:[#allocation1] sm:$0xff]
    %801 = vst [vmem:[#allocation1] ss:$9 sm:$0xff] %v69
    %802 = vst [vmem:[%s552] ss:$9 sm:$0xff] %v347
    %803 = vst [vmem:[%s554] ss:$9 sm:$0xff] %v348
    %804 = vst [vmem:[%s556] ss:$9 sm:$0xff] %v349
    %805 = vst [vmem:[%s558] ss:$9 sm:$0xff] %v350
    %806 = vst [vmem:[%s560] ss:$9 sm:$0xff] %v351
    %807 = vst [vmem:[%s562] ss:$9 sm:$0xff] %v352
    %808 = vst [vmem:[%s564] ss:$9 sm:$0xff] %v353
    %v809 = vld [vmem:[#allocation1] sm:$0xff]
    %810 = vst [vmem:[#allocation1] ss:$9 sm:$0xff] %v70
    %811 = vst [vmem:[%s552] ss:$9 sm:$0xff] %v71
    %812 = vst [vmem:[%s554] ss:$9 sm:$0xff] %v354
    %813 = vst [vmem:[%s556] ss:$9 sm:$0xff] %v355
    %814 = vst [vmem:[%s558] ss:$9 sm:$0xff] %v356
    %815 = vst [vmem:[%s560] ss:$9 sm:$0xff] %v357
    %816 = vst [vmem:[%s562] ss:$9 sm:$0xff] %v358
    %817 = vst [vmem:[%s564] ss:$9 sm:$0xff] %v359
    %v818 = vld [vmem:[#allocation1] sm:$0xff]
    %819 = vst [vmem:[#allocation1] ss:$9 sm:$0xff] %v360
    %820 = vst [vmem:[%s552] ss:$9 sm:$0xff] %v72
    %821 = vst [vmem:[%s554] ss:$9 sm:$0xff] %v361
    %822 = vst [vmem:[%s556] ss:$9 sm:$0xff] %v362
    %823 = vst [vmem:[%s558] ss:$9 sm:$0xff] %v363
    %824 = vst [vmem:[%s560] ss:$9 sm:$0xff] %v364
    %825 = vst [vmem:[%s562] ss:$9 sm:$0xff] %v365
    %826 = vst [vmem:[%s564] ss:$9 sm:$0xff] %v366
    %v827 = vld [vmem:[#allocation1] sm:$0xff]
    %828 = vst [vmem:[#allocation1] ss:$9 sm:$0xff] %v367
    %829 = vst [vmem:[%s552] ss:$9 sm:$0xff] %v73
    %830 = vst [vmem:[%s554] ss:$9 sm:$0xff] %v368
    %831 = vst [vmem:[%s556] ss:$9 sm:$0xff] %v369
    %832 = vst [vmem:[%s558] ss:$9 sm:$0xff] %v370
    %833 = vst [vmem:[%s560] ss:$9 sm:$0xff] %v371
    %834 = vst [vmem:[%s562] ss:$9 sm:$0xff] %v372
    %835 = vst [vmem:[%s564] ss:$9 sm:$0xff] %v373
    %v836 = vld [vmem:[#allocation1] sm:$0xff]
    %837 = vst [vmem:[#allocation1] ss:$9 sm:$0xff] %v374
    %838 = vst [vmem:[%s552] ss:$9 sm:$0xff] %v74
    %839 = vst [vmem:[%s554] ss:$9 sm:$0xff] %v375
    %840 = vst [vmem:[%s556] ss:$9 sm:$0xff] %v376
    %841 = vst [vmem:[%s558] ss:$9 sm:$0xff] %v377
    %842 = vst [vmem:[%s560] ss:$9 sm:$0xff] %v378
    %843 = vst [vmem:[%s562] ss:$9 sm:$0xff] %v379
    %844 = vst [vmem:[%s564] ss:$9 sm:$0xff] %v380
    %v845 = vld [vmem:[#allocation1] sm:$0xff]
    %846 = vst [vmem:[#allocation1] ss:$9 sm:$0xff] %v381
    %847 = vst [vmem:[%s552] ss:$9 sm:$0xff] %v75
    %848 = vst [vmem:[%s554] ss:$9 sm:$0xff] %v382
    %849 = vst [vmem:[%s556] ss:$9 sm:$0xff] %v383
    %850 = vst [vmem:[%s558] ss:$9 sm:$0xff] %v384
    %851 = vst [vmem:[%s560] ss:$9 sm:$0xff] %v385
    %852 = vst [vmem:[%s562] ss:$9 sm:$0xff] %v386
    %853 = vst [vmem:[%s564] ss:$9 sm:$0xff] %v387
    %v854 = vld [vmem:[#allocation1] sm:$0xff]
    %855 = vst [vmem:[#allocation1] ss:$9 sm:$0xff] %v388
    %856 = vst [vmem:[%s552] ss:$9 sm:$0xff] %v76
    %857 = vst [vmem:[%s554] ss:$9 sm:$0xff] %v389
    %858 = vst [vmem:[%s556] ss:$9 sm:$0xff] %v390
    %859 = vst [vmem:[%s558] ss:$9 sm:$0xff] %v391
    %860 = vst [vmem:[%s560] ss:$9 sm:$0xff] %v392
    %861 = vst [vmem:[%s562] ss:$9 sm:$0xff] %v393
    %862 = vst [vmem:[%s564] ss:$9 sm:$0xff] %v394
    %v863 = vld [vmem:[#allocation1] sm:$0xff]
    %864 = vst [vmem:[#allocation1] ss:$9 sm:$0xff] %v395
    %865 = vst [vmem:[%s552] ss:$9 sm:$0xff] %v77
    %866 = vst [vmem:[%s554] ss:$9 sm:$0xff] %v396
    %867 = vst [vmem:[%s556] ss:$9 sm:$0xff] %v397
    %868 = vst [vmem:[%s558] ss:$9 sm:$0xff] %v398
    %869 = vst [vmem:[%s560] ss:$9 sm:$0xff] %v399
    %870 = vst [vmem:[%s562] ss:$9 sm:$0xff] %v400
    %871 = vst [vmem:[%s564] ss:$9 sm:$0xff] %v401
    %v872 = vld [vmem:[#allocation1] sm:$0xff]
    %873 = vst [vmem:[#allocation1] ss:$9 sm:$0xff] %v402
    %874 = vst [vmem:[%s552] ss:$9 sm:$0xff] %v78
    %875 = vst [vmem:[%s554] ss:$9 sm:$0xff] %v403
    %876 = vst [vmem:[%s556] ss:$9 sm:$0xff] %v404
    %877 = vst [vmem:[%s558] ss:$9 sm:$0xff] %v405
    %878 = vst [vmem:[%s560] ss:$9 sm:$0xff] %v406
    %879 = vst [vmem:[%s562] ss:$9 sm:$0xff] %v407
    %880 = vst [vmem:[%s564] ss:$9 sm:$0xff] %v408
    %v881 = vld [vmem:[#allocation1] sm:$0xff]
    %882 = vst [vmem:[#allocation1] ss:$9 sm:$0xff] %v409
    %883 = vst [vmem:[%s552] ss:$9 sm:$0xff] %v79
    %884 = vst [vmem:[%s554] ss:$9 sm:$0xff] %v410
    %885 = vst [vmem:[%s556] ss:$9 sm:$0xff] %v411
    %886 = vst [vmem:[%s558] ss:$9 sm:$0xff] %v412
    %887 = vst [vmem:[%s560] ss:$9 sm:$0xff] %v413
    %888 = vst [vmem:[%s562] ss:$9 sm:$0xff] %v414
    %889 = vst [vmem:[%s564] ss:$9 sm:$0xff] %v415
    %v890 = vld [vmem:[#allocation1] sm:$0xff]
    %891 = vst [vmem:[#allocation1] ss:$9 sm:$0xff] %v416
    %892 = vst [vmem:[%s552] ss:$9 sm:$0xff] %v80
    %893 = vst [vmem:[%s554] ss:$9 sm:$0xff] %v417
    %894 = vst [vmem:[%s556] ss:$9 sm:$0xff] %v418
    %895 = vst [vmem:[%s558] ss:$9 sm:$0xff] %v419
    %896 = vst [vmem:[%s560] ss:$9 sm:$0xff] %v420
    %897 = vst [vmem:[%s562] ss:$9 sm:$0xff] %v421
    %898 = vst [vmem:[%s564] ss:$9 sm:$0xff] %v422
    %v899 = vld [vmem:[#allocation1] sm:$0xff]
    %900 = vst [vmem:[#allocation1] ss:$9 sm:$0xff] %v423
    %901 = vst [vmem:[%s552] ss:$9 sm:$0xff] %v81
    %902 = vst [vmem:[%s554] ss:$9 sm:$0xff] %v424
    %903 = vst [vmem:[%s556] ss:$9 sm:$0xff] %v425
    %904 = vst [vmem:[%s558] ss:$9 sm:$0xff] %v426
    %905 = vst [vmem:[%s560] ss:$9 sm:$0xff] %v427
    %906 = vst [vmem:[%s562] ss:$9 sm:$0xff] %v428
    %907 = vst [vmem:[%s564] ss:$9 sm:$0xff] %v429
    %v908 = vld [vmem:[#allocation1] sm:$0xff]
    %909 = vst [vmem:[#allocation1] ss:$9 sm:$0xff] %v430
    %910 = vst [vmem:[%s552] ss:$9 sm:$0xff] %v82
    %911 = vst [vmem:[%s554] ss:$9 sm:$0xff] %v431
    %912 = vst [vmem:[%s556] ss:$9 sm:$0xff] %v432
    %913 = vst [vmem:[%s558] ss:$9 sm:$0xff] %v433
    %914 = vst [vmem:[%s560] ss:$9 sm:$0xff] %v434
    %915 = vst [vmem:[%s562] ss:$9 sm:$0xff] %v435
    %916 = vst [vmem:[%s564] ss:$9 sm:$0xff] %v436
    %v917 = vld [vmem:[#allocation1] sm:$0xff]
    %918 = vst [vmem:[#allocation1] ss:$9 sm:$0xff] %v437
    %919 = vst [vmem:[%s552] ss:$9 sm:$0xff] %v83
    %920 = vst [vmem:[%s554] ss:$9 sm:$0xff] %v438
    %921 = vst [vmem:[%s556] ss:$9 sm:$0xff] %v439
    %922 = vst [vmem:[%s558] ss:$9 sm:$0xff] %v440
    %923 = vst [vmem:[%s560] ss:$9 sm:$0xff] %v441
    %924 = vst [vmem:[%s562] ss:$9 sm:$0xff] %v442
    %925 = vst [vmem:[%s564] ss:$9 sm:$0xff] %v443
    %v926 = vld [vmem:[#allocation1] sm:$0xff]
    %927 = vst [vmem:[#allocation1] ss:$9 sm:$0xff] %v444
    %928 = vst [vmem:[%s552] ss:$9 sm:$0xff] %v84
    %929 = vst [vmem:[%s554] ss:$9 sm:$0xff] %v445
    %930 = vst [vmem:[%s556] ss:$9 sm:$0xff] %v446
    %931 = vst [vmem:[%s558] ss:$9 sm:$0xff] %v447
    %932 = vst [vmem:[%s560] ss:$9 sm:$0xff] %v448
    %933 = vst [vmem:[%s562] ss:$9 sm:$0xff] %v449
    %934 = vst [vmem:[%s564] ss:$9 sm:$0xff] %v450
    %v935 = vld [vmem:[#allocation1] sm:$0xff]
    %936 = vst [vmem:[#allocation1] ss:$9 sm:$0xff] %v451
    %937 = vst [vmem:[%s552] ss:$9 sm:$0xff] %v85
    %938 = vst [vmem:[%s554] ss:$9 sm:$0xff] %v452
    %939 = vst [vmem:[%s556] ss:$9 sm:$0xff] %v453
    %940 = vst [vmem:[%s558] ss:$9 sm:$0xff] %v454
    %941 = vst [vmem:[%s560] ss:$9 sm:$0xff] %v455
    %942 = vst [vmem:[%s562] ss:$9 sm:$0xff] %v456
    %943 = vst [vmem:[%s564] ss:$9 sm:$0xff] %v457
    %v944 = vld [vmem:[#allocation1] sm:$0xff]
    %945 = vst [vmem:[#allocation1] ss:$9 sm:$0xff] %v458
    %946 = vst [vmem:[%s552] ss:$9 sm:$0xff] %v86
    %947 = vst [vmem:[%s554] ss:$9 sm:$0xff] %v459
    %948 = vst [vmem:[%s556] ss:$9 sm:$0xff] %v460
    %949 = vst [vmem:[%s558] ss:$9 sm:$0xff] %v461
    %950 = vst [vmem:[%s560] ss:$9 sm:$0xff] %v462
    %951 = vst [vmem:[%s562] ss:$9 sm:$0xff] %v463
    %952 = vst [vmem:[%s564] ss:$9 sm:$0xff] %v464
    %v953 = vld [vmem:[#allocation1] sm:$0xff]
    %954 = vst [vmem:[#allocation1] ss:$9 sm:$0xff] %v465
    %955 = vst [vmem:[%s552] ss:$9 sm:$0xff] %v87
    %956 = vst [vmem:[%s554] ss:$9 sm:$0xff] %v466
    %957 = vst [vmem:[%s556] ss:$9 sm:$0xff] %v467
    %958 = vst [vmem:[%s558] ss:$9 sm:$0xff] %v468
    %959 = vst [vmem:[%s560] ss:$9 sm:$0xff] %v469
    %960 = vst [vmem:[%s562] ss:$9 sm:$0xff] %v470
    %961 = vst [vmem:[%s564] ss:$9 sm:$0xff] %v471
    %v962 = vld [vmem:[#allocation1] sm:$0xff]
    %963 = vst [vmem:[#allocation1] ss:$9 sm:$0xff] %v472
    %964 = vst [vmem:[%s552] ss:$9 sm:$0xff] %v88
    %965 = vst [vmem:[%s554] ss:$9 sm:$0xff] %v473
    %966 = vst [vmem:[%s556] ss:$9 sm:$0xff] %v474
    %967 = vst [vmem:[%s558] ss:$9 sm:$0xff] %v475
    %968 = vst [vmem:[%s560] ss:$9 sm:$0xff] %v476
    %969 = vst [vmem:[%s562] ss:$9 sm:$0xff] %v477
    %970 = vst [vmem:[%s564] ss:$9 sm:$0xff] %v478
    %v971 = vld [vmem:[#allocation1] sm:$0xff]
    %972 = vst [vmem:[#allocation1] ss:$9 sm:$0xff] %v479
    %973 = vst [vmem:[%s552] ss:$9 sm:$0xff] %v89
    %974 = vst [vmem:[%s554] ss:$9 sm:$0xff] %v480
    %975 = vst [vmem:[%s556] ss:$9 sm:$0xff] %v481
    %976 = vst [vmem:[%s558] ss:$9 sm:$0xff] %v482
    %977 = vst [vmem:[%s560] ss:$9 sm:$0xff] %v483
    %978 = vst [vmem:[%s562] ss:$9 sm:$0xff] %v484
    %979 = vst [vmem:[%s564] ss:$9 sm:$0xff] %v485
    %v980 = vld [vmem:[#allocation1] sm:$0xff]
    %981 = vst [vmem:[#allocation1] ss:$9 sm:$0xff] %v486
    %982 = vst [vmem:[%s552] ss:$9 sm:$0xff] %v90
    %983 = vst [vmem:[%s554] ss:$9 sm:$0xff] %v487
    %984 = vst [vmem:[%s556] ss:$9 sm:$0xff] %v488
    %985 = vst [vmem:[%s558] ss:$9 sm:$0xff] %v489
    %986 = vst [vmem:[%s560] ss:$9 sm:$0xff] %v490
    %987 = vst [vmem:[%s562] ss:$9 sm:$0xff] %v491
    %988 = vst [vmem:[%s564] ss:$9 sm:$0xff] %v492
    %v989 = vld [vmem:[#allocation1] sm:$0xff]
    %990 = vst [vmem:[#allocation1] ss:$9 sm:$0xff] %v493
    %991 = vst [vmem:[%s552] ss:$9 sm:$0xff] %v91
    %992 = vst [vmem:[%s554] ss:$9 sm:$0xff] %v494
    %993 = vst [vmem:[%s556] ss:$9 sm:$0xff] %v495
    %994 = vst [vmem:[%s558] ss:$9 sm:$0xff] %v496
    %995 = vst [vmem:[%s560] ss:$9 sm:$0xff] %v497
    %996 = vst [vmem:[%s562] ss:$9 sm:$0xff] %v498
    %997 = vst [vmem:[%s564] ss:$9 sm:$0xff] %v499
    %v998 = vld [vmem:[#allocation1] sm:$0xff]
    %999 = vst [vmem:[#allocation1] ss:$9 sm:$0xff] %v500
    %1000 = vst [vmem:[%s552] ss:$9 sm:$0xff] %v92
    %1001 = vst [vmem:[%s554] ss:$9 sm:$0xff] %v501
    %1002 = vst [vmem:[%s556] ss:$9 sm:$0xff] %v502
    %1003 = vst [vmem:[%s558] ss:$9 sm:$0xff] %v503
    %1004 = vst [vmem:[%s560] ss:$9 sm:$0xff] %v504
    %1005 = vst [vmem:[%s562] ss:$9 sm:$0xff] %v505
    %1006 = vst [vmem:[%s564] ss:$9 sm:$0xff] %v506
    %v1007 = vld [vmem:[#allocation1] sm:$0xff]
    %1008 = vst [vmem:[#allocation1] ss:$9 sm:$0xff] %v507
    %1009 = vst [vmem:[%s552] ss:$9 sm:$0xff] %v93
    %1010 = vst [vmem:[%s554] ss:$9 sm:$0xff] %v508
    %1011 = vst [vmem:[%s556] ss:$9 sm:$0xff] %v509
    %1012 = vst [vmem:[%s558] ss:$9 sm:$0xff] %v510
    %1013 = vst [vmem:[%s560] ss:$9 sm:$0xff] %v511
    %1014 = vst [vmem:[%s562] ss:$9 sm:$0xff] %v512
    %1015 = vst [vmem:[%s564] ss:$9 sm:$0xff] %v513
    %v1016 = vld [vmem:[#allocation1] sm:$0xff]
    %1017 = vst [vmem:[#allocation1] ss:$9 sm:$0xff] %v514
    %1018 = vst [vmem:[%s552] ss:$9 sm:$0xff] %v94
    %1019 = vst [vmem:[%s554] ss:$9 sm:$0xff] %v515
    %1020 = vst [vmem:[%s556] ss:$9 sm:$0xff] %v516
    %1021 = vst [vmem:[%s558] ss:$9 sm:$0xff] %v517
    %1022 = vst [vmem:[%s560] ss:$9 sm:$0xff] %v518
    %1023 = vst [vmem:[%s562] ss:$9 sm:$0xff] %v519
    %1024 = vst [vmem:[%s564] ss:$9 sm:$0xff] %v520
    %v1025 = vld [vmem:[#allocation1] sm:$0xff]
    %1026 = vst [vmem:[#allocation1] ss:$9 sm:$0xff] %v521
    %1027 = vst [vmem:[%s552] ss:$9 sm:$0xff] %v95
    %1028 = vst [vmem:[%s554] ss:$9 sm:$0xff] %v522
    %1029 = vst [vmem:[%s556] ss:$9 sm:$0xff] %v523
    %1030 = vst [vmem:[%s558] ss:$9 sm:$0xff] %v524
    %1031 = vst [vmem:[%s560] ss:$9 sm:$0xff] %v525
    %1032 = vst [vmem:[%s562] ss:$9 sm:$0xff] %v526
    %1033 = vst [vmem:[%s564] ss:$9 sm:$0xff] %v527
    %v1034 = vld [vmem:[#allocation1] sm:$0xff]
    %1035 = vst [vmem:[#allocation1] ss:$9 sm:$0xff] %v528
    %1036 = vst [vmem:[%s552] ss:$9 sm:$0xff] %v96
    %1037 = vst [vmem:[%s554] ss:$9 sm:$0xff] %v529
    %1038 = vst [vmem:[%s556] ss:$9 sm:$0xff] %v530
    %1039 = vst [vmem:[%s558] ss:$9 sm:$0xff] %v531
    %1040 = vst [vmem:[%s560] ss:$9 sm:$0xff] %v532
    %1041 = vst [vmem:[%s562] ss:$9 sm:$0xff] %v533
    %1042 = vst [vmem:[%s564] ss:$9 sm:$0xff] %v534
    %v1043 = vld [vmem:[#allocation1] sm:$0xff]
    %1044 = vst [vmem:[#allocation1] ss:$9 sm:$0xff] %v535
    %1045 = vst [vmem:[%s552] ss:$9 sm:$0xff] %v97
    %1046 = vst [vmem:[%s554] ss:$9 sm:$0xff] %v536
    %1047 = vst [vmem:[%s556] ss:$9 sm:$0xff] %v537
    %1048 = vst [vmem:[%s558] ss:$9 sm:$0xff] %v538
    %1049 = vst [vmem:[%s560] ss:$9 sm:$0xff] %v539
    %1050 = vst [vmem:[%s562] ss:$9 sm:$0xff] %v540
    %1051 = vst [vmem:[%s564] ss:$9 sm:$0xff] %v541
    %v1052 = vld [vmem:[#allocation1] sm:$0xff]
    %1053 = vst [vmem:[#allocation1] ss:$9 sm:$0xff] %v542
    %1054 = vst [vmem:[%s552] ss:$9 sm:$0xff] %v98
    %1055 = vst [vmem:[%s554] ss:$9 sm:$0xff] %v543
    %1056 = vst [vmem:[%s556] ss:$9 sm:$0xff] %v544
    %1057 = vst [vmem:[%s558] ss:$9 sm:$0xff] %v545
    %1058 = vst [vmem:[%s560] ss:$9 sm:$0xff] %v546
    %1059 = vst [vmem:[%s562] ss:$9 sm:$0xff] %v547
    %1060 = vst [vmem:[%s564] ss:$9 sm:$0xff] %v548
    %v1061 = vld [vmem:[#allocation1] sm:$0xff]
    %1062 = vst [vmem:[#allocation1] ss:$9 sm:$0xff] %v549
    %1063 = vst [vmem:[%s552] ss:$9 sm:$0xff] %v99
    %v1064 = vld [vmem:[#allocation1] sm:$0xff]
    %vm1065 = vcmask 31744
    %v1066 = vsel %vm1065, %v566, 0
    %v1068 = vsel %vm1065, %v575, 0
    %v1070 = vsel %vm1065, %v584, 0
    %v1072 = vsel %vm1065, %v593, 0
    %v1074 = vsel %vm1065, %v602, 0
    %v1076 = vsel %vm1065, %v611, 0
    %v1078 = vsel %vm1065, %v620, 0
    %v1080 = vsel %vm1065, %v629, 0
    %v1082 = vsel %vm1065, %v638, 0
    %v1084 = vsel %vm1065, %v647, 0
    %v1086 = vsel %vm1065, %v656, 0
    %v1088 = vsel %vm1065, %v665, 0
    %v1090 = vsel %vm1065, %v674, 0
    %v1092 = vsel %vm1065, %v683, 0
    %v1094 = vsel %vm1065, %v692, 0
    %v1096 = vsel %vm1065, %v701, 0
    %v1098 = vsel %vm1065, %v710, 0
    %v1100 = vsel %vm1065, %v719, 0
    %v1102 = vsel %vm1065, %v728, 0
    %v1104 = vsel %vm1065, %v737, 0
    %v1106 = vsel %vm1065, %v746, 0
    %v1108 = vsel %vm1065, %v755, 0
    %v1110 = vsel %vm1065, %v764, 0
    %v1112 = vsel %vm1065, %v773, 0
    %v1114 = vsel %vm1065, %v782, 0
    %v1116 = vsel %vm1065, %v791, 0
    %v1118 = vsel %vm1065, %v800, 0
    %v1120 = vsel %vm1065, %v809, 0
    %v1122 = vsel %vm1065, %v818, 0
    %v1124 = vsel %vm1065, %v827, 0
    %v1126 = vsel %vm1065, %v836, 0
    %v1128 = vsel %vm1065, %v845, 0
    %v1130 = vsel %vm1065, %v854, 0
    %v1132 = vsel %vm1065, %v863, 0
    %v1134 = vsel %vm1065, %v872, 0
    %v1136 = vsel %vm1065, %v881, 0
    %v1138 = vsel %vm1065, %v890, 0
    %v1140 = vsel %vm1065, %v899, 0
    %v1142 = vsel %vm1065, %v908, 0
    %v1144 = vsel %vm1065, %v917, 0
    %v1146 = vsel %vm1065, %v926, 0
    %v1148 = vsel %vm1065, %v935, 0
    %v1150 = vsel %vm1065, %v944, 0
    %v1152 = vsel %vm1065, %v953, 0
    %v1154 = vsel %vm1065, %v962, 0
    %v1156 = vsel %vm1065, %v971, 0
    %v1158 = vsel %vm1065, %v980, 0
    %v1160 = vsel %vm1065, %v989, 0
    %v1162 = vsel %vm1065, %v998, 0
    %v1164 = vsel %vm1065, %v1007, 0
    %v1166 = vsel %vm1065, %v1016, 0
    %v1168 = vsel %vm1065, %v1025, 0
    %v1170 = vsel %vm1065, %v1034, 0
    %v1172 = vsel %vm1065, %v1043, 0
    %v1174 = vsel %vm1065, %v1052, 0
    %v1176 = vsel %vm1065, %v1061, 0
    %v1178 = vsel %vm1065, %v1064, 0
    %vm1180 = vcmask 1043456
    %v1182 = vsel %vm1180, %v550, 0
    %1184 = vmatpush.msra.mxu0 0.0
    %1185 = vmatpush.msra.mxu0 0.0
    %1186 = vmatpush.msra.mxu0 0.0
    %1187 = vmatpush.msra.mxu0 0.0
    %1188 = vmatpush.msra.mxu0 0.0
    %1189 = vmatpush.msra.mxu0 0.0
    %1190 = vmatpush.msra.mxu0 0.0
    %1191 = vmatpush.msra.mxu0 0.0
    %1192 = vmatpush.msra.mxu0 0.0
    %1193 = vmatpush.msra.mxu0 0.0
    %1194 = vmatpush.msra.mxu0 0.0
    %1195 = vmatpush.msra.mxu0 0.0
    %1196 = vmatpush.msra.mxu0 0.0
    %1197 = vmatpush.msra.mxu0 0.0
    %1198 = vmatpush.msra.mxu0 0.0
    %1199 = vmatpush.msra.mxu0 %v1182
    %1200 = vmatmul.f32.gmra.mxu0 %v1066
    %v1201 = vpop.f32.mrf.mxu0
    %v1202 = vadd.f32 0.0, %v1201
    %1203 = vmatmul.f32.gmra.mxu0 %v1068
    %v1204 = vpop.f32.mrf.mxu0
    %v1205 = vadd.f32 0.0, %v1204
    %1206 = vmatmul.f32.gmra.mxu0 %v1070
    %v1207 = vpop.f32.mrf.mxu0
    %v1208 = vadd.f32 0.0, %v1207
    %1209 = vmatmul.f32.gmra.mxu0 %v1072
    %v1210 = vpop.f32.mrf.mxu0
    %v1211 = vadd.f32 0.0, %v1210
    %1212 = vmatmul.f32.gmra.mxu0 %v1074
    %v1213 = vpop.f32.mrf.mxu0
    %v1214 = vadd.f32 0.0, %v1213
    %1215 = vmatmul.f32.gmra.mxu0 %v1076
    %v1216 = vpop.f32.mrf.mxu0
    %v1217 = vadd.f32 0.0, %v1216
    %1218 = vmatmul.f32.gmra.mxu0 %v1078
    %v1219 = vpop.f32.mrf.mxu0
    %v1220 = vadd.f32 0.0, %v1219
    %1221 = vmatmul.f32.gmra.mxu0 %v1080
    %v1222 = vpop.f32.mrf.mxu0
    %v1223 = vadd.f32 0.0, %v1222
    %1224 = vmatmul.f32.gmra.mxu0 %v1082
    %v1225 = vpop.f32.mrf.mxu0
    %v1226 = vadd.f32 0.0, %v1225
    %1227 = vmatmul.f32.gmra.mxu0 %v1084
    %v1228 = vpop.f32.mrf.mxu0
    %v1229 = vadd.f32 0.0, %v1228
    %1230 = vmatmul.f32.gmra.mxu0 %v1086
    %v1231 = vpop.f32.mrf.mxu0
    %v1232 = vadd.f32 0.0, %v1231
    %1233 = vmatmul.f32.gmra.mxu0 %v1088
    %v1234 = vpop.f32.mrf.mxu0
    %v1235 = vadd.f32 0.0, %v1234
    %1236 = vmatmul.f32.gmra.mxu0 %v1090
    %v1237 = vpop.f32.mrf.mxu0
    %v1238 = vadd.f32 0.0, %v1237
    %1239 = vmatmul.f32.gmra.mxu0 %v1092
    %v1240 = vpop.f32.mrf.mxu0
    %v1241 = vadd.f32 0.0, %v1240
    %1242 = vmatmul.f32.gmra.mxu0 %v1094
    %v1243 = vpop.f32.mrf.mxu0
    %v1244 = vadd.f32 0.0, %v1243
    %1245 = vmatmul.f32.gmra.mxu0 %v1096
    %v1246 = vpop.f32.mrf.mxu0
    %v1247 = vadd.f32 0.0, %v1246
    %1248 = vmatmul.f32.gmra.mxu0 %v1098
    %v1249 = vpop.f32.mrf.mxu0
    %v1250 = vadd.f32 0.0, %v1249
    %1251 = vmatmul.f32.gmra.mxu0 %v1100
    %v1252 = vpop.f32.mrf.mxu0
    %v1253 = vadd.f32 0.0, %v1252
    %1254 = vmatmul.f32.gmra.mxu0 %v1102
    %v1255 = vpop.f32.mrf.mxu0
    %v1256 = vadd.f32 0.0, %v1255
    %1257 = vmatmul.f32.gmra.mxu0 %v1104
    %v1258 = vpop.f32.mrf.mxu0
    %v1259 = vadd.f32 0.0, %v1258
    %1260 = vmatmul.f32.gmra.mxu0 %v1106
    %v1261 = vpop.f32.mrf.mxu0
    %v1262 = vadd.f32 0.0, %v1261
    %1263 = vmatmul.f32.gmra.mxu0 %v1108
    %v1264 = vpop.f32.mrf.mxu0
    %v1265 = vadd.f32 0.0, %v1264
    %1266 = vmatmul.f32.gmra.mxu0 %v1110
    %v1267 = vpop.f32.mrf.mxu0
    %v1268 = vadd.f32 0.0, %v1267
    %1269 = vmatmul.f32.gmra.mxu0 %v1112
    %v1270 = vpop.f32.mrf.mxu0
    %v1271 = vadd.f32 0.0, %v1270
    %1272 = vmatmul.f32.gmra.mxu0 %v1114
    %v1273 = vpop.f32.mrf.mxu0
    %v1274 = vadd.f32 0.0, %v1273
    %1275 = vmatmul.f32.gmra.mxu0 %v1116
    %v1276 = vpop.f32.mrf.mxu0
    %v1277 = vadd.f32 0.0, %v1276
    %1278 = vmatmul.f32.gmra.mxu0 %v1118
    %v1279 = vpop.f32.mrf.mxu0
    %v1280 = vadd.f32 0.0, %v1279
    %1281 = vmatmul.f32.gmra.mxu0 %v1120
    %v1282 = vpop.f32.mrf.mxu0
    %v1283 = vadd.f32 0.0, %v1282
    %1284 = vmatmul.f32.gmra.mxu0 %v1122
    %v1285 = vpop.f32.mrf.mxu0
    %v1286 = vadd.f32 0.0, %v1285
    %1287 = vmatmul.f32.gmra.mxu0 %v1124
    %v1288 = vpop.f32.mrf.mxu0
    %v1289 = vadd.f32 0.0, %v1288
    %1290 = vmatmul.f32.gmra.mxu0 %v1126
    %v1291 = vpop.f32.mrf.mxu0
    %v1292 = vadd.f32 0.0, %v1291
    %1293 = vmatmul.f32.gmra.mxu0 %v1128
    %v1294 = vpop.f32.mrf.mxu0
    %v1295 = vadd.f32 0.0, %v1294
    %1296 = vmatmul.f32.gmra.mxu0 %v1130
    %v1297 = vpop.f32.mrf.mxu0
    %v1298 = vadd.f32 0.0, %v1297
    %1299 = vmatmul.f32.gmra.mxu0 %v1132
    %v1300 = vpop.f32.mrf.mxu0
    %v1301 = vadd.f32 0.0, %v1300
    %1302 = vmatmul.f32.gmra.mxu0 %v1134
    %v1303 = vpop.f32.mrf.mxu0
    %v1304 = vadd.f32 0.0, %v1303
    %1305 = vmatmul.f32.gmra.mxu0 %v1136
    %v1306 = vpop.f32.mrf.mxu0
    %v1307 = vadd.f32 0.0, %v1306
    %1308 = vmatmul.f32.gmra.mxu0 %v1138
    %v1309 = vpop.f32.mrf.mxu0
    %v1310 = vadd.f32 0.0, %v1309
    %1311 = vmatmul.f32.gmra.mxu0 %v1140
    %v1312 = vpop.f32.mrf.mxu0
    %v1313 = vadd.f32 0.0, %v1312
    %1314 = vmatmul.f32.gmra.mxu0 %v1142
    %v1315 = vpop.f32.mrf.mxu0
    %v1316 = vadd.f32 0.0, %v1315
    %1317 = vmatmul.f32.gmra.mxu0 %v1144
    %v1318 = vpop.f32.mrf.mxu0
    %v1319 = vadd.f32 0.0, %v1318
    %1320 = vmatmul.f32.gmra.mxu0 %v1146
    %v1321 = vpop.f32.mrf.mxu0
    %v1322 = vadd.f32 0.0, %v1321
    %1323 = vmatmul.f32.gmra.mxu0 %v1148
    %v1324 = vpop.f32.mrf.mxu0
    %v1325 = vadd.f32 0.0, %v1324
    %1326 = vmatmul.f32.gmra.mxu0 %v1150
    %v1327 = vpop.f32.mrf.mxu0
    %v1328 = vadd.f32 0.0, %v1327
    %1329 = vmatmul.f32.gmra.mxu0 %v1152
    %v1330 = vpop.f32.mrf.mxu0
    %v1331 = vadd.f32 0.0, %v1330
    %1332 = vmatmul.f32.gmra.mxu0 %v1154
    %v1333 = vpop.f32.mrf.mxu0
    %v1334 = vadd.f32 0.0, %v1333
    %1335 = vmatmul.f32.gmra.mxu0 %v1156
    %v1336 = vpop.f32.mrf.mxu0
    %v1337 = vadd.f32 0.0, %v1336
    %1338 = vmatmul.f32.gmra.mxu0 %v1158
    %v1339 = vpop.f32.mrf.mxu0
    %v1340 = vadd.f32 0.0, %v1339
    %1341 = vmatmul.f32.gmra.mxu0 %v1160
    %v1342 = vpop.f32.mrf.mxu0
    %v1343 = vadd.f32 0.0, %v1342
    %1344 = vmatmul.f32.gmra.mxu0 %v1162
    %v1345 = vpop.f32.mrf.mxu0
    %v1346 = vadd.f32 0.0, %v1345
    %1347 = vmatmul.f32.gmra.mxu0 %v1164
    %v1348 = vpop.f32.mrf.mxu0
    %v1349 = vadd.f32 0.0, %v1348
    %1350 = vmatmul.f32.gmra.mxu0 %v1166
    %v1351 = vpop.f32.mrf.mxu0
    %v1352 = vadd.f32 0.0, %v1351
    %1353 = vmatmul.f32.gmra.mxu0 %v1168
    %v1354 = vpop.f32.mrf.mxu0
    %v1355 = vadd.f32 0.0, %v1354
    %1356 = vmatmul.f32.gmra.mxu0 %v1170
    %v1357 = vpop.f32.mrf.mxu0
    %v1358 = vadd.f32 0.0, %v1357
    %1359 = vmatmul.f32.gmra.mxu0 %v1172
    %v1360 = vpop.f32.mrf.mxu0
    %v1361 = vadd.f32 0.0, %v1360
    %1362 = vmatmul.f32.gmra.mxu0 %v1174
    %v1363 = vpop.f32.mrf.mxu0
    %v1364 = vadd.f32 0.0, %v1363
    %1365 = vmatmul.f32.gmra.mxu0 %v1176
    %v1366 = vpop.f32.mrf.mxu0
    %v1367 = vadd.f32 0.0, %v1366
    %1368 = vmatmul.f32.gmra.mxu0 %v1178
    %v1369 = vpop.f32.mrf.mxu0
    %v1370 = vadd.f32 0.0, %v1369
    %1371 = vdwg.mxu0
    %v1372 = vld [vmem:[%s2] sm:$0x1]
    %v1374 = vperm.slane %v1372, 0
    %v1376 = vmul.f32 %v1202, %v1374
    %v1377 = vmul.f32 %v1205, %v1374
    %v1378 = vmul.f32 %v1208, %v1374
    %v1379 = vmul.f32 %v1211, %v1374
    %v1380 = vmul.f32 %v1214, %v1374
    %v1381 = vmul.f32 %v1217, %v1374
    %v1382 = vmul.f32 %v1220, %v1374
    %v1383 = vmul.f32 %v1223, %v1374
    %v1384 = vmul.f32 %v1226, %v1374
    %v1385 = vmul.f32 %v1229, %v1374
    %v1386 = vmul.f32 %v1232, %v1374
    %v1387 = vmul.f32 %v1235, %v1374
    %v1388 = vmul.f32 %v1238, %v1374
    %v1389 = vmul.f32 %v1241, %v1374
    %v1390 = vmul.f32 %v1244, %v1374
    %v1391 = vmul.f32 %v1247, %v1374
    %v1392 = vmul.f32 %v1250, %v1374
    %v1393 = vmul.f32 %v1253, %v1374
    %v1394 = vmul.f32 %v1256, %v1374
    %v1395 = vmul.f32 %v1259, %v1374
    %v1396 = vmul.f32 %v1262, %v1374
    %v1397 = vmul.f32 %v1265, %v1374
    %v1398 = vmul.f32 %v1268, %v1374
    %v1399 = vmul.f32 %v1271, %v1374
    %v1400 = vmul.f32 %v1274, %v1374
    %v1401 = vmul.f32 %v1277, %v1374
    %v1402 = vmul.f32 %v1280, %v1374
    %v1403 = vmul.f32 %v1283, %v1374
    %v1404 = vmul.f32 %v1286, %v1374
    %v1405 = vmul.f32 %v1289, %v1374
    %v1406 = vmul.f32 %v1292, %v1374
    %v1407 = vmul.f32 %v1295, %v1374
    %v1408 = vmul.f32 %v1298, %v1374
    %v1409 = vmul.f32 %v1301, %v1374
    %v1410 = vmul.f32 %v1304, %v1374
    %v1411 = vmul.f32 %v1307, %v1374
    %v1412 = vmul.f32 %v1310, %v1374
    %v1413 = vmul.f32 %v1313, %v1374
    %v1414 = vmul.f32 %v1316, %v1374
    %v1415 = vmul.f32 %v1319, %v1374
    %v1416 = vmul.f32 %v1322, %v1374
    %v1417 = vmul.f32 %v1325, %v1374
    %v1418 = vmul.f32 %v1328, %v1374
    %v1419 = vmul.f32 %v1331, %v1374
    %v1420 = vmul.f32 %v1334, %v1374
    %v1421 = vmul.f32 %v1337, %v1374
    %v1422 = vmul.f32 %v1340, %v1374
    %v1423 = vmul.f32 %v1343, %v1374
    %v1424 = vmul.f32 %v1346, %v1374
    %v1425 = vmul.f32 %v1349, %v1374
    %v1426 = vmul.f32 %v1352, %v1374
    %v1427 = vmul.f32 %v1355, %v1374
    %v1428 = vmul.f32 %v1358, %v1374
    %v1429 = vmul.f32 %v1361, %v1374
    %v1430 = vmul.f32 %v1364, %v1374
    %v1431 = vmul.f32 %v1367, %v1374
    %v1432 = vmul.f32 %v1370, %v1374
    %v1433 = vld [vmem:[%s3] sm:$0x1]
    %v1435 = vperm.slane %v1433, 0
    %v1437 = vadd.f32 %v1376, %v1435
    %v1438 = vadd.f32 %v1377, %v1435
    %v1439 = vadd.f32 %v1378, %v1435
    %v1440 = vadd.f32 %v1379, %v1435
    %v1441 = vadd.f32 %v1380, %v1435
    %v1442 = vadd.f32 %v1381, %v1435
    %v1443 = vadd.f32 %v1382, %v1435
    %v1444 = vadd.f32 %v1383, %v1435
    %v1445 = vadd.f32 %v1384, %v1435
    %v1446 = vadd.f32 %v1385, %v1435
    %v1447 = vadd.f32 %v1386, %v1435
    %v1448 = vadd.f32 %v1387, %v1435
    %v1449 = vadd.f32 %v1388, %v1435
    %v1450 = vadd.f32 %v1389, %v1435
    %v1451 = vadd.f32 %v1390, %v1435
    %v1452 = vadd.f32 %v1391, %v1435
    %v1453 = vadd.f32 %v1392, %v1435
    %v1454 = vadd.f32 %v1393, %v1435
    %v1455 = vadd.f32 %v1394, %v1435
    %v1456 = vadd.f32 %v1395, %v1435
    %v1457 = vadd.f32 %v1396, %v1435
    %v1458 = vadd.f32 %v1397, %v1435
    %v1459 = vadd.f32 %v1398, %v1435
    %v1460 = vadd.f32 %v1399, %v1435
    %v1461 = vadd.f32 %v1400, %v1435
    %v1462 = vadd.f32 %v1401, %v1435
    %v1463 = vadd.f32 %v1402, %v1435
    %v1464 = vadd.f32 %v1403, %v1435
    %v1465 = vadd.f32 %v1404, %v1435
    %v1466 = vadd.f32 %v1405, %v1435
    %v1467 = vadd.f32 %v1406, %v1435
    %v1468 = vadd.f32 %v1407, %v1435
    %v1469 = vadd.f32 %v1408, %v1435
    %v1470 = vadd.f32 %v1409, %v1435
    %v1471 = vadd.f32 %v1410, %v1435
    %v1472 = vadd.f32 %v1411, %v1435
    %v1473 = vadd.f32 %v1412, %v1435
    %v1474 = vadd.f32 %v1413, %v1435
    %v1475 = vadd.f32 %v1414, %v1435
    %v1476 = vadd.f32 %v1415, %v1435
    %v1477 = vadd.f32 %v1416, %v1435
    %v1478 = vadd.f32 %v1417, %v1435
    %v1479 = vadd.f32 %v1418, %v1435
    %v1480 = vadd.f32 %v1419, %v1435
    %v1481 = vadd.f32 %v1420, %v1435
    %v1482 = vadd.f32 %v1421, %v1435
    %v1483 = vadd.f32 %v1422, %v1435
    %v1484 = vadd.f32 %v1423, %v1435
    %v1485 = vadd.f32 %v1424, %v1435
    %v1486 = vadd.f32 %v1425, %v1435
    %v1487 = vadd.f32 %v1426, %v1435
    %v1488 = vadd.f32 %v1427, %v1435
    %v1489 = vadd.f32 %v1428, %v1435
    %v1490 = vadd.f32 %v1429, %v1435
    %v1491 = vadd.f32 %v1430, %v1435
    %v1492 = vadd.f32 %v1431, %v1435
    %v1493 = vadd.f32 %v1432, %v1435
    %v1494 = vmax.f32 %v1437, 0.0
    %v1495 = vmax.f32 %v1438, 0.0
    %v1496 = vmax.f32 %v1439, 0.0
    %v1497 = vmax.f32 %v1440, 0.0
    %v1498 = vmax.f32 %v1441, 0.0
    %v1499 = vmax.f32 %v1442, 0.0
    %v1500 = vmax.f32 %v1443, 0.0
    %v1501 = vmax.f32 %v1444, 0.0
    %v1502 = vmax.f32 %v1445, 0.0
    %v1503 = vmax.f32 %v1446, 0.0
    %v1504 = vmax.f32 %v1447, 0.0
    %v1505 = vmax.f32 %v1448, 0.0
    %v1506 = vmax.f32 %v1449, 0.0
    %v1507 = vmax.f32 %v1450, 0.0
    %v1508 = vmax.f32 %v1451, 0.0
    %v1509 = vmax.f32 %v1452, 0.0
    %v1510 = vmax.f32 %v1453, 0.0
    %v1511 = vmax.f32 %v1454, 0.0
    %v1512 = vmax.f32 %v1455, 0.0
    %v1513 = vmax.f32 %v1456, 0.0
    %v1514 = vmax.f32 %v1457, 0.0
    %v1515 = vmax.f32 %v1458, 0.0
    %v1516 = vmax.f32 %v1459, 0.0
    %v1517 = vmax.f32 %v1460, 0.0
    %v1518 = vmax.f32 %v1461, 0.0
    %v1519 = vmax.f32 %v1462, 0.0
    %v1520 = vmax.f32 %v1463, 0.0
    %v1521 = vmax.f32 %v1464, 0.0
    %v1522 = vmax.f32 %v1465, 0.0
    %v1523 = vmax.f32 %v1466, 0.0
    %v1524 = vmax.f32 %v1467, 0.0
    %v1525 = vmax.f32 %v1468, 0.0
    %v1526 = vmax.f32 %v1469, 0.0
    %v1527 = vmax.f32 %v1470, 0.0
    %v1528 = vmax.f32 %v1471, 0.0
    %v1529 = vmax.f32 %v1472, 0.0
    %v1530 = vmax.f32 %v1473, 0.0
    %v1531 = vmax.f32 %v1474, 0.0
    %v1532 = vmax.f32 %v1475, 0.0
    %v1533 = vmax.f32 %v1476, 0.0
    %v1534 = vmax.f32 %v1477, 0.0
    %v1535 = vmax.f32 %v1478, 0.0
    %v1536 = vmax.f32 %v1479, 0.0
    %v1537 = vmax.f32 %v1480, 0.0
    %v1538 = vmax.f32 %v1481, 0.0
    %v1539 = vmax.f32 %v1482, 0.0
    %v1540 = vmax.f32 %v1483, 0.0
    %v1541 = vmax.f32 %v1484, 0.0
    %v1542 = vmax.f32 %v1485, 0.0
    %v1543 = vmax.f32 %v1486, 0.0
    %v1544 = vmax.f32 %v1487, 0.0
    %v1545 = vmax.f32 %v1488, 0.0
    %v1546 = vmax.f32 %v1489, 0.0
    %v1547 = vmax.f32 %v1490, 0.0
    %v1548 = vmax.f32 %v1491, 0.0
    %v1549 = vmax.f32 %v1492, 0.0
    %v1550 = vmax.f32 %v1493, 0.0
    %v1608 = vrot.slane %v1494, 1
    %v1609 = vrot.slane %v1494, 2
    %v1610 = vrot.slane %v1494, 3
    %v1611 = vrot.slane %v1494, 4
    %v1612 = vrot.slane %v1494, 5
    %v1613 = vrot.slane %v1494, 6
    %v1614 = vrot.slane %v1494, 7
    %v1615 = vrot.slane %v1495, 1
    %v1616 = vrot.slane %v1495, 2
    %v1617 = vrot.slane %v1495, 3
    %v1618 = vrot.slane %v1495, 4
    %v1619 = vrot.slane %v1495, 5
    %v1620 = vrot.slane %v1495, 6
    %v1621 = vrot.slane %v1495, 7
    %v1622 = vrot.slane %v1496, 1
    %v1623 = vrot.slane %v1496, 2
    %v1624 = vrot.slane %v1496, 3
    %v1625 = vrot.slane %v1496, 4
    %v1626 = vrot.slane %v1496, 5
    %v1627 = vrot.slane %v1496, 6
    %v1628 = vrot.slane %v1496, 7
    %v1629 = vrot.slane %v1497, 1
    %v1630 = vrot.slane %v1497, 2
    %v1631 = vrot.slane %v1497, 3
    %v1632 = vrot.slane %v1497, 4
    %v1633 = vrot.slane %v1497, 5
    %v1634 = vrot.slane %v1497, 6
    %v1635 = vrot.slane %v1497, 7
    %v1636 = vrot.slane %v1498, 1
    %v1637 = vrot.slane %v1498, 2
    %v1638 = vrot.slane %v1498, 3
    %v1639 = vrot.slane %v1498, 4
    %v1640 = vrot.slane %v1498, 5
    %v1641 = vrot.slane %v1498, 6
    %v1642 = vrot.slane %v1498, 7
    %v1643 = vrot.slane %v1499, 1
    %v1644 = vrot.slane %v1499, 2
    %v1645 = vrot.slane %v1499, 3
    %v1646 = vrot.slane %v1499, 4
    %v1647 = vrot.slane %v1499, 5
    %v1648 = vrot.slane %v1499, 6
    %v1649 = vrot.slane %v1499, 7
    %v1650 = vrot.slane %v1500, 1
    %v1651 = vrot.slane %v1500, 2
    %v1652 = vrot.slane %v1500, 3
    %v1653 = vrot.slane %v1500, 4
    %v1654 = vrot.slane %v1500, 5
    %v1655 = vrot.slane %v1500, 6
    %v1656 = vrot.slane %v1500, 7
    %v1657 = vrot.slane %v1501, 1
    %v1658 = vrot.slane %v1501, 2
    %v1659 = vrot.slane %v1501, 3
    %v1660 = vrot.slane %v1501, 4
    %v1661 = vrot.slane %v1501, 5
    %v1662 = vrot.slane %v1501, 6
    %v1663 = vrot.slane %v1501, 7
    %v1664 = vrot.slane %v1502, 1
    %v1665 = vrot.slane %v1502, 2
    %v1666 = vrot.slane %v1502, 3
    %v1667 = vrot.slane %v1502, 4
    %v1668 = vrot.slane %v1502, 5
    %v1669 = vrot.slane %v1502, 6
    %v1670 = vrot.slane %v1502, 7
    %v1671 = vrot.slane %v1503, 1
    %v1672 = vrot.slane %v1503, 2
    %v1673 = vrot.slane %v1503, 3
    %v1674 = vrot.slane %v1503, 4
    %v1675 = vrot.slane %v1503, 5
    %v1676 = vrot.slane %v1503, 6
    %v1677 = vrot.slane %v1503, 7
    %v1678 = vrot.slane %v1504, 1
    %v1679 = vrot.slane %v1504, 2
    %v1680 = vrot.slane %v1504, 3
    %v1681 = vrot.slane %v1504, 4
    %v1682 = vrot.slane %v1504, 5
    %v1683 = vrot.slane %v1504, 6
    %v1684 = vrot.slane %v1504, 7
    %v1685 = vrot.slane %v1505, 1
    %v1686 = vrot.slane %v1505, 2
    %v1687 = vrot.slane %v1505, 3
    %v1688 = vrot.slane %v1505, 4
    %v1689 = vrot.slane %v1505, 5
    %v1690 = vrot.slane %v1505, 6
    %v1691 = vrot.slane %v1505, 7
    %v1692 = vrot.slane %v1506, 1
    %v1693 = vrot.slane %v1506, 2
    %v1694 = vrot.slane %v1506, 3
    %v1695 = vrot.slane %v1506, 4
    %v1696 = vrot.slane %v1506, 5
    %v1697 = vrot.slane %v1506, 6
    %v1698 = vrot.slane %v1506, 7
    %v1699 = vrot.slane %v1507, 1
    %v1700 = vrot.slane %v1507, 2
    %v1701 = vrot.slane %v1507, 3
    %v1702 = vrot.slane %v1507, 4
    %v1703 = vrot.slane %v1507, 5
    %v1704 = vrot.slane %v1507, 6
    %v1705 = vrot.slane %v1507, 7
    %v1706 = vrot.slane %v1508, 1
    %v1707 = vrot.slane %v1508, 2
    %v1708 = vrot.slane %v1508, 3
    %v1709 = vrot.slane %v1508, 4
    %v1710 = vrot.slane %v1508, 5
    %v1711 = vrot.slane %v1508, 6
    %v1712 = vrot.slane %v1508, 7
    %v1713 = vrot.slane %v1509, 1
    %v1714 = vrot.slane %v1509, 2
    %v1715 = vrot.slane %v1509, 3
    %v1716 = vrot.slane %v1509, 4
    %v1717 = vrot.slane %v1509, 5
    %v1718 = vrot.slane %v1509, 6
    %v1719 = vrot.slane %v1509, 7
    %v1720 = vrot.slane %v1510, 1
    %v1721 = vrot.slane %v1510, 2
    %v1722 = vrot.slane %v1510, 3
    %v1723 = vrot.slane %v1510, 4
    %v1724 = vrot.slane %v1510, 5
    %v1725 = vrot.slane %v1510, 6
    %v1726 = vrot.slane %v1510, 7
    %v1727 = vrot.slane %v1511, 1
    %v1728 = vrot.slane %v1511, 2
    %v1729 = vrot.slane %v1511, 3
    %v1730 = vrot.slane %v1511, 4
    %v1731 = vrot.slane %v1511, 5
    %v1732 = vrot.slane %v1511, 6
    %v1733 = vrot.slane %v1511, 7
    %v1734 = vrot.slane %v1512, 1
    %v1735 = vrot.slane %v1512, 2
    %v1736 = vrot.slane %v1512, 3
    %v1737 = vrot.slane %v1512, 4
    %v1738 = vrot.slane %v1512, 5
    %v1739 = vrot.slane %v1512, 6
    %v1740 = vrot.slane %v1512, 7
    %v1741 = vrot.slane %v1513, 1
    %v1742 = vrot.slane %v1513, 2
    %v1743 = vrot.slane %v1513, 3
    %v1744 = vrot.slane %v1513, 4
    %v1745 = vrot.slane %v1513, 5
    %v1746 = vrot.slane %v1513, 6
    %v1747 = vrot.slane %v1513, 7
    %v1748 = vrot.slane %v1514, 1
    %v1749 = vrot.slane %v1514, 2
    %v1750 = vrot.slane %v1514, 3
    %v1751 = vrot.slane %v1514, 4
    %v1752 = vrot.slane %v1514, 5
    %v1753 = vrot.slane %v1514, 6
    %v1754 = vrot.slane %v1514, 7
    %v1755 = vrot.slane %v1515, 1
    %v1756 = vrot.slane %v1515, 2
    %v1757 = vrot.slane %v1515, 3
    %v1758 = vrot.slane %v1515, 4
    %v1759 = vrot.slane %v1515, 5
    %v1760 = vrot.slane %v1515, 6
    %v1761 = vrot.slane %v1515, 7
    %v1762 = vrot.slane %v1516, 1
    %v1763 = vrot.slane %v1516, 2
    %v1764 = vrot.slane %v1516, 3
    %v1765 = vrot.slane %v1516, 4
    %v1766 = vrot.slane %v1516, 5
    %v1767 = vrot.slane %v1516, 6
    %v1768 = vrot.slane %v1516, 7
    %v1769 = vrot.slane %v1517, 1
    %v1770 = vrot.slane %v1517, 2
    %v1771 = vrot.slane %v1517, 3
    %v1772 = vrot.slane %v1517, 4
    %v1773 = vrot.slane %v1517, 5
    %v1774 = vrot.slane %v1517, 6
    %v1775 = vrot.slane %v1517, 7
    %v1776 = vrot.slane %v1518, 1
    %v1777 = vrot.slane %v1518, 2
    %v1778 = vrot.slane %v1518, 3
    %v1779 = vrot.slane %v1518, 4
    %v1780 = vrot.slane %v1518, 5
    %v1781 = vrot.slane %v1518, 6
    %v1782 = vrot.slane %v1518, 7
    %v1783 = vrot.slane %v1519, 1
    %v1784 = vrot.slane %v1519, 2
    %v1785 = vrot.slane %v1519, 3
    %v1786 = vrot.slane %v1519, 4
    %v1787 = vrot.slane %v1519, 5
    %v1788 = vrot.slane %v1519, 6
    %v1789 = vrot.slane %v1519, 7
    %v1790 = vrot.slane %v1520, 1
    %v1791 = vrot.slane %v1520, 2
    %v1792 = vrot.slane %v1520, 3
    %v1793 = vrot.slane %v1520, 4
    %v1794 = vrot.slane %v1520, 5
    %v1795 = vrot.slane %v1520, 6
    %v1796 = vrot.slane %v1520, 7
    %v1797 = vrot.slane %v1521, 1
    %v1798 = vrot.slane %v1521, 2
    %v1799 = vrot.slane %v1521, 3
    %v1800 = vrot.slane %v1521, 4
    %v1801 = vrot.slane %v1521, 5
    %v1802 = vrot.slane %v1521, 6
    %v1803 = vrot.slane %v1521, 7
    %v1804 = vrot.slane %v1522, 1
    %v1805 = vrot.slane %v1522, 2
    %v1806 = vrot.slane %v1522, 3
    %v1807 = vrot.slane %v1522, 4
    %v1808 = vrot.slane %v1522, 5
    %v1809 = vrot.slane %v1522, 6
    %v1810 = vrot.slane %v1522, 7
    %v1811 = vrot.slane %v1523, 1
    %v1812 = vrot.slane %v1523, 2
    %v1813 = vrot.slane %v1523, 3
    %v1814 = vrot.slane %v1523, 4
    %v1815 = vrot.slane %v1523, 5
    %v1816 = vrot.slane %v1523, 6
    %v1817 = vrot.slane %v1523, 7
    %v1818 = vrot.slane %v1524, 1
    %v1819 = vrot.slane %v1524, 2
    %v1820 = vrot.slane %v1524, 3
    %v1821 = vrot.slane %v1524, 4
    %v1822 = vrot.slane %v1524, 5
    %v1823 = vrot.slane %v1524, 6
    %v1824 = vrot.slane %v1524, 7
    %v1825 = vrot.slane %v1525, 1
    %v1826 = vrot.slane %v1525, 2
    %v1827 = vrot.slane %v1525, 3
    %v1828 = vrot.slane %v1525, 4
    %v1829 = vrot.slane %v1525, 5
    %v1830 = vrot.slane %v1525, 6
    %v1831 = vrot.slane %v1525, 7
    %v1832 = vrot.slane %v1526, 1
    %v1833 = vrot.slane %v1526, 2
    %v1834 = vrot.slane %v1526, 3
    %v1835 = vrot.slane %v1526, 4
    %v1836 = vrot.slane %v1526, 5
    %v1837 = vrot.slane %v1526, 6
    %v1838 = vrot.slane %v1526, 7
    %v1839 = vrot.slane %v1527, 1
    %v1840 = vrot.slane %v1527, 2
    %v1841 = vrot.slane %v1527, 3
    %v1842 = vrot.slane %v1527, 4
    %v1843 = vrot.slane %v1527, 5
    %v1844 = vrot.slane %v1527, 6
    %v1845 = vrot.slane %v1527, 7
    %v1846 = vrot.slane %v1528, 1
    %v1847 = vrot.slane %v1528, 2
    %v1848 = vrot.slane %v1528, 3
    %v1849 = vrot.slane %v1528, 4
    %v1850 = vrot.slane %v1528, 5
    %v1851 = vrot.slane %v1528, 6
    %v1852 = vrot.slane %v1528, 7
    %v1853 = vrot.slane %v1529, 1
    %v1854 = vrot.slane %v1529, 2
    %v1855 = vrot.slane %v1529, 3
    %v1856 = vrot.slane %v1529, 4
    %v1857 = vrot.slane %v1529, 5
    %v1858 = vrot.slane %v1529, 6
    %v1859 = vrot.slane %v1529, 7
    %v1860 = vrot.slane %v1530, 1
    %v1861 = vrot.slane %v1530, 2
    %v1862 = vrot.slane %v1530, 3
    %v1863 = vrot.slane %v1530, 4
    %v1864 = vrot.slane %v1530, 5
    %v1865 = vrot.slane %v1530, 6
    %v1866 = vrot.slane %v1530, 7
    %v1867 = vrot.slane %v1531, 1
    %v1868 = vrot.slane %v1531, 2
    %v1869 = vrot.slane %v1531, 3
    %v1870 = vrot.slane %v1531, 4
    %v1871 = vrot.slane %v1531, 5
    %v1872 = vrot.slane %v1531, 6
    %v1873 = vrot.slane %v1531, 7
    %v1874 = vrot.slane %v1532, 1
    %v1875 = vrot.slane %v1532, 2
    %v1876 = vrot.slane %v1532, 3
    %v1877 = vrot.slane %v1532, 4
    %v1878 = vrot.slane %v1532, 5
    %v1879 = vrot.slane %v1532, 6
    %v1880 = vrot.slane %v1532, 7
    %v1881 = vrot.slane %v1533, 1
    %v1882 = vrot.slane %v1533, 2
    %v1883 = vrot.slane %v1533, 3
    %v1884 = vrot.slane %v1533, 4
    %v1885 = vrot.slane %v1533, 5
    %v1886 = vrot.slane %v1533, 6
    %v1887 = vrot.slane %v1533, 7
    %v1888 = vrot.slane %v1534, 1
    %v1889 = vrot.slane %v1534, 2
    %v1890 = vrot.slane %v1534, 3
    %v1891 = vrot.slane %v1534, 4
    %v1892 = vrot.slane %v1534, 5
    %v1893 = vrot.slane %v1534, 6
    %v1894 = vrot.slane %v1534, 7
    %v1895 = vrot.slane %v1535, 1
    %v1896 = vrot.slane %v1535, 2
    %v1897 = vrot.slane %v1535, 3
    %v1898 = vrot.slane %v1535, 4
    %v1899 = vrot.slane %v1535, 5
    %v1900 = vrot.slane %v1535, 6
    %v1901 = vrot.slane %v1535, 7
    %v1902 = vrot.slane %v1536, 1
    %v1903 = vrot.slane %v1536, 2
    %v1904 = vrot.slane %v1536, 3
    %v1905 = vrot.slane %v1536, 4
    %v1906 = vrot.slane %v1536, 5
    %v1907 = vrot.slane %v1536, 6
    %v1908 = vrot.slane %v1536, 7
    %v1909 = vrot.slane %v1537, 1
    %v1910 = vrot.slane %v1537, 2
    %v1911 = vrot.slane %v1537, 3
    %v1912 = vrot.slane %v1537, 4
    %v1913 = vrot.slane %v1537, 5
    %v1914 = vrot.slane %v1537, 6
    %v1915 = vrot.slane %v1537, 7
    %v1916 = vrot.slane %v1538, 1
    %v1917 = vrot.slane %v1538, 2
    %v1918 = vrot.slane %v1538, 3
    %v1919 = vrot.slane %v1538, 4
    %v1920 = vrot.slane %v1538, 5
    %v1921 = vrot.slane %v1538, 6
    %v1922 = vrot.slane %v1538, 7
    %v1923 = vrot.slane %v1539, 1
    %v1924 = vrot.slane %v1539, 2
    %v1925 = vrot.slane %v1539, 3
    %v1926 = vrot.slane %v1539, 4
    %v1927 = vrot.slane %v1539, 5
    %v1928 = vrot.slane %v1539, 6
    %v1929 = vrot.slane %v1539, 7
    %v1930 = vrot.slane %v1540, 1
    %v1931 = vrot.slane %v1540, 2
    %v1932 = vrot.slane %v1540, 3
    %v1933 = vrot.slane %v1540, 4
    %v1934 = vrot.slane %v1540, 5
    %v1935 = vrot.slane %v1540, 6
    %v1936 = vrot.slane %v1540, 7
    %v1937 = vrot.slane %v1541, 1
    %v1938 = vrot.slane %v1541, 2
    %v1939 = vrot.slane %v1541, 3
    %v1940 = vrot.slane %v1541, 4
    %v1941 = vrot.slane %v1541, 5
    %v1942 = vrot.slane %v1541, 6
    %v1943 = vrot.slane %v1541, 7
    %v1944 = vrot.slane %v1542, 1
    %v1945 = vrot.slane %v1542, 2
    %v1946 = vrot.slane %v1542, 3
    %v1947 = vrot.slane %v1542, 4
    %v1948 = vrot.slane %v1542, 5
    %v1949 = vrot.slane %v1542, 6
    %v1950 = vrot.slane %v1542, 7
    %v1951 = vrot.slane %v1543, 1
    %v1952 = vrot.slane %v1543, 2
    %v1953 = vrot.slane %v1543, 3
    %v1954 = vrot.slane %v1543, 4
    %v1955 = vrot.slane %v1543, 5
    %v1956 = vrot.slane %v1543, 6
    %v1957 = vrot.slane %v1543, 7
    %v1958 = vrot.slane %v1544, 1
    %v1959 = vrot.slane %v1544, 2
    %v1960 = vrot.slane %v1544, 3
    %v1961 = vrot.slane %v1544, 4
    %v1962 = vrot.slane %v1544, 5
    %v1963 = vrot.slane %v1544, 6
    %v1964 = vrot.slane %v1544, 7
    %v1965 = vrot.slane %v1545, 1
    %v1966 = vrot.slane %v1545, 2
    %v1967 = vrot.slane %v1545, 3
    %v1968 = vrot.slane %v1545, 4
    %v1969 = vrot.slane %v1545, 5
    %v1970 = vrot.slane %v1545, 6
    %v1971 = vrot.slane %v1545, 7
    %v1972 = vrot.slane %v1546, 1
    %v1973 = vrot.slane %v1546, 2
    %v1974 = vrot.slane %v1546, 3
    %v1975 = vrot.slane %v1546, 4
    %v1976 = vrot.slane %v1546, 5
    %v1977 = vrot.slane %v1546, 6
    %v1978 = vrot.slane %v1546, 7
    %v1979 = vrot.slane %v1547, 1
    %v1980 = vrot.slane %v1547, 2
    %v1981 = vrot.slane %v1547, 3
    %v1982 = vrot.slane %v1547, 4
    %v1983 = vrot.slane %v1547, 5
    %v1984 = vrot.slane %v1547, 6
    %v1985 = vrot.slane %v1547, 7
    %v1986 = vrot.slane %v1548, 1
    %v1987 = vrot.slane %v1548, 2
    %v1988 = vrot.slane %v1548, 3
    %v1989 = vrot.slane %v1548, 4
    %v1990 = vrot.slane %v1548, 5
    %v1991 = vrot.slane %v1548, 6
    %v1992 = vrot.slane %v1548, 7
    %v1993 = vrot.slane %v1549, 1
    %v1994 = vrot.slane %v1549, 2
    %v1995 = vrot.slane %v1549, 3
    %v1996 = vrot.slane %v1549, 4
    %v1997 = vrot.slane %v1549, 5
    %v1998 = vrot.slane %v1549, 6
    %v1999 = vrot.slane %v1549, 7
    %v2000 = vrot.slane %v1550, 1
    %v2394 = vmax.f32 %v1494, %v1608
    %v2395 = vmax.f32 %v1608, %v1609
    %v2396 = vmax.f32 %v1609, %v1610
    %v2397 = vmax.f32 %v1610, %v1611
    %v2398 = vmax.f32 %v1611, %v1612
    %v2399 = vmax.f32 %v1612, %v1613
    %v2400 = vmax.f32 %v1613, %v1614
    %v2401 = vmax.f32 %v1614, %v1495
    %v2402 = vmax.f32 %v1495, %v1615
    %v2403 = vmax.f32 %v1615, %v1616
    %v2404 = vmax.f32 %v1616, %v1617
    %v2405 = vmax.f32 %v1617, %v1618
    %v2406 = vmax.f32 %v1618, %v1619
    %v2407 = vmax.f32 %v1619, %v1620
    %v2408 = vmax.f32 %v1621, %v1496
    %v2409 = vmax.f32 %v1496, %v1622
    %v2410 = vmax.f32 %v1622, %v1623
    %v2411 = vmax.f32 %v1623, %v1624
    %v2412 = vmax.f32 %v1624, %v1625
    %v2413 = vmax.f32 %v1625, %v1626
    %v2414 = vmax.f32 %v1626, %v1627
    %v2415 = vmax.f32 %v1627, %v1628
    %v2416 = vmax.f32 %v1628, %v1497
    %v2417 = vmax.f32 %v1497, %v1629
    %v2418 = vmax.f32 %v1629, %v1630
    %v2419 = vmax.f32 %v1630, %v1631
    %v2420 = vmax.f32 %v1631, %v1632
    %v2421 = vmax.f32 %v1632, %v1633
    %v2422 = vmax.f32 %v1634, %v1635
    %v2423 = vmax.f32 %v1635, %v1498
    %v2424 = vmax.f32 %v1498, %v1636
    %v2425 = vmax.f32 %v1636, %v1637
    %v2426 = vmax.f32 %v1637, %v1638
    %v2427 = vmax.f32 %v1638, %v1639
    %v2428 = vmax.f32 %v1639, %v1640
    %v2429 = vmax.f32 %v1640, %v1641
    %v2430 = vmax.f32 %v1641, %v1642
    %v2431 = vmax.f32 %v1642, %v1499
    %v2432 = vmax.f32 %v1499, %v1643
    %v2433 = vmax.f32 %v1643, %v1644
    %v2434 = vmax.f32 %v1644, %v1645
    %v2435 = vmax.f32 %v1645, %v1646
    %v2436 = vmax.f32 %v1647, %v1648
    %v2437 = vmax.f32 %v1648, %v1649
    %v2438 = vmax.f32 %v1649, %v1500
    %v2439 = vmax.f32 %v1500, %v1650
    %v2440 = vmax.f32 %v1650, %v1651
    %v2441 = vmax.f32 %v1651, %v1652
    %v2442 = vmax.f32 %v1652, %v1653
    %v2443 = vmax.f32 %v1653, %v1654
    %v2444 = vmax.f32 %v1654, %v1655
    %v2445 = vmax.f32 %v1655, %v1656
    %v2446 = vmax.f32 %v1656, %v1501
    %v2447 = vmax.f32 %v1501, %v1657
    %v2448 = vmax.f32 %v1657, %v1658
    %v2449 = vmax.f32 %v1658, %v1659
    %v2450 = vmax.f32 %v1660, %v1661
    %v2451 = vmax.f32 %v1661, %v1662
    %v2452 = vmax.f32 %v1662, %v1663
    %v2453 = vmax.f32 %v1663, %v1502
    %v2454 = vmax.f32 %v1502, %v1664
    %v2455 = vmax.f32 %v1664, %v1665
    %v2456 = vmax.f32 %v1665, %v1666
    %v2457 = vmax.f32 %v1666, %v1667
    %v2458 = vmax.f32 %v1667, %v1668
    %v2459 = vmax.f32 %v1668, %v1669
    %v2460 = vmax.f32 %v1669, %v1670
    %v2461 = vmax.f32 %v1670, %v1503
    %v2462 = vmax.f32 %v1503, %v1671
    %v2463 = vmax.f32 %v1671, %v1672
    %v2464 = vmax.f32 %v1673, %v1674
    %v2465 = vmax.f32 %v1674, %v1675
    %v2466 = vmax.f32 %v1675, %v1676
    %v2467 = vmax.f32 %v1676, %v1677
    %v2468 = vmax.f32 %v1677, %v1504
    %v2469 = vmax.f32 %v1504, %v1678
    %v2470 = vmax.f32 %v1678, %v1679
    %v2471 = vmax.f32 %v1679, %v1680
    %v2472 = vmax.f32 %v1680, %v1681
    %v2473 = vmax.f32 %v1681, %v1682
    %v2474 = vmax.f32 %v1682, %v1683
    %v2475 = vmax.f32 %v1683, %v1684
    %v2476 = vmax.f32 %v1684, %v1505
    %v2477 = vmax.f32 %v1505, %v1685
    %v2478 = vmax.f32 %v1686, %v1687
    %v2479 = vmax.f32 %v1687, %v1688
    %v2480 = vmax.f32 %v1688, %v1689
    %v2481 = vmax.f32 %v1689, %v1690
    %v2482 = vmax.f32 %v1690, %v1691
    %v2483 = vmax.f32 %v1691, %v1506
    %v2484 = vmax.f32 %v1506, %v1692
    %v2485 = vmax.f32 %v1692, %v1693
    %v2486 = vmax.f32 %v1693, %v1694
    %v2487 = vmax.f32 %v1694, %v1695
    %v2488 = vmax.f32 %v1695, %v1696
    %v2489 = vmax.f32 %v1696, %v1697
    %v2490 = vmax.f32 %v1697, %v1698
    %v2491 = vmax.f32 %v1698, %v1507
    %v2492 = vmax.f32 %v1699, %v1700
    %v2493 = vmax.f32 %v1700, %v1701
    %v2494 = vmax.f32 %v1701, %v1702
    %v2495 = vmax.f32 %v1702, %v1703
    %v2496 = vmax.f32 %v1703, %v1704
    %v2497 = vmax.f32 %v1704, %v1705
    %v2498 = vmax.f32 %v1705, %v1508
    %v2499 = vmax.f32 %v1508, %v1706
    %v2500 = vmax.f32 %v1706, %v1707
    %v2501 = vmax.f32 %v1707, %v1708
    %v2502 = vmax.f32 %v1708, %v1709
    %v2503 = vmax.f32 %v1709, %v1710
    %v2504 = vmax.f32 %v1710, %v1711
    %v2505 = vmax.f32 %v1711, %v1712
    %v2506 = vmax.f32 %v1509, %v1713
    %v2507 = vmax.f32 %v1713, %v1714
    %v2508 = vmax.f32 %v1714, %v1715
    %v2509 = vmax.f32 %v1715, %v1716
    %v2510 = vmax.f32 %v1716, %v1717
    %v2511 = vmax.f32 %v1717, %v1718
    %v2512 = vmax.f32 %v1718, %v1719
    %v2513 = vmax.f32 %v1719, %v1510
    %v2514 = vmax.f32 %v1510, %v1720
    %v2515 = vmax.f32 %v1720, %v1721
    %v2516 = vmax.f32 %v1721, %v1722
    %v2517 = vmax.f32 %v1722, %v1723
    %v2518 = vmax.f32 %v1723, %v1724
    %v2519 = vmax.f32 %v1724, %v1725
    %v2520 = vmax.f32 %v1726, %v1511
    %v2521 = vmax.f32 %v1511, %v1727
    %v2522 = vmax.f32 %v1727, %v1728
    %v2523 = vmax.f32 %v1728, %v1729
    %v2524 = vmax.f32 %v1729, %v1730
    %v2525 = vmax.f32 %v1730, %v1731
    %v2526 = vmax.f32 %v1731, %v1732
    %v2527 = vmax.f32 %v1732, %v1733
    %v2528 = vmax.f32 %v1733, %v1512
    %v2529 = vmax.f32 %v1512, %v1734
    %v2530 = vmax.f32 %v1734, %v1735
    %v2531 = vmax.f32 %v1735, %v1736
    %v2532 = vmax.f32 %v1736, %v1737
    %v2533 = vmax.f32 %v1737, %v1738
    %v2534 = vmax.f32 %v1739, %v1740
    %v2535 = vmax.f32 %v1740, %v1513
    %v2536 = vmax.f32 %v1513, %v1741
    %v2537 = vmax.f32 %v1741, %v1742
    %v2538 = vmax.f32 %v1742, %v1743
    %v2539 = vmax.f32 %v1743, %v1744
    %v2540 = vmax.f32 %v1744, %v1745
    %v2541 = vmax.f32 %v1745, %v1746
    %v2542 = vmax.f32 %v1746, %v1747
    %v2543 = vmax.f32 %v1747, %v1514
    %v2544 = vmax.f32 %v1514, %v1748
    %v2545 = vmax.f32 %v1748, %v1749
    %v2546 = vmax.f32 %v1749, %v1750
    %v2547 = vmax.f32 %v1750, %v1751
    %v2548 = vmax.f32 %v1752, %v1753
    %v2549 = vmax.f32 %v1753, %v1754
    %v2550 = vmax.f32 %v1754, %v1515
    %v2551 = vmax.f32 %v1515, %v1755
    %v2552 = vmax.f32 %v1755, %v1756
    %v2553 = vmax.f32 %v1756, %v1757
    %v2554 = vmax.f32 %v1757, %v1758
    %v2555 = vmax.f32 %v1758, %v1759
    %v2556 = vmax.f32 %v1759, %v1760
    %v2557 = vmax.f32 %v1760, %v1761
    %v2558 = vmax.f32 %v1761, %v1516
    %v2559 = vmax.f32 %v1516, %v1762
    %v2560 = vmax.f32 %v1762, %v1763
    %v2561 = vmax.f32 %v1763, %v1764
    %v2562 = vmax.f32 %v1765, %v1766
    %v2563 = vmax.f32 %v1766, %v1767
    %v2564 = vmax.f32 %v1767, %v1768
    %v2565 = vmax.f32 %v1768, %v1517
    %v2566 = vmax.f32 %v1517, %v1769
    %v2567 = vmax.f32 %v1769, %v1770
    %v2568 = vmax.f32 %v1770, %v1771
    %v2569 = vmax.f32 %v1771, %v1772
    %v2570 = vmax.f32 %v1772, %v1773
    %v2571 = vmax.f32 %v1773, %v1774
    %v2572 = vmax.f32 %v1774, %v1775
    %v2573 = vmax.f32 %v1775, %v1518
    %v2574 = vmax.f32 %v1518, %v1776
    %v2575 = vmax.f32 %v1776, %v1777
    %v2576 = vmax.f32 %v1778, %v1779
    %v2577 = vmax.f32 %v1779, %v1780
    %v2578 = vmax.f32 %v1780, %v1781
    %v2579 = vmax.f32 %v1781, %v1782
    %v2580 = vmax.f32 %v1782, %v1519
    %v2581 = vmax.f32 %v1519, %v1783
    %v2582 = vmax.f32 %v1783, %v1784
    %v2583 = vmax.f32 %v1784, %v1785
    %v2584 = vmax.f32 %v1785, %v1786
    %v2585 = vmax.f32 %v1786, %v1787
    %v2586 = vmax.f32 %v1787, %v1788
    %v2587 = vmax.f32 %v1788, %v1789
    %v2588 = vmax.f32 %v1789, %v1520
    %v2589 = vmax.f32 %v1520, %v1790
    %v2590 = vmax.f32 %v1804, %v1805
    %v2591 = vmax.f32 %v1805, %v1806
    %v2592 = vmax.f32 %v1806, %v1807
    %v2593 = vmax.f32 %v1807, %v1808
    %v2594 = vmax.f32 %v1808, %v1809
    %v2595 = vmax.f32 %v1809, %v1810
    %v2596 = vmax.f32 %v1810, %v1523
    %v2597 = vmax.f32 %v1523, %v1811
    %v2598 = vmax.f32 %v1811, %v1812
    %v2599 = vmax.f32 %v1812, %v1813
    %v2600 = vmax.f32 %v1813, %v1814
    %v2601 = vmax.f32 %v1814, %v1815
    %v2602 = vmax.f32 %v1815, %v1816
    %v2603 = vmax.f32 %v1816, %v1817
    %v2604 = vmax.f32 %v1524, %v1818
    %v2605 = vmax.f32 %v1818, %v1819
    %v2606 = vmax.f32 %v1819, %v1820
    %v2607 = vmax.f32 %v1820, %v1821
    %v2608 = vmax.f32 %v1821, %v1822
    %v2609 = vmax.f32 %v1822, %v1823
    %v2610 = vmax.f32 %v1823, %v1824
    %v2611 = vmax.f32 %v1824, %v1525
    %v2612 = vmax.f32 %v1525, %v1825
    %v2613 = vmax.f32 %v1825, %v1826
    %v2614 = vmax.f32 %v1826, %v1827
    %v2615 = vmax.f32 %v1827, %v1828
    %v2616 = vmax.f32 %v1828, %v1829
    %v2617 = vmax.f32 %v1829, %v1830
    %v2618 = vmax.f32 %v1831, %v1526
    %v2619 = vmax.f32 %v1526, %v1832
    %v2620 = vmax.f32 %v1832, %v1833
    %v2621 = vmax.f32 %v1833, %v1834
    %v2622 = vmax.f32 %v1834, %v1835
    %v2623 = vmax.f32 %v1835, %v1836
    %v2624 = vmax.f32 %v1836, %v1837
    %v2625 = vmax.f32 %v1837, %v1838
    %v2626 = vmax.f32 %v1838, %v1527
    %v2627 = vmax.f32 %v1527, %v1839
    %v2628 = vmax.f32 %v1839, %v1840
    %v2629 = vmax.f32 %v1840, %v1841
    %v2630 = vmax.f32 %v1841, %v1842
    %v2631 = vmax.f32 %v1842, %v1843
    %v2632 = vmax.f32 %v1844, %v1845
    %v2633 = vmax.f32 %v1845, %v1528
    %v2634 = vmax.f32 %v1528, %v1846
    %v2635 = vmax.f32 %v1846, %v1847
    %v2636 = vmax.f32 %v1847, %v1848
    %v2637 = vmax.f32 %v1848, %v1849
    %v2638 = vmax.f32 %v1849, %v1850
    %v2639 = vmax.f32 %v1850, %v1851
    %v2640 = vmax.f32 %v1851, %v1852
    %v2641 = vmax.f32 %v1852, %v1529
    %v2642 = vmax.f32 %v1529, %v1853
    %v2643 = vmax.f32 %v1853, %v1854
    %v2644 = vmax.f32 %v1854, %v1855
    %v2645 = vmax.f32 %v1855, %v1856
    %v2646 = vmax.f32 %v1857, %v1858
    %v2647 = vmax.f32 %v1858, %v1859
    %v2648 = vmax.f32 %v1859, %v1530
    %v2649 = vmax.f32 %v1530, %v1860
    %v2650 = vmax.f32 %v1860, %v1861
    %v2651 = vmax.f32 %v1861, %v1862
    %v2652 = vmax.f32 %v1862, %v1863
    %v2653 = vmax.f32 %v1863, %v1864
    %v2654 = vmax.f32 %v1864, %v1865
    %v2655 = vmax.f32 %v1865, %v1866
    %v2656 = vmax.f32 %v1866, %v1531
    %v2657 = vmax.f32 %v1531, %v1867
    %v2658 = vmax.f32 %v1867, %v1868
    %v2659 = vmax.f32 %v1868, %v1869
    %v2660 = vmax.f32 %v1870, %v1871
    %v2661 = vmax.f32 %v1871, %v1872
    %v2662 = vmax.f32 %v1872, %v1873
    %v2663 = vmax.f32 %v1873, %v1532
    %v2664 = vmax.f32 %v1532, %v1874
    %v2665 = vmax.f32 %v1874, %v1875
    %v2666 = vmax.f32 %v1875, %v1876
    %v2667 = vmax.f32 %v1876, %v1877
    %v2668 = vmax.f32 %v1877, %v1878
    %v2669 = vmax.f32 %v1878, %v1879
    %v2670 = vmax.f32 %v1879, %v1880
    %v2671 = vmax.f32 %v1880, %v1533
    %v2672 = vmax.f32 %v1533, %v1881
    %v2673 = vmax.f32 %v1881, %v1882
    %v2674 = vmax.f32 %v1883, %v1884
    %v2675 = vmax.f32 %v1884, %v1885
    %v2676 = vmax.f32 %v1885, %v1886
    %v2677 = vmax.f32 %v1886, %v1887
    %v2678 = vmax.f32 %v1887, %v1534
    %v2679 = vmax.f32 %v1534, %v1888
    %v2680 = vmax.f32 %v1888, %v1889
    %v2681 = vmax.f32 %v1889, %v1890
    %v2682 = vmax.f32 %v1890, %v1891
    %v2683 = vmax.f32 %v1891, %v1892
    %v2684 = vmax.f32 %v1892, %v1893
    %v2685 = vmax.f32 %v1893, %v1894
    %v2686 = vmax.f32 %v1894, %v1535
    %v2687 = vmax.f32 %v1535, %v1895
    %v2688 = vmax.f32 %v1896, %v1897
    %v2689 = vmax.f32 %v1897, %v1898
    %v2690 = vmax.f32 %v1898, %v1899
    %v2691 = vmax.f32 %v1899, %v1900
    %v2692 = vmax.f32 %v1900, %v1901
    %v2693 = vmax.f32 %v1901, %v1536
    %v2694 = vmax.f32 %v1536, %v1902
    %v2695 = vmax.f32 %v1902, %v1903
    %v2696 = vmax.f32 %v1903, %v1904
    %v2697 = vmax.f32 %v1904, %v1905
    %v2698 = vmax.f32 %v1905, %v1906
    %v2699 = vmax.f32 %v1906, %v1907
    %v2700 = vmax.f32 %v1907, %v1908
    %v2701 = vmax.f32 %v1908, %v1537
    %v2702 = vmax.f32 %v1909, %v1910
    %v2703 = vmax.f32 %v1910, %v1911
    %v2704 = vmax.f32 %v1911, %v1912
    %v2705 = vmax.f32 %v1912, %v1913
    %v2706 = vmax.f32 %v1913, %v1914
    %v2707 = vmax.f32 %v1914, %v1915
    %v2708 = vmax.f32 %v1915, %v1538
    %v2709 = vmax.f32 %v1538, %v1916
    %v2710 = vmax.f32 %v1916, %v1917
    %v2711 = vmax.f32 %v1917, %v1918
    %v2712 = vmax.f32 %v1918, %v1919
    %v2713 = vmax.f32 %v1919, %v1920
    %v2714 = vmax.f32 %v1920, %v1921
    %v2715 = vmax.f32 %v1921, %v1922
    %v2716 = vmax.f32 %v1539, %v1923
    %v2717 = vmax.f32 %v1923, %v1924
    %v2718 = vmax.f32 %v1924, %v1925
    %v2719 = vmax.f32 %v1925, %v1926
    %v2720 = vmax.f32 %v1926, %v1927
    %v2721 = vmax.f32 %v1927, %v1928
    %v2722 = vmax.f32 %v1928, %v1929
    %v2723 = vmax.f32 %v1929, %v1540
    %v2724 = vmax.f32 %v1540, %v1930
    %v2725 = vmax.f32 %v1930, %v1931
    %v2726 = vmax.f32 %v1931, %v1932
    %v2727 = vmax.f32 %v1932, %v1933
    %v2728 = vmax.f32 %v1933, %v1934
    %v2729 = vmax.f32 %v1934, %v1935
    %v2730 = vmax.f32 %v1936, %v1541
    %v2731 = vmax.f32 %v1541, %v1937
    %v2732 = vmax.f32 %v1937, %v1938
    %v2733 = vmax.f32 %v1938, %v1939
    %v2734 = vmax.f32 %v1939, %v1940
    %v2735 = vmax.f32 %v1940, %v1941
    %v2736 = vmax.f32 %v1941, %v1942
    %v2737 = vmax.f32 %v1942, %v1943
    %v2738 = vmax.f32 %v1943, %v1542
    %v2739 = vmax.f32 %v1542, %v1944
    %v2740 = vmax.f32 %v1944, %v1945
    %v2741 = vmax.f32 %v1945, %v1946
    %v2742 = vmax.f32 %v1946, %v1947
    %v2743 = vmax.f32 %v1947, %v1948
    %v2744 = vmax.f32 %v1949, %v1950
    %v2745 = vmax.f32 %v1950, %v1543
    %v2746 = vmax.f32 %v1543, %v1951
    %v2747 = vmax.f32 %v1951, %v1952
    %v2748 = vmax.f32 %v1952, %v1953
    %v2749 = vmax.f32 %v1953, %v1954
    %v2750 = vmax.f32 %v1954, %v1955
    %v2751 = vmax.f32 %v1955, %v1956
    %v2752 = vmax.f32 %v1956, %v1957
    %v2753 = vmax.f32 %v1957, %v1544
    %v2754 = vmax.f32 %v1544, %v1958
    %v2755 = vmax.f32 %v1958, %v1959
    %v2756 = vmax.f32 %v1959, %v1960
    %v2757 = vmax.f32 %v1960, %v1961
    %v2758 = vmax.f32 %v1962, %v1963
    %v2759 = vmax.f32 %v1963, %v1964
    %v2760 = vmax.f32 %v1964, %v1545
    %v2761 = vmax.f32 %v1545, %v1965
    %v2762 = vmax.f32 %v1965, %v1966
    %v2763 = vmax.f32 %v1966, %v1967
    %v2764 = vmax.f32 %v1967, %v1968
    %v2765 = vmax.f32 %v1968, %v1969
    %v2766 = vmax.f32 %v1969, %v1970
    %v2767 = vmax.f32 %v1970, %v1971
    %v2768 = vmax.f32 %v1971, %v1546
    %v2769 = vmax.f32 %v1546, %v1972
    %v2770 = vmax.f32 %v1972, %v1973
    %v2771 = vmax.f32 %v1973, %v1974
    %v2772 = vmax.f32 %v1975, %v1976
    %v2773 = vmax.f32 %v1976, %v1977
    %v2774 = vmax.f32 %v1977, %v1978
    %v2775 = vmax.f32 %v1978, %v1547
    %v2776 = vmax.f32 %v1547, %v1979
    %v2777 = vmax.f32 %v1979, %v1980
    %v2778 = vmax.f32 %v1980, %v1981
    %v2779 = vmax.f32 %v1981, %v1982
    %v2780 = vmax.f32 %v1982, %v1983
    %v2781 = vmax.f32 %v1983, %v1984
    %v2782 = vmax.f32 %v1984, %v1985
    %v2783 = vmax.f32 %v1985, %v1548
    %v2784 = vmax.f32 %v1548, %v1986
    %v2785 = vmax.f32 %v1986, %v1987
    %v2786 = vmax.f32 %v1791, %v1792
    %v2787 = vmax.f32 %v1792, %v1793
    %v2788 = vmax.f32 %v1793, %v1794
    %v2789 = vmax.f32 %v1794, %v1795
    %v2790 = vmax.f32 %v1795, %v1796
    %v2791 = vmax.f32 %v1796, %v1521
    %v2792 = vmax.f32 %v1521, %v1797
    %v2793 = vmax.f32 %v1797, %v1798
    %v2794 = vmax.f32 %v1798, %v1799
    %v2795 = vmax.f32 %v1799, %v1800
    %v2796 = vmax.f32 %v1800, %v1801
    %v2797 = vmax.f32 %v1801, %v1802
    %v2798 = vmax.f32 %v1802, %v1803
    %v2799 = vmax.f32 %v1803, %v1522
    %v2800 = vmax.f32 %v1988, %v1989
    %v2801 = vmax.f32 %v1989, %v1990
    %v2802 = vmax.f32 %v1990, %v1991
    %v2803 = vmax.f32 %v1991, %v1992
    %v2804 = vmax.f32 %v1992, %v1549
    %v2805 = vmax.f32 %v1549, %v1993
    %v2806 = vmax.f32 %v1993, %v1994
    %v2807 = vmax.f32 %v1994, %v1995
    %v2808 = vmax.f32 %v1995, %v1996
    %v2809 = vmax.f32 %v1996, %v1997
    %v2810 = vmax.f32 %v1997, %v1998
    %v2811 = vmax.f32 %v1998, %v1999
    %v2812 = vmax.f32 %v1999, %v1550
    %v2813 = vmax.f32 %v1550, %v2000
    %v2814 = vmax.f32 %v2394, %v2408
    %v2815 = vmax.f32 %v2395, %v2409
    %v2816 = vmax.f32 %v2396, %v2410
    %v2817 = vmax.f32 %v2397, %v2411
    %v2818 = vmax.f32 %v2398, %v2412
    %v2819 = vmax.f32 %v2399, %v2413
    %v2820 = vmax.f32 %v2400, %v2414
    %v2821 = vmax.f32 %v2401, %v2415
    %v2822 = vmax.f32 %v2402, %v2416
    %v2823 = vmax.f32 %v2403, %v2417
    %v2824 = vmax.f32 %v2404, %v2418
    %v2825 = vmax.f32 %v2405, %v2419
    %v2826 = vmax.f32 %v2406, %v2420
    %v2827 = vmax.f32 %v2407, %v2421
    %v2828 = vmax.f32 %v2408, %v2422
    %v2829 = vmax.f32 %v2409, %v2423
    %v2830 = vmax.f32 %v2410, %v2424
    %v2831 = vmax.f32 %v2411, %v2425
    %v2832 = vmax.f32 %v2412, %v2426
    %v2833 = vmax.f32 %v2413, %v2427
    %v2834 = vmax.f32 %v2414, %v2428
    %v2835 = vmax.f32 %v2415, %v2429
    %v2836 = vmax.f32 %v2416, %v2430
    %v2837 = vmax.f32 %v2417, %v2431
    %v2838 = vmax.f32 %v2418, %v2432
    %v2839 = vmax.f32 %v2419, %v2433
    %v2840 = vmax.f32 %v2420, %v2434
    %v2841 = vmax.f32 %v2421, %v2435
    %v2842 = vmax.f32 %v2422, %v2436
    %v2843 = vmax.f32 %v2423, %v2437
    %v2844 = vmax.f32 %v2424, %v2438
    %v2845 = vmax.f32 %v2425, %v2439
    %v2846 = vmax.f32 %v2426, %v2440
    %v2847 = vmax.f32 %v2427, %v2441
    %v2848 = vmax.f32 %v2428, %v2442
    %v2849 = vmax.f32 %v2429, %v2443
    %v2850 = vmax.f32 %v2430, %v2444
    %v2851 = vmax.f32 %v2431, %v2445
    %v2852 = vmax.f32 %v2432, %v2446
    %v2853 = vmax.f32 %v2433, %v2447
    %v2854 = vmax.f32 %v2434, %v2448
    %v2855 = vmax.f32 %v2435, %v2449
    %v2856 = vmax.f32 %v2436, %v2450
    %v2857 = vmax.f32 %v2437, %v2451
    %v2858 = vmax.f32 %v2438, %v2452
    %v2859 = vmax.f32 %v2439, %v2453
    %v2860 = vmax.f32 %v2440, %v2454
    %v2861 = vmax.f32 %v2441, %v2455
    %v2862 = vmax.f32 %v2442, %v2456
    %v2863 = vmax.f32 %v2443, %v2457
    %v2864 = vmax.f32 %v2444, %v2458
    %v2865 = vmax.f32 %v2445, %v2459
    %v2866 = vmax.f32 %v2446, %v2460
    %v2867 = vmax.f32 %v2447, %v2461
    %v2868 = vmax.f32 %v2448, %v2462
    %v2869 = vmax.f32 %v2449, %v2463
    %v2870 = vmax.f32 %v2450, %v2464
    %v2871 = vmax.f32 %v2451, %v2465
    %v2872 = vmax.f32 %v2452, %v2466
    %v2873 = vmax.f32 %v2453, %v2467
    %v2874 = vmax.f32 %v2454, %v2468
    %v2875 = vmax.f32 %v2455, %v2469
    %v2876 = vmax.f32 %v2456, %v2470
    %v2877 = vmax.f32 %v2457, %v2471
    %v2878 = vmax.f32 %v2458, %v2472
    %v2879 = vmax.f32 %v2459, %v2473
    %v2880 = vmax.f32 %v2460, %v2474
    %v2881 = vmax.f32 %v2461, %v2475
    %v2882 = vmax.f32 %v2462, %v2476
    %v2883 = vmax.f32 %v2463, %v2477
    %v2884 = vmax.f32 %v2464, %v2478
    %v2885 = vmax.f32 %v2465, %v2479
    %v2886 = vmax.f32 %v2466, %v2480
    %v2887 = vmax.f32 %v2467, %v2481
    %v2888 = vmax.f32 %v2468, %v2482
    %v2889 = vmax.f32 %v2469, %v2483
    %v2890 = vmax.f32 %v2470, %v2484
    %v2891 = vmax.f32 %v2471, %v2485
    %v2892 = vmax.f32 %v2472, %v2486
    %v2893 = vmax.f32 %v2473, %v2487
    %v2894 = vmax.f32 %v2474, %v2488
    %v2895 = vmax.f32 %v2475, %v2489
    %v2896 = vmax.f32 %v2476, %v2490
    %v2897 = vmax.f32 %v2477, %v2491
    %v2898 = vmax.f32 %v2478, %v2492
    %v2899 = vmax.f32 %v2479, %v2493
    %v2900 = vmax.f32 %v2480, %v2494
    %v2901 = vmax.f32 %v2481, %v2495
    %v2902 = vmax.f32 %v2482, %v2496
    %v2903 = vmax.f32 %v2483, %v2497
    %v2904 = vmax.f32 %v2484, %v2498
    %v2905 = vmax.f32 %v2485, %v2499
    %v2906 = vmax.f32 %v2486, %v2500
    %v2907 = vmax.f32 %v2487, %v2501
    %v2908 = vmax.f32 %v2488, %v2502
    %v2909 = vmax.f32 %v2489, %v2503
    %v2910 = vmax.f32 %v2490, %v2504
    %v2911 = vmax.f32 %v2491, %v2505
    %v2912 = vmax.f32 %v2492, %v2506
    %v2913 = vmax.f32 %v2493, %v2507
    %v2914 = vmax.f32 %v2494, %v2508
    %v2915 = vmax.f32 %v2495, %v2509
    %v2916 = vmax.f32 %v2496, %v2510
    %v2917 = vmax.f32 %v2497, %v2511
    %v2918 = vmax.f32 %v2498, %v2512
    %v2919 = vmax.f32 %v2499, %v2513
    %v2920 = vmax.f32 %v2500, %v2514
    %v2921 = vmax.f32 %v2501, %v2515
    %v2922 = vmax.f32 %v2502, %v2516
    %v2923 = vmax.f32 %v2503, %v2517
    %v2924 = vmax.f32 %v2504, %v2518
    %v2925 = vmax.f32 %v2505, %v2519
    %v2926 = vmax.f32 %v2506, %v2520
    %v2927 = vmax.f32 %v2507, %v2521
    %v2928 = vmax.f32 %v2508, %v2522
    %v2929 = vmax.f32 %v2509, %v2523
    %v2930 = vmax.f32 %v2510, %v2524
    %v2931 = vmax.f32 %v2511, %v2525
    %v2932 = vmax.f32 %v2512, %v2526
    %v2933 = vmax.f32 %v2513, %v2527
    %v2934 = vmax.f32 %v2514, %v2528
    %v2935 = vmax.f32 %v2515, %v2529
    %v2936 = vmax.f32 %v2516, %v2530
    %v2937 = vmax.f32 %v2517, %v2531
    %v2938 = vmax.f32 %v2518, %v2532
    %v2939 = vmax.f32 %v2519, %v2533
    %v2940 = vmax.f32 %v2520, %v2534
    %v2941 = vmax.f32 %v2521, %v2535
    %v2942 = vmax.f32 %v2522, %v2536
    %v2943 = vmax.f32 %v2523, %v2537
    %v2944 = vmax.f32 %v2524, %v2538
    %v2945 = vmax.f32 %v2525, %v2539
    %v2946 = vmax.f32 %v2526, %v2540
    %v2947 = vmax.f32 %v2527, %v2541
    %v2948 = vmax.f32 %v2528, %v2542
    %v2949 = vmax.f32 %v2529, %v2543
    %v2950 = vmax.f32 %v2530, %v2544
    %v2951 = vmax.f32 %v2531, %v2545
    %v2952 = vmax.f32 %v2532, %v2546
    %v2953 = vmax.f32 %v2533, %v2547
    %v2954 = vmax.f32 %v2534, %v2548
    %v2955 = vmax.f32 %v2535, %v2549
    %v2956 = vmax.f32 %v2536, %v2550
    %v2957 = vmax.f32 %v2537, %v2551
    %v2958 = vmax.f32 %v2538, %v2552
    %v2959 = vmax.f32 %v2539, %v2553
    %v2960 = vmax.f32 %v2540, %v2554
    %v2961 = vmax.f32 %v2541, %v2555
    %v2962 = vmax.f32 %v2542, %v2556
    %v2963 = vmax.f32 %v2543, %v2557
    %v2964 = vmax.f32 %v2544, %v2558
    %v2965 = vmax.f32 %v2545, %v2559
    %v2966 = vmax.f32 %v2546, %v2560
    %v2967 = vmax.f32 %v2547, %v2561
    %v2968 = vmax.f32 %v2548, %v2562
    %v2969 = vmax.f32 %v2549, %v2563
    %v2970 = vmax.f32 %v2550, %v2564
    %v2971 = vmax.f32 %v2551, %v2565
    %v2972 = vmax.f32 %v2552, %v2566
    %v2973 = vmax.f32 %v2553, %v2567
    %v2974 = vmax.f32 %v2554, %v2568
    %v2975 = vmax.f32 %v2555, %v2569
    %v2976 = vmax.f32 %v2556, %v2570
    %v2977 = vmax.f32 %v2557, %v2571
    %v2978 = vmax.f32 %v2558, %v2572
    %v2979 = vmax.f32 %v2559, %v2573
    %v2980 = vmax.f32 %v2560, %v2574
    %v2981 = vmax.f32 %v2561, %v2575
    %v2982 = vmax.f32 %v2562, %v2576
    %v2983 = vmax.f32 %v2563, %v2577
    %v2984 = vmax.f32 %v2564, %v2578
    %v2985 = vmax.f32 %v2565, %v2579
    %v2986 = vmax.f32 %v2566, %v2580
    %v2987 = vmax.f32 %v2567, %v2581
    %v2988 = vmax.f32 %v2568, %v2582
    %v2989 = vmax.f32 %v2569, %v2583
    %v2990 = vmax.f32 %v2570, %v2584
    %v2991 = vmax.f32 %v2571, %v2585
    %v2992 = vmax.f32 %v2572, %v2586
    %v2993 = vmax.f32 %v2573, %v2587
    %v2994 = vmax.f32 %v2574, %v2588
    %v2995 = vmax.f32 %v2575, %v2589
    %v2996 = vmax.f32 %v2576, %v2786
    %v2997 = vmax.f32 %v2577, %v2787
    %v2998 = vmax.f32 %v2578, %v2788
    %v2999 = vmax.f32 %v2579, %v2789
    %v3000 = vmax.f32 %v2580, %v2790
    %v3001 = vmax.f32 %v2581, %v2791
    %v3002 = vmax.f32 %v2582, %v2792
    %v3003 = vmax.f32 %v2583, %v2793
    %v3004 = vmax.f32 %v2584, %v2794
    %v3005 = vmax.f32 %v2585, %v2795
    %v3006 = vmax.f32 %v2586, %v2796
    %v3007 = vmax.f32 %v2587, %v2797
    %v3008 = vmax.f32 %v2588, %v2798
    %v3009 = vmax.f32 %v2589, %v2799
    %v3010 = vmax.f32 %v2590, %v2604
    %v3011 = vmax.f32 %v2591, %v2605
    %v3012 = vmax.f32 %v2592, %v2606
    %v3013 = vmax.f32 %v2593, %v2607
    %v3014 = vmax.f32 %v2594, %v2608
    %v3015 = vmax.f32 %v2595, %v2609
    %v3016 = vmax.f32 %v2596, %v2610
    %v3017 = vmax.f32 %v2597, %v2611
    %v3018 = vmax.f32 %v2598, %v2612
    %v3019 = vmax.f32 %v2599, %v2613
    %v3020 = vmax.f32 %v2600, %v2614
    %v3021 = vmax.f32 %v2601, %v2615
    %v3022 = vmax.f32 %v2602, %v2616
    %v3023 = vmax.f32 %v2603, %v2617
    %v3024 = vmax.f32 %v2604, %v2618
    %v3025 = vmax.f32 %v2605, %v2619
    %v3026 = vmax.f32 %v2606, %v2620
    %v3027 = vmax.f32 %v2607, %v2621
    %v3028 = vmax.f32 %v2608, %v2622
    %v3029 = vmax.f32 %v2609, %v2623
    %v3030 = vmax.f32 %v2610, %v2624
    %v3031 = vmax.f32 %v2611, %v2625
    %v3032 = vmax.f32 %v2612, %v2626
    %v3033 = vmax.f32 %v2613, %v2627
    %v3034 = vmax.f32 %v2614, %v2628
    %v3035 = vmax.f32 %v2615, %v2629
    %v3036 = vmax.f32 %v2616, %v2630
    %v3037 = vmax.f32 %v2617, %v2631
    %v3038 = vmax.f32 %v2618, %v2632
    %v3039 = vmax.f32 %v2619, %v2633
    %v3040 = vmax.f32 %v2620, %v2634
    %v3041 = vmax.f32 %v2621, %v2635
    %v3042 = vmax.f32 %v2622, %v2636
    %v3043 = vmax.f32 %v2623, %v2637
    %v3044 = vmax.f32 %v2624, %v2638
    %v3045 = vmax.f32 %v2625, %v2639
    %v3046 = vmax.f32 %v2626, %v2640
    %v3047 = vmax.f32 %v2627, %v2641
    %v3048 = vmax.f32 %v2628, %v2642
    %v3049 = vmax.f32 %v2629, %v2643
    %v3050 = vmax.f32 %v2630, %v2644
    %v3051 = vmax.f32 %v2631, %v2645
    %v3052 = vmax.f32 %v2632, %v2646
    %v3053 = vmax.f32 %v2633, %v2647
    %v3054 = vmax.f32 %v2634, %v2648
    %v3055 = vmax.f32 %v2635, %v2649
    %v3056 = vmax.f32 %v2636, %v2650
    %v3057 = vmax.f32 %v2637, %v2651
    %v3058 = vmax.f32 %v2638, %v2652
    %v3059 = vmax.f32 %v2639, %v2653
    %v3060 = vmax.f32 %v2640, %v2654
    %v3061 = vmax.f32 %v2641, %v2655
    %v3062 = vmax.f32 %v2642, %v2656
    %v3063 = vmax.f32 %v2643, %v2657
    %v3064 = vmax.f32 %v2644, %v2658
    %v3065 = vmax.f32 %v2645, %v2659
    %v3066 = vmax.f32 %v2646, %v2660
    %v3067 = vmax.f32 %v2647, %v2661
    %v3068 = vmax.f32 %v2648, %v2662
    %v3069 = vmax.f32 %v2649, %v2663
    %v3070 = vmax.f32 %v2650, %v2664
    %v3071 = vmax.f32 %v2651, %v2665
    %v3072 = vmax.f32 %v2652, %v2666
    %v3073 = vmax.f32 %v2653, %v2667
    %v3074 = vmax.f32 %v2654, %v2668
    %v3075 = vmax.f32 %v2655, %v2669
    %v3076 = vmax.f32 %v2656, %v2670
    %v3077 = vmax.f32 %v2657, %v2671
    %v3078 = vmax.f32 %v2658, %v2672
    %v3079 = vmax.f32 %v2659, %v2673
    %v3080 = vmax.f32 %v2660, %v2674
    %v3081 = vmax.f32 %v2661, %v2675
    %v3082 = vmax.f32 %v2662, %v2676
    %v3083 = vmax.f32 %v2663, %v2677
    %v3084 = vmax.f32 %v2664, %v2678
    %v3085 = vmax.f32 %v2665, %v2679
    %v3086 = vmax.f32 %v2666, %v2680
    %v3087 = vmax.f32 %v2667, %v2681
    %v3088 = vmax.f32 %v2668, %v2682
    %v3089 = vmax.f32 %v2669, %v2683
    %v3090 = vmax.f32 %v2670, %v2684
    %v3091 = vmax.f32 %v2671, %v2685
    %v3092 = vmax.f32 %v2672, %v2686
    %v3093 = vmax.f32 %v2673, %v2687
    %v3094 = vmax.f32 %v2674, %v2688
    %v3095 = vmax.f32 %v2675, %v2689
    %v3096 = vmax.f32 %v2676, %v2690
    %v3097 = vmax.f32 %v2677, %v2691
    %v3098 = vmax.f32 %v2678, %v2692
    %v3099 = vmax.f32 %v2679, %v2693
    %v3100 = vmax.f32 %v2680, %v2694
    %v3101 = vmax.f32 %v2681, %v2695
    %v3102 = vmax.f32 %v2682, %v2696
    %v3103 = vmax.f32 %v2683, %v2697
    %v3104 = vmax.f32 %v2684, %v2698
    %v3105 = vmax.f32 %v2685, %v2699
    %v3106 = vmax.f32 %v2686, %v2700
    %v3107 = vmax.f32 %v2687, %v2701
    %v3108 = vmax.f32 %v2688, %v2702
    %v3109 = vmax.f32 %v2689, %v2703
    %v3110 = vmax.f32 %v2690, %v2704
    %v3111 = vmax.f32 %v2691, %v2705
    %v3112 = vmax.f32 %v2692, %v2706
    %v3113 = vmax.f32 %v2693, %v2707
    %v3114 = vmax.f32 %v2694, %v2708
    %v3115 = vmax.f32 %v2695, %v2709
    %v3116 = vmax.f32 %v2696, %v2710
    %v3117 = vmax.f32 %v2697, %v2711
    %v3118 = vmax.f32 %v2698, %v2712
    %v3119 = vmax.f32 %v2699, %v2713
    %v3120 = vmax.f32 %v2700, %v2714
    %v3121 = vmax.f32 %v2701, %v2715
    %v3122 = vmax.f32 %v2702, %v2716
    %v3123 = vmax.f32 %v2703, %v2717
    %v3124 = vmax.f32 %v2704, %v2718
    %v3125 = vmax.f32 %v2705, %v2719
    %v3126 = vmax.f32 %v2706, %v2720
    %v3127 = vmax.f32 %v2707, %v2721
    %v3128 = vmax.f32 %v2708, %v2722
    %v3129 = vmax.f32 %v2709, %v2723
    %v3130 = vmax.f32 %v2710, %v2724
    %v3131 = vmax.f32 %v2711, %v2725
    %v3132 = vmax.f32 %v2712, %v2726
    %v3133 = vmax.f32 %v2713, %v2727
    %v3134 = vmax.f32 %v2714, %v2728
    %v3135 = vmax.f32 %v2715, %v2729
    %v3136 = vmax.f32 %v2716, %v2730
    %v3137 = vmax.f32 %v2717, %v2731
    %v3138 = vmax.f32 %v2718, %v2732
    %v3139 = vmax.f32 %v2719, %v2733
    %v3140 = vmax.f32 %v2720, %v2734
    %v3141 = vmax.f32 %v2721, %v2735
    %v3142 = vmax.f32 %v2722, %v2736
    %v3143 = vmax.f32 %v2723, %v2737
    %v3144 = vmax.f32 %v2724, %v2738
    %v3145 = vmax.f32 %v2725, %v2739
    %v3146 = vmax.f32 %v2726, %v2740
    %v3147 = vmax.f32 %v2727, %v2741
    %v3148 = vmax.f32 %v2728, %v2742
    %v3149 = vmax.f32 %v2729, %v2743
    %v3150 = vmax.f32 %v2730, %v2744
    %v3151 = vmax.f32 %v2731, %v2745
    %v3152 = vmax.f32 %v2732, %v2746
    %v3153 = vmax.f32 %v2733, %v2747
    %v3154 = vmax.f32 %v2734, %v2748
    %v3155 = vmax.f32 %v2735, %v2749
    %v3156 = vmax.f32 %v2736, %v2750
    %v3157 = vmax.f32 %v2737, %v2751
    %v3158 = vmax.f32 %v2738, %v2752
    %v3159 = vmax.f32 %v2739, %v2753
    %v3160 = vmax.f32 %v2740, %v2754
    %v3161 = vmax.f32 %v2741, %v2755
    %v3162 = vmax.f32 %v2742, %v2756
    %v3163 = vmax.f32 %v2743, %v2757
    %v3164 = vmax.f32 %v2744, %v2758
    %v3165 = vmax.f32 %v2745, %v2759
    %v3166 = vmax.f32 %v2746, %v2760
    %v3167 = vmax.f32 %v2747, %v2761
    %v3168 = vmax.f32 %v2748, %v2762
    %v3169 = vmax.f32 %v2749, %v2763
    %v3170 = vmax.f32 %v2750, %v2764
    %v3171 = vmax.f32 %v2751, %v2765
    %v3172 = vmax.f32 %v2752, %v2766
    %v3173 = vmax.f32 %v2753, %v2767
    %v3174 = vmax.f32 %v2754, %v2768
    %v3175 = vmax.f32 %v2755, %v2769
    %v3176 = vmax.f32 %v2756, %v2770
    %v3177 = vmax.f32 %v2757, %v2771
    %v3178 = vmax.f32 %v2758, %v2772
    %v3179 = vmax.f32 %v2759, %v2773
    %v3180 = vmax.f32 %v2760, %v2774
    %v3181 = vmax.f32 %v2761, %v2775
    %v3182 = vmax.f32 %v2762, %v2776
    %v3183 = vmax.f32 %v2763, %v2777
    %v3184 = vmax.f32 %v2764, %v2778
    %v3185 = vmax.f32 %v2765, %v2779
    %v3186 = vmax.f32 %v2766, %v2780
    %v3187 = vmax.f32 %v2767, %v2781
    %v3188 = vmax.f32 %v2768, %v2782
    %v3189 = vmax.f32 %v2769, %v2783
    %v3190 = vmax.f32 %v2770, %v2784
    %v3191 = vmax.f32 %v2771, %v2785
    %v3192 = vmax.f32 %v2772, %v2800
    %v3193 = vmax.f32 %v2773, %v2801
    %v3194 = vmax.f32 %v2774, %v2802
    %v3195 = vmax.f32 %v2775, %v2803
    %v3196 = vmax.f32 %v2776, %v2804
    %v3197 = vmax.f32 %v2777, %v2805
    %v3198 = vmax.f32 %v2778, %v2806
    %v3199 = vmax.f32 %v2779, %v2807
    %v3200 = vmax.f32 %v2780, %v2808
    %v3201 = vmax.f32 %v2781, %v2809
    %v3202 = vmax.f32 %v2782, %v2810
    %v3203 = vmax.f32 %v2783, %v2811
    %v3204 = vmax.f32 %v2784, %v2812
    %v3205 = vmax.f32 %v2785, %v2813
    %3544 = vst [vmem:[#allocation1] ss:$9 sm:$0xff] %v2814
    %s3545 = scalar_lea.vmem [#allocation1], 1
    %3546 = vst [vmem:[%s3545] ss:$9 sm:$0xff] %v2815
    %s3547 = scalar_lea.vmem [#allocation1], 2
    %3548 = vst [vmem:[%s3547] ss:$9 sm:$0xff] %v2816
    %s3549 = scalar_lea.vmem [#allocation1], 3
    %3550 = vst [vmem:[%s3549] ss:$9 sm:$0xff] %v2817
    %s3551 = scalar_lea.vmem [#allocation1], 4
    %3552 = vst [vmem:[%s3551] ss:$9 sm:$0xff] %v2818
    %s3553 = scalar_lea.vmem [#allocation1], 5
    %3554 = vst [vmem:[%s3553] ss:$9 sm:$0xff] %v2819
    %s3555 = scalar_lea.vmem [#allocation1], 6
    %3556 = vst [vmem:[%s3555] ss:$9 sm:$0xff] %v2820
    %s3557 = scalar_lea.vmem [#allocation1], 7
    %3558 = vst [vmem:[%s3557] ss:$9 sm:$0xff] %v2821
    %v3559 = vld [vmem:[#allocation1] sm:$0xff]
    %3560 = vst [vmem:[#allocation1] ss:$9 sm:$0xff] %v2822
    %3561 = vst [vmem:[%s3545] ss:$9 sm:$0xff] %v2823
    %3562 = vst [vmem:[%s3547] ss:$9 sm:$0xff] %v2824
    %3563 = vst [vmem:[%s3549] ss:$9 sm:$0xff] %v2825
    %3564 = vst [vmem:[%s3551] ss:$9 sm:$0xff] %v2826
    %v3565 = vld [vmem:[#allocation1] sm:$0xff]
    %3566 = vst [vmem:[#allocation1] ss:$9 sm:$0xff] %v2828
    %3567 = vst [vmem:[%s3545] ss:$9 sm:$0xff] %v2829
    %3568 = vst [vmem:[%s3547] ss:$9 sm:$0xff] %v2830
    %3569 = vst [vmem:[%s3549] ss:$9 sm:$0xff] %v2831
    %3570 = vst [vmem:[%s3551] ss:$9 sm:$0xff] %v2832
    %3571 = vst [vmem:[%s3553] ss:$9 sm:$0xff] %v2833
    %3572 = vst [vmem:[%s3555] ss:$9 sm:$0xff] %v2834
    %3573 = vst [vmem:[%s3557] ss:$9 sm:$0xff] %v2835
    %v3574 = vld [vmem:[#allocation1] sm:$0xff]
    %3575 = vst [vmem:[#allocation1] ss:$9 sm:$0xff] %v2836
    %3576 = vst [vmem:[%s3545] ss:$9 sm:$0xff] %v2837
    %3577 = vst [vmem:[%s3547] ss:$9 sm:$0xff] %v2838
    %3578 = vst [vmem:[%s3549] ss:$9 sm:$0xff] %v2839
    %3579 = vst [vmem:[%s3551] ss:$9 sm:$0xff] %v2840
    %v3580 = vld [vmem:[#allocation1] sm:$0xff]
    %3581 = vst [vmem:[#allocation1] ss:$9 sm:$0xff] %v2842
    %3582 = vst [vmem:[%s3545] ss:$9 sm:$0xff] %v2843
    %3583 = vst [vmem:[%s3547] ss:$9 sm:$0xff] %v2844
    %3584 = vst [vmem:[%s3549] ss:$9 sm:$0xff] %v2845
    %3585 = vst [vmem:[%s3551] ss:$9 sm:$0xff] %v2846
    %3586 = vst [vmem:[%s3553] ss:$9 sm:$0xff] %v2847
    %3587 = vst [vmem:[%s3555] ss:$9 sm:$0xff] %v2848
    %3588 = vst [vmem:[%s3557] ss:$9 sm:$0xff] %v2849
    %v3589 = vld [vmem:[#allocation1] sm:$0xff]
    %3590 = vst [vmem:[#allocation1] ss:$9 sm:$0xff] %v2850
    %3591 = vst [vmem:[%s3545] ss:$9 sm:$0xff] %v2851
    %3592 = vst [vmem:[%s3547] ss:$9 sm:$0xff] %v2852
    %3593 = vst [vmem:[%s3549] ss:$9 sm:$0xff] %v2853
    %3594 = vst [vmem:[%s3551] ss:$9 sm:$0xff] %v2854
    %v3595 = vld [vmem:[#allocation1] sm:$0xff]
    %3596 = vst [vmem:[#allocation1] ss:$9 sm:$0xff] %v2856
    %3597 = vst [vmem:[%s3545] ss:$9 sm:$0xff] %v2857
    %3598 = vst [vmem:[%s3547] ss:$9 sm:$0xff] %v2858
    %3599 = vst [vmem:[%s3549] ss:$9 sm:$0xff] %v2859
    %3600 = vst [vmem:[%s3551] ss:$9 sm:$0xff] %v2860
    %3601 = vst [vmem:[%s3553] ss:$9 sm:$0xff] %v2861
    %3602 = vst [vmem:[%s3555] ss:$9 sm:$0xff] %v2862
    %3603 = vst [vmem:[%s3557] ss:$9 sm:$0xff] %v2863
    %v3604 = vld [vmem:[#allocation1] sm:$0xff]
    %3605 = vst [vmem:[#allocation1] ss:$9 sm:$0xff] %v2864
    %3606 = vst [vmem:[%s3545] ss:$9 sm:$0xff] %v2865
    %3607 = vst [vmem:[%s3547] ss:$9 sm:$0xff] %v2866
    %3608 = vst [vmem:[%s3549] ss:$9 sm:$0xff] %v2867
    %3609 = vst [vmem:[%s3551] ss:$9 sm:$0xff] %v2868
    %v3610 = vld [vmem:[#allocation1] sm:$0xff]
    %3611 = vst [vmem:[#allocation1] ss:$9 sm:$0xff] %v2870
    %3612 = vst [vmem:[%s3545] ss:$9 sm:$0xff] %v2871
    %3613 = vst [vmem:[%s3547] ss:$9 sm:$0xff] %v2872
    %3614 = vst [vmem:[%s3549] ss:$9 sm:$0xff] %v2873
    %3615 = vst [vmem:[%s3551] ss:$9 sm:$0xff] %v2874
    %3616 = vst [vmem:[%s3553] ss:$9 sm:$0xff] %v2875
    %3617 = vst [vmem:[%s3555] ss:$9 sm:$0xff] %v2876
    %3618 = vst [vmem:[%s3557] ss:$9 sm:$0xff] %v2877
    %v3619 = vld [vmem:[#allocation1] sm:$0xff]
    %3620 = vst [vmem:[#allocation1] ss:$9 sm:$0xff] %v2878
    %3621 = vst [vmem:[%s3545] ss:$9 sm:$0xff] %v2879
    %3622 = vst [vmem:[%s3547] ss:$9 sm:$0xff] %v2880
    %3623 = vst [vmem:[%s3549] ss:$9 sm:$0xff] %v2881
    %3624 = vst [vmem:[%s3551] ss:$9 sm:$0xff] %v2882
    %v3625 = vld [vmem:[#allocation1] sm:$0xff]
    %3626 = vst [vmem:[#allocation1] ss:$9 sm:$0xff] %v2884
    %3627 = vst [vmem:[%s3545] ss:$9 sm:$0xff] %v2885
    %3628 = vst [vmem:[%s3547] ss:$9 sm:$0xff] %v2886
    %3629 = vst [vmem:[%s3549] ss:$9 sm:$0xff] %v2887
    %3630 = vst [vmem:[%s3551] ss:$9 sm:$0xff] %v2888
    %3631 = vst [vmem:[%s3553] ss:$9 sm:$0xff] %v2889
    %3632 = vst [vmem:[%s3555] ss:$9 sm:$0xff] %v2890
    %3633 = vst [vmem:[%s3557] ss:$9 sm:$0xff] %v2891
    %v3634 = vld [vmem:[#allocation1] sm:$0xff]
    %3635 = vst [vmem:[#allocation1] ss:$9 sm:$0xff] %v2892
    %3636 = vst [vmem:[%s3545] ss:$9 sm:$0xff] %v2893
    %3637 = vst [vmem:[%s3547] ss:$9 sm:$0xff] %v2894
    %3638 = vst [vmem:[%s3549] ss:$9 sm:$0xff] %v2895
    %3639 = vst [vmem:[%s3551] ss:$9 sm:$0xff] %v2896
    %v3640 = vld [vmem:[#allocation1] sm:$0xff]
    %3641 = vst [vmem:[#allocation1] ss:$9 sm:$0xff] %v2898
    %3642 = vst [vmem:[%s3545] ss:$9 sm:$0xff] %v2899
    %3643 = vst [vmem:[%s3547] ss:$9 sm:$0xff] %v2900
    %3644 = vst [vmem:[%s3549] ss:$9 sm:$0xff] %v2901
    %3645 = vst [vmem:[%s3551] ss:$9 sm:$0xff] %v2902
    %3646 = vst [vmem:[%s3553] ss:$9 sm:$0xff] %v2903
    %3647 = vst [vmem:[%s3555] ss:$9 sm:$0xff] %v2904
    %3648 = vst [vmem:[%s3557] ss:$9 sm:$0xff] %v2905
    %v3649 = vld [vmem:[#allocation1] sm:$0xff]
    %3650 = vst [vmem:[#allocation1] ss:$9 sm:$0xff] %v2906
    %3651 = vst [vmem:[%s3545] ss:$9 sm:$0xff] %v2907
    %3652 = vst [vmem:[%s3547] ss:$9 sm:$0xff] %v2908
    %3653 = vst [vmem:[%s3549] ss:$9 sm:$0xff] %v2909
    %3654 = vst [vmem:[%s3551] ss:$9 sm:$0xff] %v2910
    %v3655 = vld [vmem:[#allocation1] sm:$0xff]
    %3656 = vst [vmem:[#allocation1] ss:$9 sm:$0xff] %v2912
    %3657 = vst [vmem:[%s3545] ss:$9 sm:$0xff] %v2913
    %3658 = vst [vmem:[%s3547] ss:$9 sm:$0xff] %v2914
    %3659 = vst [vmem:[%s3549] ss:$9 sm:$0xff] %v2915
    %3660 = vst [vmem:[%s3551] ss:$9 sm:$0xff] %v2916
    %3661 = vst [vmem:[%s3553] ss:$9 sm:$0xff] %v2917
    %3662 = vst [vmem:[%s3555] ss:$9 sm:$0xff] %v2918
    %3663 = vst [vmem:[%s3557] ss:$9 sm:$0xff] %v2919
    %v3664 = vld [vmem:[#allocation1] sm:$0xff]
    %3665 = vst [vmem:[#allocation1] ss:$9 sm:$0xff] %v2920
    %3666 = vst [vmem:[%s3545] ss:$9 sm:$0xff] %v2921
    %3667 = vst [vmem:[%s3547] ss:$9 sm:$0xff] %v2922
    %3668 = vst [vmem:[%s3549] ss:$9 sm:$0xff] %v2923
    %3669 = vst [vmem:[%s3551] ss:$9 sm:$0xff] %v2924
    %v3670 = vld [vmem:[#allocation1] sm:$0xff]
    %3671 = vst [vmem:[#allocation1] ss:$9 sm:$0xff] %v2926
    %3672 = vst [vmem:[%s3545] ss:$9 sm:$0xff] %v2927
    %3673 = vst [vmem:[%s3547] ss:$9 sm:$0xff] %v2928
    %3674 = vst [vmem:[%s3549] ss:$9 sm:$0xff] %v2929
    %3675 = vst [vmem:[%s3551] ss:$9 sm:$0xff] %v2930
    %3676 = vst [vmem:[%s3553] ss:$9 sm:$0xff] %v2931
    %3677 = vst [vmem:[%s3555] ss:$9 sm:$0xff] %v2932
    %3678 = vst [vmem:[%s3557] ss:$9 sm:$0xff] %v2933
    %v3679 = vld [vmem:[#allocation1] sm:$0xff]
    %3680 = vst [vmem:[#allocation1] ss:$9 sm:$0xff] %v2934
    %3681 = vst [vmem:[%s3545] ss:$9 sm:$0xff] %v2935
    %3682 = vst [vmem:[%s3547] ss:$9 sm:$0xff] %v2936
    %3683 = vst [vmem:[%s3549] ss:$9 sm:$0xff] %v2937
    %3684 = vst [vmem:[%s3551] ss:$9 sm:$0xff] %v2938
    %v3685 = vld [vmem:[#allocation1] sm:$0xff]
    %3686 = vst [vmem:[#allocation1] ss:$9 sm:$0xff] %v2940
    %3687 = vst [vmem:[%s3545] ss:$9 sm:$0xff] %v2941
    %3688 = vst [vmem:[%s3547] ss:$9 sm:$0xff] %v2942
    %3689 = vst [vmem:[%s3549] ss:$9 sm:$0xff] %v2943
    %3690 = vst [vmem:[%s3551] ss:$9 sm:$0xff] %v2944
    %3691 = vst [vmem:[%s3553] ss:$9 sm:$0xff] %v2945
    %3692 = vst [vmem:[%s3555] ss:$9 sm:$0xff] %v2946
    %3693 = vst [vmem:[%s3557] ss:$9 sm:$0xff] %v2947
    %v3694 = vld [vmem:[#allocation1] sm:$0xff]
    %3695 = vst [vmem:[#allocation1] ss:$9 sm:$0xff] %v2948
    %3696 = vst [vmem:[%s3545] ss:$9 sm:$0xff] %v2949
    %3697 = vst [vmem:[%s3547] ss:$9 sm:$0xff] %v2950
    %3698 = vst [vmem:[%s3549] ss:$9 sm:$0xff] %v2951
    %3699 = vst [vmem:[%s3551] ss:$9 sm:$0xff] %v2952
    %v3700 = vld [vmem:[#allocation1] sm:$0xff]
    %3701 = vst [vmem:[#allocation1] ss:$9 sm:$0xff] %v2954
    %3702 = vst [vmem:[%s3545] ss:$9 sm:$0xff] %v2955
    %3703 = vst [vmem:[%s3547] ss:$9 sm:$0xff] %v2956
    %3704 = vst [vmem:[%s3549] ss:$9 sm:$0xff] %v2957
    %3705 = vst [vmem:[%s3551] ss:$9 sm:$0xff] %v2958
    %3706 = vst [vmem:[%s3553] ss:$9 sm:$0xff] %v2959
    %3707 = vst [vmem:[%s3555] ss:$9 sm:$0xff] %v2960
    %3708 = vst [vmem:[%s3557] ss:$9 sm:$0xff] %v2961
    %v3709 = vld [vmem:[#allocation1] sm:$0xff]
    %3710 = vst [vmem:[#allocation1] ss:$9 sm:$0xff] %v2962
    %3711 = vst [vmem:[%s3545] ss:$9 sm:$0xff] %v2963
    %3712 = vst [vmem:[%s3547] ss:$9 sm:$0xff] %v2964
    %3713 = vst [vmem:[%s3549] ss:$9 sm:$0xff] %v2965
    %3714 = vst [vmem:[%s3551] ss:$9 sm:$0xff] %v2966
    %v3715 = vld [vmem:[#allocation1] sm:$0xff]
    %3716 = vst [vmem:[#allocation1] ss:$9 sm:$0xff] %v2968
    %3717 = vst [vmem:[%s3545] ss:$9 sm:$0xff] %v2969
    %3718 = vst [vmem:[%s3547] ss:$9 sm:$0xff] %v2970
    %3719 = vst [vmem:[%s3549] ss:$9 sm:$0xff] %v2971
    %3720 = vst [vmem:[%s3551] ss:$9 sm:$0xff] %v2972
    %3721 = vst [vmem:[%s3553] ss:$9 sm:$0xff] %v2973
    %3722 = vst [vmem:[%s3555] ss:$9 sm:$0xff] %v2974
    %3723 = vst [vmem:[%s3557] ss:$9 sm:$0xff] %v2975
    %v3724 = vld [vmem:[#allocation1] sm:$0xff]
    %3725 = vst [vmem:[#allocation1] ss:$9 sm:$0xff] %v2976
    %3726 = vst [vmem:[%s3545] ss:$9 sm:$0xff] %v2977
    %3727 = vst [vmem:[%s3547] ss:$9 sm:$0xff] %v2978
    %3728 = vst [vmem:[%s3549] ss:$9 sm:$0xff] %v2979
    %3729 = vst [vmem:[%s3551] ss:$9 sm:$0xff] %v2980
    %v3730 = vld [vmem:[#allocation1] sm:$0xff]
    %3731 = vst [vmem:[#allocation1] ss:$9 sm:$0xff] %v2982
    %3732 = vst [vmem:[%s3545] ss:$9 sm:$0xff] %v2983
    %3733 = vst [vmem:[%s3547] ss:$9 sm:$0xff] %v2984
    %3734 = vst [vmem:[%s3549] ss:$9 sm:$0xff] %v2985
    %3735 = vst [vmem:[%s3551] ss:$9 sm:$0xff] %v2986
    %3736 = vst [vmem:[%s3553] ss:$9 sm:$0xff] %v2987
    %3737 = vst [vmem:[%s3555] ss:$9 sm:$0xff] %v2988
    %3738 = vst [vmem:[%s3557] ss:$9 sm:$0xff] %v2989
    %v3739 = vld [vmem:[#allocation1] sm:$0xff]
    %3740 = vst [vmem:[#allocation1] ss:$9 sm:$0xff] %v2990
    %3741 = vst [vmem:[%s3545] ss:$9 sm:$0xff] %v2991
    %3742 = vst [vmem:[%s3547] ss:$9 sm:$0xff] %v2992
    %3743 = vst [vmem:[%s3549] ss:$9 sm:$0xff] %v2993
    %3744 = vst [vmem:[%s3551] ss:$9 sm:$0xff] %v2994
    %v3745 = vld [vmem:[#allocation1] sm:$0xff]
    %3746 = vst [vmem:[#allocation1] ss:$9 sm:$0xff] %v3010
    %3747 = vst [vmem:[%s3545] ss:$9 sm:$0xff] %v3011
    %3748 = vst [vmem:[%s3547] ss:$9 sm:$0xff] %v3012
    %3749 = vst [vmem:[%s3549] ss:$9 sm:$0xff] %v3013
    %3750 = vst [vmem:[%s3551] ss:$9 sm:$0xff] %v3014
    %3751 = vst [vmem:[%s3553] ss:$9 sm:$0xff] %v3015
    %3752 = vst [vmem:[%s3555] ss:$9 sm:$0xff] %v3016
    %3753 = vst [vmem:[%s3557] ss:$9 sm:$0xff] %v3017
    %v3754 = vld [vmem:[#allocation1] sm:$0xff]
    %3755 = vst [vmem:[#allocation1] ss:$9 sm:$0xff] %v3018
    %3756 = vst [vmem:[%s3545] ss:$9 sm:$0xff] %v3019
    %3757 = vst [vmem:[%s3547] ss:$9 sm:$0xff] %v3020
    %3758 = vst [vmem:[%s3549] ss:$9 sm:$0xff] %v3021
    %3759 = vst [vmem:[%s3551] ss:$9 sm:$0xff] %v3022
    %v3760 = vld [vmem:[#allocation1] sm:$0xff]
    %3761 = vst [vmem:[#allocation1] ss:$9 sm:$0xff] %v3024
    %3762 = vst [vmem:[%s3545] ss:$9 sm:$0xff] %v3025
    %3763 = vst [vmem:[%s3547] ss:$9 sm:$0xff] %v3026
    %3764 = vst [vmem:[%s3549] ss:$9 sm:$0xff] %v3027
    %3765 = vst [vmem:[%s3551] ss:$9 sm:$0xff] %v3028
    %3766 = vst [vmem:[%s3553] ss:$9 sm:$0xff] %v3029
    %3767 = vst [vmem:[%s3555] ss:$9 sm:$0xff] %v3030
    %3768 = vst [vmem:[%s3557] ss:$9 sm:$0xff] %v3031
    %v3769 = vld [vmem:[#allocation1] sm:$0xff]
    %3770 = vst [vmem:[#allocation1] ss:$9 sm:$0xff] %v3032
    %3771 = vst [vmem:[%s3545] ss:$9 sm:$0xff] %v3033
    %3772 = vst [vmem:[%s3547] ss:$9 sm:$0xff] %v3034
    %3773 = vst [vmem:[%s3549] ss:$9 sm:$0xff] %v3035
    %3774 = vst [vmem:[%s3551] ss:$9 sm:$0xff] %v3036
    %v3775 = vld [vmem:[#allocation1] sm:$0xff]
    %3776 = vst [vmem:[#allocation1] ss:$9 sm:$0xff] %v3038
    %3777 = vst [vmem:[%s3545] ss:$9 sm:$0xff] %v3039
    %3778 = vst [vmem:[%s3547] ss:$9 sm:$0xff] %v3040
    %3779 = vst [vmem:[%s3549] ss:$9 sm:$0xff] %v3041
    %3780 = vst [vmem:[%s3551] ss:$9 sm:$0xff] %v3042
    %3781 = vst [vmem:[%s3553] ss:$9 sm:$0xff] %v3043
    %3782 = vst [vmem:[%s3555] ss:$9 sm:$0xff] %v3044
    %3783 = vst [vmem:[%s3557] ss:$9 sm:$0xff] %v3045
    %v3784 = vld [vmem:[#allocation1] sm:$0xff]
    %3785 = vst [vmem:[#allocation1] ss:$9 sm:$0xff] %v3046
    %3786 = vst [vmem:[%s3545] ss:$9 sm:$0xff] %v3047
    %3787 = vst [vmem:[%s3547] ss:$9 sm:$0xff] %v3048
    %3788 = vst [vmem:[%s3549] ss:$9 sm:$0xff] %v3049
    %3789 = vst [vmem:[%s3551] ss:$9 sm:$0xff] %v3050
    %v3790 = vld [vmem:[#allocation1] sm:$0xff]
    %3791 = vst [vmem:[#allocation1] ss:$9 sm:$0xff] %v3052
    %3792 = vst [vmem:[%s3545] ss:$9 sm:$0xff] %v3053
    %3793 = vst [vmem:[%s3547] ss:$9 sm:$0xff] %v3054
    %3794 = vst [vmem:[%s3549] ss:$9 sm:$0xff] %v3055
    %3795 = vst [vmem:[%s3551] ss:$9 sm:$0xff] %v3056
    %3796 = vst [vmem:[%s3553] ss:$9 sm:$0xff] %v3057
    %3797 = vst [vmem:[%s3555] ss:$9 sm:$0xff] %v3058
    %3798 = vst [vmem:[%s3557] ss:$9 sm:$0xff] %v3059
    %v3799 = vld [vmem:[#allocation1] sm:$0xff]
    %3800 = vst [vmem:[#allocation1] ss:$9 sm:$0xff] %v3060
    %3801 = vst [vmem:[%s3545] ss:$9 sm:$0xff] %v3061
    %3802 = vst [vmem:[%s3547] ss:$9 sm:$0xff] %v3062
    %3803 = vst [vmem:[%s3549] ss:$9 sm:$0xff] %v3063
    %3804 = vst [vmem:[%s3551] ss:$9 sm:$0xff] %v3064
    %v3805 = vld [vmem:[#allocation1] sm:$0xff]
    %3806 = vst [vmem:[#allocation1] ss:$9 sm:$0xff] %v3066
    %3807 = vst [vmem:[%s3545] ss:$9 sm:$0xff] %v3067
    %3808 = vst [vmem:[%s3547] ss:$9 sm:$0xff] %v3068
    %3809 = vst [vmem:[%s3549] ss:$9 sm:$0xff] %v3069
    %3810 = vst [vmem:[%s3551] ss:$9 sm:$0xff] %v3070
    %3811 = vst [vmem:[%s3553] ss:$9 sm:$0xff] %v3071
    %3812 = vst [vmem:[%s3555] ss:$9 sm:$0xff] %v3072
    %3813 = vst [vmem:[%s3557] ss:$9 sm:$0xff] %v3073
    %v3814 = vld [vmem:[#allocation1] sm:$0xff]
    %3815 = vst [vmem:[#allocation1] ss:$9 sm:$0xff] %v3074
    %3816 = vst [vmem:[%s3545] ss:$9 sm:$0xff] %v3075
    %3817 = vst [vmem:[%s3547] ss:$9 sm:$0xff] %v3076
    %3818 = vst [vmem:[%s3549] ss:$9 sm:$0xff] %v3077
    %3819 = vst [vmem:[%s3551] ss:$9 sm:$0xff] %v3078
    %v3820 = vld [vmem:[#allocation1] sm:$0xff]
    %3821 = vst [vmem:[#allocation1] ss:$9 sm:$0xff] %v3080
    %3822 = vst [vmem:[%s3545] ss:$9 sm:$0xff] %v3081
    %3823 = vst [vmem:[%s3547] ss:$9 sm:$0xff] %v3082
    %3824 = vst [vmem:[%s3549] ss:$9 sm:$0xff] %v3083
    %3825 = vst [vmem:[%s3551] ss:$9 sm:$0xff] %v3084
    %3826 = vst [vmem:[%s3553] ss:$9 sm:$0xff] %v3085
    %3827 = vst [vmem:[%s3555] ss:$9 sm:$0xff] %v3086
    %3828 = vst [vmem:[%s3557] ss:$9 sm:$0xff] %v3087
    %v3829 = vld [vmem:[#allocation1] sm:$0xff]
    %3830 = vst [vmem:[#allocation1] ss:$9 sm:$0xff] %v3088
    %3831 = vst [vmem:[%s3545] ss:$9 sm:$0xff] %v3089
    %3832 = vst [vmem:[%s3547] ss:$9 sm:$0xff] %v3090
    %3833 = vst [vmem:[%s3549] ss:$9 sm:$0xff] %v3091
    %3834 = vst [vmem:[%s3551] ss:$9 sm:$0xff] %v3092
    %v3835 = vld [vmem:[#allocation1] sm:$0xff]
    %3836 = vst [vmem:[#allocation1] ss:$9 sm:$0xff] %v3094
    %3837 = vst [vmem:[%s3545] ss:$9 sm:$0xff] %v3095
    %3838 = vst [vmem:[%s3547] ss:$9 sm:$0xff] %v3096
    %3839 = vst [vmem:[%s3549] ss:$9 sm:$0xff] %v3097
    %3840 = vst [vmem:[%s3551] ss:$9 sm:$0xff] %v3098
    %3841 = vst [vmem:[%s3553] ss:$9 sm:$0xff] %v3099
    %3842 = vst [vmem:[%s3555] ss:$9 sm:$0xff] %v3100
    %3843 = vst [vmem:[%s3557] ss:$9 sm:$0xff] %v3101
    %v3844 = vld [vmem:[#allocation1] sm:$0xff]
    %3845 = vst [vmem:[#allocation1] ss:$9 sm:$0xff] %v3102
    %3846 = vst [vmem:[%s3545] ss:$9 sm:$0xff] %v3103
    %3847 = vst [vmem:[%s3547] ss:$9 sm:$0xff] %v3104
    %3848 = vst [vmem:[%s3549] ss:$9 sm:$0xff] %v3105
    %3849 = vst [vmem:[%s3551] ss:$9 sm:$0xff] %v3106
    %v3850 = vld [vmem:[#allocation1] sm:$0xff]
    %3851 = vst [vmem:[#allocation1] ss:$9 sm:$0xff] %v3108
    %3852 = vst [vmem:[%s3545] ss:$9 sm:$0xff] %v3109
    %3853 = vst [vmem:[%s3547] ss:$9 sm:$0xff] %v3110
    %3854 = vst [vmem:[%s3549] ss:$9 sm:$0xff] %v3111
    %3855 = vst [vmem:[%s3551] ss:$9 sm:$0xff] %v3112
    %3856 = vst [vmem:[%s3553] ss:$9 sm:$0xff] %v3113
    %3857 = vst [vmem:[%s3555] ss:$9 sm:$0xff] %v3114
    %3858 = vst [vmem:[%s3557] ss:$9 sm:$0xff] %v3115
    %v3859 = vld [vmem:[#allocation1] sm:$0xff]
    %3860 = vst [vmem:[#allocation1] ss:$9 sm:$0xff] %v3116
    %3861 = vst [vmem:[%s3545] ss:$9 sm:$0xff] %v3117
    %3862 = vst [vmem:[%s3547] ss:$9 sm:$0xff] %v3118
    %3863 = vst [vmem:[%s3549] ss:$9 sm:$0xff] %v3119
    %3864 = vst [vmem:[%s3551] ss:$9 sm:$0xff] %v3120
    %v3865 = vld [vmem:[#allocation1] sm:$0xff]
    %3866 = vst [vmem:[#allocation1] ss:$9 sm:$0xff] %v3122
    %3867 = vst [vmem:[%s3545] ss:$9 sm:$0xff] %v3123
    %3868 = vst [vmem:[%s3547] ss:$9 sm:$0xff] %v3124
    %3869 = vst [vmem:[%s3549] ss:$9 sm:$0xff] %v3125
    %3870 = vst [vmem:[%s3551] ss:$9 sm:$0xff] %v3126
    %3871 = vst [vmem:[%s3553] ss:$9 sm:$0xff] %v3127
    %3872 = vst [vmem:[%s3555] ss:$9 sm:$0xff] %v3128
    %3873 = vst [vmem:[%s3557] ss:$9 sm:$0xff] %v3129
    %v3874 = vld [vmem:[#allocation1] sm:$0xff]
    %3875 = vst [vmem:[#allocation1] ss:$9 sm:$0xff] %v3130
    %3876 = vst [vmem:[%s3545] ss:$9 sm:$0xff] %v3131
    %3877 = vst [vmem:[%s3547] ss:$9 sm:$0xff] %v3132
    %3878 = vst [vmem:[%s3549] ss:$9 sm:$0xff] %v3133
    %3879 = vst [vmem:[%s3551] ss:$9 sm:$0xff] %v3134
    %v3880 = vld [vmem:[#allocation1] sm:$0xff]
    %3881 = vst [vmem:[#allocation1] ss:$9 sm:$0xff] %v3136
    %3882 = vst [vmem:[%s3545] ss:$9 sm:$0xff] %v3137
    %3883 = vst [vmem:[%s3547] ss:$9 sm:$0xff] %v3138
    %3884 = vst [vmem:[%s3549] ss:$9 sm:$0xff] %v3139
    %3885 = vst [vmem:[%s3551] ss:$9 sm:$0xff] %v3140
    %3886 = vst [vmem:[%s3553] ss:$9 sm:$0xff] %v3141
    %3887 = vst [vmem:[%s3555] ss:$9 sm:$0xff] %v3142
    %3888 = vst [vmem:[%s3557] ss:$9 sm:$0xff] %v3143
    %v3889 = vld [vmem:[#allocation1] sm:$0xff]
    %3890 = vst [vmem:[#allocation1] ss:$9 sm:$0xff] %v3144
    %3891 = vst [vmem:[%s3545] ss:$9 sm:$0xff] %v3145
    %3892 = vst [vmem:[%s3547] ss:$9 sm:$0xff] %v3146
    %3893 = vst [vmem:[%s3549] ss:$9 sm:$0xff] %v3147
    %3894 = vst [vmem:[%s3551] ss:$9 sm:$0xff] %v3148
    %v3895 = vld [vmem:[#allocation1] sm:$0xff]
    %3896 = vst [vmem:[#allocation1] ss:$9 sm:$0xff] %v3150
    %3897 = vst [vmem:[%s3545] ss:$9 sm:$0xff] %v3151
    %3898 = vst [vmem:[%s3547] ss:$9 sm:$0xff] %v3152
    %3899 = vst [vmem:[%s3549] ss:$9 sm:$0xff] %v3153
    %3900 = vst [vmem:[%s3551] ss:$9 sm:$0xff] %v3154
    %3901 = vst [vmem:[%s3553] ss:$9 sm:$0xff] %v3155
    %3902 = vst [vmem:[%s3555] ss:$9 sm:$0xff] %v3156
    %3903 = vst [vmem:[%s3557] ss:$9 sm:$0xff] %v3157
    %v3904 = vld [vmem:[#allocation1] sm:$0xff]
    %3905 = vst [vmem:[#allocation1] ss:$9 sm:$0xff] %v3158
    %3906 = vst [vmem:[%s3545] ss:$9 sm:$0xff] %v3159
    %3907 = vst [vmem:[%s3547] ss:$9 sm:$0xff] %v3160
    %3908 = vst [vmem:[%s3549] ss:$9 sm:$0xff] %v3161
    %3909 = vst [vmem:[%s3551] ss:$9 sm:$0xff] %v3162
    %v3910 = vld [vmem:[#allocation1] sm:$0xff]
    %3911 = vst [vmem:[#allocation1] ss:$9 sm:$0xff] %v3164
    %3912 = vst [vmem:[%s3545] ss:$9 sm:$0xff] %v3165
    %3913 = vst [vmem:[%s3547] ss:$9 sm:$0xff] %v3166
    %3914 = vst [vmem:[%s3549] ss:$9 sm:$0xff] %v3167
    %3915 = vst [vmem:[%s3551] ss:$9 sm:$0xff] %v3168
    %3916 = vst [vmem:[%s3553] ss:$9 sm:$0xff] %v3169
    %3917 = vst [vmem:[%s3555] ss:$9 sm:$0xff] %v3170
    %3918 = vst [vmem:[%s3557] ss:$9 sm:$0xff] %v3171
    %v3919 = vld [vmem:[#allocation1] sm:$0xff]
    %3920 = vst [vmem:[#allocation1] ss:$9 sm:$0xff] %v3172
    %3921 = vst [vmem:[%s3545] ss:$9 sm:$0xff] %v3173
    %3922 = vst [vmem:[%s3547] ss:$9 sm:$0xff] %v3174
    %3923 = vst [vmem:[%s3549] ss:$9 sm:$0xff] %v3175
    %3924 = vst [vmem:[%s3551] ss:$9 sm:$0xff] %v3176
    %v3925 = vld [vmem:[#allocation1] sm:$0xff]
    %3926 = vst [vmem:[#allocation1] ss:$9 sm:$0xff] %v3178
    %3927 = vst [vmem:[%s3545] ss:$9 sm:$0xff] %v3179
    %3928 = vst [vmem:[%s3547] ss:$9 sm:$0xff] %v3180
    %3929 = vst [vmem:[%s3549] ss:$9 sm:$0xff] %v3181
    %3930 = vst [vmem:[%s3551] ss:$9 sm:$0xff] %v3182
    %3931 = vst [vmem:[%s3553] ss:$9 sm:$0xff] %v3183
    %3932 = vst [vmem:[%s3555] ss:$9 sm:$0xff] %v3184
    %3933 = vst [vmem:[%s3557] ss:$9 sm:$0xff] %v3185
    %v3934 = vld [vmem:[#allocation1] sm:$0xff]
    %3935 = vst [vmem:[#allocation1] ss:$9 sm:$0xff] %v3186
    %3936 = vst [vmem:[%s3545] ss:$9 sm:$0xff] %v3187
    %3937 = vst [vmem:[%s3547] ss:$9 sm:$0xff] %v3188
    %3938 = vst [vmem:[%s3549] ss:$9 sm:$0xff] %v3189
    %3939 = vst [vmem:[%s3551] ss:$9 sm:$0xff] %v3190
    %v3940 = vld [vmem:[#allocation1] sm:$0xff]
    %4019 = vst [vmem:[#allocation1] ss:$9 sm:$0xff] %v2815
    %s4020 = scalar_lea.vmem [#allocation1], 1
    %4021 = vst [vmem:[%s4020] ss:$9 sm:$0xff] %v2816
    %s4022 = scalar_lea.vmem [#allocation1], 2
    %4023 = vst [vmem:[%s4022] ss:$9 sm:$0xff] %v2817
    %s4024 = scalar_lea.vmem [#allocation1], 3
    %4025 = vst [vmem:[%s4024] ss:$9 sm:$0xff] %v2818
    %s4026 = scalar_lea.vmem [#allocation1], 4
    %4027 = vst [vmem:[%s4026] ss:$9 sm:$0xff] %v2819
    %s4028 = scalar_lea.vmem [#allocation1], 5
    %4029 = vst [vmem:[%s4028] ss:$9 sm:$0xff] %v2820
    %s4030 = scalar_lea.vmem [#allocation1], 6
    %4031 = vst [vmem:[%s4030] ss:$9 sm:$0xff] %v2821
    %s4032 = scalar_lea.vmem [#allocation1], 7
    %4033 = vst [vmem:[%s4032] ss:$9 sm:$0xff] %v2822
    %v4034 = vld [vmem:[#allocation1] sm:$0xff]
    %4035 = vst [vmem:[#allocation1] ss:$9 sm:$0xff] %v2823
    %4036 = vst [vmem:[%s4020] ss:$9 sm:$0xff] %v2824
    %4037 = vst [vmem:[%s4022] ss:$9 sm:$0xff] %v2825
    %4038 = vst [vmem:[%s4024] ss:$9 sm:$0xff] %v2826
    %4039 = vst [vmem:[%s4026] ss:$9 sm:$0xff] %v2827
    %v4040 = vld [vmem:[#allocation1] sm:$0xff]
    %4041 = vst [vmem:[#allocation1] ss:$9 sm:$0xff] %v2829
    %4042 = vst [vmem:[%s4020] ss:$9 sm:$0xff] %v2830
    %4043 = vst [vmem:[%s4022] ss:$9 sm:$0xff] %v2831
    %4044 = vst [vmem:[%s4024] ss:$9 sm:$0xff] %v2832
    %4045 = vst [vmem:[%s4026] ss:$9 sm:$0xff] %v2833
    %4046 = vst [vmem:[%s4028] ss:$9 sm:$0xff] %v2834
    %4047 = vst [vmem:[%s4030] ss:$9 sm:$0xff] %v2835
    %4048 = vst [vmem:[%s4032] ss:$9 sm:$0xff] %v2836
    %v4049 = vld [vmem:[#allocation1] sm:$0xff]
    %4050 = vst [vmem:[#allocation1] ss:$9 sm:$0xff] %v2837
    %4051 = vst [vmem:[%s4020] ss:$9 sm:$0xff] %v2838
    %4052 = vst [vmem:[%s4022] ss:$9 sm:$0xff] %v2839
    %4053 = vst [vmem:[%s4024] ss:$9 sm:$0xff] %v2840
    %4054 = vst [vmem:[%s4026] ss:$9 sm:$0xff] %v2841
    %v4055 = vld [vmem:[#allocation1] sm:$0xff]
    %4056 = vst [vmem:[#allocation1] ss:$9 sm:$0xff] %v2843
    %4057 = vst [vmem:[%s4020] ss:$9 sm:$0xff] %v2844
    %4058 = vst [vmem:[%s4022] ss:$9 sm:$0xff] %v2845
    %4059 = vst [vmem:[%s4024] ss:$9 sm:$0xff] %v2846
    %4060 = vst [vmem:[%s4026] ss:$9 sm:$0xff] %v2847
    %4061 = vst [vmem:[%s4028] ss:$9 sm:$0xff] %v2848
    %4062 = vst [vmem:[%s4030] ss:$9 sm:$0xff] %v2849
    %4063 = vst [vmem:[%s4032] ss:$9 sm:$0xff] %v2850
    %v4064 = vld [vmem:[#allocation1] sm:$0xff]
    %4065 = vst [vmem:[#allocation1] ss:$9 sm:$0xff] %v2851
    %4066 = vst [vmem:[%s4020] ss:$9 sm:$0xff] %v2852
    %4067 = vst [vmem:[%s4022] ss:$9 sm:$0xff] %v2853
    %4068 = vst [vmem:[%s4024] ss:$9 sm:$0xff] %v2854
    %4069 = vst [vmem:[%s4026] ss:$9 sm:$0xff] %v2855
    %v4070 = vld [vmem:[#allocation1] sm:$0xff]
    %4071 = vst [vmem:[#allocation1] ss:$9 sm:$0xff] %v2857
    %4072 = vst [vmem:[%s4020] ss:$9 sm:$0xff] %v2858
    %4073 = vst [vmem:[%s4022] ss:$9 sm:$0xff] %v2859
    %4074 = vst [vmem:[%s4024] ss:$9 sm:$0xff] %v2860
    %4075 = vst [vmem:[%s4026] ss:$9 sm:$0xff] %v2861
    %4076 = vst [vmem:[%s4028] ss:$9 sm:$0xff] %v2862
    %4077 = vst [vmem:[%s4030] ss:$9 sm:$0xff] %v2863
    %4078 = vst [vmem:[%s4032] ss:$9 sm:$0xff] %v2864
    %v4079 = vld [vmem:[#allocation1] sm:$0xff]
    %4080 = vst [vmem:[#allocation1] ss:$9 sm:$0xff] %v2865
    %4081 = vst [vmem:[%s4020] ss:$9 sm:$0xff] %v2866
    %4082 = vst [vmem:[%s4022] ss:$9 sm:$0xff] %v2867
    %4083 = vst [vmem:[%s4024] ss:$9 sm:$0xff] %v2868
    %4084 = vst [vmem:[%s4026] ss:$9 sm:$0xff] %v2869
    %v4085 = vld [vmem:[#allocation1] sm:$0xff]
    %4086 = vst [vmem:[#allocation1] ss:$9 sm:$0xff] %v2871
    %4087 = vst [vmem:[%s4020] ss:$9 sm:$0xff] %v2872
    %4088 = vst [vmem:[%s4022] ss:$9 sm:$0xff] %v2873
    %4089 = vst [vmem:[%s4024] ss:$9 sm:$0xff] %v2874
    %4090 = vst [vmem:[%s4026] ss:$9 sm:$0xff] %v2875
    %4091 = vst [vmem:[%s4028] ss:$9 sm:$0xff] %v2876
    %4092 = vst [vmem:[%s4030] ss:$9 sm:$0xff] %v2877
    %4093 = vst [vmem:[%s4032] ss:$9 sm:$0xff] %v2878
    %v4094 = vld [vmem:[#allocation1] sm:$0xff]
    %4095 = vst [vmem:[#allocation1] ss:$9 sm:$0xff] %v2879
    %4096 = vst [vmem:[%s4020] ss:$9 sm:$0xff] %v2880
    %4097 = vst [vmem:[%s4022] ss:$9 sm:$0xff] %v2881
    %4098 = vst [vmem:[%s4024] ss:$9 sm:$0xff] %v2882
    %4099 = vst [vmem:[%s4026] ss:$9 sm:$0xff] %v2883
    %v4100 = vld [vmem:[#allocation1] sm:$0xff]
    %4101 = vst [vmem:[#allocation1] ss:$9 sm:$0xff] %v2885
    %4102 = vst [vmem:[%s4020] ss:$9 sm:$0xff] %v2886
    %4103 = vst [vmem:[%s4022] ss:$9 sm:$0xff] %v2887
    %4104 = vst [vmem:[%s4024] ss:$9 sm:$0xff] %v2888
    %4105 = vst [vmem:[%s4026] ss:$9 sm:$0xff] %v2889
    %4106 = vst [vmem:[%s4028] ss:$9 sm:$0xff] %v2890
    %4107 = vst [vmem:[%s4030] ss:$9 sm:$0xff] %v2891
    %4108 = vst [vmem:[%s4032] ss:$9 sm:$0xff] %v2892
    %v4109 = vld [vmem:[#allocation1] sm:$0xff]
    %4110 = vst [vmem:[#allocation1] ss:$9 sm:$0xff] %v2893
    %4111 = vst [vmem:[%s4020] ss:$9 sm:$0xff] %v2894
    %4112 = vst [vmem:[%s4022] ss:$9 sm:$0xff] %v2895
    %4113 = vst [vmem:[%s4024] ss:$9 sm:$0xff] %v2896
    %4114 = vst [vmem:[%s4026] ss:$9 sm:$0xff] %v2897
    %v4115 = vld [vmem:[#allocation1] sm:$0xff]
    %4116 = vst [vmem:[#allocation1] ss:$9 sm:$0xff] %v2899
    %4117 = vst [vmem:[%s4020] ss:$9 sm:$0xff] %v2900
    %4118 = vst [vmem:[%s4022] ss:$9 sm:$0xff] %v2901
    %4119 = vst [vmem:[%s4024] ss:$9 sm:$0xff] %v2902
    %4120 = vst [vmem:[%s4026] ss:$9 sm:$0xff] %v2903
    %4121 = vst [vmem:[%s4028] ss:$9 sm:$0xff] %v2904
    %4122 = vst [vmem:[%s4030] ss:$9 sm:$0xff] %v2905
    %4123 = vst [vmem:[%s4032] ss:$9 sm:$0xff] %v2906
    %v4124 = vld [vmem:[#allocation1] sm:$0xff]
    %4125 = vst [vmem:[#allocation1] ss:$9 sm:$0xff] %v2907
    %4126 = vst [vmem:[%s4020] ss:$9 sm:$0xff] %v2908
    %4127 = vst [vmem:[%s4022] ss:$9 sm:$0xff] %v2909
    %4128 = vst [vmem:[%s4024] ss:$9 sm:$0xff] %v2910
    %4129 = vst [vmem:[%s4026] ss:$9 sm:$0xff] %v2911
    %v4130 = vld [vmem:[#allocation1] sm:$0xff]
    %4131 = vst [vmem:[#allocation1] ss:$9 sm:$0xff] %v2913
    %4132 = vst [vmem:[%s4020] ss:$9 sm:$0xff] %v2914
    %4133 = vst [vmem:[%s4022] ss:$9 sm:$0xff] %v2915
    %4134 = vst [vmem:[%s4024] ss:$9 sm:$0xff] %v2916
    %4135 = vst [vmem:[%s4026] ss:$9 sm:$0xff] %v2917
    %4136 = vst [vmem:[%s4028] ss:$9 sm:$0xff] %v2918
    %4137 = vst [vmem:[%s4030] ss:$9 sm:$0xff] %v2919
    %4138 = vst [vmem:[%s4032] ss:$9 sm:$0xff] %v2920
    %v4139 = vld [vmem:[#allocation1] sm:$0xff]
    %4140 = vst [vmem:[#allocation1] ss:$9 sm:$0xff] %v2921
    %4141 = vst [vmem:[%s4020] ss:$9 sm:$0xff] %v2922
    %4142 = vst [vmem:[%s4022] ss:$9 sm:$0xff] %v2923
    %4143 = vst [vmem:[%s4024] ss:$9 sm:$0xff] %v2924
    %4144 = vst [vmem:[%s4026] ss:$9 sm:$0xff] %v2925
    %v4145 = vld [vmem:[#allocation1] sm:$0xff]
    %4146 = vst [vmem:[#allocation1] ss:$9 sm:$0xff] %v2927
    %4147 = vst [vmem:[%s4020] ss:$9 sm:$0xff] %v2928
    %4148 = vst [vmem:[%s4022] ss:$9 sm:$0xff] %v2929
    %4149 = vst [vmem:[%s4024] ss:$9 sm:$0xff] %v2930
    %4150 = vst [vmem:[%s4026] ss:$9 sm:$0xff] %v2931
    %4151 = vst [vmem:[%s4028] ss:$9 sm:$0xff] %v2932
    %4152 = vst [vmem:[%s4030] ss:$9 sm:$0xff] %v2933
    %4153 = vst [vmem:[%s4032] ss:$9 sm:$0xff] %v2934
    %v4154 = vld [vmem:[#allocation1] sm:$0xff]
    %4155 = vst [vmem:[#allocation1] ss:$9 sm:$0xff] %v2935
    %4156 = vst [vmem:[%s4020] ss:$9 sm:$0xff] %v2936
    %4157 = vst [vmem:[%s4022] ss:$9 sm:$0xff] %v2937
    %4158 = vst [vmem:[%s4024] ss:$9 sm:$0xff] %v2938
    %4159 = vst [vmem:[%s4026] ss:$9 sm:$0xff] %v2939
    %v4160 = vld [vmem:[#allocation1] sm:$0xff]
    %4161 = vst [vmem:[#allocation1] ss:$9 sm:$0xff] %v2941
    %4162 = vst [vmem:[%s4020] ss:$9 sm:$0xff] %v2942
    %4163 = vst [vmem:[%s4022] ss:$9 sm:$0xff] %v2943
    %4164 = vst [vmem:[%s4024] ss:$9 sm:$0xff] %v2944
    %4165 = vst [vmem:[%s4026] ss:$9 sm:$0xff] %v2945
    %4166 = vst [vmem:[%s4028] ss:$9 sm:$0xff] %v2946
    %4167 = vst [vmem:[%s4030] ss:$9 sm:$0xff] %v2947
    %4168 = vst [vmem:[%s4032] ss:$9 sm:$0xff] %v2948
    %v4169 = vld [vmem:[#allocation1] sm:$0xff]
    %4170 = vst [vmem:[#allocation1] ss:$9 sm:$0xff] %v2949
    %4171 = vst [vmem:[%s4020] ss:$9 sm:$0xff] %v2950
    %4172 = vst [vmem:[%s4022] ss:$9 sm:$0xff] %v2951
    %4173 = vst [vmem:[%s4024] ss:$9 sm:$0xff] %v2952
    %4174 = vst [vmem:[%s4026] ss:$9 sm:$0xff] %v2953
    %v4175 = vld [vmem:[#allocation1] sm:$0xff]
    %4176 = vst [vmem:[#allocation1] ss:$9 sm:$0xff] %v2955
    %4177 = vst [vmem:[%s4020] ss:$9 sm:$0xff] %v2956
    %4178 = vst [vmem:[%s4022] ss:$9 sm:$0xff] %v2957
    %4179 = vst [vmem:[%s4024] ss:$9 sm:$0xff] %v2958
    %4180 = vst [vmem:[%s4026] ss:$9 sm:$0xff] %v2959
    %4181 = vst [vmem:[%s4028] ss:$9 sm:$0xff] %v2960
    %4182 = vst [vmem:[%s4030] ss:$9 sm:$0xff] %v2961
    %4183 = vst [vmem:[%s4032] ss:$9 sm:$0xff] %v2962
    %v4184 = vld [vmem:[#allocation1] sm:$0xff]
    %4185 = vst [vmem:[#allocation1] ss:$9 sm:$0xff] %v2963
    %4186 = vst [vmem:[%s4020] ss:$9 sm:$0xff] %v2964
    %4187 = vst [vmem:[%s4022] ss:$9 sm:$0xff] %v2965
    %4188 = vst [vmem:[%s4024] ss:$9 sm:$0xff] %v2966
    %4189 = vst [vmem:[%s4026] ss:$9 sm:$0xff] %v2967
    %v4190 = vld [vmem:[#allocation1] sm:$0xff]
    %4191 = vst [vmem:[#allocation1] ss:$9 sm:$0xff] %v2969
    %4192 = vst [vmem:[%s4020] ss:$9 sm:$0xff] %v2970
    %4193 = vst [vmem:[%s4022] ss:$9 sm:$0xff] %v2971
    %4194 = vst [vmem:[%s4024] ss:$9 sm:$0xff] %v2972
    %4195 = vst [vmem:[%s4026] ss:$9 sm:$0xff] %v2973
    %4196 = vst [vmem:[%s4028] ss:$9 sm:$0xff] %v2974
    %4197 = vst [vmem:[%s4030] ss:$9 sm:$0xff] %v2975
    %4198 = vst [vmem:[%s4032] ss:$9 sm:$0xff] %v2976
    %v4199 = vld [vmem:[#allocation1] sm:$0xff]
    %4200 = vst [vmem:[#allocation1] ss:$9 sm:$0xff] %v2977
    %4201 = vst [vmem:[%s4020] ss:$9 sm:$0xff] %v2978
    %4202 = vst [vmem:[%s4022] ss:$9 sm:$0xff] %v2979
    %4203 = vst [vmem:[%s4024] ss:$9 sm:$0xff] %v2980
    %4204 = vst [vmem:[%s4026] ss:$9 sm:$0xff] %v2981
    %v4205 = vld [vmem:[#allocation1] sm:$0xff]
    %4206 = vst [vmem:[#allocation1] ss:$9 sm:$0xff] %v2983
    %4207 = vst [vmem:[%s4020] ss:$9 sm:$0xff] %v2984
    %4208 = vst [vmem:[%s4022] ss:$9 sm:$0xff] %v2985
    %4209 = vst [vmem:[%s4024] ss:$9 sm:$0xff] %v2986
    %4210 = vst [vmem:[%s4026] ss:$9 sm:$0xff] %v2987
    %4211 = vst [vmem:[%s4028] ss:$9 sm:$0xff] %v2988
    %4212 = vst [vmem:[%s4030] ss:$9 sm:$0xff] %v2989
    %4213 = vst [vmem:[%s4032] ss:$9 sm:$0xff] %v2990
    %v4214 = vld [vmem:[#allocation1] sm:$0xff]
    %4215 = vst [vmem:[#allocation1] ss:$9 sm:$0xff] %v2991
    %4216 = vst [vmem:[%s4020] ss:$9 sm:$0xff] %v2992
    %4217 = vst [vmem:[%s4022] ss:$9 sm:$0xff] %v2993
    %4218 = vst [vmem:[%s4024] ss:$9 sm:$0xff] %v2994
    %4219 = vst [vmem:[%s4026] ss:$9 sm:$0xff] %v2995
    %v4220 = vld [vmem:[#allocation1] sm:$0xff]
    %4221 = vst [vmem:[#allocation1] ss:$9 sm:$0xff] %v3011
    %4222 = vst [vmem:[%s4020] ss:$9 sm:$0xff] %v3012
    %4223 = vst [vmem:[%s4022] ss:$9 sm:$0xff] %v3013
    %4224 = vst [vmem:[%s4024] ss:$9 sm:$0xff] %v3014
    %4225 = vst [vmem:[%s4026] ss:$9 sm:$0xff] %v3015
    %4226 = vst [vmem:[%s4028] ss:$9 sm:$0xff] %v3016
    %4227 = vst [vmem:[%s4030] ss:$9 sm:$0xff] %v3017
    %4228 = vst [vmem:[%s4032] ss:$9 sm:$0xff] %v3018
    %v4229 = vld [vmem:[#allocation1] sm:$0xff]
    %4230 = vst [vmem:[#allocation1] ss:$9 sm:$0xff] %v3019
    %4231 = vst [vmem:[%s4020] ss:$9 sm:$0xff] %v3020
    %4232 = vst [vmem:[%s4022] ss:$9 sm:$0xff] %v3021
    %4233 = vst [vmem:[%s4024] ss:$9 sm:$0xff] %v3022
    %4234 = vst [vmem:[%s4026] ss:$9 sm:$0xff] %v3023
    %v4235 = vld [vmem:[#allocation1] sm:$0xff]
    %4236 = vst [vmem:[#allocation1] ss:$9 sm:$0xff] %v3025
    %4237 = vst [vmem:[%s4020] ss:$9 sm:$0xff] %v3026
    %4238 = vst [vmem:[%s4022] ss:$9 sm:$0xff] %v3027
    %4239 = vst [vmem:[%s4024] ss:$9 sm:$0xff] %v3028
    %4240 = vst [vmem:[%s4026] ss:$9 sm:$0xff] %v3029
    %4241 = vst [vmem:[%s4028] ss:$9 sm:$0xff] %v3030
    %4242 = vst [vmem:[%s4030] ss:$9 sm:$0xff] %v3031
    %4243 = vst [vmem:[%s4032] ss:$9 sm:$0xff] %v3032
    %v4244 = vld [vmem:[#allocation1] sm:$0xff]
    %4245 = vst [vmem:[#allocation1] ss:$9 sm:$0xff] %v3033
    %4246 = vst [vmem:[%s4020] ss:$9 sm:$0xff] %v3034
    %4247 = vst [vmem:[%s4022] ss:$9 sm:$0xff] %v3035
    %4248 = vst [vmem:[%s4024] ss:$9 sm:$0xff] %v3036
    %4249 = vst [vmem:[%s4026] ss:$9 sm:$0xff] %v3037
    %v4250 = vld [vmem:[#allocation1] sm:$0xff]
    %4251 = vst [vmem:[#allocation1] ss:$9 sm:$0xff] %v3039
    %4252 = vst [vmem:[%s4020] ss:$9 sm:$0xff] %v3040
    %4253 = vst [vmem:[%s4022] ss:$9 sm:$0xff] %v3041
    %4254 = vst [vmem:[%s4024] ss:$9 sm:$0xff] %v3042
    %4255 = vst [vmem:[%s4026] ss:$9 sm:$0xff] %v3043
    %4256 = vst [vmem:[%s4028] ss:$9 sm:$0xff] %v3044
    %4257 = vst [vmem:[%s4030] ss:$9 sm:$0xff] %v3045
    %4258 = vst [vmem:[%s4032] ss:$9 sm:$0xff] %v3046
    %v4259 = vld [vmem:[#allocation1] sm:$0xff]
    %4260 = vst [vmem:[#allocation1] ss:$9 sm:$0xff] %v3047
    %4261 = vst [vmem:[%s4020] ss:$9 sm:$0xff] %v3048
    %4262 = vst [vmem:[%s4022] ss:$9 sm:$0xff] %v3049
    %4263 = vst [vmem:[%s4024] ss:$9 sm:$0xff] %v3050
    %4264 = vst [vmem:[%s4026] ss:$9 sm:$0xff] %v3051
    %v4265 = vld [vmem:[#allocation1] sm:$0xff]
    %4266 = vst [vmem:[#allocation1] ss:$9 sm:$0xff] %v3053
    %4267 = vst [vmem:[%s4020] ss:$9 sm:$0xff] %v3054
    %4268 = vst [vmem:[%s4022] ss:$9 sm:$0xff] %v3055
    %4269 = vst [vmem:[%s4024] ss:$9 sm:$0xff] %v3056
    %4270 = vst [vmem:[%s4026] ss:$9 sm:$0xff] %v3057
    %4271 = vst [vmem:[%s4028] ss:$9 sm:$0xff] %v3058
    %4272 = vst [vmem:[%s4030] ss:$9 sm:$0xff] %v3059
    %4273 = vst [vmem:[%s4032] ss:$9 sm:$0xff] %v3060
    %v4274 = vld [vmem:[#allocation1] sm:$0xff]
    %4275 = vst [vmem:[#allocation1] ss:$9 sm:$0xff] %v3061
    %4276 = vst [vmem:[%s4020] ss:$9 sm:$0xff] %v3062
    %4277 = vst [vmem:[%s4022] ss:$9 sm:$0xff] %v3063
    %4278 = vst [vmem:[%s4024] ss:$9 sm:$0xff] %v3064
    %4279 = vst [vmem:[%s4026] ss:$9 sm:$0xff] %v3065
    %v4280 = vld [vmem:[#allocation1] sm:$0xff]
    %4281 = vst [vmem:[#allocation1] ss:$9 sm:$0xff] %v3067
    %4282 = vst [vmem:[%s4020] ss:$9 sm:$0xff] %v3068
    %4283 = vst [vmem:[%s4022] ss:$9 sm:$0xff] %v3069
    %4284 = vst [vmem:[%s4024] ss:$9 sm:$0xff] %v3070
    %4285 = vst [vmem:[%s4026] ss:$9 sm:$0xff] %v3071
    %4286 = vst [vmem:[%s4028] ss:$9 sm:$0xff] %v3072
    %4287 = vst [vmem:[%s4030] ss:$9 sm:$0xff] %v3073
    %4288 = vst [vmem:[%s4032] ss:$9 sm:$0xff] %v3074
    %v4289 = vld [vmem:[#allocation1] sm:$0xff]
    %4290 = vst [vmem:[#allocation1] ss:$9 sm:$0xff] %v3075
    %4291 = vst [vmem:[%s4020] ss:$9 sm:$0xff] %v3076
    %4292 = vst [vmem:[%s4022] ss:$9 sm:$0xff] %v3077
    %4293 = vst [vmem:[%s4024] ss:$9 sm:$0xff] %v3078
    %4294 = vst [vmem:[%s4026] ss:$9 sm:$0xff] %v3079
    %v4295 = vld [vmem:[#allocation1] sm:$0xff]
    %4296 = vst [vmem:[#allocation1] ss:$9 sm:$0xff] %v3081
    %4297 = vst [vmem:[%s4020] ss:$9 sm:$0xff] %v3082
    %4298 = vst [vmem:[%s4022] ss:$9 sm:$0xff] %v3083
    %4299 = vst [vmem:[%s4024] ss:$9 sm:$0xff] %v3084
    %4300 = vst [vmem:[%s4026] ss:$9 sm:$0xff] %v3085
    %4301 = vst [vmem:[%s4028] ss:$9 sm:$0xff] %v3086
    %4302 = vst [vmem:[%s4030] ss:$9 sm:$0xff] %v3087
    %4303 = vst [vmem:[%s4032] ss:$9 sm:$0xff] %v3088
    %v4304 = vld [vmem:[#allocation1] sm:$0xff]
    %4305 = vst [vmem:[#allocation1] ss:$9 sm:$0xff] %v3089
    %4306 = vst [vmem:[%s4020] ss:$9 sm:$0xff] %v3090
    %4307 = vst [vmem:[%s4022] ss:$9 sm:$0xff] %v3091
    %4308 = vst [vmem:[%s4024] ss:$9 sm:$0xff] %v3092
    %4309 = vst [vmem:[%s4026] ss:$9 sm:$0xff] %v3093
    %v4310 = vld [vmem:[#allocation1] sm:$0xff]
    %4311 = vst [vmem:[#allocation1] ss:$9 sm:$0xff] %v3095
    %4312 = vst [vmem:[%s4020] ss:$9 sm:$0xff] %v3096
    %4313 = vst [vmem:[%s4022] ss:$9 sm:$0xff] %v3097
    %4314 = vst [vmem:[%s4024] ss:$9 sm:$0xff] %v3098
    %4315 = vst [vmem:[%s4026] ss:$9 sm:$0xff] %v3099
    %4316 = vst [vmem:[%s4028] ss:$9 sm:$0xff] %v3100
    %4317 = vst [vmem:[%s4030] ss:$9 sm:$0xff] %v3101
    %4318 = vst [vmem:[%s4032] ss:$9 sm:$0xff] %v3102
    %v4319 = vld [vmem:[#allocation1] sm:$0xff]
    %4320 = vst [vmem:[#allocation1] ss:$9 sm:$0xff] %v3103
    %4321 = vst [vmem:[%s4020] ss:$9 sm:$0xff] %v3104
    %4322 = vst [vmem:[%s4022] ss:$9 sm:$0xff] %v3105
    %4323 = vst [vmem:[%s4024] ss:$9 sm:$0xff] %v3106
    %4324 = vst [vmem:[%s4026] ss:$9 sm:$0xff] %v3107
    %v4325 = vld [vmem:[#allocation1] sm:$0xff]
    %4326 = vst [vmem:[#allocation1] ss:$9 sm:$0xff] %v3109
    %4327 = vst [vmem:[%s4020] ss:$9 sm:$0xff] %v3110
    %4328 = vst [vmem:[%s4022] ss:$9 sm:$0xff] %v3111
    %4329 = vst [vmem:[%s4024] ss:$9 sm:$0xff] %v3112
    %4330 = vst [vmem:[%s4026] ss:$9 sm:$0xff] %v3113
    %4331 = vst [vmem:[%s4028] ss:$9 sm:$0xff] %v3114
    %4332 = vst [vmem:[%s4030] ss:$9 sm:$0xff] %v3115
    %4333 = vst [vmem:[%s4032] ss:$9 sm:$0xff] %v3116
    %v4334 = vld [vmem:[#allocation1] sm:$0xff]
    %4335 = vst [vmem:[#allocation1] ss:$9 sm:$0xff] %v3117
    %4336 = vst [vmem:[%s4020] ss:$9 sm:$0xff] %v3118
    %4337 = vst [vmem:[%s4022] ss:$9 sm:$0xff] %v3119
    %4338 = vst [vmem:[%s4024] ss:$9 sm:$0xff] %v3120
    %4339 = vst [vmem:[%s4026] ss:$9 sm:$0xff] %v3121
    %v4340 = vld [vmem:[#allocation1] sm:$0xff]
    %4341 = vst [vmem:[#allocation1] ss:$9 sm:$0xff] %v3123
    %4342 = vst [vmem:[%s4020] ss:$9 sm:$0xff] %v3124
    %4343 = vst [vmem:[%s4022] ss:$9 sm:$0xff] %v3125
    %4344 = vst [vmem:[%s4024] ss:$9 sm:$0xff] %v3126
    %4345 = vst [vmem:[%s4026] ss:$9 sm:$0xff] %v3127
    %4346 = vst [vmem:[%s4028] ss:$9 sm:$0xff] %v3128
    %4347 = vst [vmem:[%s4030] ss:$9 sm:$0xff] %v3129
    %4348 = vst [vmem:[%s4032] ss:$9 sm:$0xff] %v3130
    %v4349 = vld [vmem:[#allocation1] sm:$0xff]
    %4350 = vst [vmem:[#allocation1] ss:$9 sm:$0xff] %v3131
    %4351 = vst [vmem:[%s4020] ss:$9 sm:$0xff] %v3132
    %4352 = vst [vmem:[%s4022] ss:$9 sm:$0xff] %v3133
    %4353 = vst [vmem:[%s4024] ss:$9 sm:$0xff] %v3134
    %4354 = vst [vmem:[%s4026] ss:$9 sm:$0xff] %v3135
    %v4355 = vld [vmem:[#allocation1] sm:$0xff]
    %4356 = vst [vmem:[#allocation1] ss:$9 sm:$0xff] %v3137
    %4357 = vst [vmem:[%s4020] ss:$9 sm:$0xff] %v3138
    %4358 = vst [vmem:[%s4022] ss:$9 sm:$0xff] %v3139
    %4359 = vst [vmem:[%s4024] ss:$9 sm:$0xff] %v3140
    %4360 = vst [vmem:[%s4026] ss:$9 sm:$0xff] %v3141
    %4361 = vst [vmem:[%s4028] ss:$9 sm:$0xff] %v3142
    %4362 = vst [vmem:[%s4030] ss:$9 sm:$0xff] %v3143
    %4363 = vst [vmem:[%s4032] ss:$9 sm:$0xff] %v3144
    %v4364 = vld [vmem:[#allocation1] sm:$0xff]
    %4365 = vst [vmem:[#allocation1] ss:$9 sm:$0xff] %v3145
    %4366 = vst [vmem:[%s4020] ss:$9 sm:$0xff] %v3146
    %4367 = vst [vmem:[%s4022] ss:$9 sm:$0xff] %v3147
    %4368 = vst [vmem:[%s4024] ss:$9 sm:$0xff] %v3148
    %4369 = vst [vmem:[%s4026] ss:$9 sm:$0xff] %v3149
    %v4370 = vld [vmem:[#allocation1] sm:$0xff]
    %4371 = vst [vmem:[#allocation1] ss:$9 sm:$0xff] %v3151
    %4372 = vst [vmem:[%s4020] ss:$9 sm:$0xff] %v3152
    %4373 = vst [vmem:[%s4022] ss:$9 sm:$0xff] %v3153
    %4374 = vst [vmem:[%s4024] ss:$9 sm:$0xff] %v3154
    %4375 = vst [vmem:[%s4026] ss:$9 sm:$0xff] %v3155
    %4376 = vst [vmem:[%s4028] ss:$9 sm:$0xff] %v3156
    %4377 = vst [vmem:[%s4030] ss:$9 sm:$0xff] %v3157
    %4378 = vst [vmem:[%s4032] ss:$9 sm:$0xff] %v3158
    %v4379 = vld [vmem:[#allocation1] sm:$0xff]
    %4380 = vst [vmem:[#allocation1] ss:$9 sm:$0xff] %v3159
    %4381 = vst [vmem:[%s4020] ss:$9 sm:$0xff] %v3160
    %4382 = vst [vmem:[%s4022] ss:$9 sm:$0xff] %v3161
    %4383 = vst [vmem:[%s4024] ss:$9 sm:$0xff] %v3162
    %4384 = vst [vmem:[%s4026] ss:$9 sm:$0xff] %v3163
    %v4385 = vld [vmem:[#allocation1] sm:$0xff]
    %4386 = vst [vmem:[#allocation1] ss:$9 sm:$0xff] %v3165
    %4387 = vst [vmem:[%s4020] ss:$9 sm:$0xff] %v3166
    %4388 = vst [vmem:[%s4022] ss:$9 sm:$0xff] %v3167
    %4389 = vst [vmem:[%s4024] ss:$9 sm:$0xff] %v3168
    %4390 = vst [vmem:[%s4026] ss:$9 sm:$0xff] %v3169
    %4391 = vst [vmem:[%s4028] ss:$9 sm:$0xff] %v3170
    %4392 = vst [vmem:[%s4030] ss:$9 sm:$0xff] %v3171
    %4393 = vst [vmem:[%s4032] ss:$9 sm:$0xff] %v3172
    %v4394 = vld [vmem:[#allocation1] sm:$0xff]
    %4395 = vst [vmem:[#allocation1] ss:$9 sm:$0xff] %v3173
    %4396 = vst [vmem:[%s4020] ss:$9 sm:$0xff] %v3174
    %4397 = vst [vmem:[%s4022] ss:$9 sm:$0xff] %v3175
    %4398 = vst [vmem:[%s4024] ss:$9 sm:$0xff] %v3176
    %4399 = vst [vmem:[%s4026] ss:$9 sm:$0xff] %v3177
    %v4400 = vld [vmem:[#allocation1] sm:$0xff]
    %4401 = vst [vmem:[#allocation1] ss:$9 sm:$0xff] %v3179
    %4402 = vst [vmem:[%s4020] ss:$9 sm:$0xff] %v3180
    %4403 = vst [vmem:[%s4022] ss:$9 sm:$0xff] %v3181
    %4404 = vst [vmem:[%s4024] ss:$9 sm:$0xff] %v3182
    %4405 = vst [vmem:[%s4026] ss:$9 sm:$0xff] %v3183
    %4406 = vst [vmem:[%s4028] ss:$9 sm:$0xff] %v3184
    %4407 = vst [vmem:[%s4030] ss:$9 sm:$0xff] %v3185
    %4408 = vst [vmem:[%s4032] ss:$9 sm:$0xff] %v3186
    %v4409 = vld [vmem:[#allocation1] sm:$0xff]
    %4410 = vst [vmem:[#allocation1] ss:$9 sm:$0xff] %v3187
    %4411 = vst [vmem:[%s4020] ss:$9 sm:$0xff] %v3188
    %4412 = vst [vmem:[%s4022] ss:$9 sm:$0xff] %v3189
    %4413 = vst [vmem:[%s4024] ss:$9 sm:$0xff] %v3190
    %4414 = vst [vmem:[%s4026] ss:$9 sm:$0xff] %v3191
    %v4415 = vld [vmem:[#allocation1] sm:$0xff]
    %4416 = vrot.lane.b32.xlu0 %v4034, 16
    %v4417 = vpop.permute.xlu0 %4416
    %4418 = vrot.lane.b32.xlu0 %v4040, 16
    %v4419 = vpop.permute.xlu0 %4418
    %4420 = vrot.lane.b32.xlu0 %v4049, 16
    %v4421 = vpop.permute.xlu0 %4420
    %4422 = vrot.lane.b32.xlu0 %v4055, 16
    %v4423 = vpop.permute.xlu0 %4422
    %4424 = vrot.lane.b32.xlu0 %v4064, 16
    %v4425 = vpop.permute.xlu0 %4424
    %4426 = vrot.lane.b32.xlu0 %v4070, 16
    %v4427 = vpop.permute.xlu0 %4426
    %4428 = vrot.lane.b32.xlu0 %v4079, 16
    %v4429 = vpop.permute.xlu0 %4428
    %4430 = vrot.lane.b32.xlu0 %v4085, 16
    %v4431 = vpop.permute.xlu0 %4430
    %4432 = vrot.lane.b32.xlu0 %v4094, 16
    %v4433 = vpop.permute.xlu0 %4432
    %4434 = vrot.lane.b32.xlu0 %v4100, 16
    %v4435 = vpop.permute.xlu0 %4434
    %4436 = vrot.lane.b32.xlu0 %v4109, 16
    %v4437 = vpop.permute.xlu0 %4436
    %4438 = vrot.lane.b32.xlu0 %v4115, 16
    %v4439 = vpop.permute.xlu0 %4438
    %4440 = vrot.lane.b32.xlu0 %v4124, 16
    %v4441 = vpop.permute.xlu0 %4440
    %4442 = vrot.lane.b32.xlu0 %v4130, 16
    %v4443 = vpop.permute.xlu0 %4442
    %4444 = vrot.lane.b32.xlu0 %v4139, 16
    %v4445 = vpop.permute.xlu0 %4444
    %4446 = vrot.lane.b32.xlu0 %v4145, 16
    %v4447 = vpop.permute.xlu0 %4446
    %4448 = vrot.lane.b32.xlu0 %v4154, 16
    %v4449 = vpop.permute.xlu0 %4448
    %4450 = vrot.lane.b32.xlu0 %v4160, 16
    %v4451 = vpop.permute.xlu0 %4450
    %4452 = vrot.lane.b32.xlu0 %v4169, 16
    %v4453 = vpop.permute.xlu0 %4452
    %4454 = vrot.lane.b32.xlu0 %v4175, 16
    %v4455 = vpop.permute.xlu0 %4454
    %4456 = vrot.lane.b32.xlu0 %v4184, 16
    %v4457 = vpop.permute.xlu0 %4456
    %4458 = vrot.lane.b32.xlu0 %v4190, 16
    %v4459 = vpop.permute.xlu0 %4458
    %4460 = vrot.lane.b32.xlu0 %v4199, 16
    %v4461 = vpop.permute.xlu0 %4460
    %4462 = vrot.lane.b32.xlu0 %v4205, 16
    %v4463 = vpop.permute.xlu0 %4462
    %4464 = vrot.lane.b32.xlu0 %v4214, 16
    %v4465 = vpop.permute.xlu0 %4464
    %4466 = vrot.lane.b32.xlu0 %v4220, 16
    %v4467 = vpop.permute.xlu0 %4466
    %4468 = vrot.lane.b32.xlu0 %v4229, 16
    %v4469 = vpop.permute.xlu0 %4468
    %4470 = vrot.lane.b32.xlu0 %v4235, 16
    %v4471 = vpop.permute.xlu0 %4470
    %4472 = vrot.lane.b32.xlu0 %v4244, 16
    %v4473 = vpop.permute.xlu0 %4472
    %4474 = vrot.lane.b32.xlu0 %v4250, 16
    %v4475 = vpop.permute.xlu0 %4474
    %4476 = vrot.lane.b32.xlu0 %v4259, 16
    %v4477 = vpop.permute.xlu0 %4476
    %4478 = vrot.lane.b32.xlu0 %v4265, 16
    %v4479 = vpop.permute.xlu0 %4478
    %4480 = vrot.lane.b32.xlu0 %v4274, 16
    %v4481 = vpop.permute.xlu0 %4480
    %4482 = vrot.lane.b32.xlu0 %v4280, 16
    %v4483 = vpop.permute.xlu0 %4482
    %4484 = vrot.lane.b32.xlu0 %v4289, 16
    %v4485 = vpop.permute.xlu0 %4484
    %4486 = vrot.lane.b32.xlu0 %v4295, 16
    %v4487 = vpop.permute.xlu0 %4486
    %4488 = vrot.lane.b32.xlu0 %v4304, 16
    %v4489 = vpop.permute.xlu0 %4488
    %4490 = vrot.lane.b32.xlu0 %v4310, 16
    %v4491 = vpop.permute.xlu0 %4490
    %4492 = vrot.lane.b32.xlu0 %v4319, 16
    %v4493 = vpop.permute.xlu0 %4492
    %4494 = vrot.lane.b32.xlu0 %v4325, 16
    %v4495 = vpop.permute.xlu0 %4494
    %4496 = vrot.lane.b32.xlu0 %v4334, 16
    %v4497 = vpop.permute.xlu0 %4496
    %4498 = vrot.lane.b32.xlu0 %v4340, 16
    %v4499 = vpop.permute.xlu0 %4498
    %4500 = vrot.lane.b32.xlu0 %v4349, 16
    %v4501 = vpop.permute.xlu0 %4500
    %4502 = vrot.lane.b32.xlu0 %v4355, 16
    %v4503 = vpop.permute.xlu0 %4502
    %4504 = vrot.lane.b32.xlu0 %v4364, 16
    %v4505 = vpop.permute.xlu0 %4504
    %4506 = vrot.lane.b32.xlu0 %v4370, 16
    %v4507 = vpop.permute.xlu0 %4506
    %4508 = vrot.lane.b32.xlu0 %v4379, 16
    %v4509 = vpop.permute.xlu0 %4508
    %4510 = vrot.lane.b32.xlu0 %v4385, 16
    %v4511 = vpop.permute.xlu0 %4510
    %4512 = vrot.lane.b32.xlu0 %v4394, 16
    %v4513 = vpop.permute.xlu0 %4512
    %4514 = vrot.lane.b32.xlu0 %v4400, 16
    %v4515 = vpop.permute.xlu0 %4514
    %4516 = vrot.lane.b32.xlu0 %v4409, 16
    %v4517 = vpop.permute.xlu0 %4516
    %4518 = vrot.lane.b32.xlu0 %v4415, 16
    %v4519 = vpop.permute.xlu0 %4518
    %4598 = vst [vmem:[#allocation1] ss:$9 sm:$0xff] %v2828
    %s4599 = scalar_lea.vmem [#allocation1], 1
    %4600 = vst [vmem:[%s4599] ss:$9 sm:$0xff] %v2829
    %s4601 = scalar_lea.vmem [#allocation1], 2
    %4602 = vst [vmem:[%s4601] ss:$9 sm:$0xff] %v2830
    %s4603 = scalar_lea.vmem [#allocation1], 3
    %4604 = vst [vmem:[%s4603] ss:$9 sm:$0xff] %v2831
    %s4605 = scalar_lea.vmem [#allocation1], 4
    %4606 = vst [vmem:[%s4605] ss:$9 sm:$0xff] %v2832
    %s4607 = scalar_lea.vmem [#allocation1], 5
    %4608 = vst [vmem:[%s4607] ss:$9 sm:$0xff] %v2833
    %s4609 = scalar_lea.vmem [#allocation1], 6
    %4610 = vst [vmem:[%s4609] ss:$9 sm:$0xff] %v2834
    %s4611 = scalar_lea.vmem [#allocation1], 7
    %4612 = vst [vmem:[%s4611] ss:$9 sm:$0xff] %v2835
    %v4613 = vld [vmem:[#allocation1] sm:$0xff]
    %4614 = vst [vmem:[#allocation1] ss:$9 sm:$0xff] %v2836
    %4615 = vst [vmem:[%s4599] ss:$9 sm:$0xff] %v2837
    %4616 = vst [vmem:[%s4601] ss:$9 sm:$0xff] %v2838
    %4617 = vst [vmem:[%s4603] ss:$9 sm:$0xff] %v2839
    %4618 = vst [vmem:[%s4605] ss:$9 sm:$0xff] %v2840
    %v4619 = vld [vmem:[#allocation1] sm:$0xff]
    %4620 = vst [vmem:[#allocation1] ss:$9 sm:$0xff] %v2842
    %4621 = vst [vmem:[%s4599] ss:$9 sm:$0xff] %v2843
    %4622 = vst [vmem:[%s4601] ss:$9 sm:$0xff] %v2844
    %4623 = vst [vmem:[%s4603] ss:$9 sm:$0xff] %v2845
    %4624 = vst [vmem:[%s4605] ss:$9 sm:$0xff] %v2846
    %4625 = vst [vmem:[%s4607] ss:$9 sm:$0xff] %v2847
    %4626 = vst [vmem:[%s4609] ss:$9 sm:$0xff] %v2848
    %4627 = vst [vmem:[%s4611] ss:$9 sm:$0xff] %v2849
    %v4628 = vld [vmem:[#allocation1] sm:$0xff]
    %4629 = vst [vmem:[#allocation1] ss:$9 sm:$0xff] %v2850
    %4630 = vst [vmem:[%s4599] ss:$9 sm:$0xff] %v2851
    %4631 = vst [vmem:[%s4601] ss:$9 sm:$0xff] %v2852
    %4632 = vst [vmem:[%s4603] ss:$9 sm:$0xff] %v2853
    %4633 = vst [vmem:[%s4605] ss:$9 sm:$0xff] %v2854
    %v4634 = vld [vmem:[#allocation1] sm:$0xff]
    %4635 = vst [vmem:[#allocation1] ss:$9 sm:$0xff] %v2856
    %4636 = vst [vmem:[%s4599] ss:$9 sm:$0xff] %v2857
    %4637 = vst [vmem:[%s4601] ss:$9 sm:$0xff] %v2858
    %4638 = vst [vmem:[%s4603] ss:$9 sm:$0xff] %v2859
    %4639 = vst [vmem:[%s4605] ss:$9 sm:$0xff] %v2860
    %4640 = vst [vmem:[%s4607] ss:$9 sm:$0xff] %v2861
    %4641 = vst [vmem:[%s4609] ss:$9 sm:$0xff] %v2862
    %4642 = vst [vmem:[%s4611] ss:$9 sm:$0xff] %v2863
    %v4643 = vld [vmem:[#allocation1] sm:$0xff]
    %4644 = vst [vmem:[#allocation1] ss:$9 sm:$0xff] %v2864
    %4645 = vst [vmem:[%s4599] ss:$9 sm:$0xff] %v2865
    %4646 = vst [vmem:[%s4601] ss:$9 sm:$0xff] %v2866
    %4647 = vst [vmem:[%s4603] ss:$9 sm:$0xff] %v2867
    %4648 = vst [vmem:[%s4605] ss:$9 sm:$0xff] %v2868
    %v4649 = vld [vmem:[#allocation1] sm:$0xff]
    %4650 = vst [vmem:[#allocation1] ss:$9 sm:$0xff] %v2870
    %4651 = vst [vmem:[%s4599] ss:$9 sm:$0xff] %v2871
    %4652 = vst [vmem:[%s4601] ss:$9 sm:$0xff] %v2872
    %4653 = vst [vmem:[%s4603] ss:$9 sm:$0xff] %v2873
    %4654 = vst [vmem:[%s4605] ss:$9 sm:$0xff] %v2874
    %4655 = vst [vmem:[%s4607] ss:$9 sm:$0xff] %v2875
    %4656 = vst [vmem:[%s4609] ss:$9 sm:$0xff] %v2876
    %4657 = vst [vmem:[%s4611] ss:$9 sm:$0xff] %v2877
    %v4658 = vld [vmem:[#allocation1] sm:$0xff]
    %4659 = vst [vmem:[#allocation1] ss:$9 sm:$0xff] %v2878
    %4660 = vst [vmem:[%s4599] ss:$9 sm:$0xff] %v2879
    %4661 = vst [vmem:[%s4601] ss:$9 sm:$0xff] %v2880
    %4662 = vst [vmem:[%s4603] ss:$9 sm:$0xff] %v2881
    %4663 = vst [vmem:[%s4605] ss:$9 sm:$0xff] %v2882
    %v4664 = vld [vmem:[#allocation1] sm:$0xff]
    %4665 = vst [vmem:[#allocation1] ss:$9 sm:$0xff] %v2884
    %4666 = vst [vmem:[%s4599] ss:$9 sm:$0xff] %v2885
    %4667 = vst [vmem:[%s4601] ss:$9 sm:$0xff] %v2886
    %4668 = vst [vmem:[%s4603] ss:$9 sm:$0xff] %v2887
    %4669 = vst [vmem:[%s4605] ss:$9 sm:$0xff] %v2888
    %4670 = vst [vmem:[%s4607] ss:$9 sm:$0xff] %v2889
    %4671 = vst [vmem:[%s4609] ss:$9 sm:$0xff] %v2890
    %4672 = vst [vmem:[%s4611] ss:$9 sm:$0xff] %v2891
    %v4673 = vld [vmem:[#allocation1] sm:$0xff]
    %4674 = vst [vmem:[#allocation1] ss:$9 sm:$0xff] %v2892
    %4675 = vst [vmem:[%s4599] ss:$9 sm:$0xff] %v2893
    %4676 = vst [vmem:[%s4601] ss:$9 sm:$0xff] %v2894
    %4677 = vst [vmem:[%s4603] ss:$9 sm:$0xff] %v2895
    %4678 = vst [vmem:[%s4605] ss:$9 sm:$0xff] %v2896
    %v4679 = vld [vmem:[#allocation1] sm:$0xff]
    %4680 = vst [vmem:[#allocation1] ss:$9 sm:$0xff] %v2898
    %4681 = vst [vmem:[%s4599] ss:$9 sm:$0xff] %v2899
    %4682 = vst [vmem:[%s4601] ss:$9 sm:$0xff] %v2900
    %4683 = vst [vmem:[%s4603] ss:$9 sm:$0xff] %v2901
    %4684 = vst [vmem:[%s4605] ss:$9 sm:$0xff] %v2902
    %4685 = vst [vmem:[%s4607] ss:$9 sm:$0xff] %v2903
    %4686 = vst [vmem:[%s4609] ss:$9 sm:$0xff] %v2904
    %4687 = vst [vmem:[%s4611] ss:$9 sm:$0xff] %v2905
    %v4688 = vld [vmem:[#allocation1] sm:$0xff]
    %4689 = vst [vmem:[#allocation1] ss:$9 sm:$0xff] %v2906
    %4690 = vst [vmem:[%s4599] ss:$9 sm:$0xff] %v2907
    %4691 = vst [vmem:[%s4601] ss:$9 sm:$0xff] %v2908
    %4692 = vst [vmem:[%s4603] ss:$9 sm:$0xff] %v2909
    %4693 = vst [vmem:[%s4605] ss:$9 sm:$0xff] %v2910
    %v4694 = vld [vmem:[#allocation1] sm:$0xff]
    %4695 = vst [vmem:[#allocation1] ss:$9 sm:$0xff] %v2912
    %4696 = vst [vmem:[%s4599] ss:$9 sm:$0xff] %v2913
    %4697 = vst [vmem:[%s4601] ss:$9 sm:$0xff] %v2914
    %4698 = vst [vmem:[%s4603] ss:$9 sm:$0xff] %v2915
    %4699 = vst [vmem:[%s4605] ss:$9 sm:$0xff] %v2916
    %4700 = vst [vmem:[%s4607] ss:$9 sm:$0xff] %v2917
    %4701 = vst [vmem:[%s4609] ss:$9 sm:$0xff] %v2918
    %4702 = vst [vmem:[%s4611] ss:$9 sm:$0xff] %v2919
    %v4703 = vld [vmem:[#allocation1] sm:$0xff]
    %4704 = vst [vmem:[#allocation1] ss:$9 sm:$0xff] %v2920
    %4705 = vst [vmem:[%s4599] ss:$9 sm:$0xff] %v2921
    %4706 = vst [vmem:[%s4601] ss:$9 sm:$0xff] %v2922
    %4707 = vst [vmem:[%s4603] ss:$9 sm:$0xff] %v2923
    %4708 = vst [vmem:[%s4605] ss:$9 sm:$0xff] %v2924
    %v4709 = vld [vmem:[#allocation1] sm:$0xff]
    %4710 = vst [vmem:[#allocation1] ss:$9 sm:$0xff] %v2926
    %4711 = vst [vmem:[%s4599] ss:$9 sm:$0xff] %v2927
    %4712 = vst [vmem:[%s4601] ss:$9 sm:$0xff] %v2928
    %4713 = vst [vmem:[%s4603] ss:$9 sm:$0xff] %v2929
    %4714 = vst [vmem:[%s4605] ss:$9 sm:$0xff] %v2930
    %4715 = vst [vmem:[%s4607] ss:$9 sm:$0xff] %v2931
    %4716 = vst [vmem:[%s4609] ss:$9 sm:$0xff] %v2932
    %4717 = vst [vmem:[%s4611] ss:$9 sm:$0xff] %v2933
    %v4718 = vld [vmem:[#allocation1] sm:$0xff]
    %4719 = vst [vmem:[#allocation1] ss:$9 sm:$0xff] %v2934
    %4720 = vst [vmem:[%s4599] ss:$9 sm:$0xff] %v2935
    %4721 = vst [vmem:[%s4601] ss:$9 sm:$0xff] %v2936
    %4722 = vst [vmem:[%s4603] ss:$9 sm:$0xff] %v2937
    %4723 = vst [vmem:[%s4605] ss:$9 sm:$0xff] %v2938
    %v4724 = vld [vmem:[#allocation1] sm:$0xff]
    %4725 = vst [vmem:[#allocation1] ss:$9 sm:$0xff] %v2940
    %4726 = vst [vmem:[%s4599] ss:$9 sm:$0xff] %v2941
    %4727 = vst [vmem:[%s4601] ss:$9 sm:$0xff] %v2942
    %4728 = vst [vmem:[%s4603] ss:$9 sm:$0xff] %v2943
    %4729 = vst [vmem:[%s4605] ss:$9 sm:$0xff] %v2944
    %4730 = vst [vmem:[%s4607] ss:$9 sm:$0xff] %v2945
    %4731 = vst [vmem:[%s4609] ss:$9 sm:$0xff] %v2946
    %4732 = vst [vmem:[%s4611] ss:$9 sm:$0xff] %v2947
    %v4733 = vld [vmem:[#allocation1] sm:$0xff]
    %4734 = vst [vmem:[#allocation1] ss:$9 sm:$0xff] %v2948
    %4735 = vst [vmem:[%s4599] ss:$9 sm:$0xff] %v2949
    %4736 = vst [vmem:[%s4601] ss:$9 sm:$0xff] %v2950
    %4737 = vst [vmem:[%s4603] ss:$9 sm:$0xff] %v2951
    %4738 = vst [vmem:[%s4605] ss:$9 sm:$0xff] %v2952
    %v4739 = vld [vmem:[#allocation1] sm:$0xff]
    %4740 = vst [vmem:[#allocation1] ss:$9 sm:$0xff] %v2954
    %4741 = vst [vmem:[%s4599] ss:$9 sm:$0xff] %v2955
    %4742 = vst [vmem:[%s4601] ss:$9 sm:$0xff] %v2956
    %4743 = vst [vmem:[%s4603] ss:$9 sm:$0xff] %v2957
    %4744 = vst [vmem:[%s4605] ss:$9 sm:$0xff] %v2958
    %4745 = vst [vmem:[%s4607] ss:$9 sm:$0xff] %v2959
    %4746 = vst [vmem:[%s4609] ss:$9 sm:$0xff] %v2960
    %4747 = vst [vmem:[%s4611] ss:$9 sm:$0xff] %v2961
    %v4748 = vld [vmem:[#allocation1] sm:$0xff]
    %4749 = vst [vmem:[#allocation1] ss:$9 sm:$0xff] %v2962
    %4750 = vst [vmem:[%s4599] ss:$9 sm:$0xff] %v2963
    %4751 = vst [vmem:[%s4601] ss:$9 sm:$0xff] %v2964
    %4752 = vst [vmem:[%s4603] ss:$9 sm:$0xff] %v2965
    %4753 = vst [vmem:[%s4605] ss:$9 sm:$0xff] %v2966
    %v4754 = vld [vmem:[#allocation1] sm:$0xff]
    %4755 = vst [vmem:[#allocation1] ss:$9 sm:$0xff] %v2968
    %4756 = vst [vmem:[%s4599] ss:$9 sm:$0xff] %v2969
    %4757 = vst [vmem:[%s4601] ss:$9 sm:$0xff] %v2970
    %4758 = vst [vmem:[%s4603] ss:$9 sm:$0xff] %v2971
    %4759 = vst [vmem:[%s4605] ss:$9 sm:$0xff] %v2972
    %4760 = vst [vmem:[%s4607] ss:$9 sm:$0xff] %v2973
    %4761 = vst [vmem:[%s4609] ss:$9 sm:$0xff] %v2974
    %4762 = vst [vmem:[%s4611] ss:$9 sm:$0xff] %v2975
    %v4763 = vld [vmem:[#allocation1] sm:$0xff]
    %4764 = vst [vmem:[#allocation1] ss:$9 sm:$0xff] %v2976
    %4765 = vst [vmem:[%s4599] ss:$9 sm:$0xff] %v2977
    %4766 = vst [vmem:[%s4601] ss:$9 sm:$0xff] %v2978
    %4767 = vst [vmem:[%s4603] ss:$9 sm:$0xff] %v2979
    %4768 = vst [vmem:[%s4605] ss:$9 sm:$0xff] %v2980
    %v4769 = vld [vmem:[#allocation1] sm:$0xff]
    %4770 = vst [vmem:[#allocation1] ss:$9 sm:$0xff] %v2982
    %4771 = vst [vmem:[%s4599] ss:$9 sm:$0xff] %v2983
    %4772 = vst [vmem:[%s4601] ss:$9 sm:$0xff] %v2984
    %4773 = vst [vmem:[%s4603] ss:$9 sm:$0xff] %v2985
    %4774 = vst [vmem:[%s4605] ss:$9 sm:$0xff] %v2986
    %4775 = vst [vmem:[%s4607] ss:$9 sm:$0xff] %v2987
    %4776 = vst [vmem:[%s4609] ss:$9 sm:$0xff] %v2988
    %4777 = vst [vmem:[%s4611] ss:$9 sm:$0xff] %v2989
    %v4778 = vld [vmem:[#allocation1] sm:$0xff]
    %4779 = vst [vmem:[#allocation1] ss:$9 sm:$0xff] %v2990
    %4780 = vst [vmem:[%s4599] ss:$9 sm:$0xff] %v2991
    %4781 = vst [vmem:[%s4601] ss:$9 sm:$0xff] %v2992
    %4782 = vst [vmem:[%s4603] ss:$9 sm:$0xff] %v2993
    %4783 = vst [vmem:[%s4605] ss:$9 sm:$0xff] %v2994
    %v4784 = vld [vmem:[#allocation1] sm:$0xff]
    %4785 = vst [vmem:[#allocation1] ss:$9 sm:$0xff] %v2996
    %4786 = vst [vmem:[%s4599] ss:$9 sm:$0xff] %v2997
    %4787 = vst [vmem:[%s4601] ss:$9 sm:$0xff] %v2998
    %4788 = vst [vmem:[%s4603] ss:$9 sm:$0xff] %v2999
    %4789 = vst [vmem:[%s4605] ss:$9 sm:$0xff] %v3000
    %4790 = vst [vmem:[%s4607] ss:$9 sm:$0xff] %v3001
    %4791 = vst [vmem:[%s4609] ss:$9 sm:$0xff] %v3002
    %4792 = vst [vmem:[%s4611] ss:$9 sm:$0xff] %v3003
    %v4793 = vld [vmem:[#allocation1] sm:$0xff]
    %4794 = vst [vmem:[#allocation1] ss:$9 sm:$0xff] %v3004
    %4795 = vst [vmem:[%s4599] ss:$9 sm:$0xff] %v3005
    %4796 = vst [vmem:[%s4601] ss:$9 sm:$0xff] %v3006
    %4797 = vst [vmem:[%s4603] ss:$9 sm:$0xff] %v3007
    %4798 = vst [vmem:[%s4605] ss:$9 sm:$0xff] %v3008
    %v4799 = vld [vmem:[#allocation1] sm:$0xff]
    %4800 = vst [vmem:[#allocation1] ss:$9 sm:$0xff] %v3024
    %4801 = vst [vmem:[%s4599] ss:$9 sm:$0xff] %v3025
    %4802 = vst [vmem:[%s4601] ss:$9 sm:$0xff] %v3026
    %4803 = vst [vmem:[%s4603] ss:$9 sm:$0xff] %v3027
    %4804 = vst [vmem:[%s4605] ss:$9 sm:$0xff] %v3028
    %4805 = vst [vmem:[%s4607] ss:$9 sm:$0xff] %v3029
    %4806 = vst [vmem:[%s4609] ss:$9 sm:$0xff] %v3030
    %4807 = vst [vmem:[%s4611] ss:$9 sm:$0xff] %v3031
    %v4808 = vld [vmem:[#allocation1] sm:$0xff]
    %4809 = vst [vmem:[#allocation1] ss:$9 sm:$0xff] %v3032
    %4810 = vst [vmem:[%s4599] ss:$9 sm:$0xff] %v3033
    %4811 = vst [vmem:[%s4601] ss:$9 sm:$0xff] %v3034
    %4812 = vst [vmem:[%s4603] ss:$9 sm:$0xff] %v3035
    %4813 = vst [vmem:[%s4605] ss:$9 sm:$0xff] %v3036
    %v4814 = vld [vmem:[#allocation1] sm:$0xff]
    %4815 = vst [vmem:[#allocation1] ss:$9 sm:$0xff] %v3038
    %4816 = vst [vmem:[%s4599] ss:$9 sm:$0xff] %v3039
    %4817 = vst [vmem:[%s4601] ss:$9 sm:$0xff] %v3040
    %4818 = vst [vmem:[%s4603] ss:$9 sm:$0xff] %v3041
    %4819 = vst [vmem:[%s4605] ss:$9 sm:$0xff] %v3042
    %4820 = vst [vmem:[%s4607] ss:$9 sm:$0xff] %v3043
    %4821 = vst [vmem:[%s4609] ss:$9 sm:$0xff] %v3044
    %4822 = vst [vmem:[%s4611] ss:$9 sm:$0xff] %v3045
    %v4823 = vld [vmem:[#allocation1] sm:$0xff]
    %4824 = vst [vmem:[#allocation1] ss:$9 sm:$0xff] %v3046
    %4825 = vst [vmem:[%s4599] ss:$9 sm:$0xff] %v3047
    %4826 = vst [vmem:[%s4601] ss:$9 sm:$0xff] %v3048
    %4827 = vst [vmem:[%s4603] ss:$9 sm:$0xff] %v3049
    %4828 = vst [vmem:[%s4605] ss:$9 sm:$0xff] %v3050
    %v4829 = vld [vmem:[#allocation1] sm:$0xff]
    %4830 = vst [vmem:[#allocation1] ss:$9 sm:$0xff] %v3052
    %4831 = vst [vmem:[%s4599] ss:$9 sm:$0xff] %v3053
    %4832 = vst [vmem:[%s4601] ss:$9 sm:$0xff] %v3054
    %4833 = vst [vmem:[%s4603] ss:$9 sm:$0xff] %v3055
    %4834 = vst [vmem:[%s4605] ss:$9 sm:$0xff] %v3056
    %4835 = vst [vmem:[%s4607] ss:$9 sm:$0xff] %v3057
    %4836 = vst [vmem:[%s4609] ss:$9 sm:$0xff] %v3058
    %4837 = vst [vmem:[%s4611] ss:$9 sm:$0xff] %v3059
    %v4838 = vld [vmem:[#allocation1] sm:$0xff]
    %4839 = vst [vmem:[#allocation1] ss:$9 sm:$0xff] %v3060
    %4840 = vst [vmem:[%s4599] ss:$9 sm:$0xff] %v3061
    %4841 = vst [vmem:[%s4601] ss:$9 sm:$0xff] %v3062
    %4842 = vst [vmem:[%s4603] ss:$9 sm:$0xff] %v3063
    %4843 = vst [vmem:[%s4605] ss:$9 sm:$0xff] %v3064
    %v4844 = vld [vmem:[#allocation1] sm:$0xff]
    %4845 = vst [vmem:[#allocation1] ss:$9 sm:$0xff] %v3066
    %4846 = vst [vmem:[%s4599] ss:$9 sm:$0xff] %v3067
    %4847 = vst [vmem:[%s4601] ss:$9 sm:$0xff] %v3068
    %4848 = vst [vmem:[%s4603] ss:$9 sm:$0xff] %v3069
    %4849 = vst [vmem:[%s4605] ss:$9 sm:$0xff] %v3070
    %4850 = vst [vmem:[%s4607] ss:$9 sm:$0xff] %v3071
    %4851 = vst [vmem:[%s4609] ss:$9 sm:$0xff] %v3072
    %4852 = vst [vmem:[%s4611] ss:$9 sm:$0xff] %v3073
    %v4853 = vld [vmem:[#allocation1] sm:$0xff]
    %4854 = vst [vmem:[#allocation1] ss:$9 sm:$0xff] %v3074
    %4855 = vst [vmem:[%s4599] ss:$9 sm:$0xff] %v3075
    %4856 = vst [vmem:[%s4601] ss:$9 sm:$0xff] %v3076
    %4857 = vst [vmem:[%s4603] ss:$9 sm:$0xff] %v3077
    %4858 = vst [vmem:[%s4605] ss:$9 sm:$0xff] %v3078
    %v4859 = vld [vmem:[#allocation1] sm:$0xff]
    %4860 = vst [vmem:[#allocation1] ss:$9 sm:$0xff] %v3080
    %4861 = vst [vmem:[%s4599] ss:$9 sm:$0xff] %v3081
    %4862 = vst [vmem:[%s4601] ss:$9 sm:$0xff] %v3082
    %4863 = vst [vmem:[%s4603] ss:$9 sm:$0xff] %v3083
    %4864 = vst [vmem:[%s4605] ss:$9 sm:$0xff] %v3084
    %4865 = vst [vmem:[%s4607] ss:$9 sm:$0xff] %v3085
    %4866 = vst [vmem:[%s4609] ss:$9 sm:$0xff] %v3086
    %4867 = vst [vmem:[%s4611] ss:$9 sm:$0xff] %v3087
    %v4868 = vld [vmem:[#allocation1] sm:$0xff]
    %4869 = vst [vmem:[#allocation1] ss:$9 sm:$0xff] %v3088
    %4870 = vst [vmem:[%s4599] ss:$9 sm:$0xff] %v3089
    %4871 = vst [vmem:[%s4601] ss:$9 sm:$0xff] %v3090
    %4872 = vst [vmem:[%s4603] ss:$9 sm:$0xff] %v3091
    %4873 = vst [vmem:[%s4605] ss:$9 sm:$0xff] %v3092
    %v4874 = vld [vmem:[#allocation1] sm:$0xff]
    %4875 = vst [vmem:[#allocation1] ss:$9 sm:$0xff] %v3094
    %4876 = vst [vmem:[%s4599] ss:$9 sm:$0xff] %v3095
    %4877 = vst [vmem:[%s4601] ss:$9 sm:$0xff] %v3096
    %4878 = vst [vmem:[%s4603] ss:$9 sm:$0xff] %v3097
    %4879 = vst [vmem:[%s4605] ss:$9 sm:$0xff] %v3098
    %4880 = vst [vmem:[%s4607] ss:$9 sm:$0xff] %v3099
    %4881 = vst [vmem:[%s4609] ss:$9 sm:$0xff] %v3100
    %4882 = vst [vmem:[%s4611] ss:$9 sm:$0xff] %v3101
    %v4883 = vld [vmem:[#allocation1] sm:$0xff]
    %4884 = vst [vmem:[#allocation1] ss:$9 sm:$0xff] %v3102
    %4885 = vst [vmem:[%s4599] ss:$9 sm:$0xff] %v3103
    %4886 = vst [vmem:[%s4601] ss:$9 sm:$0xff] %v3104
    %4887 = vst [vmem:[%s4603] ss:$9 sm:$0xff] %v3105
    %4888 = vst [vmem:[%s4605] ss:$9 sm:$0xff] %v3106
    %v4889 = vld [vmem:[#allocation1] sm:$0xff]
    %4890 = vst [vmem:[#allocation1] ss:$9 sm:$0xff] %v3108
    %4891 = vst [vmem:[%s4599] ss:$9 sm:$0xff] %v3109
    %4892 = vst [vmem:[%s4601] ss:$9 sm:$0xff] %v3110
    %4893 = vst [vmem:[%s4603] ss:$9 sm:$0xff] %v3111
    %4894 = vst [vmem:[%s4605] ss:$9 sm:$0xff] %v3112
    %4895 = vst [vmem:[%s4607] ss:$9 sm:$0xff] %v3113
    %4896 = vst [vmem:[%s4609] ss:$9 sm:$0xff] %v3114
    %4897 = vst [vmem:[%s4611] ss:$9 sm:$0xff] %v3115
    %v4898 = vld [vmem:[#allocation1] sm:$0xff]
    %4899 = vst [vmem:[#allocation1] ss:$9 sm:$0xff] %v3116
    %4900 = vst [vmem:[%s4599] ss:$9 sm:$0xff] %v3117
    %4901 = vst [vmem:[%s4601] ss:$9 sm:$0xff] %v3118
    %4902 = vst [vmem:[%s4603] ss:$9 sm:$0xff] %v3119
    %4903 = vst [vmem:[%s4605] ss:$9 sm:$0xff] %v3120
    %v4904 = vld [vmem:[#allocation1] sm:$0xff]
    %4905 = vst [vmem:[#allocation1] ss:$9 sm:$0xff] %v3122
    %4906 = vst [vmem:[%s4599] ss:$9 sm:$0xff] %v3123
    %4907 = vst [vmem:[%s4601] ss:$9 sm:$0xff] %v3124
    %4908 = vst [vmem:[%s4603] ss:$9 sm:$0xff] %v3125
    %4909 = vst [vmem:[%s4605] ss:$9 sm:$0xff] %v3126
    %4910 = vst [vmem:[%s4607] ss:$9 sm:$0xff] %v3127
    %4911 = vst [vmem:[%s4609] ss:$9 sm:$0xff] %v3128
    %4912 = vst [vmem:[%s4611] ss:$9 sm:$0xff] %v3129
    %v4913 = vld [vmem:[#allocation1] sm:$0xff]
    %4914 = vst [vmem:[#allocation1] ss:$9 sm:$0xff] %v3130
    %4915 = vst [vmem:[%s4599] ss:$9 sm:$0xff] %v3131
    %4916 = vst [vmem:[%s4601] ss:$9 sm:$0xff] %v3132
    %4917 = vst [vmem:[%s4603] ss:$9 sm:$0xff] %v3133
    %4918 = vst [vmem:[%s4605] ss:$9 sm:$0xff] %v3134
    %v4919 = vld [vmem:[#allocation1] sm:$0xff]
    %4920 = vst [vmem:[#allocation1] ss:$9 sm:$0xff] %v3136
    %4921 = vst [vmem:[%s4599] ss:$9 sm:$0xff] %v3137
    %4922 = vst [vmem:[%s4601] ss:$9 sm:$0xff] %v3138
    %4923 = vst [vmem:[%s4603] ss:$9 sm:$0xff] %v3139
    %4924 = vst [vmem:[%s4605] ss:$9 sm:$0xff] %v3140
    %4925 = vst [vmem:[%s4607] ss:$9 sm:$0xff] %v3141
    %4926 = vst [vmem:[%s4609] ss:$9 sm:$0xff] %v3142
    %4927 = vst [vmem:[%s4611] ss:$9 sm:$0xff] %v3143
    %v4928 = vld [vmem:[#allocation1] sm:$0xff]
    %4929 = vst [vmem:[#allocation1] ss:$9 sm:$0xff] %v3144
    %4930 = vst [vmem:[%s4599] ss:$9 sm:$0xff] %v3145
    %4931 = vst [vmem:[%s4601] ss:$9 sm:$0xff] %v3146
    %4932 = vst [vmem:[%s4603] ss:$9 sm:$0xff] %v3147
    %4933 = vst [vmem:[%s4605] ss:$9 sm:$0xff] %v3148
    %v4934 = vld [vmem:[#allocation1] sm:$0xff]
    %4935 = vst [vmem:[#allocation1] ss:$9 sm:$0xff] %v3150
    %4936 = vst [vmem:[%s4599] ss:$9 sm:$0xff] %v3151
    %4937 = vst [vmem:[%s4601] ss:$9 sm:$0xff] %v3152
    %4938 = vst [vmem:[%s4603] ss:$9 sm:$0xff] %v3153
    %4939 = vst [vmem:[%s4605] ss:$9 sm:$0xff] %v3154
    %4940 = vst [vmem:[%s4607] ss:$9 sm:$0xff] %v3155
    %4941 = vst [vmem:[%s4609] ss:$9 sm:$0xff] %v3156
    %4942 = vst [vmem:[%s4611] ss:$9 sm:$0xff] %v3157
    %v4943 = vld [vmem:[#allocation1] sm:$0xff]
    %4944 = vst [vmem:[#allocation1] ss:$9 sm:$0xff] %v3158
    %4945 = vst [vmem:[%s4599] ss:$9 sm:$0xff] %v3159
    %4946 = vst [vmem:[%s4601] ss:$9 sm:$0xff] %v3160
    %4947 = vst [vmem:[%s4603] ss:$9 sm:$0xff] %v3161
    %4948 = vst [vmem:[%s4605] ss:$9 sm:$0xff] %v3162
    %v4949 = vld [vmem:[#allocation1] sm:$0xff]
    %4950 = vst [vmem:[#allocation1] ss:$9 sm:$0xff] %v3164
    %4951 = vst [vmem:[%s4599] ss:$9 sm:$0xff] %v3165
    %4952 = vst [vmem:[%s4601] ss:$9 sm:$0xff] %v3166
    %4953 = vst [vmem:[%s4603] ss:$9 sm:$0xff] %v3167
    %4954 = vst [vmem:[%s4605] ss:$9 sm:$0xff] %v3168
    %4955 = vst [vmem:[%s4607] ss:$9 sm:$0xff] %v3169
    %4956 = vst [vmem:[%s4609] ss:$9 sm:$0xff] %v3170
    %4957 = vst [vmem:[%s4611] ss:$9 sm:$0xff] %v3171
    %v4958 = vld [vmem:[#allocation1] sm:$0xff]
    %4959 = vst [vmem:[#allocation1] ss:$9 sm:$0xff] %v3172
    %4960 = vst [vmem:[%s4599] ss:$9 sm:$0xff] %v3173
    %4961 = vst [vmem:[%s4601] ss:$9 sm:$0xff] %v3174
    %4962 = vst [vmem:[%s4603] ss:$9 sm:$0xff] %v3175
    %4963 = vst [vmem:[%s4605] ss:$9 sm:$0xff] %v3176
    %v4964 = vld [vmem:[#allocation1] sm:$0xff]
    %4965 = vst [vmem:[#allocation1] ss:$9 sm:$0xff] %v3178
    %4966 = vst [vmem:[%s4599] ss:$9 sm:$0xff] %v3179
    %4967 = vst [vmem:[%s4601] ss:$9 sm:$0xff] %v3180
    %4968 = vst [vmem:[%s4603] ss:$9 sm:$0xff] %v3181
    %4969 = vst [vmem:[%s4605] ss:$9 sm:$0xff] %v3182
    %4970 = vst [vmem:[%s4607] ss:$9 sm:$0xff] %v3183
    %4971 = vst [vmem:[%s4609] ss:$9 sm:$0xff] %v3184
    %4972 = vst [vmem:[%s4611] ss:$9 sm:$0xff] %v3185
    %v4973 = vld [vmem:[#allocation1] sm:$0xff]
    %4974 = vst [vmem:[#allocation1] ss:$9 sm:$0xff] %v3186
    %4975 = vst [vmem:[%s4599] ss:$9 sm:$0xff] %v3187
    %4976 = vst [vmem:[%s4601] ss:$9 sm:$0xff] %v3188
    %4977 = vst [vmem:[%s4603] ss:$9 sm:$0xff] %v3189
    %4978 = vst [vmem:[%s4605] ss:$9 sm:$0xff] %v3190
    %v4979 = vld [vmem:[#allocation1] sm:$0xff]
    %4980 = vst [vmem:[#allocation1] ss:$9 sm:$0xff] %v3192
    %4981 = vst [vmem:[%s4599] ss:$9 sm:$0xff] %v3193
    %4982 = vst [vmem:[%s4601] ss:$9 sm:$0xff] %v3194
    %4983 = vst [vmem:[%s4603] ss:$9 sm:$0xff] %v3195
    %4984 = vst [vmem:[%s4605] ss:$9 sm:$0xff] %v3196
    %4985 = vst [vmem:[%s4607] ss:$9 sm:$0xff] %v3197
    %4986 = vst [vmem:[%s4609] ss:$9 sm:$0xff] %v3198
    %4987 = vst [vmem:[%s4611] ss:$9 sm:$0xff] %v3199
    %v4988 = vld [vmem:[#allocation1] sm:$0xff]
    %4989 = vst [vmem:[#allocation1] ss:$9 sm:$0xff] %v3200
    %4990 = vst [vmem:[%s4599] ss:$9 sm:$0xff] %v3201
    %4991 = vst [vmem:[%s4601] ss:$9 sm:$0xff] %v3202
    %4992 = vst [vmem:[%s4603] ss:$9 sm:$0xff] %v3203
    %4993 = vst [vmem:[%s4605] ss:$9 sm:$0xff] %v3204
    %v4994 = vld [vmem:[#allocation1] sm:$0xff]
    %4995 = vrot.lane.b32.xlu0 %v4613, 32
    %v4996 = vpop.permute.xlu0 %4995
    %4997 = vrot.lane.b32.xlu0 %v4619, 32
    %v4998 = vpop.permute.xlu0 %4997
    %4999 = vrot.lane.b32.xlu0 %v4628, 32
    %v5000 = vpop.permute.xlu0 %4999
    %5001 = vrot.lane.b32.xlu0 %v4634, 32
    %v5002 = vpop.permute.xlu0 %5001
    %5003 = vrot.lane.b32.xlu0 %v4643, 32
    %v5004 = vpop.permute.xlu0 %5003
    %5005 = vrot.lane.b32.xlu0 %v4649, 32
    %v5006 = vpop.permute.xlu0 %5005
    %5007 = vrot.lane.b32.xlu0 %v4658, 32
    %v5008 = vpop.permute.xlu0 %5007
    %5009 = vrot.lane.b32.xlu0 %v4664, 32
    %v5010 = vpop.permute.xlu0 %5009
    %5011 = vrot.lane.b32.xlu0 %v4673, 32
    %v5012 = vpop.permute.xlu0 %5011
    %5013 = vrot.lane.b32.xlu0 %v4679, 32
    %v5014 = vpop.permute.xlu0 %5013
    %5015 = vrot.lane.b32.xlu0 %v4688, 32
    %v5016 = vpop.permute.xlu0 %5015
    %5017 = vrot.lane.b32.xlu0 %v4694, 32
    %v5018 = vpop.permute.xlu0 %5017
    %5019 = vrot.lane.b32.xlu0 %v4703, 32
    %v5020 = vpop.permute.xlu0 %5019
    %5021 = vrot.lane.b32.xlu0 %v4709, 32
    %v5022 = vpop.permute.xlu0 %5021
    %5023 = vrot.lane.b32.xlu0 %v4718, 32
    %v5024 = vpop.permute.xlu0 %5023
    %5025 = vrot.lane.b32.xlu0 %v4724, 32
    %v5026 = vpop.permute.xlu0 %5025
    %5027 = vrot.lane.b32.xlu0 %v4733, 32
    %v5028 = vpop.permute.xlu0 %5027
    %5029 = vrot.lane.b32.xlu0 %v4739, 32
    %v5030 = vpop.permute.xlu0 %5029
    %5031 = vrot.lane.b32.xlu0 %v4748, 32
    %v5032 = vpop.permute.xlu0 %5031
    %5033 = vrot.lane.b32.xlu0 %v4754, 32
    %v5034 = vpop.permute.xlu0 %5033
    %5035 = vrot.lane.b32.xlu0 %v4763, 32
    %v5036 = vpop.permute.xlu0 %5035
    %5037 = vrot.lane.b32.xlu0 %v4769, 32
    %v5038 = vpop.permute.xlu0 %5037
    %5039 = vrot.lane.b32.xlu0 %v4778, 32
    %v5040 = vpop.permute.xlu0 %5039
    %5041 = vrot.lane.b32.xlu0 %v4784, 32
    %v5042 = vpop.permute.xlu0 %5041
    %5043 = vrot.lane.b32.xlu0 %v4793, 32
    %v5044 = vpop.permute.xlu0 %5043
    %5045 = vrot.lane.b32.xlu0 %v4799, 32
    %v5046 = vpop.permute.xlu0 %5045
    %5047 = vrot.lane.b32.xlu0 %v4808, 32
    %v5048 = vpop.permute.xlu0 %5047
    %5049 = vrot.lane.b32.xlu0 %v4814, 32
    %v5050 = vpop.permute.xlu0 %5049
    %5051 = vrot.lane.b32.xlu0 %v4823, 32
    %v5052 = vpop.permute.xlu0 %5051
    %5053 = vrot.lane.b32.xlu0 %v4829, 32
    %v5054 = vpop.permute.xlu0 %5053
    %5055 = vrot.lane.b32.xlu0 %v4838, 32
    %v5056 = vpop.permute.xlu0 %5055
    %5057 = vrot.lane.b32.xlu0 %v4844, 32
    %v5058 = vpop.permute.xlu0 %5057
    %5059 = vrot.lane.b32.xlu0 %v4853, 32
    %v5060 = vpop.permute.xlu0 %5059
    %5061 = vrot.lane.b32.xlu0 %v4859, 32
    %v5062 = vpop.permute.xlu0 %5061
    %5063 = vrot.lane.b32.xlu0 %v4868, 32
    %v5064 = vpop.permute.xlu0 %5063
    %5065 = vrot.lane.b32.xlu0 %v4874, 32
    %v5066 = vpop.permute.xlu0 %5065
    %5067 = vrot.lane.b32.xlu0 %v4883, 32
    %v5068 = vpop.permute.xlu0 %5067
    %5069 = vrot.lane.b32.xlu0 %v4889, 32
    %v5070 = vpop.permute.xlu0 %5069
    %5071 = vrot.lane.b32.xlu0 %v4898, 32
    %v5072 = vpop.permute.xlu0 %5071
    %5073 = vrot.lane.b32.xlu0 %v4904, 32
    %v5074 = vpop.permute.xlu0 %5073
    %5075 = vrot.lane.b32.xlu0 %v4913, 32
    %v5076 = vpop.permute.xlu0 %5075
    %5077 = vrot.lane.b32.xlu0 %v4919, 32
    %v5078 = vpop.permute.xlu0 %5077
    %5079 = vrot.lane.b32.xlu0 %v4928, 32
    %v5080 = vpop.permute.xlu0 %5079
    %5081 = vrot.lane.b32.xlu0 %v4934, 32
    %v5082 = vpop.permute.xlu0 %5081
    %5083 = vrot.lane.b32.xlu0 %v4943, 32
    %v5084 = vpop.permute.xlu0 %5083
    %5085 = vrot.lane.b32.xlu0 %v4949, 32
    %v5086 = vpop.permute.xlu0 %5085
    %5087 = vrot.lane.b32.xlu0 %v4958, 32
    %v5088 = vpop.permute.xlu0 %5087
    %5089 = vrot.lane.b32.xlu0 %v4964, 32
    %v5090 = vpop.permute.xlu0 %5089
    %5091 = vrot.lane.b32.xlu0 %v4973, 32
    %v5092 = vpop.permute.xlu0 %5091
    %5093 = vrot.lane.b32.xlu0 %v4979, 32
    %v5094 = vpop.permute.xlu0 %5093
    %5095 = vrot.lane.b32.xlu0 %v4988, 32
    %v5096 = vpop.permute.xlu0 %5095
    %5097 = vrot.lane.b32.xlu0 %v4994, 32
    %v5098 = vpop.permute.xlu0 %5097
    %5153 = vst [vmem:[#allocation1] ss:$9 sm:$0xff] %v2829
    %s5154 = scalar_lea.vmem [#allocation1], 1
    %5155 = vst [vmem:[%s5154] ss:$9 sm:$0xff] %v2830
    %s5156 = scalar_lea.vmem [#allocation1], 2
    %5157 = vst [vmem:[%s5156] ss:$9 sm:$0xff] %v2831
    %s5158 = scalar_lea.vmem [#allocation1], 3
    %5159 = vst [vmem:[%s5158] ss:$9 sm:$0xff] %v2832
    %s5160 = scalar_lea.vmem [#allocation1], 4
    %5161 = vst [vmem:[%s5160] ss:$9 sm:$0xff] %v2833
    %s5162 = scalar_lea.vmem [#allocation1], 5
    %5163 = vst [vmem:[%s5162] ss:$9 sm:$0xff] %v2834
    %s5164 = scalar_lea.vmem [#allocation1], 6
    %5165 = vst [vmem:[%s5164] ss:$9 sm:$0xff] %v2835
    %s5166 = scalar_lea.vmem [#allocation1], 7
    %5167 = vst [vmem:[%s5166] ss:$9 sm:$0xff] %v2836
    %v5168 = vld [vmem:[#allocation1] sm:$0xff]
    %5169 = vst [vmem:[#allocation1] ss:$9 sm:$0xff] %v2837
    %5170 = vst [vmem:[%s5154] ss:$9 sm:$0xff] %v2838
    %5171 = vst [vmem:[%s5156] ss:$9 sm:$0xff] %v2839
    %5172 = vst [vmem:[%s5158] ss:$9 sm:$0xff] %v2840
    %5173 = vst [vmem:[%s5160] ss:$9 sm:$0xff] %v2841
    %v5174 = vld [vmem:[#allocation1] sm:$0xff]
    %5175 = vst [vmem:[#allocation1] ss:$9 sm:$0xff] %v2843
    %5176 = vst [vmem:[%s5154] ss:$9 sm:$0xff] %v2844
    %5177 = vst [vmem:[%s5156] ss:$9 sm:$0xff] %v2845
    %5178 = vst [vmem:[%s5158] ss:$9 sm:$0xff] %v2846
    %5179 = vst [vmem:[%s5160] ss:$9 sm:$0xff] %v2847
    %5180 = vst [vmem:[%s5162] ss:$9 sm:$0xff] %v2848
    %5181 = vst [vmem:[%s5164] ss:$9 sm:$0xff] %v2849
    %5182 = vst [vmem:[%s5166] ss:$9 sm:$0xff] %v2850
    %v5183 = vld [vmem:[#allocation1] sm:$0xff]
    %5184 = vst [vmem:[#allocation1] ss:$9 sm:$0xff] %v2851
    %5185 = vst [vmem:[%s5154] ss:$9 sm:$0xff] %v2852
    %5186 = vst [vmem:[%s5156] ss:$9 sm:$0xff] %v2853
    %5187 = vst [vmem:[%s5158] ss:$9 sm:$0xff] %v2854
    %5188 = vst [vmem:[%s5160] ss:$9 sm:$0xff] %v2855
    %v5189 = vld [vmem:[#allocation1] sm:$0xff]
    %5190 = vst [vmem:[#allocation1] ss:$9 sm:$0xff] %v2857
    %5191 = vst [vmem:[%s5154] ss:$9 sm:$0xff] %v2858
    %5192 = vst [vmem:[%s5156] ss:$9 sm:$0xff] %v2859
    %5193 = vst [vmem:[%s5158] ss:$9 sm:$0xff] %v2860
    %5194 = vst [vmem:[%s5160] ss:$9 sm:$0xff] %v2861
    %5195 = vst [vmem:[%s5162] ss:$9 sm:$0xff] %v2862
    %5196 = vst [vmem:[%s5164] ss:$9 sm:$0xff] %v2863
    %5197 = vst [vmem:[%s5166] ss:$9 sm:$0xff] %v2864
    %v5198 = vld [vmem:[#allocation1] sm:$0xff]
    %5199 = vst [vmem:[#allocation1] ss:$9 sm:$0xff] %v2865
    %5200 = vst [vmem:[%s5154] ss:$9 sm:$0xff] %v2866
    %5201 = vst [vmem:[%s5156] ss:$9 sm:$0xff] %v2867
    %5202 = vst [vmem:[%s5158] ss:$9 sm:$0xff] %v2868
    %5203 = vst [vmem:[%s5160] ss:$9 sm:$0xff] %v2869
    %v5204 = vld [vmem:[#allocation1] sm:$0xff]
    %5205 = vst [vmem:[#allocation1] ss:$9 sm:$0xff] %v2871
    %5206 = vst [vmem:[%s5154] ss:$9 sm:$0xff] %v2872
    %5207 = vst [vmem:[%s5156] ss:$9 sm:$0xff] %v2873
    %5208 = vst [vmem:[%s5158] ss:$9 sm:$0xff] %v2874
    %5209 = vst [vmem:[%s5160] ss:$9 sm:$0xff] %v2875
    %5210 = vst [vmem:[%s5162] ss:$9 sm:$0xff] %v2876
    %5211 = vst [vmem:[%s5164] ss:$9 sm:$0xff] %v2877
    %5212 = vst [vmem:[%s5166] ss:$9 sm:$0xff] %v2878
    %v5213 = vld [vmem:[#allocation1] sm:$0xff]
    %5214 = vst [vmem:[#allocation1] ss:$9 sm:$0xff] %v2879
    %5215 = vst [vmem:[%s5154] ss:$9 sm:$0xff] %v2880
    %5216 = vst [vmem:[%s5156] ss:$9 sm:$0xff] %v2881
    %5217 = vst [vmem:[%s5158] ss:$9 sm:$0xff] %v2882
    %5218 = vst [vmem:[%s5160] ss:$9 sm:$0xff] %v2883
    %v5219 = vld [vmem:[#allocation1] sm:$0xff]
    %5220 = vst [vmem:[#allocation1] ss:$9 sm:$0xff] %v2885
    %5221 = vst [vmem:[%s5154] ss:$9 sm:$0xff] %v2886
    %5222 = vst [vmem:[%s5156] ss:$9 sm:$0xff] %v2887
    %5223 = vst [vmem:[%s5158] ss:$9 sm:$0xff] %v2888
    %5224 = vst [vmem:[%s5160] ss:$9 sm:$0xff] %v2889
    %5225 = vst [vmem:[%s5162] ss:$9 sm:$0xff] %v2890
    %5226 = vst [vmem:[%s5164] ss:$9 sm:$0xff] %v2891
    %5227 = vst [vmem:[%s5166] ss:$9 sm:$0xff] %v2892
    %v5228 = vld [vmem:[#allocation1] sm:$0xff]
    %5229 = vst [vmem:[#allocation1] ss:$9 sm:$0xff] %v2893
    %5230 = vst [vmem:[%s5154] ss:$9 sm:$0xff] %v2894
    %5231 = vst [vmem:[%s5156] ss:$9 sm:$0xff] %v2895
    %5232 = vst [vmem:[%s5158] ss:$9 sm:$0xff] %v2896
    %5233 = vst [vmem:[%s5160] ss:$9 sm:$0xff] %v2897
    %v5234 = vld [vmem:[#allocation1] sm:$0xff]
    %5235 = vst [vmem:[#allocation1] ss:$9 sm:$0xff] %v2899
    %5236 = vst [vmem:[%s5154] ss:$9 sm:$0xff] %v2900
    %5237 = vst [vmem:[%s5156] ss:$9 sm:$0xff] %v2901
    %5238 = vst [vmem:[%s5158] ss:$9 sm:$0xff] %v2902
    %5239 = vst [vmem:[%s5160] ss:$9 sm:$0xff] %v2903
    %5240 = vst [vmem:[%s5162] ss:$9 sm:$0xff] %v2904
    %5241 = vst [vmem:[%s5164] ss:$9 sm:$0xff] %v2905
    %5242 = vst [vmem:[%s5166] ss:$9 sm:$0xff] %v2906
    %v5243 = vld [vmem:[#allocation1] sm:$0xff]
    %5244 = vst [vmem:[#allocation1] ss:$9 sm:$0xff] %v2907
    %5245 = vst [vmem:[%s5154] ss:$9 sm:$0xff] %v2908
    %5246 = vst [vmem:[%s5156] ss:$9 sm:$0xff] %v2909
    %5247 = vst [vmem:[%s5158] ss:$9 sm:$0xff] %v2910
    %5248 = vst [vmem:[%s5160] ss:$9 sm:$0xff] %v2911
    %v5249 = vld [vmem:[#allocation1] sm:$0xff]
    %5250 = vst [vmem:[#allocation1] ss:$9 sm:$0xff] %v2913
    %5251 = vst [vmem:[%s5154] ss:$9 sm:$0xff] %v2914
    %5252 = vst [vmem:[%s5156] ss:$9 sm:$0xff] %v2915
    %5253 = vst [vmem:[%s5158] ss:$9 sm:$0xff] %v2916
    %5254 = vst [vmem:[%s5160] ss:$9 sm:$0xff] %v2917
    %5255 = vst [vmem:[%s5162] ss:$9 sm:$0xff] %v2918
    %5256 = vst [vmem:[%s5164] ss:$9 sm:$0xff] %v2919
    %5257 = vst [vmem:[%s5166] ss:$9 sm:$0xff] %v2920
    %v5258 = vld [vmem:[#allocation1] sm:$0xff]
    %5259 = vst [vmem:[#allocation1] ss:$9 sm:$0xff] %v2921
    %5260 = vst [vmem:[%s5154] ss:$9 sm:$0xff] %v2922
    %5261 = vst [vmem:[%s5156] ss:$9 sm:$0xff] %v2923
    %5262 = vst [vmem:[%s5158] ss:$9 sm:$0xff] %v2924
    %5263 = vst [vmem:[%s5160] ss:$9 sm:$0xff] %v2925
    %v5264 = vld [vmem:[#allocation1] sm:$0xff]
    %5265 = vst [vmem:[#allocation1] ss:$9 sm:$0xff] %v2927
    %5266 = vst [vmem:[%s5154] ss:$9 sm:$0xff] %v2928
    %5267 = vst [vmem:[%s5156] ss:$9 sm:$0xff] %v2929
    %5268 = vst [vmem:[%s5158] ss:$9 sm:$0xff] %v2930
    %5269 = vst [vmem:[%s5160] ss:$9 sm:$0xff] %v2931
    %5270 = vst [vmem:[%s5162] ss:$9 sm:$0xff] %v2932
    %5271 = vst [vmem:[%s5164] ss:$9 sm:$0xff] %v2933
    %5272 = vst [vmem:[%s5166] ss:$9 sm:$0xff] %v2934
    %v5273 = vld [vmem:[#allocation1] sm:$0xff]
    %5274 = vst [vmem:[#allocation1] ss:$9 sm:$0xff] %v2935
    %5275 = vst [vmem:[%s5154] ss:$9 sm:$0xff] %v2936
    %5276 = vst [vmem:[%s5156] ss:$9 sm:$0xff] %v2937
    %5277 = vst [vmem:[%s5158] ss:$9 sm:$0xff] %v2938
    %5278 = vst [vmem:[%s5160] ss:$9 sm:$0xff] %v2939
    %v5279 = vld [vmem:[#allocation1] sm:$0xff]
    %5280 = vst [vmem:[#allocation1] ss:$9 sm:$0xff] %v2941
    %5281 = vst [vmem:[%s5154] ss:$9 sm:$0xff] %v2942
    %5282 = vst [vmem:[%s5156] ss:$9 sm:$0xff] %v2943
    %5283 = vst [vmem:[%s5158] ss:$9 sm:$0xff] %v2944
    %5284 = vst [vmem:[%s5160] ss:$9 sm:$0xff] %v2945
    %5285 = vst [vmem:[%s5162] ss:$9 sm:$0xff] %v2946
    %5286 = vst [vmem:[%s5164] ss:$9 sm:$0xff] %v2947
    %5287 = vst [vmem:[%s5166] ss:$9 sm:$0xff] %v2948
    %v5288 = vld [vmem:[#allocation1] sm:$0xff]
    %5289 = vst [vmem:[#allocation1] ss:$9 sm:$0xff] %v2949
    %5290 = vst [vmem:[%s5154] ss:$9 sm:$0xff] %v2950
    %5291 = vst [vmem:[%s5156] ss:$9 sm:$0xff] %v2951
    %5292 = vst [vmem:[%s5158] ss:$9 sm:$0xff] %v2952
    %5293 = vst [vmem:[%s5160] ss:$9 sm:$0xff] %v2953
    %v5294 = vld [vmem:[#allocation1] sm:$0xff]
    %5295 = vst [vmem:[#allocation1] ss:$9 sm:$0xff] %v2955
    %5296 = vst [vmem:[%s5154] ss:$9 sm:$0xff] %v2956
    %5297 = vst [vmem:[%s5156] ss:$9 sm:$0xff] %v2957
    %5298 = vst [vmem:[%s5158] ss:$9 sm:$0xff] %v2958
    %5299 = vst [vmem:[%s5160] ss:$9 sm:$0xff] %v2959
    %5300 = vst [vmem:[%s5162] ss:$9 sm:$0xff] %v2960
    %5301 = vst [vmem:[%s5164] ss:$9 sm:$0xff] %v2961
    %5302 = vst [vmem:[%s5166] ss:$9 sm:$0xff] %v2962
    %v5303 = vld [vmem:[#allocation1] sm:$0xff]
    %5304 = vst [vmem:[#allocation1] ss:$9 sm:$0xff] %v2963
    %5305 = vst [vmem:[%s5154] ss:$9 sm:$0xff] %v2964
    %5306 = vst [vmem:[%s5156] ss:$9 sm:$0xff] %v2965
    %5307 = vst [vmem:[%s5158] ss:$9 sm:$0xff] %v2966
    %5308 = vst [vmem:[%s5160] ss:$9 sm:$0xff] %v2967
    %v5309 = vld [vmem:[#allocation1] sm:$0xff]
    %5310 = vst [vmem:[#allocation1] ss:$9 sm:$0xff] %v2969
    %5311 = vst [vmem:[%s5154] ss:$9 sm:$0xff] %v2970
    %5312 = vst [vmem:[%s5156] ss:$9 sm:$0xff] %v2971
    %5313 = vst [vmem:[%s5158] ss:$9 sm:$0xff] %v2972
    %5314 = vst [vmem:[%s5160] ss:$9 sm:$0xff] %v2973
    %5315 = vst [vmem:[%s5162] ss:$9 sm:$0xff] %v2974
    %5316 = vst [vmem:[%s5164] ss:$9 sm:$0xff] %v2975
    %5317 = vst [vmem:[%s5166] ss:$9 sm:$0xff] %v2976
    %v5318 = vld [vmem:[#allocation1] sm:$0xff]
    %5319 = vst [vmem:[#allocation1] ss:$9 sm:$0xff] %v2977
    %5320 = vst [vmem:[%s5154] ss:$9 sm:$0xff] %v2978
    %5321 = vst [vmem:[%s5156] ss:$9 sm:$0xff] %v2979
    %5322 = vst [vmem:[%s5158] ss:$9 sm:$0xff] %v2980
    %5323 = vst [vmem:[%s5160] ss:$9 sm:$0xff] %v2981
    %v5324 = vld [vmem:[#allocation1] sm:$0xff]
    %5325 = vst [vmem:[#allocation1] ss:$9 sm:$0xff] %v2983
    %5326 = vst [vmem:[%s5154] ss:$9 sm:$0xff] %v2984
    %5327 = vst [vmem:[%s5156] ss:$9 sm:$0xff] %v2985
    %5328 = vst [vmem:[%s5158] ss:$9 sm:$0xff] %v2986
    %5329 = vst [vmem:[%s5160] ss:$9 sm:$0xff] %v2987
    %5330 = vst [vmem:[%s5162] ss:$9 sm:$0xff] %v2988
    %5331 = vst [vmem:[%s5164] ss:$9 sm:$0xff] %v2989
    %5332 = vst [vmem:[%s5166] ss:$9 sm:$0xff] %v2990
    %v5333 = vld [vmem:[#allocation1] sm:$0xff]
    %5334 = vst [vmem:[#allocation1] ss:$9 sm:$0xff] %v2991
    %5335 = vst [vmem:[%s5154] ss:$9 sm:$0xff] %v2992
    %5336 = vst [vmem:[%s5156] ss:$9 sm:$0xff] %v2993
    %5337 = vst [vmem:[%s5158] ss:$9 sm:$0xff] %v2994
    %5338 = vst [vmem:[%s5160] ss:$9 sm:$0xff] %v2995
    %v5339 = vld [vmem:[#allocation1] sm:$0xff]
    %5340 = vst [vmem:[#allocation1] ss:$9 sm:$0xff] %v2997
    %5341 = vst [vmem:[%s5154] ss:$9 sm:$0xff] %v2998
    %5342 = vst [vmem:[%s5156] ss:$9 sm:$0xff] %v2999
    %5343 = vst [vmem:[%s5158] ss:$9 sm:$0xff] %v3000
    %5344 = vst [vmem:[%s5160] ss:$9 sm:$0xff] %v3001
    %5345 = vst [vmem:[%s5162] ss:$9 sm:$0xff] %v3002
    %5346 = vst [vmem:[%s5164] ss:$9 sm:$0xff] %v3003
    %5347 = vst [vmem:[%s5166] ss:$9 sm:$0xff] %v3004
    %v5348 = vld [vmem:[#allocation1] sm:$0xff]
    %5349 = vst [vmem:[#allocation1] ss:$9 sm:$0xff] %v3005
    %5350 = vst [vmem:[%s5154] ss:$9 sm:$0xff] %v3006
    %5351 = vst [vmem:[%s5156] ss:$9 sm:$0xff] %v3007
    %5352 = vst [vmem:[%s5158] ss:$9 sm:$0xff] %v3008
    %5353 = vst [vmem:[%s5160] ss:$9 sm:$0xff] %v3009
    %v5354 = vld [vmem:[#allocation1] sm:$0xff]
    %5355 = vst [vmem:[#allocation1] ss:$9 sm:$0xff] %v3025
    %5356 = vst [vmem:[%s5154] ss:$9 sm:$0xff] %v3026
    %5357 = vst [vmem:[%s5156] ss:$9 sm:$0xff] %v3027
    %5358 = vst [vmem:[%s5158] ss:$9 sm:$0xff] %v3028
    %5359 = vst [vmem:[%s5160] ss:$9 sm:$0xff] %v3029
    %5360 = vst [vmem:[%s5162] ss:$9 sm:$0xff] %v3030
    %5361 = vst [vmem:[%s5164] ss:$9 sm:$0xff] %v3031
    %5362 = vst [vmem:[%s5166] ss:$9 sm:$0xff] %v3032
    %v5363 = vld [vmem:[#allocation1] sm:$0xff]
    %5364 = vst [vmem:[#allocation1] ss:$9 sm:$0xff] %v3033
    %5365 = vst [vmem:[%s5154] ss:$9 sm:$0xff] %v3034
    %5366 = vst [vmem:[%s5156] ss:$9 sm:$0xff] %v3035
    %5367 = vst [vmem:[%s5158] ss:$9 sm:$0xff] %v3036
    %5368 = vst [vmem:[%s5160] ss:$9 sm:$0xff] %v3037
    %v5369 = vld [vmem:[#allocation1] sm:$0xff]
    %5370 = vst [vmem:[#allocation1] ss:$9 sm:$0xff] %v3039
    %5371 = vst [vmem:[%s5154] ss:$9 sm:$0xff] %v3040
    %5372 = vst [vmem:[%s5156] ss:$9 sm:$0xff] %v3041
    %5373 = vst [vmem:[%s5158] ss:$9 sm:$0xff] %v3042
    %5374 = vst [vmem:[%s5160] ss:$9 sm:$0xff] %v3043
    %5375 = vst [vmem:[%s5162] ss:$9 sm:$0xff] %v3044
    %5376 = vst [vmem:[%s5164] ss:$9 sm:$0xff] %v3045
    %5377 = vst [vmem:[%s5166] ss:$9 sm:$0xff] %v3046
    %v5378 = vld [vmem:[#allocation1] sm:$0xff]
    %5379 = vst [vmem:[#allocation1] ss:$9 sm:$0xff] %v3047
    %5380 = vst [vmem:[%s5154] ss:$9 sm:$0xff] %v3048
    %5381 = vst [vmem:[%s5156] ss:$9 sm:$0xff] %v3049
    %5382 = vst [vmem:[%s5158] ss:$9 sm:$0xff] %v3050
    %5383 = vst [vmem:[%s5160] ss:$9 sm:$0xff] %v3051
    %v5384 = vld [vmem:[#allocation1] sm:$0xff]
    %5385 = vst [vmem:[#allocation1] ss:$9 sm:$0xff] %v3053
    %5386 = vst [vmem:[%s5154] ss:$9 sm:$0xff] %v3054
    %5387 = vst [vmem:[%s5156] ss:$9 sm:$0xff] %v3055
    %5388 = vst [vmem:[%s5158] ss:$9 sm:$0xff] %v3056
    %5389 = vst [vmem:[%s5160] ss:$9 sm:$0xff] %v3057
    %5390 = vst [vmem:[%s5162] ss:$9 sm:$0xff] %v3058
    %5391 = vst [vmem:[%s5164] ss:$9 sm:$0xff] %v3059
    %5392 = vst [vmem:[%s5166] ss:$9 sm:$0xff] %v3060
    %v5393 = vld [vmem:[#allocation1] sm:$0xff]
    %5394 = vst [vmem:[#allocation1] ss:$9 sm:$0xff] %v3061
    %5395 = vst [vmem:[%s5154] ss:$9 sm:$0xff] %v3062
    %5396 = vst [vmem:[%s5156] ss:$9 sm:$0xff] %v3063
    %5397 = vst [vmem:[%s5158] ss:$9 sm:$0xff] %v3064
    %5398 = vst [vmem:[%s5160] ss:$9 sm:$0xff] %v3065
    %v5399 = vld [vmem:[#allocation1] sm:$0xff]
    %5400 = vst [vmem:[#allocation1] ss:$9 sm:$0xff] %v3067
    %5401 = vst [vmem:[%s5154] ss:$9 sm:$0xff] %v3068
    %5402 = vst [vmem:[%s5156] ss:$9 sm:$0xff] %v3069
    %5403 = vst [vmem:[%s5158] ss:$9 sm:$0xff] %v3070
    %5404 = vst [vmem:[%s5160] ss:$9 sm:$0xff] %v3071
    %5405 = vst [vmem:[%s5162] ss:$9 sm:$0xff] %v3072
    %5406 = vst [vmem:[%s5164] ss:$9 sm:$0xff] %v3073
    %5407 = vst [vmem:[%s5166] ss:$9 sm:$0xff] %v3074
    %v5408 = vld [vmem:[#allocation1] sm:$0xff]
    %5409 = vst [vmem:[#allocation1] ss:$9 sm:$0xff] %v3075
    %5410 = vst [vmem:[%s5154] ss:$9 sm:$0xff] %v3076
    %5411 = vst [vmem:[%s5156] ss:$9 sm:$0xff] %v3077
    %5412 = vst [vmem:[%s5158] ss:$9 sm:$0xff] %v3078
    %5413 = vst [vmem:[%s5160] ss:$9 sm:$0xff] %v3079
    %v5414 = vld [vmem:[#allocation1] sm:$0xff]
    %5415 = vst [vmem:[#allocation1] ss:$9 sm:$0xff] %v3081
    %5416 = vst [vmem:[%s5154] ss:$9 sm:$0xff] %v3082
    %5417 = vst [vmem:[%s5156] ss:$9 sm:$0xff] %v3083
    %5418 = vst [vmem:[%s5158] ss:$9 sm:$0xff] %v3084
    %5419 = vst [vmem:[%s5160] ss:$9 sm:$0xff] %v3085
    %5420 = vst [vmem:[%s5162] ss:$9 sm:$0xff] %v3086
    %5421 = vst [vmem:[%s5164] ss:$9 sm:$0xff] %v3087
    %5422 = vst [vmem:[%s5166] ss:$9 sm:$0xff] %v3088
    %v5423 = vld [vmem:[#allocation1] sm:$0xff]
    %5424 = vst [vmem:[#allocation1] ss:$9 sm:$0xff] %v3089
    %5425 = vst [vmem:[%s5154] ss:$9 sm:$0xff] %v3090
    %5426 = vst [vmem:[%s5156] ss:$9 sm:$0xff] %v3091
    %5427 = vst [vmem:[%s5158] ss:$9 sm:$0xff] %v3092
    %5428 = vst [vmem:[%s5160] ss:$9 sm:$0xff] %v3093
    %v5429 = vld [vmem:[#allocation1] sm:$0xff]
    %5430 = vst [vmem:[#allocation1] ss:$9 sm:$0xff] %v3095
    %5431 = vst [vmem:[%s5154] ss:$9 sm:$0xff] %v3096
    %5432 = vst [vmem:[%s5156] ss:$9 sm:$0xff] %v3097
    %5433 = vst [vmem:[%s5158] ss:$9 sm:$0xff] %v3098
    %5434 = vst [vmem:[%s5160] ss:$9 sm:$0xff] %v3099
    %5435 = vst [vmem:[%s5162] ss:$9 sm:$0xff] %v3100
    %5436 = vst [vmem:[%s5164] ss:$9 sm:$0xff] %v3101
    %5437 = vst [vmem:[%s5166] ss:$9 sm:$0xff] %v3102
    %v5438 = vld [vmem:[#allocation1] sm:$0xff]
    %5439 = vst [vmem:[#allocation1] ss:$9 sm:$0xff] %v3103
    %5440 = vst [vmem:[%s5154] ss:$9 sm:$0xff] %v3104
    %5441 = vst [vmem:[%s5156] ss:$9 sm:$0xff] %v3105
    %5442 = vst [vmem:[%s5158] ss:$9 sm:$0xff] %v3106
    %5443 = vst [vmem:[%s5160] ss:$9 sm:$0xff] %v3107
    %v5444 = vld [vmem:[#allocation1] sm:$0xff]
    %5445 = vst [vmem:[#allocation1] ss:$9 sm:$0xff] %v3109
    %5446 = vst [vmem:[%s5154] ss:$9 sm:$0xff] %v3110
    %5447 = vst [vmem:[%s5156] ss:$9 sm:$0xff] %v3111
    %5448 = vst [vmem:[%s5158] ss:$9 sm:$0xff] %v3112
    %5449 = vst [vmem:[%s5160] ss:$9 sm:$0xff] %v3113
    %5450 = vst [vmem:[%s5162] ss:$9 sm:$0xff] %v3114
    %5451 = vst [vmem:[%s5164] ss:$9 sm:$0xff] %v3115
    %5452 = vst [vmem:[%s5166] ss:$9 sm:$0xff] %v3116
    %v5453 = vld [vmem:[#allocation1] sm:$0xff]
    %5454 = vst [vmem:[#allocation1] ss:$9 sm:$0xff] %v3117
    %5455 = vst [vmem:[%s5154] ss:$9 sm:$0xff] %v3118
    %5456 = vst [vmem:[%s5156] ss:$9 sm:$0xff] %v3119
    %5457 = vst [vmem:[%s5158] ss:$9 sm:$0xff] %v3120
    %5458 = vst [vmem:[%s5160] ss:$9 sm:$0xff] %v3121
    %v5459 = vld [vmem:[#allocation1] sm:$0xff]
    %5460 = vst [vmem:[#allocation1] ss:$9 sm:$0xff] %v3123
    %5461 = vst [vmem:[%s5154] ss:$9 sm:$0xff] %v3124
    %5462 = vst [vmem:[%s5156] ss:$9 sm:$0xff] %v3125
    %5463 = vst [vmem:[%s5158] ss:$9 sm:$0xff] %v3126
    %5464 = vst [vmem:[%s5160] ss:$9 sm:$0xff] %v3127
    %5465 = vst [vmem:[%s5162] ss:$9 sm:$0xff] %v3128
    %5466 = vst [vmem:[%s5164] ss:$9 sm:$0xff] %v3129
    %5467 = vst [vmem:[%s5166] ss:$9 sm:$0xff] %v3130
    %v5468 = vld [vmem:[#allocation1] sm:$0xff]
    %5469 = vst [vmem:[#allocation1] ss:$9 sm:$0xff] %v3131
    %5470 = vst [vmem:[%s5154] ss:$9 sm:$0xff] %v3132
    %5471 = vst [vmem:[%s5156] ss:$9 sm:$0xff] %v3133
    %5472 = vst [vmem:[%s5158] ss:$9 sm:$0xff] %v3134
    %5473 = vst [vmem:[%s5160] ss:$9 sm:$0xff] %v3135
    %v5474 = vld [vmem:[#allocation1] sm:$0xff]
    %5475 = vst [vmem:[#allocation1] ss:$9 sm:$0xff] %v3137
    %5476 = vst [vmem:[%s5154] ss:$9 sm:$0xff] %v3138
    %5477 = vst [vmem:[%s5156] ss:$9 sm:$0xff] %v3139
    %5478 = vst [vmem:[%s5158] ss:$9 sm:$0xff] %v3140
    %5479 = vst [vmem:[%s5160] ss:$9 sm:$0xff] %v3141
    %5480 = vst [vmem:[%s5162] ss:$9 sm:$0xff] %v3142
    %5481 = vst [vmem:[%s5164] ss:$9 sm:$0xff] %v3143
    %5482 = vst [vmem:[%s5166] ss:$9 sm:$0xff] %v3144
    %v5483 = vld [vmem:[#allocation1] sm:$0xff]
    %5484 = vst [vmem:[#allocation1] ss:$9 sm:$0xff] %v3145
    %5485 = vst [vmem:[%s5154] ss:$9 sm:$0xff] %v3146
    %5486 = vst [vmem:[%s5156] ss:$9 sm:$0xff] %v3147
    %5487 = vst [vmem:[%s5158] ss:$9 sm:$0xff] %v3148
    %5488 = vst [vmem:[%s5160] ss:$9 sm:$0xff] %v3149
    %v5489 = vld [vmem:[#allocation1] sm:$0xff]
    %5490 = vst [vmem:[#allocation1] ss:$9 sm:$0xff] %v3151
    %5491 = vst [vmem:[%s5154] ss:$9 sm:$0xff] %v3152
    %5492 = vst [vmem:[%s5156] ss:$9 sm:$0xff] %v3153
    %5493 = vst [vmem:[%s5158] ss:$9 sm:$0xff] %v3154
    %5494 = vst [vmem:[%s5160] ss:$9 sm:$0xff] %v3155
    %5495 = vst [vmem:[%s5162] ss:$9 sm:$0xff] %v3156
    %5496 = vst [vmem:[%s5164] ss:$9 sm:$0xff] %v3157
    %5497 = vst [vmem:[%s5166] ss:$9 sm:$0xff] %v3158
    %v5498 = vld [vmem:[#allocation1] sm:$0xff]
    %5499 = vst [vmem:[#allocation1] ss:$9 sm:$0xff] %v3159
    %5500 = vst [vmem:[%s5154] ss:$9 sm:$0xff] %v3160
    %5501 = vst [vmem:[%s5156] ss:$9 sm:$0xff] %v3161
    %5502 = vst [vmem:[%s5158] ss:$9 sm:$0xff] %v3162
    %5503 = vst [vmem:[%s5160] ss:$9 sm:$0xff] %v3163
    %v5504 = vld [vmem:[#allocation1] sm:$0xff]
    %5505 = vst [vmem:[#allocation1] ss:$9 sm:$0xff] %v3165
    %5506 = vst [vmem:[%s5154] ss:$9 sm:$0xff] %v3166
    %5507 = vst [vmem:[%s5156] ss:$9 sm:$0xff] %v3167
    %5508 = vst [vmem:[%s5158] ss:$9 sm:$0xff] %v3168
    %5509 = vst [vmem:[%s5160] ss:$9 sm:$0xff] %v3169
    %5510 = vst [vmem:[%s5162] ss:$9 sm:$0xff] %v3170
    %5511 = vst [vmem:[%s5164] ss:$9 sm:$0xff] %v3171
    %5512 = vst [vmem:[%s5166] ss:$9 sm:$0xff] %v3172
    %v5513 = vld [vmem:[#allocation1] sm:$0xff]
    %5514 = vst [vmem:[#allocation1] ss:$9 sm:$0xff] %v3173
    %5515 = vst [vmem:[%s5154] ss:$9 sm:$0xff] %v3174
    %5516 = vst [vmem:[%s5156] ss:$9 sm:$0xff] %v3175
    %5517 = vst [vmem:[%s5158] ss:$9 sm:$0xff] %v3176
    %5518 = vst [vmem:[%s5160] ss:$9 sm:$0xff] %v3177
    %v5519 = vld [vmem:[#allocation1] sm:$0xff]
    %5520 = vst [vmem:[#allocation1] ss:$9 sm:$0xff] %v3179
    %5521 = vst [vmem:[%s5154] ss:$9 sm:$0xff] %v3180
    %5522 = vst [vmem:[%s5156] ss:$9 sm:$0xff] %v3181
    %5523 = vst [vmem:[%s5158] ss:$9 sm:$0xff] %v3182
    %5524 = vst [vmem:[%s5160] ss:$9 sm:$0xff] %v3183
    %5525 = vst [vmem:[%s5162] ss:$9 sm:$0xff] %v3184
    %5526 = vst [vmem:[%s5164] ss:$9 sm:$0xff] %v3185
    %5527 = vst [vmem:[%s5166] ss:$9 sm:$0xff] %v3186
    %v5528 = vld [vmem:[#allocation1] sm:$0xff]
    %5529 = vst [vmem:[#allocation1] ss:$9 sm:$0xff] %v3187
    %5530 = vst [vmem:[%s5154] ss:$9 sm:$0xff] %v3188
    %5531 = vst [vmem:[%s5156] ss:$9 sm:$0xff] %v3189
    %5532 = vst [vmem:[%s5158] ss:$9 sm:$0xff] %v3190
    %5533 = vst [vmem:[%s5160] ss:$9 sm:$0xff] %v3191
    %v5534 = vld [vmem:[#allocation1] sm:$0xff]
    %5535 = vst [vmem:[#allocation1] ss:$9 sm:$0xff] %v3193
    %5536 = vst [vmem:[%s5154] ss:$9 sm:$0xff] %v3194
    %5537 = vst [vmem:[%s5156] ss:$9 sm:$0xff] %v3195
    %5538 = vst [vmem:[%s5158] ss:$9 sm:$0xff] %v3196
    %5539 = vst [vmem:[%s5160] ss:$9 sm:$0xff] %v3197
    %5540 = vst [vmem:[%s5162] ss:$9 sm:$0xff] %v3198
    %5541 = vst [vmem:[%s5164] ss:$9 sm:$0xff] %v3199
    %5542 = vst [vmem:[%s5166] ss:$9 sm:$0xff] %v3200
    %v5543 = vld [vmem:[#allocation1] sm:$0xff]
    %5544 = vst [vmem:[#allocation1] ss:$9 sm:$0xff] %v3201
    %5545 = vst [vmem:[%s5154] ss:$9 sm:$0xff] %v3202
    %5546 = vst [vmem:[%s5156] ss:$9 sm:$0xff] %v3203
    %5547 = vst [vmem:[%s5158] ss:$9 sm:$0xff] %v3204
    %5548 = vst [vmem:[%s5160] ss:$9 sm:$0xff] %v3205
    %v5549 = vld [vmem:[#allocation1] sm:$0xff]
    %5550 = vrot.lane.b32.xlu0 %v5168, 48
    %v5551 = vpop.permute.xlu0 %5550
    %5552 = vrot.lane.b32.xlu0 %v5174, 48
    %v5553 = vpop.permute.xlu0 %5552
    %5554 = vrot.lane.b32.xlu0 %v5183, 48
    %v5555 = vpop.permute.xlu0 %5554
    %5556 = vrot.lane.b32.xlu0 %v5189, 48
    %v5557 = vpop.permute.xlu0 %5556
    %5558 = vrot.lane.b32.xlu0 %v5198, 48
    %v5559 = vpop.permute.xlu0 %5558
    %5560 = vrot.lane.b32.xlu0 %v5204, 48
    %v5561 = vpop.permute.xlu0 %5560
    %5562 = vrot.lane.b32.xlu0 %v5213, 48
    %v5563 = vpop.permute.xlu0 %5562
    %5564 = vrot.lane.b32.xlu0 %v5219, 48
    %v5565 = vpop.permute.xlu0 %5564
    %5566 = vrot.lane.b32.xlu0 %v5228, 48
    %v5567 = vpop.permute.xlu0 %5566
    %5568 = vrot.lane.b32.xlu0 %v5234, 48
    %v5569 = vpop.permute.xlu0 %5568
    %5570 = vrot.lane.b32.xlu0 %v5243, 48
    %v5571 = vpop.permute.xlu0 %5570
    %5572 = vrot.lane.b32.xlu0 %v5249, 48
    %v5573 = vpop.permute.xlu0 %5572
    %5574 = vrot.lane.b32.xlu0 %v5258, 48
    %v5575 = vpop.permute.xlu0 %5574
    %5576 = vrot.lane.b32.xlu0 %v5264, 48
    %v5577 = vpop.permute.xlu0 %5576
    %5578 = vrot.lane.b32.xlu0 %v5273, 48
    %v5579 = vpop.permute.xlu0 %5578
    %5580 = vrot.lane.b32.xlu0 %v5279, 48
    %v5581 = vpop.permute.xlu0 %5580
    %5582 = vrot.lane.b32.xlu0 %v5288, 48
    %v5583 = vpop.permute.xlu0 %5582
    %5584 = vrot.lane.b32.xlu0 %v5294, 48
    %v5585 = vpop.permute.xlu0 %5584
    %5586 = vrot.lane.b32.xlu0 %v5303, 48
    %v5587 = vpop.permute.xlu0 %5586
    %5588 = vrot.lane.b32.xlu0 %v5309, 48
    %v5589 = vpop.permute.xlu0 %5588
    %5590 = vrot.lane.b32.xlu0 %v5318, 48
    %v5591 = vpop.permute.xlu0 %5590
    %5592 = vrot.lane.b32.xlu0 %v5324, 48
    %v5593 = vpop.permute.xlu0 %5592
    %5594 = vrot.lane.b32.xlu0 %v5333, 48
    %v5595 = vpop.permute.xlu0 %5594
    %5596 = vrot.lane.b32.xlu0 %v5339, 48
    %v5597 = vpop.permute.xlu0 %5596
    %5598 = vrot.lane.b32.xlu0 %v5348, 48
    %v5599 = vpop.permute.xlu0 %5598
    %5600 = vrot.lane.b32.xlu0 %v5354, 48
    %v5601 = vpop.permute.xlu0 %5600
    %5602 = vrot.lane.b32.xlu0 %v5363, 48
    %v5603 = vpop.permute.xlu0 %5602
    %5604 = vrot.lane.b32.xlu0 %v5369, 48
    %v5605 = vpop.permute.xlu0 %5604
    %5606 = vrot.lane.b32.xlu0 %v5378, 48
    %v5607 = vpop.permute.xlu0 %5606
    %5608 = vrot.lane.b32.xlu0 %v5384, 48
    %v5609 = vpop.permute.xlu0 %5608
    %5610 = vrot.lane.b32.xlu0 %v5393, 48
    %v5611 = vpop.permute.xlu0 %5610
    %5612 = vrot.lane.b32.xlu0 %v5399, 48
    %v5613 = vpop.permute.xlu0 %5612
    %5614 = vrot.lane.b32.xlu0 %v5408, 48
    %v5615 = vpop.permute.xlu0 %5614
    %5616 = vrot.lane.b32.xlu0 %v5414, 48
    %v5617 = vpop.permute.xlu0 %5616
    %5618 = vrot.lane.b32.xlu0 %v5423, 48
    %v5619 = vpop.permute.xlu0 %5618
    %5620 = vrot.lane.b32.xlu0 %v5429, 48
    %v5621 = vpop.permute.xlu0 %5620
    %5622 = vrot.lane.b32.xlu0 %v5438, 48
    %v5623 = vpop.permute.xlu0 %5622
    %5624 = vrot.lane.b32.xlu0 %v5444, 48
    %v5625 = vpop.permute.xlu0 %5624
    %5626 = vrot.lane.b32.xlu0 %v5453, 48
    %v5627 = vpop.permute.xlu0 %5626
    %5628 = vrot.lane.b32.xlu0 %v5459, 48
    %v5629 = vpop.permute.xlu0 %5628
    %5630 = vrot.lane.b32.xlu0 %v5468, 48
    %v5631 = vpop.permute.xlu0 %5630
    %5632 = vrot.lane.b32.xlu0 %v5474, 48
    %v5633 = vpop.permute.xlu0 %5632
    %5634 = vrot.lane.b32.xlu0 %v5483, 48
    %v5635 = vpop.permute.xlu0 %5634
    %5636 = vrot.lane.b32.xlu0 %v5489, 48
    %v5637 = vpop.permute.xlu0 %5636
    %5638 = vrot.lane.b32.xlu0 %v5498, 48
    %v5639 = vpop.permute.xlu0 %5638
    %5640 = vrot.lane.b32.xlu0 %v5504, 48
    %v5641 = vpop.permute.xlu0 %5640
    %5642 = vrot.lane.b32.xlu0 %v5513, 48
    %v5643 = vpop.permute.xlu0 %5642
    %5644 = vrot.lane.b32.xlu0 %v5519, 48
    %v5645 = vpop.permute.xlu0 %5644
    %5646 = vrot.lane.b32.xlu0 %v5528, 48
    %v5647 = vpop.permute.xlu0 %5646
    %5648 = vrot.lane.b32.xlu0 %v5534, 48
    %v5649 = vpop.permute.xlu0 %5648
    %5650 = vrot.lane.b32.xlu0 %v5543, 48
    %v5651 = vpop.permute.xlu0 %5650
    %5652 = vrot.lane.b32.xlu0 %v5549, 48
    %v5653 = vpop.permute.xlu0 %5652
    %vm5706 = vcmask 130048
    %v5707 = vsel %vm5706, %v3559, %v4417
    %v5708 = vsel %vm5706, %v3565, %v4419
    %v5709 = vsel %vm5706, %v3574, %v4421
    %v5710 = vsel %vm5706, %v3580, %v4423
    %v5711 = vsel %vm5706, %v3589, %v4425
    %v5712 = vsel %vm5706, %v3595, %v4427
    %v5713 = vsel %vm5706, %v3604, %v4429
    %v5714 = vsel %vm5706, %v3610, %v4431
    %v5715 = vsel %vm5706, %v3619, %v4433
    %v5716 = vsel %vm5706, %v3625, %v4435
    %v5717 = vsel %vm5706, %v3634, %v4437
    %v5718 = vsel %vm5706, %v3640, %v4439
    %v5719 = vsel %vm5706, %v3649, %v4441
    %v5720 = vsel %vm5706, %v3655, %v4443
    %v5721 = vsel %vm5706, %v3664, %v4445
    %v5722 = vsel %vm5706, %v3670, %v4447
    %v5723 = vsel %vm5706, %v3679, %v4449
    %v5724 = vsel %vm5706, %v3685, %v4451
    %v5725 = vsel %vm5706, %v3694, %v4453
    %v5726 = vsel %vm5706, %v3700, %v4455
    %v5727 = vsel %vm5706, %v3709, %v4457
    %v5728 = vsel %vm5706, %v3715, %v4459
    %v5729 = vsel %vm5706, %v3724, %v4461
    %v5730 = vsel %vm5706, %v3730, %v4463
    %v5731 = vsel %vm5706, %v3739, %v4465
    %v5732 = vsel %vm5706, %v3745, %v4467
    %v5733 = vsel %vm5706, %v3754, %v4469
    %v5734 = vsel %vm5706, %v3760, %v4471
    %v5735 = vsel %vm5706, %v3769, %v4473
    %v5736 = vsel %vm5706, %v3775, %v4475
    %v5737 = vsel %vm5706, %v3784, %v4477
    %v5738 = vsel %vm5706, %v3790, %v4479
    %v5739 = vsel %vm5706, %v3799, %v4481
    %v5740 = vsel %vm5706, %v3805, %v4483
    %v5741 = vsel %vm5706, %v3814, %v4485
    %v5742 = vsel %vm5706, %v3820, %v4487
    %v5743 = vsel %vm5706, %v3829, %v4489
    %v5744 = vsel %vm5706, %v3835, %v4491
    %v5745 = vsel %vm5706, %v3844, %v4493
    %v5746 = vsel %vm5706, %v3850, %v4495
    %v5747 = vsel %vm5706, %v3859, %v4497
    %v5748 = vsel %vm5706, %v3865, %v4499
    %v5749 = vsel %vm5706, %v3874, %v4501
    %v5750 = vsel %vm5706, %v3880, %v4503
    %v5751 = vsel %vm5706, %v3889, %v4505
    %v5752 = vsel %vm5706, %v3895, %v4507
    %v5753 = vsel %vm5706, %v3904, %v4509
    %v5754 = vsel %vm5706, %v3910, %v4511
    %v5755 = vsel %vm5706, %v3919, %v4513
    %v5756 = vsel %vm5706, %v3925, %v4515
    %v5757 = vsel %vm5706, %v3934, %v4517
    %v5758 = vsel %vm5706, %v3940, %v4519
    %vm5759 = vcmask 261120
    %v5760 = vsel %vm5759, %v5707, %v4996
    %v5761 = vsel %vm5759, %v5708, %v4998
    %v5762 = vsel %vm5759, %v5709, %v5000
    %v5763 = vsel %vm5759, %v5710, %v5002
    %v5764 = vsel %vm5759, %v5711, %v5004
    %v5765 = vsel %vm5759, %v5712, %v5006
    %v5766 = vsel %vm5759, %v5713, %v5008
    %v5767 = vsel %vm5759, %v5714, %v5010
    %v5768 = vsel %vm5759, %v5715, %v5012
    %v5769 = vsel %vm5759, %v5716, %v5014
    %v5770 = vsel %vm5759, %v5717, %v5016
    %v5771 = vsel %vm5759, %v5718, %v5018
    %v5772 = vsel %vm5759, %v5719, %v5020
    %v5773 = vsel %vm5759, %v5720, %v5022
    %v5774 = vsel %vm5759, %v5721, %v5024
    %v5775 = vsel %vm5759, %v5722, %v5026
    %v5776 = vsel %vm5759, %v5723, %v5028
    %v5777 = vsel %vm5759, %v5724, %v5030
    %v5778 = vsel %vm5759, %v5725, %v5032
    %v5779 = vsel %vm5759, %v5726, %v5034
    %v5780 = vsel %vm5759, %v5727, %v5036
    %v5781 = vsel %vm5759, %v5728, %v5038
    %v5782 = vsel %vm5759, %v5729, %v5040
    %v5783 = vsel %vm5759, %v5730, %v5042
    %v5784 = vsel %vm5759, %v5731, %v5044
    %v5785 = vsel %vm5759, %v5732, %v5046
    %v5786 = vsel %vm5759, %v5733, %v5048
    %v5787 = vsel %vm5759, %v5734, %v5050
    %v5788 = vsel %vm5759, %v5735, %v5052
    %v5789 = vsel %vm5759, %v5736, %v5054
    %v5790 = vsel %vm5759, %v5737, %v5056
    %v5791 = vsel %vm5759, %v5738, %v5058
    %v5792 = vsel %vm5759, %v5739, %v5060
    %v5793 = vsel %vm5759, %v5740, %v5062
    %v5794 = vsel %vm5759, %v5741, %v5064
    %v5795 = vsel %vm5759, %v5742, %v5066
    %v5796 = vsel %vm5759, %v5743, %v5068
    %v5797 = vsel %vm5759, %v5744, %v5070
    %v5798 = vsel %vm5759, %v5745, %v5072
    %v5799 = vsel %vm5759, %v5746, %v5074
    %v5800 = vsel %vm5759, %v5747, %v5076
    %v5801 = vsel %vm5759, %v5748, %v5078
    %v5802 = vsel %vm5759, %v5749, %v5080
    %v5803 = vsel %vm5759, %v5750, %v5082
    %v5804 = vsel %vm5759, %v5751, %v5084
    %v5805 = vsel %vm5759, %v5752, %v5086
    %v5806 = vsel %vm5759, %v5753, %v5088
    %v5807 = vsel %vm5759, %v5754, %v5090
    %v5808 = vsel %vm5759, %v5755, %v5092
    %v5809 = vsel %vm5759, %v5756, %v5094
    %v5810 = vsel %vm5759, %v5757, %v5096
    %v5811 = vsel %vm5759, %v5758, %v5098
    %vm5812 = vcmask 392192
    %v5813 = vsel %vm5812, %v5760, %v5551
    %v5814 = vsel %vm5812, %v5761, %v5553
    %v5815 = vsel %vm5812, %v5762, %v5555
    %v5816 = vsel %vm5812, %v5763, %v5557
    %v5817 = vsel %vm5812, %v5764, %v5559
    %v5818 = vsel %vm5812, %v5765, %v5561
    %v5819 = vsel %vm5812, %v5766, %v5563
    %v5820 = vsel %vm5812, %v5767, %v5565
    %v5821 = vsel %vm5812, %v5768, %v5567
    %v5822 = vsel %vm5812, %v5769, %v5569
    %v5823 = vsel %vm5812, %v5770, %v5571
    %v5824 = vsel %vm5812, %v5771, %v5573
    %v5825 = vsel %vm5812, %v5772, %v5575
    %v5826 = vsel %vm5812, %v5773, %v5577
    %v5827 = vsel %vm5812, %v5774, %v5579
    %v5828 = vsel %vm5812, %v5775, %v5581
    %v5829 = vsel %vm5812, %v5776, %v5583
    %v5830 = vsel %vm5812, %v5777, %v5585
    %v5831 = vsel %vm5812, %v5778, %v5587
    %v5832 = vsel %vm5812, %v5779, %v5589
    %v5833 = vsel %vm5812, %v5780, %v5591
    %v5834 = vsel %vm5812, %v5781, %v5593
    %v5835 = vsel %vm5812, %v5782, %v5595
    %v5836 = vsel %vm5812, %v5783, %v5597
    %v5837 = vsel %vm5812, %v5784, %v5599
    %v5838 = vsel %vm5812, %v5785, %v5601
    %v5839 = vsel %vm5812, %v5786, %v5603
    %v5840 = vsel %vm5812, %v5787, %v5605
    %v5841 = vsel %vm5812, %v5788, %v5607
    %v5842 = vsel %vm5812, %v5789, %v5609
    %v5843 = vsel %vm5812, %v5790, %v5611
    %v5844 = vsel %vm5812, %v5791, %v5613
    %v5845 = vsel %vm5812, %v5792, %v5615
    %v5846 = vsel %vm5812, %v5793, %v5617
    %v5847 = vsel %vm5812, %v5794, %v5619
    %v5848 = vsel %vm5812, %v5795, %v5621
    %v5849 = vsel %vm5812, %v5796, %v5623
    %v5850 = vsel %vm5812, %v5797, %v5625
    %v5851 = vsel %vm5812, %v5798, %v5627
    %v5852 = vsel %vm5812, %v5799, %v5629
    %v5853 = vsel %vm5812, %v5800, %v5631
    %v5854 = vsel %vm5812, %v5801, %v5633
    %v5855 = vsel %vm5812, %v5802, %v5635
    %v5856 = vsel %vm5812, %v5803, %v5637
    %v5857 = vsel %vm5812, %v5804, %v5639
    %v5858 = vsel %vm5812, %v5805, %v5641
    %v5859 = vsel %vm5812, %v5806, %v5643
    %v5860 = vsel %vm5812, %v5807, %v5645
    %v5861 = vsel %vm5812, %v5808, %v5647
    %v5862 = vsel %vm5812, %v5809, %v5649
    %v5863 = vsel %vm5812, %v5810, %v5651
    %v5864 = vsel %vm5812, %v5811, %v5653
    %v5917 = vrot.slane %v5813, 1
    %v5918 = vrot.slane %v5813, 2
    %v5919 = vrot.slane %v5813, 3
    %v5920 = vrot.slane %v5813, 4
    %v5921 = vrot.slane %v5813, 5
    %v5922 = vrot.slane %v5813, 6
    %v5923 = vrot.slane %v5813, 7
    %v5924 = vrot.slane %v5814, 1
    %v5925 = vrot.slane %v5814, 2
    %v5926 = vrot.slane %v5814, 3
    %v5927 = vrot.slane %v5814, 4
    %v5928 = vrot.slane %v5815, 1
    %v5929 = vrot.slane %v5815, 2
    %v5930 = vrot.slane %v5815, 3
    %v5931 = vrot.slane %v5815, 4
    %v5932 = vrot.slane %v5815, 5
    %v5933 = vrot.slane %v5815, 6
    %v5934 = vrot.slane %v5815, 7
    %v5935 = vrot.slane %v5816, 1
    %v5936 = vrot.slane %v5816, 2
    %v5937 = vrot.slane %v5816, 3
    %v5938 = vrot.slane %v5816, 4
    %v5939 = vrot.slane %v5817, 1
    %v5940 = vrot.slane %v5817, 2
    %v5941 = vrot.slane %v5817, 3
    %v5942 = vrot.slane %v5817, 4
    %v5943 = vrot.slane %v5817, 5
    %v5944 = vrot.slane %v5817, 6
    %v5945 = vrot.slane %v5817, 7
    %v5946 = vrot.slane %v5818, 1
    %v5947 = vrot.slane %v5818, 2
    %v5948 = vrot.slane %v5818, 3
    %v5949 = vrot.slane %v5818, 4
    %v5950 = vrot.slane %v5819, 1
    %v5951 = vrot.slane %v5819, 2
    %v5952 = vrot.slane %v5819, 3
    %v5953 = vrot.slane %v5819, 4
    %v5954 = vrot.slane %v5819, 5
    %v5955 = vrot.slane %v5819, 6
    %v5956 = vrot.slane %v5819, 7
    %v5957 = vrot.slane %v5820, 1
    %v5958 = vrot.slane %v5820, 2
    %v5959 = vrot.slane %v5820, 3
    %v5960 = vrot.slane %v5820, 4
    %v5961 = vrot.slane %v5821, 1
    %v5962 = vrot.slane %v5821, 2
    %v5963 = vrot.slane %v5821, 3
    %v5964 = vrot.slane %v5821, 4
    %v5965 = vrot.slane %v5821, 5
    %v5966 = vrot.slane %v5821, 6
    %v5967 = vrot.slane %v5821, 7
    %v5968 = vrot.slane %v5822, 1
    %v5969 = vrot.slane %v5822, 2
    %v5970 = vrot.slane %v5822, 3
    %v5971 = vrot.slane %v5822, 4
    %v5972 = vrot.slane %v5823, 1
    %v5973 = vrot.slane %v5823, 2
    %v5974 = vrot.slane %v5823, 3
    %v5975 = vrot.slane %v5823, 4
    %v5976 = vrot.slane %v5823, 5
    %v5977 = vrot.slane %v5823, 6
    %v5978 = vrot.slane %v5823, 7
    %v5979 = vrot.slane %v5824, 1
    %v5980 = vrot.slane %v5824, 2
    %v5981 = vrot.slane %v5824, 3
    %v5982 = vrot.slane %v5824, 4
    %v5983 = vrot.slane %v5825, 1
    %v5984 = vrot.slane %v5825, 2
    %v5985 = vrot.slane %v5825, 3
    %v5986 = vrot.slane %v5825, 4
    %v5987 = vrot.slane %v5825, 5
    %v5988 = vrot.slane %v5825, 6
    %v5989 = vrot.slane %v5825, 7
    %v5990 = vrot.slane %v5826, 1
    %v5991 = vrot.slane %v5826, 2
    %v5992 = vrot.slane %v5826, 3
    %v5993 = vrot.slane %v5826, 4
    %v5994 = vrot.slane %v5827, 1
    %v5995 = vrot.slane %v5827, 2
    %v5996 = vrot.slane %v5827, 3
    %v5997 = vrot.slane %v5827, 4
    %v5998 = vrot.slane %v5827, 5
    %v5999 = vrot.slane %v5827, 6
    %v6000 = vrot.slane %v5827, 7
    %v6001 = vrot.slane %v5828, 1
    %v6002 = vrot.slane %v5828, 2
    %v6003 = vrot.slane %v5828, 3
    %v6004 = vrot.slane %v5828, 4
    %v6005 = vrot.slane %v5829, 1
    %v6006 = vrot.slane %v5829, 2
    %v6007 = vrot.slane %v5829, 3
    %v6008 = vrot.slane %v5829, 4
    %v6009 = vrot.slane %v5829, 5
    %v6010 = vrot.slane %v5829, 6
    %v6011 = vrot.slane %v5829, 7
    %v6012 = vrot.slane %v5830, 1
    %v6013 = vrot.slane %v5830, 2
    %v6014 = vrot.slane %v5830, 3
    %v6015 = vrot.slane %v5830, 4
    %v6016 = vrot.slane %v5831, 1
    %v6017 = vrot.slane %v5831, 2
    %v6018 = vrot.slane %v5831, 3
    %v6019 = vrot.slane %v5831, 4
    %v6020 = vrot.slane %v5831, 5
    %v6021 = vrot.slane %v5831, 6
    %v6022 = vrot.slane %v5831, 7
    %v6023 = vrot.slane %v5832, 1
    %v6024 = vrot.slane %v5832, 2
    %v6025 = vrot.slane %v5832, 3
    %v6026 = vrot.slane %v5832, 4
    %v6027 = vrot.slane %v5833, 1
    %v6028 = vrot.slane %v5833, 2
    %v6029 = vrot.slane %v5833, 3
    %v6030 = vrot.slane %v5833, 4
    %v6031 = vrot.slane %v5833, 5
    %v6032 = vrot.slane %v5833, 6
    %v6033 = vrot.slane %v5833, 7
    %v6034 = vrot.slane %v5834, 1
    %v6035 = vrot.slane %v5834, 2
    %v6036 = vrot.slane %v5834, 3
    %v6037 = vrot.slane %v5834, 4
    %v6038 = vrot.slane %v5835, 1
    %v6039 = vrot.slane %v5835, 2
    %v6040 = vrot.slane %v5835, 3
    %v6041 = vrot.slane %v5835, 4
    %v6042 = vrot.slane %v5835, 5
    %v6043 = vrot.slane %v5835, 6
    %v6044 = vrot.slane %v5835, 7
    %v6045 = vrot.slane %v5836, 1
    %v6046 = vrot.slane %v5836, 2
    %v6047 = vrot.slane %v5836, 3
    %v6048 = vrot.slane %v5836, 4
    %v6049 = vrot.slane %v5837, 1
    %v6050 = vrot.slane %v5837, 2
    %v6051 = vrot.slane %v5837, 3
    %v6052 = vrot.slane %v5837, 4
    %v6053 = vrot.slane %v5837, 5
    %v6054 = vrot.slane %v5837, 6
    %v6055 = vrot.slane %v5837, 7
    %v6056 = vrot.slane %v5838, 1
    %v6057 = vrot.slane %v5838, 2
    %v6058 = vrot.slane %v5838, 3
    %v6059 = vrot.slane %v5838, 4
    %v6060 = vrot.slane %v5839, 1
    %v6061 = vrot.slane %v5839, 2
    %v6062 = vrot.slane %v5839, 3
    %v6063 = vrot.slane %v5839, 4
    %v6064 = vrot.slane %v5839, 5
    %v6065 = vrot.slane %v5839, 6
    %v6066 = vrot.slane %v5839, 7
    %v6067 = vrot.slane %v5840, 1
    %v6068 = vrot.slane %v5840, 2
    %v6069 = vrot.slane %v5840, 3
    %v6070 = vrot.slane %v5840, 4
    %v6071 = vrot.slane %v5841, 1
    %v6072 = vrot.slane %v5841, 2
    %v6073 = vrot.slane %v5841, 3
    %v6074 = vrot.slane %v5841, 4
    %v6075 = vrot.slane %v5841, 5
    %v6076 = vrot.slane %v5841, 6
    %v6077 = vrot.slane %v5841, 7
    %v6078 = vrot.slane %v5842, 1
    %v6079 = vrot.slane %v5842, 2
    %v6080 = vrot.slane %v5842, 3
    %v6081 = vrot.slane %v5842, 4
    %v6082 = vrot.slane %v5843, 1
    %v6083 = vrot.slane %v5843, 2
    %v6084 = vrot.slane %v5843, 3
    %v6085 = vrot.slane %v5843, 4
    %v6086 = vrot.slane %v5843, 5
    %v6087 = vrot.slane %v5843, 6
    %v6088 = vrot.slane %v5843, 7
    %v6089 = vrot.slane %v5844, 1
    %v6090 = vrot.slane %v5844, 2
    %v6091 = vrot.slane %v5844, 3
    %v6092 = vrot.slane %v5844, 4
    %v6093 = vrot.slane %v5845, 1
    %v6094 = vrot.slane %v5845, 2
    %v6095 = vrot.slane %v5845, 3
    %v6096 = vrot.slane %v5845, 4
    %v6097 = vrot.slane %v5845, 5
    %v6098 = vrot.slane %v5845, 6
    %v6099 = vrot.slane %v5845, 7
    %v6100 = vrot.slane %v5846, 1
    %v6101 = vrot.slane %v5846, 2
    %v6102 = vrot.slane %v5846, 3
    %v6103 = vrot.slane %v5846, 4
    %v6104 = vrot.slane %v5847, 1
    %v6105 = vrot.slane %v5847, 2
    %v6106 = vrot.slane %v5847, 3
    %v6107 = vrot.slane %v5847, 4
    %v6108 = vrot.slane %v5847, 5
    %v6109 = vrot.slane %v5847, 6
    %v6110 = vrot.slane %v5847, 7
    %v6111 = vrot.slane %v5848, 1
    %v6112 = vrot.slane %v5848, 2
    %v6113 = vrot.slane %v5848, 3
    %v6114 = vrot.slane %v5848, 4
    %v6115 = vrot.slane %v5849, 1
    %v6116 = vrot.slane %v5849, 2
    %v6117 = vrot.slane %v5849, 3
    %v6118 = vrot.slane %v5849, 4
    %v6119 = vrot.slane %v5849, 5
    %v6120 = vrot.slane %v5849, 6
    %v6121 = vrot.slane %v5849, 7
    %v6122 = vrot.slane %v5850, 1
    %v6123 = vrot.slane %v5850, 2
    %v6124 = vrot.slane %v5850, 3
    %v6125 = vrot.slane %v5850, 4
    %v6126 = vrot.slane %v5851, 1
    %v6127 = vrot.slane %v5851, 2
    %v6128 = vrot.slane %v5851, 3
    %v6129 = vrot.slane %v5851, 4
    %v6130 = vrot.slane %v5851, 5
    %v6131 = vrot.slane %v5851, 6
    %v6132 = vrot.slane %v5851, 7
    %v6133 = vrot.slane %v5852, 1
    %v6134 = vrot.slane %v5852, 2
    %v6135 = vrot.slane %v5852, 3
    %v6136 = vrot.slane %v5852, 4
    %v6137 = vrot.slane %v5853, 1
    %v6138 = vrot.slane %v5853, 2
    %v6139 = vrot.slane %v5853, 3
    %v6140 = vrot.slane %v5853, 4
    %v6141 = vrot.slane %v5853, 5
    %v6142 = vrot.slane %v5853, 6
    %v6143 = vrot.slane %v5853, 7
    %v6144 = vrot.slane %v5854, 1
    %v6145 = vrot.slane %v5854, 2
    %v6146 = vrot.slane %v5854, 3
    %v6147 = vrot.slane %v5854, 4
    %v6148 = vrot.slane %v5855, 1
    %v6149 = vrot.slane %v5855, 2
    %v6150 = vrot.slane %v5855, 3
    %v6151 = vrot.slane %v5855, 4
    %v6152 = vrot.slane %v5855, 5
    %v6153 = vrot.slane %v5855, 6
    %v6154 = vrot.slane %v5855, 7
    %v6155 = vrot.slane %v5856, 1
    %v6156 = vrot.slane %v5856, 2
    %v6157 = vrot.slane %v5856, 3
    %v6158 = vrot.slane %v5856, 4
    %v6159 = vrot.slane %v5857, 1
    %v6160 = vrot.slane %v5857, 2
    %v6161 = vrot.slane %v5857, 3
    %v6162 = vrot.slane %v5857, 4
    %v6163 = vrot.slane %v5857, 5
    %v6164 = vrot.slane %v5857, 6
    %v6165 = vrot.slane %v5857, 7
    %v6166 = vrot.slane %v5858, 1
    %v6167 = vrot.slane %v5858, 2
    %v6168 = vrot.slane %v5858, 3
    %v6169 = vrot.slane %v5858, 4
    %v6170 = vrot.slane %v5859, 1
    %v6171 = vrot.slane %v5859, 2
    %v6172 = vrot.slane %v5859, 3
    %v6173 = vrot.slane %v5859, 4
    %v6174 = vrot.slane %v5859, 5
    %v6175 = vrot.slane %v5859, 6
    %v6176 = vrot.slane %v5859, 7
    %v6177 = vrot.slane %v5860, 1
    %v6178 = vrot.slane %v5860, 2
    %v6179 = vrot.slane %v5860, 3
    %v6180 = vrot.slane %v5860, 4
    %v6181 = vrot.slane %v5861, 1
    %v6182 = vrot.slane %v5861, 2
    %v6183 = vrot.slane %v5861, 3
    %v6184 = vrot.slane %v5861, 4
    %v6185 = vrot.slane %v5861, 5
    %v6186 = vrot.slane %v5861, 6
    %v6187 = vrot.slane %v5861, 7
    %v6188 = vrot.slane %v5862, 1
    %v6189 = vrot.slane %v5862, 2
    %v6190 = vrot.slane %v5862, 3
    %v6191 = vrot.slane %v5862, 4
    %v6192 = vrot.slane %v5863, 1
    %v6193 = vrot.slane %v5863, 2
    %v6194 = vrot.slane %v5863, 3
    %v6195 = vrot.slane %v5863, 4
    %v6196 = vrot.slane %v5863, 5
    %v6197 = vrot.slane %v5863, 6
    %v6198 = vrot.slane %v5863, 7
    %v6199 = vrot.slane %v5864, 1
    %v6200 = vrot.slane %v5864, 2
    %v6201 = vrot.slane %v5864, 3
    %v6202 = vrot.slane %v5864, 4
    %v6203 = vld [vmem:[%s4] sm:$0xff]
    %v6204 = vld [vmem:[%s4 + $0x8] sm:$0xff]
    %v6205 = vld [vmem:[%s4 + $0x10] sm:$0xff]
    %v6206 = vld [vmem:[%s4 + $0x18] sm:$0xff]
    %v6207 = vld [vmem:[%s4 + $0x20] sm:$0xff]
    %v6208 = vld [vmem:[%s4 + $0x28] sm:$0xff]
    %v6209 = vld [vmem:[%s4 + $0x30] sm:$0xff]
    %v6210 = vld [vmem:[%s4 + $0x38] sm:$0xff]
    %6211 = vst [vmem:[#allocation1] ss:$9 sm:$0xff] %v5813
    %s6212 = scalar_lea.vmem [#allocation1], 1
    %6213 = vst [vmem:[%s6212] ss:$9 sm:$0xff] %v5917
    %s6214 = scalar_lea.vmem [#allocation1], 2
    %6215 = vst [vmem:[%s6214] ss:$9 sm:$0xff] %v5918
    %s6216 = scalar_lea.vmem [#allocation1], 3
    %6217 = vst [vmem:[%s6216] ss:$9 sm:$0xff] %v5919
    %s6218 = scalar_lea.vmem [#allocation1], 4
    %6219 = vst [vmem:[%s6218] ss:$9 sm:$0xff] %v5920
    %s6220 = scalar_lea.vmem [#allocation1], 5
    %6221 = vst [vmem:[%s6220] ss:$9 sm:$0xff] %v5921
    %s6222 = scalar_lea.vmem [#allocation1], 6
    %6223 = vst [vmem:[%s6222] ss:$9 sm:$0xff] %v5922
    %s6224 = scalar_lea.vmem [#allocation1], 7
    %6225 = vst [vmem:[%s6224] ss:$9 sm:$0xff] %v5923
    %v6226 = vld [vmem:[#allocation1] sm:$0xff]
    %6227 = vst [vmem:[#allocation1] ss:$9 sm:$0xff] %v5814
    %6228 = vst [vmem:[%s6212] ss:$9 sm:$0xff] %v5924
    %6229 = vst [vmem:[%s6214] ss:$9 sm:$0xff] %v5925
    %6230 = vst [vmem:[%s6216] ss:$9 sm:$0xff] %v5926
    %6231 = vst [vmem:[%s6218] ss:$9 sm:$0xff] %v5927
    %6232 = vst [vmem:[%s6220] ss:$9 sm:$0xff] %v5815
    %6233 = vst [vmem:[%s6222] ss:$9 sm:$0xff] %v5928
    %6234 = vst [vmem:[%s6224] ss:$9 sm:$0xff] %v5929
    %v6235 = vld [vmem:[#allocation1] sm:$0xff]
    %6236 = vst [vmem:[#allocation1] ss:$9 sm:$0xff] %v5930
    %6237 = vst [vmem:[%s6212] ss:$9 sm:$0xff] %v5931
    %6238 = vst [vmem:[%s6214] ss:$9 sm:$0xff] %v5932
    %6239 = vst [vmem:[%s6216] ss:$9 sm:$0xff] %v5933
    %6240 = vst [vmem:[%s6218] ss:$9 sm:$0xff] %v5934
    %6241 = vst [vmem:[%s6220] ss:$9 sm:$0xff] %v5816
    %6242 = vst [vmem:[%s6222] ss:$9 sm:$0xff] %v5935
    %6243 = vst [vmem:[%s6224] ss:$9 sm:$0xff] %v5936
    %v6244 = vld [vmem:[#allocation1] sm:$0xff]
    %6245 = vst [vmem:[#allocation1] ss:$9 sm:$0xff] %v5937
    %6246 = vst [vmem:[%s6212] ss:$9 sm:$0xff] %v5938
    %6247 = vst [vmem:[%s6214] ss:$9 sm:$0xff] %v5817
    %6248 = vst [vmem:[%s6216] ss:$9 sm:$0xff] %v5939
    %6249 = vst [vmem:[%s6218] ss:$9 sm:$0xff] %v5940
    %6250 = vst [vmem:[%s6220] ss:$9 sm:$0xff] %v5941
    %6251 = vst [vmem:[%s6222] ss:$9 sm:$0xff] %v5942
    %6252 = vst [vmem:[%s6224] ss:$9 sm:$0xff] %v5943
    %v6253 = vld [vmem:[#allocation1] sm:$0xff]
    %6254 = vst [vmem:[#allocation1] ss:$9 sm:$0xff] %v5944
    %6255 = vst [vmem:[%s6212] ss:$9 sm:$0xff] %v5945
    %6256 = vst [vmem:[%s6214] ss:$9 sm:$0xff] %v5818
    %6257 = vst [vmem:[%s6216] ss:$9 sm:$0xff] %v5946
    %6258 = vst [vmem:[%s6218] ss:$9 sm:$0xff] %v5947
    %6259 = vst [vmem:[%s6220] ss:$9 sm:$0xff] %v5948
    %6260 = vst [vmem:[%s6222] ss:$9 sm:$0xff] %v5949
    %6261 = vst [vmem:[%s6224] ss:$9 sm:$0xff] %v5819
    %v6262 = vld [vmem:[#allocation1] sm:$0xff]
    %6263 = vst [vmem:[#allocation1] ss:$9 sm:$0xff] %v5950
    %6264 = vst [vmem:[%s6212] ss:$9 sm:$0xff] %v5951
    %6265 = vst [vmem:[%s6214] ss:$9 sm:$0xff] %v5952
    %6266 = vst [vmem:[%s6216] ss:$9 sm:$0xff] %v5953
    %6267 = vst [vmem:[%s6218] ss:$9 sm:$0xff] %v5954
    %6268 = vst [vmem:[%s6220] ss:$9 sm:$0xff] %v5955
    %6269 = vst [vmem:[%s6222] ss:$9 sm:$0xff] %v5956
    %6270 = vst [vmem:[%s6224] ss:$9 sm:$0xff] %v5820
    %v6271 = vld [vmem:[#allocation1] sm:$0xff]
    %6272 = vst [vmem:[#allocation1] ss:$9 sm:$0xff] %v5957
    %6273 = vst [vmem:[%s6212] ss:$9 sm:$0xff] %v5958
    %6274 = vst [vmem:[%s6214] ss:$9 sm:$0xff] %v5959
    %6275 = vst [vmem:[%s6216] ss:$9 sm:$0xff] %v5960
    %6276 = vst [vmem:[%s6218] ss:$9 sm:$0xff] %v5821
    %6277 = vst [vmem:[%s6220] ss:$9 sm:$0xff] %v5961
    %6278 = vst [vmem:[%s6222] ss:$9 sm:$0xff] %v5962
    %6279 = vst [vmem:[%s6224] ss:$9 sm:$0xff] %v5963
    %v6280 = vld [vmem:[#allocation1] sm:$0xff]
    %6281 = vst [vmem:[#allocation1] ss:$9 sm:$0xff] %v5964
    %6282 = vst [vmem:[%s6212] ss:$9 sm:$0xff] %v5965
    %6283 = vst [vmem:[%s6214] ss:$9 sm:$0xff] %v5966
    %6284 = vst [vmem:[%s6216] ss:$9 sm:$0xff] %v5967
    %6285 = vst [vmem:[%s6218] ss:$9 sm:$0xff] %v5822
    %6286 = vst [vmem:[%s6220] ss:$9 sm:$0xff] %v5968
    %6287 = vst [vmem:[%s6222] ss:$9 sm:$0xff] %v5969
    %6288 = vst [vmem:[%s6224] ss:$9 sm:$0xff] %v5970
    %v6289 = vld [vmem:[#allocation1] sm:$0xff]
    %6290 = vst [vmem:[#allocation1] ss:$9 sm:$0xff] %v5971
    %6291 = vst [vmem:[%s6212] ss:$9 sm:$0xff] %v5823
    %6292 = vst [vmem:[%s6214] ss:$9 sm:$0xff] %v5972
    %6293 = vst [vmem:[%s6216] ss:$9 sm:$0xff] %v5973
    %6294 = vst [vmem:[%s6218] ss:$9 sm:$0xff] %v5974
    %6295 = vst [vmem:[%s6220] ss:$9 sm:$0xff] %v5975
    %6296 = vst [vmem:[%s6222] ss:$9 sm:$0xff] %v5976
    %6297 = vst [vmem:[%s6224] ss:$9 sm:$0xff] %v5977
    %v6298 = vld [vmem:[#allocation1] sm:$0xff]
    %6299 = vst [vmem:[#allocation1] ss:$9 sm:$0xff] %v5978
    %6300 = vst [vmem:[%s6212] ss:$9 sm:$0xff] %v5824
    %6301 = vst [vmem:[%s6214] ss:$9 sm:$0xff] %v5979
    %6302 = vst [vmem:[%s6216] ss:$9 sm:$0xff] %v5980
    %6303 = vst [vmem:[%s6218] ss:$9 sm:$0xff] %v5981
    %6304 = vst [vmem:[%s6220] ss:$9 sm:$0xff] %v5982
    %6305 = vst [vmem:[%s6222] ss:$9 sm:$0xff] %v5825
    %6306 = vst [vmem:[%s6224] ss:$9 sm:$0xff] %v5983
    %v6307 = vld [vmem:[#allocation1] sm:$0xff]
    %6308 = vst [vmem:[#allocation1] ss:$9 sm:$0xff] %v5984
    %6309 = vst [vmem:[%s6212] ss:$9 sm:$0xff] %v5985
    %6310 = vst [vmem:[%s6214] ss:$9 sm:$0xff] %v5986
    %6311 = vst [vmem:[%s6216] ss:$9 sm:$0xff] %v5987
    %6312 = vst [vmem:[%s6218] ss:$9 sm:$0xff] %v5988
    %6313 = vst [vmem:[%s6220] ss:$9 sm:$0xff] %v5989
    %6314 = vst [vmem:[%s6222] ss:$9 sm:$0xff] %v5826
    %6315 = vst [vmem:[%s6224] ss:$9 sm:$0xff] %v5990
    %v6316 = vld [vmem:[#allocation1] sm:$0xff]
    %6317 = vst [vmem:[#allocation1] ss:$9 sm:$0xff] %v5991
    %6318 = vst [vmem:[%s6212] ss:$9 sm:$0xff] %v5992
    %6319 = vst [vmem:[%s6214] ss:$9 sm:$0xff] %v5993
    %6320 = vst [vmem:[%s6216] ss:$9 sm:$0xff] %v5827
    %6321 = vst [vmem:[%s6218] ss:$9 sm:$0xff] %v5994
    %6322 = vst [vmem:[%s6220] ss:$9 sm:$0xff] %v5995
    %6323 = vst [vmem:[%s6222] ss:$9 sm:$0xff] %v5996
    %6324 = vst [vmem:[%s6224] ss:$9 sm:$0xff] %v5997
    %v6325 = vld [vmem:[#allocation1] sm:$0xff]
    %6326 = vst [vmem:[#allocation1] ss:$9 sm:$0xff] %v5998
    %6327 = vst [vmem:[%s6212] ss:$9 sm:$0xff] %v5999
    %6328 = vst [vmem:[%s6214] ss:$9 sm:$0xff] %v6000
    %6329 = vst [vmem:[%s6216] ss:$9 sm:$0xff] %v5828
    %6330 = vst [vmem:[%s6218] ss:$9 sm:$0xff] %v6001
    %6331 = vst [vmem:[%s6220] ss:$9 sm:$0xff] %v6002
    %6332 = vst [vmem:[%s6222] ss:$9 sm:$0xff] %v6003
    %6333 = vst [vmem:[%s6224] ss:$9 sm:$0xff] %v6004
    %v6334 = vld [vmem:[#allocation1] sm:$0xff]
    %6335 = vst [vmem:[#allocation1] ss:$9 sm:$0xff] %v5829
    %6336 = vst [vmem:[%s6212] ss:$9 sm:$0xff] %v6005
    %6337 = vst [vmem:[%s6214] ss:$9 sm:$0xff] %v6006
    %6338 = vst [vmem:[%s6216] ss:$9 sm:$0xff] %v6007
    %6339 = vst [vmem:[%s6218] ss:$9 sm:$0xff] %v6008
    %6340 = vst [vmem:[%s6220] ss:$9 sm:$0xff] %v6009
    %6341 = vst [vmem:[%s6222] ss:$9 sm:$0xff] %v6010
    %6342 = vst [vmem:[%s6224] ss:$9 sm:$0xff] %v6011
    %v6343 = vld [vmem:[#allocation1] sm:$0xff]
    %6344 = vst [vmem:[#allocation1] ss:$9 sm:$0xff] %v5830
    %6345 = vst [vmem:[%s6212] ss:$9 sm:$0xff] %v6012
    %6346 = vst [vmem:[%s6214] ss:$9 sm:$0xff] %v6013
    %6347 = vst [vmem:[%s6216] ss:$9 sm:$0xff] %v6014
    %6348 = vst [vmem:[%s6218] ss:$9 sm:$0xff] %v6015
    %6349 = vst [vmem:[%s6220] ss:$9 sm:$0xff] %v5831
    %6350 = vst [vmem:[%s6222] ss:$9 sm:$0xff] %v6016
    %6351 = vst [vmem:[%s6224] ss:$9 sm:$0xff] %v6017
    %v6352 = vld [vmem:[#allocation1] sm:$0xff]
    %6353 = vst [vmem:[#allocation1] ss:$9 sm:$0xff] %v6018
    %6354 = vst [vmem:[%s6212] ss:$9 sm:$0xff] %v6019
    %6355 = vst [vmem:[%s6214] ss:$9 sm:$0xff] %v6020
    %6356 = vst [vmem:[%s6216] ss:$9 sm:$0xff] %v6021
    %6357 = vst [vmem:[%s6218] ss:$9 sm:$0xff] %v6022
    %6358 = vst [vmem:[%s6220] ss:$9 sm:$0xff] %v5832
    %6359 = vst [vmem:[%s6222] ss:$9 sm:$0xff] %v6023
    %6360 = vst [vmem:[%s6224] ss:$9 sm:$0xff] %v6024
    %v6361 = vld [vmem:[#allocation1] sm:$0xff]
    %6362 = vst [vmem:[#allocation1] ss:$9 sm:$0xff] %v6025
    %6363 = vst [vmem:[%s6212] ss:$9 sm:$0xff] %v6026
    %6364 = vst [vmem:[%s6214] ss:$9 sm:$0xff] %v5833
    %6365 = vst [vmem:[%s6216] ss:$9 sm:$0xff] %v6027
    %6366 = vst [vmem:[%s6218] ss:$9 sm:$0xff] %v6028
    %6367 = vst [vmem:[%s6220] ss:$9 sm:$0xff] %v6029
    %6368 = vst [vmem:[%s6222] ss:$9 sm:$0xff] %v6030
    %6369 = vst [vmem:[%s6224] ss:$9 sm:$0xff] %v6031
    %v6370 = vld [vmem:[#allocation1] sm:$0xff]
    %6371 = vst [vmem:[#allocation1] ss:$9 sm:$0xff] %v6032
    %6372 = vst [vmem:[%s6212] ss:$9 sm:$0xff] %v6033
    %6373 = vst [vmem:[%s6214] ss:$9 sm:$0xff] %v5834
    %6374 = vst [vmem:[%s6216] ss:$9 sm:$0xff] %v6034
    %6375 = vst [vmem:[%s6218] ss:$9 sm:$0xff] %v6035
    %6376 = vst [vmem:[%s6220] ss:$9 sm:$0xff] %v6036
    %6377 = vst [vmem:[%s6222] ss:$9 sm:$0xff] %v6037
    %6378 = vst [vmem:[%s6224] ss:$9 sm:$0xff] %v5835
    %v6379 = vld [vmem:[#allocation1] sm:$0xff]
    %6380 = vst [vmem:[#allocation1] ss:$9 sm:$0xff] %v6038
    %6381 = vst [vmem:[%s6212] ss:$9 sm:$0xff] %v6039
    %6382 = vst [vmem:[%s6214] ss:$9 sm:$0xff] %v6040
    %6383 = vst [vmem:[%s6216] ss:$9 sm:$0xff] %v6041
    %6384 = vst [vmem:[%s6218] ss:$9 sm:$0xff] %v6042
    %6385 = vst [vmem:[%s6220] ss:$9 sm:$0xff] %v6043
    %6386 = vst [vmem:[%s6222] ss:$9 sm:$0xff] %v6044
    %6387 = vst [vmem:[%s6224] ss:$9 sm:$0xff] %v5836
    %v6388 = vld [vmem:[#allocation1] sm:$0xff]
    %6389 = vst [vmem:[#allocation1] ss:$9 sm:$0xff] %v6045
    %6390 = vst [vmem:[%s6212] ss:$9 sm:$0xff] %v6046
    %6391 = vst [vmem:[%s6214] ss:$9 sm:$0xff] %v6047
    %6392 = vst [vmem:[%s6216] ss:$9 sm:$0xff] %v6048
    %6393 = vst [vmem:[%s6218] ss:$9 sm:$0xff] %v5837
    %6394 = vst [vmem:[%s6220] ss:$9 sm:$0xff] %v6049
    %6395 = vst [vmem:[%s6222] ss:$9 sm:$0xff] %v6050
    %6396 = vst [vmem:[%s6224] ss:$9 sm:$0xff] %v6051
    %v6397 = vld [vmem:[#allocation1] sm:$0xff]
    %6398 = vst [vmem:[#allocation1] ss:$9 sm:$0xff] %v6052
    %6399 = vst [vmem:[%s6212] ss:$9 sm:$0xff] %v6053
    %6400 = vst [vmem:[%s6214] ss:$9 sm:$0xff] %v6054
    %6401 = vst [vmem:[%s6216] ss:$9 sm:$0xff] %v6055
    %6402 = vst [vmem:[%s6218] ss:$9 sm:$0xff] %v5838
    %6403 = vst [vmem:[%s6220] ss:$9 sm:$0xff] %v6056
    %6404 = vst [vmem:[%s6222] ss:$9 sm:$0xff] %v6057
    %6405 = vst [vmem:[%s6224] ss:$9 sm:$0xff] %v6058
    %v6406 = vld [vmem:[#allocation1] sm:$0xff]
    %6407 = vst [vmem:[#allocation1] ss:$9 sm:$0xff] %v6059
    %6408 = vst [vmem:[%s6212] ss:$9 sm:$0xff] %v5839
    %6409 = vst [vmem:[%s6214] ss:$9 sm:$0xff] %v6060
    %6410 = vst [vmem:[%s6216] ss:$9 sm:$0xff] %v6061
    %6411 = vst [vmem:[%s6218] ss:$9 sm:$0xff] %v6062
    %6412 = vst [vmem:[%s6220] ss:$9 sm:$0xff] %v6063
    %6413 = vst [vmem:[%s6222] ss:$9 sm:$0xff] %v6064
    %6414 = vst [vmem:[%s6224] ss:$9 sm:$0xff] %v6065
    %v6415 = vld [vmem:[#allocation1] sm:$0xff]
    %6416 = vst [vmem:[#allocation1] ss:$9 sm:$0xff] %v6066
    %6417 = vst [vmem:[%s6212] ss:$9 sm:$0xff] %v5840
    %6418 = vst [vmem:[%s6214] ss:$9 sm:$0xff] %v6067
    %6419 = vst [vmem:[%s6216] ss:$9 sm:$0xff] %v6068
    %6420 = vst [vmem:[%s6218] ss:$9 sm:$0xff] %v6069
    %6421 = vst [vmem:[%s6220] ss:$9 sm:$0xff] %v6070
    %6422 = vst [vmem:[%s6222] ss:$9 sm:$0xff] %v5841
    %6423 = vst [vmem:[%s6224] ss:$9 sm:$0xff] %v6071
    %v6424 = vld [vmem:[#allocation1] sm:$0xff]
    %6425 = vst [vmem:[#allocation1] ss:$9 sm:$0xff] %v6072
    %6426 = vst [vmem:[%s6212] ss:$9 sm:$0xff] %v6073
    %6427 = vst [vmem:[%s6214] ss:$9 sm:$0xff] %v6074
    %6428 = vst [vmem:[%s6216] ss:$9 sm:$0xff] %v6075
    %6429 = vst [vmem:[%s6218] ss:$9 sm:$0xff] %v6076
    %6430 = vst [vmem:[%s6220] ss:$9 sm:$0xff] %v6077
    %6431 = vst [vmem:[%s6222] ss:$9 sm:$0xff] %v5842
    %6432 = vst [vmem:[%s6224] ss:$9 sm:$0xff] %v6078
    %v6433 = vld [vmem:[#allocation1] sm:$0xff]
    %6434 = vst [vmem:[#allocation1] ss:$9 sm:$0xff] %v6079
    %6435 = vst [vmem:[%s6212] ss:$9 sm:$0xff] %v6080
    %6436 = vst [vmem:[%s6214] ss:$9 sm:$0xff] %v6081
    %6437 = vst [vmem:[%s6216] ss:$9 sm:$0xff] %v5843
    %6438 = vst [vmem:[%s6218] ss:$9 sm:$0xff] %v6082
    %6439 = vst [vmem:[%s6220] ss:$9 sm:$0xff] %v6083
    %6440 = vst [vmem:[%s6222] ss:$9 sm:$0xff] %v6084
    %6441 = vst [vmem:[%s6224] ss:$9 sm:$0xff] %v6085
    %v6442 = vld [vmem:[#allocation1] sm:$0xff]
    %6443 = vst [vmem:[#allocation1] ss:$9 sm:$0xff] %v6086
    %6444 = vst [vmem:[%s6212] ss:$9 sm:$0xff] %v6087
    %6445 = vst [vmem:[%s6214] ss:$9 sm:$0xff] %v6088
    %6446 = vst [vmem:[%s6216] ss:$9 sm:$0xff] %v5844
    %6447 = vst [vmem:[%s6218] ss:$9 sm:$0xff] %v6089
    %6448 = vst [vmem:[%s6220] ss:$9 sm:$0xff] %v6090
    %6449 = vst [vmem:[%s6222] ss:$9 sm:$0xff] %v6091
    %6450 = vst [vmem:[%s6224] ss:$9 sm:$0xff] %v6092
    %v6451 = vld [vmem:[#allocation1] sm:$0xff]
    %6452 = vst [vmem:[#allocation1] ss:$9 sm:$0xff] %v5845
    %6453 = vst [vmem:[%s6212] ss:$9 sm:$0xff] %v6093
    %6454 = vst [vmem:[%s6214] ss:$9 sm:$0xff] %v6094
    %6455 = vst [vmem:[%s6216] ss:$9 sm:$0xff] %v6095
    %6456 = vst [vmem:[%s6218] ss:$9 sm:$0xff] %v6096
    %6457 = vst [vmem:[%s6220] ss:$9 sm:$0xff] %v6097
    %6458 = vst [vmem:[%s6222] ss:$9 sm:$0xff] %v6098
    %6459 = vst [vmem:[%s6224] ss:$9 sm:$0xff] %v6099
    %v6460 = vld [vmem:[#allocation1] sm:$0xff]
    %6461 = vst [vmem:[#allocation1] ss:$9 sm:$0xff] %v5846
    %6462 = vst [vmem:[%s6212] ss:$9 sm:$0xff] %v6100
    %6463 = vst [vmem:[%s6214] ss:$9 sm:$0xff] %v6101
    %6464 = vst [vmem:[%s6216] ss:$9 sm:$0xff] %v6102
    %6465 = vst [vmem:[%s6218] ss:$9 sm:$0xff] %v6103
    %6466 = vst [vmem:[%s6220] ss:$9 sm:$0xff] %v5847
    %6467 = vst [vmem:[%s6222] ss:$9 sm:$0xff] %v6104
    %6468 = vst [vmem:[%s6224] ss:$9 sm:$0xff] %v6105
    %v6469 = vld [vmem:[#allocation1] sm:$0xff]
    %6470 = vst [vmem:[#allocation1] ss:$9 sm:$0xff] %v6106
    %6471 = vst [vmem:[%s6212] ss:$9 sm:$0xff] %v6107
    %6472 = vst [vmem:[%s6214] ss:$9 sm:$0xff] %v6108
    %6473 = vst [vmem:[%s6216] ss:$9 sm:$0xff] %v6109
    %6474 = vst [vmem:[%s6218] ss:$9 sm:$0xff] %v6110
    %6475 = vst [vmem:[%s6220] ss:$9 sm:$0xff] %v5848
    %6476 = vst [vmem:[%s6222] ss:$9 sm:$0xff] %v6111
    %6477 = vst [vmem:[%s6224] ss:$9 sm:$0xff] %v6112
    %v6478 = vld [vmem:[#allocation1] sm:$0xff]
    %6479 = vst [vmem:[#allocation1] ss:$9 sm:$0xff] %v6113
    %6480 = vst [vmem:[%s6212] ss:$9 sm:$0xff] %v6114
    %6481 = vst [vmem:[%s6214] ss:$9 sm:$0xff] %v5849
    %6482 = vst [vmem:[%s6216] ss:$9 sm:$0xff] %v6115
    %6483 = vst [vmem:[%s6218] ss:$9 sm:$0xff] %v6116
    %6484 = vst [vmem:[%s6220] ss:$9 sm:$0xff] %v6117
    %6485 = vst [vmem:[%s6222] ss:$9 sm:$0xff] %v6118
    %6486 = vst [vmem:[%s6224] ss:$9 sm:$0xff] %v6119
    %v6487 = vld [vmem:[#allocation1] sm:$0xff]
    %6488 = vst [vmem:[#allocation1] ss:$9 sm:$0xff] %v6120
    %6489 = vst [vmem:[%s6212] ss:$9 sm:$0xff] %v6121
    %6490 = vst [vmem:[%s6214] ss:$9 sm:$0xff] %v5850
    %6491 = vst [vmem:[%s6216] ss:$9 sm:$0xff] %v6122
    %6492 = vst [vmem:[%s6218] ss:$9 sm:$0xff] %v6123
    %6493 = vst [vmem:[%s6220] ss:$9 sm:$0xff] %v6124
    %6494 = vst [vmem:[%s6222] ss:$9 sm:$0xff] %v6125
    %6495 = vst [vmem:[%s6224] ss:$9 sm:$0xff] %v5851
    %v6496 = vld [vmem:[#allocation1] sm:$0xff]
    %6497 = vst [vmem:[#allocation1] ss:$9 sm:$0xff] %v6126
    %6498 = vst [vmem:[%s6212] ss:$9 sm:$0xff] %v6127
    %6499 = vst [vmem:[%s6214] ss:$9 sm:$0xff] %v6128
    %6500 = vst [vmem:[%s6216] ss:$9 sm:$0xff] %v6129
    %6501 = vst [vmem:[%s6218] ss:$9 sm:$0xff] %v6130
    %6502 = vst [vmem:[%s6220] ss:$9 sm:$0xff] %v6131
    %6503 = vst [vmem:[%s6222] ss:$9 sm:$0xff] %v6132
    %6504 = vst [vmem:[%s6224] ss:$9 sm:$0xff] %v5852
    %v6505 = vld [vmem:[#allocation1] sm:$0xff]
    %6506 = vst [vmem:[#allocation1] ss:$9 sm:$0xff] %v6133
    %6507 = vst [vmem:[%s6212] ss:$9 sm:$0xff] %v6134
    %6508 = vst [vmem:[%s6214] ss:$9 sm:$0xff] %v6135
    %6509 = vst [vmem:[%s6216] ss:$9 sm:$0xff] %v6136
    %6510 = vst [vmem:[%s6218] ss:$9 sm:$0xff] %v5853
    %6511 = vst [vmem:[%s6220] ss:$9 sm:$0xff] %v6137
    %6512 = vst [vmem:[%s6222] ss:$9 sm:$0xff] %v6138
    %6513 = vst [vmem:[%s6224] ss:$9 sm:$0xff] %v6139
    %v6514 = vld [vmem:[#allocation1] sm:$0xff]
    %6515 = vst [vmem:[#allocation1] ss:$9 sm:$0xff] %v6140
    %6516 = vst [vmem:[%s6212] ss:$9 sm:$0xff] %v6141
    %6517 = vst [vmem:[%s6214] ss:$9 sm:$0xff] %v6142
    %6518 = vst [vmem:[%s6216] ss:$9 sm:$0xff] %v6143
    %6519 = vst [vmem:[%s6218] ss:$9 sm:$0xff] %v5854
    %6520 = vst [vmem:[%s6220] ss:$9 sm:$0xff] %v6144
    %6521 = vst [vmem:[%s6222] ss:$9 sm:$0xff] %v6145
    %6522 = vst [vmem:[%s6224] ss:$9 sm:$0xff] %v6146
    %v6523 = vld [vmem:[#allocation1] sm:$0xff]
    %6524 = vst [vmem:[#allocation1] ss:$9 sm:$0xff] %v6147
    %6525 = vst [vmem:[%s6212] ss:$9 sm:$0xff] %v5855
    %6526 = vst [vmem:[%s6214] ss:$9 sm:$0xff] %v6148
    %6527 = vst [vmem:[%s6216] ss:$9 sm:$0xff] %v6149
    %6528 = vst [vmem:[%s6218] ss:$9 sm:$0xff] %v6150
    %6529 = vst [vmem:[%s6220] ss:$9 sm:$0xff] %v6151
    %6530 = vst [vmem:[%s6222] ss:$9 sm:$0xff] %v6152
    %6531 = vst [vmem:[%s6224] ss:$9 sm:$0xff] %v6153
    %v6532 = vld [vmem:[#allocation1] sm:$0xff]
    %6533 = vst [vmem:[#allocation1] ss:$9 sm:$0xff] %v6154
    %6534 = vst [vmem:[%s6212] ss:$9 sm:$0xff] %v5856
    %6535 = vst [vmem:[%s6214] ss:$9 sm:$0xff] %v6155
    %6536 = vst [vmem:[%s6216] ss:$9 sm:$0xff] %v6156
    %6537 = vst [vmem:[%s6218] ss:$9 sm:$0xff] %v6157
    %6538 = vst [vmem:[%s6220] ss:$9 sm:$0xff] %v6158
    %6539 = vst [vmem:[%s6222] ss:$9 sm:$0xff] %v5857
    %6540 = vst [vmem:[%s6224] ss:$9 sm:$0xff] %v6159
    %v6541 = vld [vmem:[#allocation1] sm:$0xff]
    %6542 = vst [vmem:[#allocation1] ss:$9 sm:$0xff] %v6160
    %6543 = vst [vmem:[%s6212] ss:$9 sm:$0xff] %v6161
    %6544 = vst [vmem:[%s6214] ss:$9 sm:$0xff] %v6162
    %6545 = vst [vmem:[%s6216] ss:$9 sm:$0xff] %v6163
    %6546 = vst [vmem:[%s6218] ss:$9 sm:$0xff] %v6164
    %6547 = vst [vmem:[%s6220] ss:$9 sm:$0xff] %v6165
    %6548 = vst [vmem:[%s6222] ss:$9 sm:$0xff] %v5858
    %6549 = vst [vmem:[%s6224] ss:$9 sm:$0xff] %v6166
    %v6550 = vld [vmem:[#allocation1] sm:$0xff]
    %6551 = vst [vmem:[#allocation1] ss:$9 sm:$0xff] %v6167
    %6552 = vst [vmem:[%s6212] ss:$9 sm:$0xff] %v6168
    %6553 = vst [vmem:[%s6214] ss:$9 sm:$0xff] %v6169
    %6554 = vst [vmem:[%s6216] ss:$9 sm:$0xff] %v5859
    %6555 = vst [vmem:[%s6218] ss:$9 sm:$0xff] %v6170
    %6556 = vst [vmem:[%s6220] ss:$9 sm:$0xff] %v6171
    %6557 = vst [vmem:[%s6222] ss:$9 sm:$0xff] %v6172
    %6558 = vst [vmem:[%s6224] ss:$9 sm:$0xff] %v6173
    %v6559 = vld [vmem:[#allocation1] sm:$0xff]
    %6560 = vst [vmem:[#allocation1] ss:$9 sm:$0xff] %v6174
    %6561 = vst [vmem:[%s6212] ss:$9 sm:$0xff] %v6175
    %6562 = vst [vmem:[%s6214] ss:$9 sm:$0xff] %v6176
    %6563 = vst [vmem:[%s6216] ss:$9 sm:$0xff] %v5860
    %6564 = vst [vmem:[%s6218] ss:$9 sm:$0xff] %v6177
    %6565 = vst [vmem:[%s6220] ss:$9 sm:$0xff] %v6178
    %6566 = vst [vmem:[%s6222] ss:$9 sm:$0xff] %v6179
    %6567 = vst [vmem:[%s6224] ss:$9 sm:$0xff] %v6180
    %v6568 = vld [vmem:[#allocation1] sm:$0xff]
    %6569 = vst [vmem:[#allocation1] ss:$9 sm:$0xff] %v5861
    %6570 = vst [vmem:[%s6212] ss:$9 sm:$0xff] %v6181
    %6571 = vst [vmem:[%s6214] ss:$9 sm:$0xff] %v6182
    %6572 = vst [vmem:[%s6216] ss:$9 sm:$0xff] %v6183
    %6573 = vst [vmem:[%s6218] ss:$9 sm:$0xff] %v6184
    %6574 = vst [vmem:[%s6220] ss:$9 sm:$0xff] %v6185
    %6575 = vst [vmem:[%s6222] ss:$9 sm:$0xff] %v6186
    %6576 = vst [vmem:[%s6224] ss:$9 sm:$0xff] %v6187
    %v6577 = vld [vmem:[#allocation1] sm:$0xff]
    %6578 = vst [vmem:[#allocation1] ss:$9 sm:$0xff] %v5862
    %6579 = vst [vmem:[%s6212] ss:$9 sm:$0xff] %v6188
    %6580 = vst [vmem:[%s6214] ss:$9 sm:$0xff] %v6189
    %6581 = vst [vmem:[%s6216] ss:$9 sm:$0xff] %v6190
    %6582 = vst [vmem:[%s6218] ss:$9 sm:$0xff] %v6191
    %6583 = vst [vmem:[%s6220] ss:$9 sm:$0xff] %v5863
    %6584 = vst [vmem:[%s6222] ss:$9 sm:$0xff] %v6192
    %6585 = vst [vmem:[%s6224] ss:$9 sm:$0xff] %v6193
    %v6586 = vld [vmem:[#allocation1] sm:$0xff]
    %6587 = vst [vmem:[#allocation1] ss:$9 sm:$0xff] %v6194
    %6588 = vst [vmem:[%s6212] ss:$9 sm:$0xff] %v6195
    %6589 = vst [vmem:[%s6214] ss:$9 sm:$0xff] %v6196
    %6590 = vst [vmem:[%s6216] ss:$9 sm:$0xff] %v6197
    %6591 = vst [vmem:[%s6218] ss:$9 sm:$0xff] %v6198
    %6592 = vst [vmem:[%s6220] ss:$9 sm:$0xff] %v5864
    %6593 = vst [vmem:[%s6222] ss:$9 sm:$0xff] %v6199
    %6594 = vst [vmem:[%s6224] ss:$9 sm:$0xff] %v6200
    %v6595 = vld [vmem:[#allocation1] sm:$0xff]
    %6596 = vst [vmem:[#allocation1] ss:$9 sm:$0xff] %v6201
    %6597 = vst [vmem:[%s6212] ss:$9 sm:$0xff] %v6202
    %v6598 = vld [vmem:[#allocation1] sm:$0xff]
    %vm6599 = vcmask 523264
    %v6600 = vsel %vm6599, %v6226, 0
    %v6602 = vsel %vm6599, %v6235, 0
    %v6604 = vsel %vm6599, %v6244, 0
    %v6606 = vsel %vm6599, %v6253, 0
    %v6608 = vsel %vm6599, %v6262, 0
    %v6610 = vsel %vm6599, %v6271, 0
    %v6612 = vsel %vm6599, %v6280, 0
    %v6614 = vsel %vm6599, %v6289, 0
    %v6616 = vsel %vm6599, %v6298, 0
    %v6618 = vsel %vm6599, %v6307, 0
    %v6620 = vsel %vm6599, %v6316, 0
    %v6622 = vsel %vm6599, %v6325, 0
    %v6624 = vsel %vm6599, %v6334, 0
    %v6626 = vsel %vm6599, %v6343, 0
    %v6628 = vsel %vm6599, %v6352, 0
    %v6630 = vsel %vm6599, %v6361, 0
    %v6632 = vsel %vm6599, %v6370, 0
    %v6634 = vsel %vm6599, %v6379, 0
    %v6636 = vsel %vm6599, %v6388, 0
    %v6638 = vsel %vm6599, %v6397, 0
    %v6640 = vsel %vm6599, %v6406, 0
    %v6642 = vsel %vm6599, %v6415, 0
    %v6644 = vsel %vm6599, %v6424, 0
    %v6646 = vsel %vm6599, %v6433, 0
    %v6648 = vsel %vm6599, %v6442, 0
    %v6650 = vsel %vm6599, %v6451, 0
    %v6652 = vsel %vm6599, %v6460, 0
    %v6654 = vsel %vm6599, %v6469, 0
    %v6656 = vsel %vm6599, %v6478, 0
    %v6658 = vsel %vm6599, %v6487, 0
    %v6660 = vsel %vm6599, %v6496, 0
    %v6662 = vsel %vm6599, %v6505, 0
    %v6664 = vsel %vm6599, %v6514, 0
    %v6666 = vsel %vm6599, %v6523, 0
    %v6668 = vsel %vm6599, %v6532, 0
    %v6670 = vsel %vm6599, %v6541, 0
    %v6672 = vsel %vm6599, %v6550, 0
    %v6674 = vsel %vm6599, %v6559, 0
    %v6676 = vsel %vm6599, %v6568, 0
    %v6678 = vsel %vm6599, %v6577, 0
    %v6680 = vsel %vm6599, %v6586, 0
    %v6682 = vsel %vm6599, %v6595, 0
    %v6684 = vsel %vm6599, %v6598, 0
    %6686 = vmatpush.msra.mxu0 0.0
    %6687 = vmatpush.msra.mxu0 0.0
    %6688 = vmatpush.msra.mxu0 0.0
    %6689 = vmatpush.msra.mxu0 0.0
    %6690 = vmatpush.msra.mxu0 0.0
    %6691 = vmatpush.msra.mxu0 0.0
    %6692 = vmatpush.msra.mxu0 0.0
    %6693 = vmatpush.msra.mxu0 0.0
    %6694 = vmatpush.msra.mxu0 %v6210
    %6695 = vmatpush.msra.mxu0 %v6209
    %6696 = vmatpush.msra.mxu0 %v6208
    %6697 = vmatpush.msra.mxu0 %v6207
    %6698 = vmatpush.msra.mxu0 %v6206
    %6699 = vmatpush.msra.mxu0 %v6205
    %6700 = vmatpush.msra.mxu0 %v6204
    %6701 = vmatpush.msra.mxu0 %v6203
    %6702 = vmatmul.f32.gmra.mxu0 %v6600
    %v6703 = vpop.f32.mrf.mxu0
    %v6704 = vadd.f32 0.0, %v6703
    %6705 = vmatmul.f32.gmra.mxu0 %v6602
    %v6706 = vpop.f32.mrf.mxu0
    %v6707 = vadd.f32 0.0, %v6706
    %6708 = vmatmul.f32.gmra.mxu0 %v6604
    %v6709 = vpop.f32.mrf.mxu0
    %v6710 = vadd.f32 0.0, %v6709
    %6711 = vmatmul.f32.gmra.mxu0 %v6606
    %v6712 = vpop.f32.mrf.mxu0
    %v6713 = vadd.f32 0.0, %v6712
    %6714 = vmatmul.f32.gmra.mxu0 %v6608
    %v6715 = vpop.f32.mrf.mxu0
    %v6716 = vadd.f32 0.0, %v6715
    %6717 = vmatmul.f32.gmra.mxu0 %v6610
    %v6718 = vpop.f32.mrf.mxu0
    %v6719 = vadd.f32 0.0, %v6718
    %6720 = vmatmul.f32.gmra.mxu0 %v6612
    %v6721 = vpop.f32.mrf.mxu0
    %v6722 = vadd.f32 0.0, %v6721
    %6723 = vmatmul.f32.gmra.mxu0 %v6614
    %v6724 = vpop.f32.mrf.mxu0
    %v6725 = vadd.f32 0.0, %v6724
    %6726 = vmatmul.f32.gmra.mxu0 %v6616
    %v6727 = vpop.f32.mrf.mxu0
    %v6728 = vadd.f32 0.0, %v6727
    %6729 = vmatmul.f32.gmra.mxu0 %v6618
    %v6730 = vpop.f32.mrf.mxu0
    %v6731 = vadd.f32 0.0, %v6730
    %6732 = vmatmul.f32.gmra.mxu0 %v6620
    %v6733 = vpop.f32.mrf.mxu0
    %v6734 = vadd.f32 0.0, %v6733
    %6735 = vmatmul.f32.gmra.mxu0 %v6622
    %v6736 = vpop.f32.mrf.mxu0
    %v6737 = vadd.f32 0.0, %v6736
    %6738 = vmatmul.f32.gmra.mxu0 %v6624
    %v6739 = vpop.f32.mrf.mxu0
    %v6740 = vadd.f32 0.0, %v6739
    %6741 = vmatmul.f32.gmra.mxu0 %v6626
    %v6742 = vpop.f32.mrf.mxu0
    %v6743 = vadd.f32 0.0, %v6742
    %6744 = vmatmul.f32.gmra.mxu0 %v6628
    %v6745 = vpop.f32.mrf.mxu0
    %v6746 = vadd.f32 0.0, %v6745
    %6747 = vmatmul.f32.gmra.mxu0 %v6630
    %v6748 = vpop.f32.mrf.mxu0
    %v6749 = vadd.f32 0.0, %v6748
    %6750 = vmatmul.f32.gmra.mxu0 %v6632
    %v6751 = vpop.f32.mrf.mxu0
    %v6752 = vadd.f32 0.0, %v6751
    %6753 = vmatmul.f32.gmra.mxu0 %v6634
    %v6754 = vpop.f32.mrf.mxu0
    %v6755 = vadd.f32 0.0, %v6754
    %6756 = vmatmul.f32.gmra.mxu0 %v6636
    %v6757 = vpop.f32.mrf.mxu0
    %v6758 = vadd.f32 0.0, %v6757
    %6759 = vmatmul.f32.gmra.mxu0 %v6638
    %v6760 = vpop.f32.mrf.mxu0
    %v6761 = vadd.f32 0.0, %v6760
    %6762 = vmatmul.f32.gmra.mxu0 %v6640
    %v6763 = vpop.f32.mrf.mxu0
    %v6764 = vadd.f32 0.0, %v6763
    %6765 = vmatmul.f32.gmra.mxu0 %v6642
    %v6766 = vpop.f32.mrf.mxu0
    %v6767 = vadd.f32 0.0, %v6766
    %6768 = vmatmul.f32.gmra.mxu0 %v6644
    %v6769 = vpop.f32.mrf.mxu0
    %v6770 = vadd.f32 0.0, %v6769
    %6771 = vmatmul.f32.gmra.mxu0 %v6646
    %v6772 = vpop.f32.mrf.mxu0
    %v6773 = vadd.f32 0.0, %v6772
    %6774 = vmatmul.f32.gmra.mxu0 %v6648
    %v6775 = vpop.f32.mrf.mxu0
    %v6776 = vadd.f32 0.0, %v6775
    %6777 = vmatmul.f32.gmra.mxu0 %v6650
    %v6778 = vpop.f32.mrf.mxu0
    %v6779 = vadd.f32 0.0, %v6778
    %6780 = vmatmul.f32.gmra.mxu0 %v6652
    %v6781 = vpop.f32.mrf.mxu0
    %v6782 = vadd.f32 0.0, %v6781
    %6783 = vmatmul.f32.gmra.mxu0 %v6654
    %v6784 = vpop.f32.mrf.mxu0
    %v6785 = vadd.f32 0.0, %v6784
    %6786 = vmatmul.f32.gmra.mxu0 %v6656
    %v6787 = vpop.f32.mrf.mxu0
    %v6788 = vadd.f32 0.0, %v6787
    %6789 = vmatmul.f32.gmra.mxu0 %v6658
    %v6790 = vpop.f32.mrf.mxu0
    %v6791 = vadd.f32 0.0, %v6790
    %6792 = vmatmul.f32.gmra.mxu0 %v6660
    %v6793 = vpop.f32.mrf.mxu0
    %v6794 = vadd.f32 0.0, %v6793
    %6795 = vmatmul.f32.gmra.mxu0 %v6662
    %v6796 = vpop.f32.mrf.mxu0
    %v6797 = vadd.f32 0.0, %v6796
    %6798 = vmatmul.f32.gmra.mxu0 %v6664
    %v6799 = vpop.f32.mrf.mxu0
    %v6800 = vadd.f32 0.0, %v6799
    %6801 = vmatmul.f32.gmra.mxu0 %v6666
    %v6802 = vpop.f32.mrf.mxu0
    %v6803 = vadd.f32 0.0, %v6802
    %6804 = vmatmul.f32.gmra.mxu0 %v6668
    %v6805 = vpop.f32.mrf.mxu0
    %v6806 = vadd.f32 0.0, %v6805
    %6807 = vmatmul.f32.gmra.mxu0 %v6670
    %v6808 = vpop.f32.mrf.mxu0
    %v6809 = vadd.f32 0.0, %v6808
    %6810 = vmatmul.f32.gmra.mxu0 %v6672
    %v6811 = vpop.f32.mrf.mxu0
    %v6812 = vadd.f32 0.0, %v6811
    %6813 = vmatmul.f32.gmra.mxu0 %v6674
    %v6814 = vpop.f32.mrf.mxu0
    %v6815 = vadd.f32 0.0, %v6814
    %6816 = vmatmul.f32.gmra.mxu0 %v6676
    %v6817 = vpop.f32.mrf.mxu0
    %v6818 = vadd.f32 0.0, %v6817
    %6819 = vmatmul.f32.gmra.mxu0 %v6678
    %v6820 = vpop.f32.mrf.mxu0
    %v6821 = vadd.f32 0.0, %v6820
    %6822 = vmatmul.f32.gmra.mxu0 %v6680
    %v6823 = vpop.f32.mrf.mxu0
    %v6824 = vadd.f32 0.0, %v6823
    %6825 = vmatmul.f32.gmra.mxu0 %v6682
    %v6826 = vpop.f32.mrf.mxu0
    %v6827 = vadd.f32 0.0, %v6826
    %6828 = vmatmul.f32.gmra.mxu0 %v6684
    %v6829 = vpop.f32.mrf.mxu0
    %v6830 = vadd.f32 0.0, %v6829
    %6831 = vdwg.mxu0
    %v6832 = vld [vmem:[%s5] sm:$0x1]
    %v6834 = vperm.slane %v6832, 0
    %v6836 = vmul.f32 %v6704, %v6834
    %v6837 = vmul.f32 %v6707, %v6834
    %v6838 = vmul.f32 %v6710, %v6834
    %v6839 = vmul.f32 %v6713, %v6834
    %v6840 = vmul.f32 %v6716, %v6834
    %v6841 = vmul.f32 %v6719, %v6834
    %v6842 = vmul.f32 %v6722, %v6834
    %v6843 = vmul.f32 %v6725, %v6834
    %v6844 = vmul.f32 %v6728, %v6834
    %v6845 = vmul.f32 %v6731, %v6834
    %v6846 = vmul.f32 %v6734, %v6834
    %v6847 = vmul.f32 %v6737, %v6834
    %v6848 = vmul.f32 %v6740, %v6834
    %v6849 = vmul.f32 %v6743, %v6834
    %v6850 = vmul.f32 %v6746, %v6834
    %v6851 = vmul.f32 %v6749, %v6834
    %v6852 = vmul.f32 %v6752, %v6834
    %v6853 = vmul.f32 %v6755, %v6834
    %v6854 = vmul.f32 %v6758, %v6834
    %v6855 = vmul.f32 %v6761, %v6834
    %v6856 = vmul.f32 %v6764, %v6834
    %v6857 = vmul.f32 %v6767, %v6834
    %v6858 = vmul.f32 %v6770, %v6834
    %v6859 = vmul.f32 %v6773, %v6834
    %v6860 = vmul.f32 %v6776, %v6834
    %v6861 = vmul.f32 %v6779, %v6834
    %v6862 = vmul.f32 %v6782, %v6834
    %v6863 = vmul.f32 %v6785, %v6834
    %v6864 = vmul.f32 %v6788, %v6834
    %v6865 = vmul.f32 %v6791, %v6834
    %v6866 = vmul.f32 %v6794, %v6834
    %v6867 = vmul.f32 %v6797, %v6834
    %v6868 = vmul.f32 %v6800, %v6834
    %v6869 = vmul.f32 %v6803, %v6834
    %v6870 = vmul.f32 %v6806, %v6834
    %v6871 = vmul.f32 %v6809, %v6834
    %v6872 = vmul.f32 %v6812, %v6834
    %v6873 = vmul.f32 %v6815, %v6834
    %v6874 = vmul.f32 %v6818, %v6834
    %v6875 = vmul.f32 %v6821, %v6834
    %v6876 = vmul.f32 %v6824, %v6834
    %v6877 = vmul.f32 %v6827, %v6834
    %v6878 = vmul.f32 %v6830, %v6834
    %v6879 = vld [vmem:[%s6] sm:$0x1]
    %v6881 = vperm.slane %v6879, 0
    %v6883 = vadd.f32 %v6836, %v6881
    %v6884 = vadd.f32 %v6837, %v6881
    %v6885 = vadd.f32 %v6838, %v6881
    %v6886 = vadd.f32 %v6839, %v6881
    %v6887 = vadd.f32 %v6840, %v6881
    %v6888 = vadd.f32 %v6841, %v6881
    %v6889 = vadd.f32 %v6842, %v6881
    %v6890 = vadd.f32 %v6843, %v6881
    %v6891 = vadd.f32 %v6844, %v6881
    %v6892 = vadd.f32 %v6845, %v6881
    %v6893 = vadd.f32 %v6846, %v6881
    %v6894 = vadd.f32 %v6847, %v6881
    %v6895 = vadd.f32 %v6848, %v6881
    %v6896 = vadd.f32 %v6849, %v6881
    %v6897 = vadd.f32 %v6850, %v6881
    %v6898 = vadd.f32 %v6851, %v6881
    %v6899 = vadd.f32 %v6852, %v6881
    %v6900 = vadd.f32 %v6853, %v6881
    %v6901 = vadd.f32 %v6854, %v6881
    %v6902 = vadd.f32 %v6855, %v6881
    %v6903 = vadd.f32 %v6856, %v6881
    %v6904 = vadd.f32 %v6857, %v6881
    %v6905 = vadd.f32 %v6858, %v6881
    %v6906 = vadd.f32 %v6859, %v6881
    %v6907 = vadd.f32 %v6860, %v6881
    %v6908 = vadd.f32 %v6861, %v6881
    %v6909 = vadd.f32 %v6862, %v6881
    %v6910 = vadd.f32 %v6863, %v6881
    %v6911 = vadd.f32 %v6864, %v6881
    %v6912 = vadd.f32 %v6865, %v6881
    %v6913 = vadd.f32 %v6866, %v6881
    %v6914 = vadd.f32 %v6867, %v6881
    %v6915 = vadd.f32 %v6868, %v6881
    %v6916 = vadd.f32 %v6869, %v6881
    %v6917 = vadd.f32 %v6870, %v6881
    %v6918 = vadd.f32 %v6871, %v6881
    %v6919 = vadd.f32 %v6872, %v6881
    %v6920 = vadd.f32 %v6873, %v6881
    %v6921 = vadd.f32 %v6874, %v6881
    %v6922 = vadd.f32 %v6875, %v6881
    %v6923 = vadd.f32 %v6876, %v6881
    %v6924 = vadd.f32 %v6877, %v6881
    %v6925 = vadd.f32 %v6878, %v6881
    %v6926 = vmax.f32 %v6883, 0.0
    %v6927 = vmax.f32 %v6884, 0.0
    %v6928 = vmax.f32 %v6885, 0.0
    %v6929 = vmax.f32 %v6886, 0.0
    %v6930 = vmax.f32 %v6887, 0.0
    %v6931 = vmax.f32 %v6888, 0.0
    %v6932 = vmax.f32 %v6889, 0.0
    %v6933 = vmax.f32 %v6890, 0.0
    %v6934 = vmax.f32 %v6891, 0.0
    %v6935 = vmax.f32 %v6892, 0.0
    %v6936 = vmax.f32 %v6893, 0.0
    %v6937 = vmax.f32 %v6894, 0.0
    %v6938 = vmax.f32 %v6895, 0.0
    %v6939 = vmax.f32 %v6896, 0.0
    %v6940 = vmax.f32 %v6897, 0.0
    %v6941 = vmax.f32 %v6898, 0.0
    %v6942 = vmax.f32 %v6899, 0.0
    %v6943 = vmax.f32 %v6900, 0.0
    %v6944 = vmax.f32 %v6901, 0.0
    %v6945 = vmax.f32 %v6902, 0.0
    %v6946 = vmax.f32 %v6903, 0.0
    %v6947 = vmax.f32 %v6904, 0.0
    %v6948 = vmax.f32 %v6905, 0.0
    %v6949 = vmax.f32 %v6906, 0.0
    %v6950 = vmax.f32 %v6907, 0.0
    %v6951 = vmax.f32 %v6908, 0.0
    %v6952 = vmax.f32 %v6909, 0.0
    %v6953 = vmax.f32 %v6910, 0.0
    %v6954 = vmax.f32 %v6911, 0.0
    %v6955 = vmax.f32 %v6912, 0.0
    %v6956 = vmax.f32 %v6913, 0.0
    %v6957 = vmax.f32 %v6914, 0.0
    %v6958 = vmax.f32 %v6915, 0.0
    %v6959 = vmax.f32 %v6916, 0.0
    %v6960 = vmax.f32 %v6917, 0.0
    %v6961 = vmax.f32 %v6918, 0.0
    %v6962 = vmax.f32 %v6919, 0.0
    %v6963 = vmax.f32 %v6920, 0.0
    %v6964 = vmax.f32 %v6921, 0.0
    %v6965 = vmax.f32 %v6922, 0.0
    %v6966 = vmax.f32 %v6923, 0.0
    %v6967 = vmax.f32 %v6924, 0.0
    %v6968 = vmax.f32 %v6925, 0.0
    %v7012 = vrot.slane %v6926, 1
    %v7013 = vrot.slane %v6926, 2
    %v7014 = vrot.slane %v6926, 3
    %v7015 = vrot.slane %v6926, 4
    %v7016 = vrot.slane %v6926, 5
    %v7017 = vrot.slane %v6926, 6
    %v7018 = vrot.slane %v6926, 7
    %v7019 = vrot.slane %v6927, 1
    %v7020 = vrot.slane %v6927, 2
    %v7021 = vrot.slane %v6927, 3
    %v7022 = vrot.slane %v6927, 4
    %v7023 = vrot.slane %v6927, 5
    %v7024 = vrot.slane %v6927, 6
    %v7025 = vrot.slane %v6927, 7
    %v7026 = vrot.slane %v6928, 1
    %v7027 = vrot.slane %v6928, 2
    %v7028 = vrot.slane %v6928, 3
    %v7029 = vrot.slane %v6928, 4
    %v7030 = vrot.slane %v6928, 5
    %v7031 = vrot.slane %v6928, 6
    %v7032 = vrot.slane %v6928, 7
    %v7033 = vrot.slane %v6929, 1
    %v7034 = vrot.slane %v6929, 2
    %v7035 = vrot.slane %v6929, 3
    %v7036 = vrot.slane %v6929, 4
    %v7037 = vrot.slane %v6929, 5
    %v7038 = vrot.slane %v6929, 6
    %v7039 = vrot.slane %v6929, 7
    %v7040 = vrot.slane %v6930, 1
    %v7041 = vrot.slane %v6930, 2
    %v7042 = vrot.slane %v6930, 3
    %v7043 = vrot.slane %v6930, 4
    %v7044 = vrot.slane %v6930, 5
    %v7045 = vrot.slane %v6930, 6
    %v7046 = vrot.slane %v6930, 7
    %v7047 = vrot.slane %v6931, 1
    %v7048 = vrot.slane %v6931, 2
    %v7049 = vrot.slane %v6931, 3
    %v7050 = vrot.slane %v6931, 4
    %v7051 = vrot.slane %v6931, 5
    %v7052 = vrot.slane %v6931, 6
    %v7053 = vrot.slane %v6931, 7
    %v7054 = vrot.slane %v6932, 1
    %v7055 = vrot.slane %v6932, 2
    %v7056 = vrot.slane %v6932, 3
    %v7057 = vrot.slane %v6932, 4
    %v7058 = vrot.slane %v6932, 5
    %v7059 = vrot.slane %v6932, 6
    %v7060 = vrot.slane %v6932, 7
    %v7061 = vrot.slane %v6933, 1
    %v7062 = vrot.slane %v6933, 2
    %v7063 = vrot.slane %v6933, 3
    %v7064 = vrot.slane %v6933, 4
    %v7065 = vrot.slane %v6933, 5
    %v7066 = vrot.slane %v6933, 6
    %v7067 = vrot.slane %v6933, 7
    %v7068 = vrot.slane %v6934, 1
    %v7069 = vrot.slane %v6934, 2
    %v7070 = vrot.slane %v6934, 3
    %v7071 = vrot.slane %v6934, 4
    %v7072 = vrot.slane %v6934, 5
    %v7073 = vrot.slane %v6934, 6
    %v7074 = vrot.slane %v6934, 7
    %v7075 = vrot.slane %v6935, 1
    %v7076 = vrot.slane %v6935, 2
    %v7077 = vrot.slane %v6935, 3
    %v7078 = vrot.slane %v6935, 4
    %v7079 = vrot.slane %v6935, 5
    %v7080 = vrot.slane %v6935, 6
    %v7081 = vrot.slane %v6935, 7
    %v7082 = vrot.slane %v6936, 1
    %v7083 = vrot.slane %v6936, 2
    %v7084 = vrot.slane %v6936, 3
    %v7085 = vrot.slane %v6936, 4
    %v7086 = vrot.slane %v6936, 5
    %v7087 = vrot.slane %v6936, 6
    %v7088 = vrot.slane %v6936, 7
    %v7089 = vrot.slane %v6937, 1
    %v7090 = vrot.slane %v6937, 2
    %v7091 = vrot.slane %v6937, 3
    %v7092 = vrot.slane %v6937, 4
    %v7093 = vrot.slane %v6937, 5
    %v7094 = vrot.slane %v6937, 6
    %v7095 = vrot.slane %v6937, 7
    %v7096 = vrot.slane %v6938, 1
    %v7097 = vrot.slane %v6938, 2
    %v7098 = vrot.slane %v6938, 3
    %v7099 = vrot.slane %v6938, 4
    %v7100 = vrot.slane %v6938, 5
    %v7101 = vrot.slane %v6938, 6
    %v7102 = vrot.slane %v6938, 7
    %v7103 = vrot.slane %v6939, 1
    %v7104 = vrot.slane %v6939, 2
    %v7105 = vrot.slane %v6939, 3
    %v7106 = vrot.slane %v6939, 4
    %v7107 = vrot.slane %v6939, 5
    %v7108 = vrot.slane %v6939, 6
    %v7109 = vrot.slane %v6939, 7
    %v7110 = vrot.slane %v6940, 1
    %v7111 = vrot.slane %v6940, 2
    %v7112 = vrot.slane %v6940, 3
    %v7113 = vrot.slane %v6940, 4
    %v7114 = vrot.slane %v6940, 5
    %v7115 = vrot.slane %v6940, 6
    %v7116 = vrot.slane %v6940, 7
    %v7117 = vrot.slane %v6941, 1
    %v7118 = vrot.slane %v6941, 2
    %v7119 = vrot.slane %v6941, 3
    %v7120 = vrot.slane %v6941, 4
    %v7121 = vrot.slane %v6941, 5
    %v7122 = vrot.slane %v6941, 6
    %v7123 = vrot.slane %v6941, 7
    %v7124 = vrot.slane %v6942, 1
    %v7125 = vrot.slane %v6942, 2
    %v7126 = vrot.slane %v6942, 3
    %v7127 = vrot.slane %v6942, 4
    %v7128 = vrot.slane %v6942, 5
    %v7129 = vrot.slane %v6942, 6
    %v7130 = vrot.slane %v6942, 7
    %v7131 = vrot.slane %v6943, 1
    %v7132 = vrot.slane %v6943, 2
    %v7133 = vrot.slane %v6943, 3
    %v7134 = vrot.slane %v6943, 4
    %v7135 = vrot.slane %v6943, 5
    %v7136 = vrot.slane %v6943, 6
    %v7137 = vrot.slane %v6943, 7
    %v7138 = vrot.slane %v6944, 1
    %v7139 = vrot.slane %v6944, 2
    %v7140 = vrot.slane %v6944, 3
    %v7141 = vrot.slane %v6944, 4
    %v7142 = vrot.slane %v6944, 5
    %v7143 = vrot.slane %v6944, 6
    %v7144 = vrot.slane %v6944, 7
    %v7145 = vrot.slane %v6945, 1
    %v7146 = vrot.slane %v6945, 2
    %v7147 = vrot.slane %v6945, 3
    %v7148 = vrot.slane %v6945, 4
    %v7149 = vrot.slane %v6945, 5
    %v7150 = vrot.slane %v6945, 6
    %v7151 = vrot.slane %v6945, 7
    %v7152 = vrot.slane %v6946, 1
    %v7153 = vrot.slane %v6946, 2
    %v7154 = vrot.slane %v6946, 3
    %v7155 = vrot.slane %v6946, 4
    %v7156 = vrot.slane %v6946, 5
    %v7157 = vrot.slane %v6946, 6
    %v7158 = vrot.slane %v6946, 7
    %v7159 = vrot.slane %v6947, 1
    %v7160 = vrot.slane %v6947, 2
    %v7161 = vrot.slane %v6947, 3
    %v7162 = vrot.slane %v6947, 4
    %v7163 = vrot.slane %v6947, 5
    %v7164 = vrot.slane %v6947, 6
    %v7165 = vrot.slane %v6947, 7
    %v7166 = vrot.slane %v6948, 1
    %v7167 = vrot.slane %v6948, 2
    %v7168 = vrot.slane %v6948, 3
    %v7169 = vrot.slane %v6948, 4
    %v7170 = vrot.slane %v6948, 5
    %v7171 = vrot.slane %v6948, 6
    %v7172 = vrot.slane %v6948, 7
    %v7173 = vrot.slane %v6949, 1
    %v7174 = vrot.slane %v6949, 2
    %v7175 = vrot.slane %v6949, 3
    %v7176 = vrot.slane %v6949, 4
    %v7177 = vrot.slane %v6949, 5
    %v7178 = vrot.slane %v6949, 6
    %v7179 = vrot.slane %v6949, 7
    %v7180 = vrot.slane %v6950, 1
    %v7181 = vrot.slane %v6950, 2
    %v7182 = vrot.slane %v6950, 3
    %v7183 = vrot.slane %v6950, 4
    %v7184 = vrot.slane %v6950, 5
    %v7185 = vrot.slane %v6950, 6
    %v7186 = vrot.slane %v6950, 7
    %v7187 = vrot.slane %v6951, 1
    %v7188 = vrot.slane %v6951, 2
    %v7189 = vrot.slane %v6951, 3
    %v7190 = vrot.slane %v6951, 4
    %v7191 = vrot.slane %v6951, 5
    %v7192 = vrot.slane %v6951, 6
    %v7193 = vrot.slane %v6951, 7
    %v7194 = vrot.slane %v6952, 1
    %v7195 = vrot.slane %v6952, 2
    %v7196 = vrot.slane %v6952, 3
    %v7197 = vrot.slane %v6952, 4
    %v7198 = vrot.slane %v6952, 5
    %v7199 = vrot.slane %v6952, 6
    %v7200 = vrot.slane %v6952, 7
    %v7201 = vrot.slane %v6953, 1
    %v7202 = vrot.slane %v6953, 2
    %v7203 = vrot.slane %v6953, 3
    %v7204 = vrot.slane %v6953, 4
    %v7205 = vrot.slane %v6953, 5
    %v7206 = vrot.slane %v6953, 6
    %v7207 = vrot.slane %v6953, 7
    %v7208 = vrot.slane %v6954, 1
    %v7209 = vrot.slane %v6954, 2
    %v7210 = vrot.slane %v6954, 3
    %v7211 = vrot.slane %v6954, 4
    %v7212 = vrot.slane %v6954, 5
    %v7213 = vrot.slane %v6954, 6
    %v7214 = vrot.slane %v6954, 7
    %v7215 = vrot.slane %v6955, 1
    %v7216 = vrot.slane %v6955, 2
    %v7217 = vrot.slane %v6955, 3
    %v7218 = vrot.slane %v6955, 4
    %v7219 = vrot.slane %v6955, 5
    %v7220 = vrot.slane %v6955, 6
    %v7221 = vrot.slane %v6955, 7
    %v7222 = vrot.slane %v6956, 1
    %v7223 = vrot.slane %v6956, 2
    %v7224 = vrot.slane %v6956, 3
    %v7225 = vrot.slane %v6956, 4
    %v7226 = vrot.slane %v6956, 5
    %v7227 = vrot.slane %v6956, 6
    %v7228 = vrot.slane %v6956, 7
    %v7229 = vrot.slane %v6957, 1
    %v7230 = vrot.slane %v6957, 2
    %v7231 = vrot.slane %v6957, 3
    %v7232 = vrot.slane %v6957, 4
    %v7233 = vrot.slane %v6957, 5
    %v7234 = vrot.slane %v6957, 6
    %v7235 = vrot.slane %v6957, 7
    %v7236 = vrot.slane %v6958, 1
    %v7237 = vrot.slane %v6958, 2
    %v7238 = vrot.slane %v6958, 3
    %v7239 = vrot.slane %v6958, 4
    %v7240 = vrot.slane %v6958, 5
    %v7241 = vrot.slane %v6958, 6
    %v7242 = vrot.slane %v6958, 7
    %v7243 = vrot.slane %v6959, 1
    %v7244 = vrot.slane %v6959, 2
    %v7245 = vrot.slane %v6959, 3
    %v7246 = vrot.slane %v6959, 4
    %v7247 = vrot.slane %v6959, 5
    %v7248 = vrot.slane %v6959, 6
    %v7249 = vrot.slane %v6959, 7
    %v7250 = vrot.slane %v6960, 1
    %v7251 = vrot.slane %v6960, 2
    %v7252 = vrot.slane %v6960, 3
    %v7253 = vrot.slane %v6960, 4
    %v7254 = vrot.slane %v6960, 5
    %v7255 = vrot.slane %v6960, 6
    %v7256 = vrot.slane %v6960, 7
    %v7257 = vrot.slane %v6961, 1
    %v7258 = vrot.slane %v6961, 2
    %v7259 = vrot.slane %v6961, 3
    %v7260 = vrot.slane %v6961, 4
    %v7261 = vrot.slane %v6961, 5
    %v7262 = vrot.slane %v6961, 6
    %v7263 = vrot.slane %v6961, 7
    %v7264 = vrot.slane %v6962, 1
    %v7265 = vrot.slane %v6962, 2
    %v7266 = vrot.slane %v6962, 3
    %v7267 = vrot.slane %v6962, 4
    %v7268 = vrot.slane %v6962, 5
    %v7269 = vrot.slane %v6962, 6
    %v7270 = vrot.slane %v6962, 7
    %v7271 = vrot.slane %v6963, 1
    %v7272 = vrot.slane %v6963, 2
    %v7273 = vrot.slane %v6963, 3
    %v7274 = vrot.slane %v6963, 4
    %v7275 = vrot.slane %v6963, 5
    %v7276 = vrot.slane %v6963, 6
    %v7277 = vrot.slane %v6963, 7
    %v7278 = vrot.slane %v6964, 1
    %v7279 = vrot.slane %v6964, 2
    %v7280 = vrot.slane %v6964, 3
    %v7281 = vrot.slane %v6964, 4
    %v7282 = vrot.slane %v6964, 5
    %v7283 = vrot.slane %v6964, 6
    %v7284 = vrot.slane %v6964, 7
    %v7285 = vrot.slane %v6965, 1
    %v7286 = vrot.slane %v6965, 2
    %v7287 = vrot.slane %v6965, 3
    %v7288 = vrot.slane %v6965, 4
    %v7289 = vrot.slane %v6965, 5
    %v7290 = vrot.slane %v6965, 6
    %v7291 = vrot.slane %v6965, 7
    %v7292 = vrot.slane %v6966, 1
    %v7293 = vrot.slane %v6966, 2
    %v7294 = vrot.slane %v6966, 3
    %v7295 = vrot.slane %v6966, 4
    %v7296 = vrot.slane %v6966, 5
    %v7297 = vrot.slane %v6966, 6
    %v7298 = vrot.slane %v6966, 7
    %v7299 = vrot.slane %v6967, 1
    %v7300 = vrot.slane %v6967, 2
    %v7301 = vrot.slane %v6967, 3
    %v7302 = vrot.slane %v6967, 4
    %v7303 = vrot.slane %v6967, 5
    %v7304 = vrot.slane %v6967, 6
    %v7305 = vrot.slane %v6967, 7
    %v7306 = vrot.slane %v6968, 1
    %v7602 = vmax.f32 %v6926, %v7012
    %v7603 = vmax.f32 %v7012, %v7013
    %v7604 = vmax.f32 %v7013, %v7014
    %v7605 = vmax.f32 %v7014, %v7015
    %v7606 = vmax.f32 %v7015, %v7016
    %v7607 = vmax.f32 %v7016, %v7017
    %v7608 = vmax.f32 %v7017, %v7018
    %v7609 = vmax.f32 %v7018, %v6927
    %v7610 = vmax.f32 %v6927, %v7019
    %v7611 = vmax.f32 %v7019, %v7020
    %v7612 = vmax.f32 %v7020, %v7021
    %v7613 = vmax.f32 %v7021, %v7022
    %v7614 = vmax.f32 %v7023, %v7024
    %v7615 = vmax.f32 %v7024, %v7025
    %v7616 = vmax.f32 %v7025, %v6928
    %v7617 = vmax.f32 %v6928, %v7026
    %v7618 = vmax.f32 %v7026, %v7027
    %v7619 = vmax.f32 %v7027, %v7028
    %v7620 = vmax.f32 %v7028, %v7029
    %v7621 = vmax.f32 %v7029, %v7030
    %v7622 = vmax.f32 %v7030, %v7031
    %v7623 = vmax.f32 %v7031, %v7032
    %v7624 = vmax.f32 %v7032, %v6929
    %v7625 = vmax.f32 %v6929, %v7033
    %v7626 = vmax.f32 %v7034, %v7035
    %v7627 = vmax.f32 %v7035, %v7036
    %v7628 = vmax.f32 %v7036, %v7037
    %v7629 = vmax.f32 %v7037, %v7038
    %v7630 = vmax.f32 %v7038, %v7039
    %v7631 = vmax.f32 %v7039, %v6930
    %v7632 = vmax.f32 %v6930, %v7040
    %v7633 = vmax.f32 %v7040, %v7041
    %v7634 = vmax.f32 %v7041, %v7042
    %v7635 = vmax.f32 %v7042, %v7043
    %v7636 = vmax.f32 %v7043, %v7044
    %v7637 = vmax.f32 %v7044, %v7045
    %v7638 = vmax.f32 %v7046, %v6931
    %v7639 = vmax.f32 %v6931, %v7047
    %v7640 = vmax.f32 %v7047, %v7048
    %v7641 = vmax.f32 %v7048, %v7049
    %v7642 = vmax.f32 %v7049, %v7050
    %v7643 = vmax.f32 %v7050, %v7051
    %v7644 = vmax.f32 %v7051, %v7052
    %v7645 = vmax.f32 %v7052, %v7053
    %v7646 = vmax.f32 %v7053, %v6932
    %v7647 = vmax.f32 %v6932, %v7054
    %v7648 = vmax.f32 %v7054, %v7055
    %v7649 = vmax.f32 %v7055, %v7056
    %v7650 = vmax.f32 %v7057, %v7058
    %v7651 = vmax.f32 %v7058, %v7059
    %v7652 = vmax.f32 %v7059, %v7060
    %v7653 = vmax.f32 %v7060, %v6933
    %v7654 = vmax.f32 %v6933, %v7061
    %v7655 = vmax.f32 %v7061, %v7062
    %v7656 = vmax.f32 %v7062, %v7063
    %v7657 = vmax.f32 %v7063, %v7064
    %v7658 = vmax.f32 %v7064, %v7065
    %v7659 = vmax.f32 %v7065, %v7066
    %v7660 = vmax.f32 %v7066, %v7067
    %v7661 = vmax.f32 %v7067, %v6934
    %v7662 = vmax.f32 %v7068, %v7069
    %v7663 = vmax.f32 %v7069, %v7070
    %v7664 = vmax.f32 %v7070, %v7071
    %v7665 = vmax.f32 %v7071, %v7072
    %v7666 = vmax.f32 %v7072, %v7073
    %v7667 = vmax.f32 %v7073, %v7074
    %v7668 = vmax.f32 %v7074, %v6935
    %v7669 = vmax.f32 %v6935, %v7075
    %v7670 = vmax.f32 %v7075, %v7076
    %v7671 = vmax.f32 %v7076, %v7077
    %v7672 = vmax.f32 %v7077, %v7078
    %v7673 = vmax.f32 %v7078, %v7079
    %v7674 = vmax.f32 %v7080, %v7081
    %v7675 = vmax.f32 %v7081, %v6936
    %v7676 = vmax.f32 %v6936, %v7082
    %v7677 = vmax.f32 %v7082, %v7083
    %v7678 = vmax.f32 %v7083, %v7084
    %v7679 = vmax.f32 %v7084, %v7085
    %v7680 = vmax.f32 %v7085, %v7086
    %v7681 = vmax.f32 %v7086, %v7087
    %v7682 = vmax.f32 %v7087, %v7088
    %v7683 = vmax.f32 %v7088, %v6937
    %v7684 = vmax.f32 %v6937, %v7089
    %v7685 = vmax.f32 %v7089, %v7090
    %v7686 = vmax.f32 %v7091, %v7092
    %v7687 = vmax.f32 %v7092, %v7093
    %v7688 = vmax.f32 %v7093, %v7094
    %v7689 = vmax.f32 %v7094, %v7095
    %v7690 = vmax.f32 %v7095, %v6938
    %v7691 = vmax.f32 %v6938, %v7096
    %v7692 = vmax.f32 %v7096, %v7097
    %v7693 = vmax.f32 %v7097, %v7098
    %v7694 = vmax.f32 %v7098, %v7099
    %v7695 = vmax.f32 %v7099, %v7100
    %v7696 = vmax.f32 %v7100, %v7101
    %v7697 = vmax.f32 %v7101, %v7102
    %v7698 = vmax.f32 %v6939, %v7103
    %v7699 = vmax.f32 %v7103, %v7104
    %v7700 = vmax.f32 %v7104, %v7105
    %v7701 = vmax.f32 %v7105, %v7106
    %v7702 = vmax.f32 %v7106, %v7107
    %v7703 = vmax.f32 %v7107, %v7108
    %v7704 = vmax.f32 %v7108, %v7109
    %v7705 = vmax.f32 %v7109, %v6940
    %v7706 = vmax.f32 %v6940, %v7110
    %v7707 = vmax.f32 %v7110, %v7111
    %v7708 = vmax.f32 %v7111, %v7112
    %v7709 = vmax.f32 %v7112, %v7113
    %v7710 = vmax.f32 %v7114, %v7115
    %v7711 = vmax.f32 %v7115, %v7116
    %v7712 = vmax.f32 %v7116, %v6941
    %v7713 = vmax.f32 %v6941, %v7117
    %v7714 = vmax.f32 %v7117, %v7118
    %v7715 = vmax.f32 %v7118, %v7119
    %v7716 = vmax.f32 %v7119, %v7120
    %v7717 = vmax.f32 %v7120, %v7121
    %v7718 = vmax.f32 %v7121, %v7122
    %v7719 = vmax.f32 %v7122, %v7123
    %v7720 = vmax.f32 %v7123, %v6942
    %v7721 = vmax.f32 %v6942, %v7124
    %v7722 = vmax.f32 %v7125, %v7126
    %v7723 = vmax.f32 %v7126, %v7127
    %v7724 = vmax.f32 %v7127, %v7128
    %v7725 = vmax.f32 %v7128, %v7129
    %v7726 = vmax.f32 %v7129, %v7130
    %v7727 = vmax.f32 %v7130, %v6943
    %v7728 = vmax.f32 %v6943, %v7131
    %v7729 = vmax.f32 %v7131, %v7132
    %v7730 = vmax.f32 %v7132, %v7133
    %v7731 = vmax.f32 %v7133, %v7134
    %v7732 = vmax.f32 %v7134, %v7135
    %v7733 = vmax.f32 %v7135, %v7136
    %v7734 = vmax.f32 %v7137, %v6944
    %v7735 = vmax.f32 %v6944, %v7138
    %v7736 = vmax.f32 %v7138, %v7139
    %v7737 = vmax.f32 %v7139, %v7140
    %v7738 = vmax.f32 %v7140, %v7141
    %v7739 = vmax.f32 %v7141, %v7142
    %v7740 = vmax.f32 %v7142, %v7143
    %v7741 = vmax.f32 %v7143, %v7144
    %v7742 = vmax.f32 %v7144, %v6945
    %v7743 = vmax.f32 %v6945, %v7145
    %v7744 = vmax.f32 %v7145, %v7146
    %v7745 = vmax.f32 %v7146, %v7147
    %v7746 = vmax.f32 %v7159, %v7160
    %v7747 = vmax.f32 %v7160, %v7161
    %v7748 = vmax.f32 %v7161, %v7162
    %v7749 = vmax.f32 %v7162, %v7163
    %v7750 = vmax.f32 %v7163, %v7164
    %v7751 = vmax.f32 %v7164, %v7165
    %v7752 = vmax.f32 %v7165, %v6948
    %v7753 = vmax.f32 %v6948, %v7166
    %v7754 = vmax.f32 %v7166, %v7167
    %v7755 = vmax.f32 %v7167, %v7168
    %v7756 = vmax.f32 %v7168, %v7169
    %v7757 = vmax.f32 %v7169, %v7170
    %v7758 = vmax.f32 %v7171, %v7172
    %v7759 = vmax.f32 %v7172, %v6949
    %v7760 = vmax.f32 %v6949, %v7173
    %v7761 = vmax.f32 %v7173, %v7174
    %v7762 = vmax.f32 %v7174, %v7175
    %v7763 = vmax.f32 %v7175, %v7176
    %v7764 = vmax.f32 %v7176, %v7177
    %v7765 = vmax.f32 %v7177, %v7178
    %v7766 = vmax.f32 %v7178, %v7179
    %v7767 = vmax.f32 %v7179, %v6950
    %v7768 = vmax.f32 %v6950, %v7180
    %v7769 = vmax.f32 %v7180, %v7181
    %v7770 = vmax.f32 %v7182, %v7183
    %v7771 = vmax.f32 %v7183, %v7184
    %v7772 = vmax.f32 %v7184, %v7185
    %v7773 = vmax.f32 %v7185, %v7186
    %v7774 = vmax.f32 %v7186, %v6951
    %v7775 = vmax.f32 %v6951, %v7187
    %v7776 = vmax.f32 %v7187, %v7188
    %v7777 = vmax.f32 %v7188, %v7189
    %v7778 = vmax.f32 %v7189, %v7190
    %v7779 = vmax.f32 %v7190, %v7191
    %v7780 = vmax.f32 %v7191, %v7192
    %v7781 = vmax.f32 %v7192, %v7193
    %v7782 = vmax.f32 %v6952, %v7194
    %v7783 = vmax.f32 %v7194, %v7195
    %v7784 = vmax.f32 %v7195, %v7196
    %v7785 = vmax.f32 %v7196, %v7197
    %v7786 = vmax.f32 %v7197, %v7198
    %v7787 = vmax.f32 %v7198, %v7199
    %v7788 = vmax.f32 %v7199, %v7200
    %v7789 = vmax.f32 %v7200, %v6953
    %v7790 = vmax.f32 %v6953, %v7201
    %v7791 = vmax.f32 %v7201, %v7202
    %v7792 = vmax.f32 %v7202, %v7203
    %v7793 = vmax.f32 %v7203, %v7204
    %v7794 = vmax.f32 %v7205, %v7206
    %v7795 = vmax.f32 %v7206, %v7207
    %v7796 = vmax.f32 %v7207, %v6954
    %v7797 = vmax.f32 %v6954, %v7208
    %v7798 = vmax.f32 %v7208, %v7209
    %v7799 = vmax.f32 %v7209, %v7210
    %v7800 = vmax.f32 %v7210, %v7211
    %v7801 = vmax.f32 %v7211, %v7212
    %v7802 = vmax.f32 %v7212, %v7213
    %v7803 = vmax.f32 %v7213, %v7214
    %v7804 = vmax.f32 %v7214, %v6955
    %v7805 = vmax.f32 %v6955, %v7215
    %v7806 = vmax.f32 %v7216, %v7217
    %v7807 = vmax.f32 %v7217, %v7218
    %v7808 = vmax.f32 %v7218, %v7219
    %v7809 = vmax.f32 %v7219, %v7220
    %v7810 = vmax.f32 %v7220, %v7221
    %v7811 = vmax.f32 %v7221, %v6956
    %v7812 = vmax.f32 %v6956, %v7222
    %v7813 = vmax.f32 %v7222, %v7223
    %v7814 = vmax.f32 %v7223, %v7224
    %v7815 = vmax.f32 %v7224, %v7225
    %v7816 = vmax.f32 %v7225, %v7226
    %v7817 = vmax.f32 %v7226, %v7227
    %v7818 = vmax.f32 %v7228, %v6957
    %v7819 = vmax.f32 %v6957, %v7229
    %v7820 = vmax.f32 %v7229, %v7230
    %v7821 = vmax.f32 %v7230, %v7231
    %v7822 = vmax.f32 %v7231, %v7232
    %v7823 = vmax.f32 %v7232, %v7233
    %v7824 = vmax.f32 %v7233, %v7234
    %v7825 = vmax.f32 %v7234, %v7235
    %v7826 = vmax.f32 %v7235, %v6958
    %v7827 = vmax.f32 %v6958, %v7236
    %v7828 = vmax.f32 %v7236, %v7237
    %v7829 = vmax.f32 %v7237, %v7238
    %v7830 = vmax.f32 %v7239, %v7240
    %v7831 = vmax.f32 %v7240, %v7241
    %v7832 = vmax.f32 %v7241, %v7242
    %v7833 = vmax.f32 %v7242, %v6959
    %v7834 = vmax.f32 %v6959, %v7243
    %v7835 = vmax.f32 %v7243, %v7244
    %v7836 = vmax.f32 %v7244, %v7245
    %v7837 = vmax.f32 %v7245, %v7246
    %v7838 = vmax.f32 %v7246, %v7247
    %v7839 = vmax.f32 %v7247, %v7248
    %v7840 = vmax.f32 %v7248, %v7249
    %v7841 = vmax.f32 %v7249, %v6960
    %v7842 = vmax.f32 %v7250, %v7251
    %v7843 = vmax.f32 %v7251, %v7252
    %v7844 = vmax.f32 %v7252, %v7253
    %v7845 = vmax.f32 %v7253, %v7254
    %v7846 = vmax.f32 %v7254, %v7255
    %v7847 = vmax.f32 %v7255, %v7256
    %v7848 = vmax.f32 %v7256, %v6961
    %v7849 = vmax.f32 %v6961, %v7257
    %v7850 = vmax.f32 %v7257, %v7258
    %v7851 = vmax.f32 %v7258, %v7259
    %v7852 = vmax.f32 %v7259, %v7260
    %v7853 = vmax.f32 %v7260, %v7261
    %v7854 = vmax.f32 %v7262, %v7263
    %v7855 = vmax.f32 %v7263, %v6962
    %v7856 = vmax.f32 %v6962, %v7264
    %v7857 = vmax.f32 %v7264, %v7265
    %v7858 = vmax.f32 %v7265, %v7266
    %v7859 = vmax.f32 %v7266, %v7267
    %v7860 = vmax.f32 %v7267, %v7268
    %v7861 = vmax.f32 %v7268, %v7269
    %v7862 = vmax.f32 %v7269, %v7270
    %v7863 = vmax.f32 %v7270, %v6963
    %v7864 = vmax.f32 %v6963, %v7271
    %v7865 = vmax.f32 %v7271, %v7272
    %v7866 = vmax.f32 %v7273, %v7274
    %v7867 = vmax.f32 %v7274, %v7275
    %v7868 = vmax.f32 %v7275, %v7276
    %v7869 = vmax.f32 %v7276, %v7277
    %v7870 = vmax.f32 %v7277, %v6964
    %v7871 = vmax.f32 %v6964, %v7278
    %v7872 = vmax.f32 %v7278, %v7279
    %v7873 = vmax.f32 %v7279, %v7280
    %v7874 = vmax.f32 %v7280, %v7281
    %v7875 = vmax.f32 %v7281, %v7282
    %v7876 = vmax.f32 %v7282, %v7283
    %v7877 = vmax.f32 %v7283, %v7284
    %v7878 = vmax.f32 %v6965, %v7285
    %v7879 = vmax.f32 %v7285, %v7286
    %v7880 = vmax.f32 %v7286, %v7287
    %v7881 = vmax.f32 %v7287, %v7288
    %v7882 = vmax.f32 %v7288, %v7289
    %v7883 = vmax.f32 %v7289, %v7290
    %v7884 = vmax.f32 %v7290, %v7291
    %v7885 = vmax.f32 %v7291, %v6966
    %v7886 = vmax.f32 %v6966, %v7292
    %v7887 = vmax.f32 %v7292, %v7293
    %v7888 = vmax.f32 %v7293, %v7294
    %v7889 = vmax.f32 %v7294, %v7295
    %v7890 = vmax.f32 %v7148, %v7149
    %v7891 = vmax.f32 %v7149, %v7150
    %v7892 = vmax.f32 %v7150, %v7151
    %v7893 = vmax.f32 %v7151, %v6946
    %v7894 = vmax.f32 %v6946, %v7152
    %v7895 = vmax.f32 %v7152, %v7153
    %v7896 = vmax.f32 %v7153, %v7154
    %v7897 = vmax.f32 %v7154, %v7155
    %v7898 = vmax.f32 %v7155, %v7156
    %v7899 = vmax.f32 %v7156, %v7157
    %v7900 = vmax.f32 %v7157, %v7158
    %v7901 = vmax.f32 %v7158, %v6947
    %v7902 = vmax.f32 %v7296, %v7297
    %v7903 = vmax.f32 %v7297, %v7298
    %v7904 = vmax.f32 %v7298, %v6967
    %v7905 = vmax.f32 %v6967, %v7299
    %v7906 = vmax.f32 %v7299, %v7300
    %v7907 = vmax.f32 %v7300, %v7301
    %v7908 = vmax.f32 %v7301, %v7302
    %v7909 = vmax.f32 %v7302, %v7303
    %v7910 = vmax.f32 %v7303, %v7304
    %v7911 = vmax.f32 %v7304, %v7305
    %v7912 = vmax.f32 %v7305, %v6968
    %v7913 = vmax.f32 %v6968, %v7306
    %v7914 = vmax.f32 %v7602, %v7614
    %v7915 = vmax.f32 %v7603, %v7615
    %v7916 = vmax.f32 %v7604, %v7616
    %v7917 = vmax.f32 %v7605, %v7617
    %v7918 = vmax.f32 %v7606, %v7618
    %v7919 = vmax.f32 %v7607, %v7619
    %v7920 = vmax.f32 %v7608, %v7620
    %v7921 = vmax.f32 %v7609, %v7621
    %v7922 = vmax.f32 %v7610, %v7622
    %v7923 = vmax.f32 %v7611, %v7623
    %v7924 = vmax.f32 %v7612, %v7624
    %v7925 = vmax.f32 %v7613, %v7625
    %v7926 = vmax.f32 %v7614, %v7626
    %v7927 = vmax.f32 %v7615, %v7627
    %v7928 = vmax.f32 %v7616, %v7628
    %v7929 = vmax.f32 %v7617, %v7629
    %v7930 = vmax.f32 %v7618, %v7630
    %v7931 = vmax.f32 %v7619, %v7631
    %v7932 = vmax.f32 %v7620, %v7632
    %v7933 = vmax.f32 %v7621, %v7633
    %v7934 = vmax.f32 %v7622, %v7634
    %v7935 = vmax.f32 %v7623, %v7635
    %v7936 = vmax.f32 %v7624, %v7636
    %v7937 = vmax.f32 %v7625, %v7637
    %v7938 = vmax.f32 %v7626, %v7638
    %v7939 = vmax.f32 %v7627, %v7639
    %v7940 = vmax.f32 %v7628, %v7640
    %v7941 = vmax.f32 %v7629, %v7641
    %v7942 = vmax.f32 %v7630, %v7642
    %v7943 = vmax.f32 %v7631, %v7643
    %v7944 = vmax.f32 %v7632, %v7644
    %v7945 = vmax.f32 %v7633, %v7645
    %v7946 = vmax.f32 %v7634, %v7646
    %v7947 = vmax.f32 %v7635, %v7647
    %v7948 = vmax.f32 %v7636, %v7648
    %v7949 = vmax.f32 %v7637, %v7649
    %v7950 = vmax.f32 %v7638, %v7650
    %v7951 = vmax.f32 %v7639, %v7651
    %v7952 = vmax.f32 %v7640, %v7652
    %v7953 = vmax.f32 %v7641, %v7653
    %v7954 = vmax.f32 %v7642, %v7654
    %v7955 = vmax.f32 %v7643, %v7655
    %v7956 = vmax.f32 %v7644, %v7656
    %v7957 = vmax.f32 %v7645, %v7657
    %v7958 = vmax.f32 %v7646, %v7658
    %v7959 = vmax.f32 %v7647, %v7659
    %v7960 = vmax.f32 %v7648, %v7660
    %v7961 = vmax.f32 %v7649, %v7661
    %v7962 = vmax.f32 %v7650, %v7662
    %v7963 = vmax.f32 %v7651, %v7663
    %v7964 = vmax.f32 %v7652, %v7664
    %v7965 = vmax.f32 %v7653, %v7665
    %v7966 = vmax.f32 %v7654, %v7666
    %v7967 = vmax.f32 %v7655, %v7667
    %v7968 = vmax.f32 %v7656, %v7668
    %v7969 = vmax.f32 %v7657, %v7669
    %v7970 = vmax.f32 %v7658, %v7670
    %v7971 = vmax.f32 %v7659, %v7671
    %v7972 = vmax.f32 %v7660, %v7672
    %v7973 = vmax.f32 %v7661, %v7673
    %v7974 = vmax.f32 %v7662, %v7674
    %v7975 = vmax.f32 %v7663, %v7675
    %v7976 = vmax.f32 %v7664, %v7676
    %v7977 = vmax.f32 %v7665, %v7677
    %v7978 = vmax.f32 %v7666, %v7678
    %v7979 = vmax.f32 %v7667, %v7679
    %v7980 = vmax.f32 %v7668, %v7680
    %v7981 = vmax.f32 %v7669, %v7681
    %v7982 = vmax.f32 %v7670, %v7682
    %v7983 = vmax.f32 %v7671, %v7683
    %v7984 = vmax.f32 %v7672, %v7684
    %v7985 = vmax.f32 %v7673, %v7685
    %v7986 = vmax.f32 %v7674, %v7686
    %v7987 = vmax.f32 %v7675, %v7687
    %v7988 = vmax.f32 %v7676, %v7688
    %v7989 = vmax.f32 %v7677, %v7689
    %v7990 = vmax.f32 %v7678, %v7690
    %v7991 = vmax.f32 %v7679, %v7691
    %v7992 = vmax.f32 %v7680, %v7692
    %v7993 = vmax.f32 %v7681, %v7693
    %v7994 = vmax.f32 %v7682, %v7694
    %v7995 = vmax.f32 %v7683, %v7695
    %v7996 = vmax.f32 %v7684, %v7696
    %v7997 = vmax.f32 %v7685, %v7697
    %v7998 = vmax.f32 %v7686, %v7698
    %v7999 = vmax.f32 %v7687, %v7699
    %v8000 = vmax.f32 %v7688, %v7700
    %v8001 = vmax.f32 %v7689, %v7701
    %v8002 = vmax.f32 %v7690, %v7702
    %v8003 = vmax.f32 %v7691, %v7703
    %v8004 = vmax.f32 %v7692, %v7704
    %v8005 = vmax.f32 %v7693, %v7705
    %v8006 = vmax.f32 %v7694, %v7706
    %v8007 = vmax.f32 %v7695, %v7707
    %v8008 = vmax.f32 %v7696, %v7708
    %v8009 = vmax.f32 %v7697, %v7709
    %v8010 = vmax.f32 %v7698, %v7710
    %v8011 = vmax.f32 %v7699, %v7711
    %v8012 = vmax.f32 %v7700, %v7712
    %v8013 = vmax.f32 %v7701, %v7713
    %v8014 = vmax.f32 %v7702, %v7714
    %v8015 = vmax.f32 %v7703, %v7715
    %v8016 = vmax.f32 %v7704, %v7716
    %v8017 = vmax.f32 %v7705, %v7717
    %v8018 = vmax.f32 %v7706, %v7718
    %v8019 = vmax.f32 %v7707, %v7719
    %v8020 = vmax.f32 %v7708, %v7720
    %v8021 = vmax.f32 %v7709, %v7721
    %v8022 = vmax.f32 %v7710, %v7722
    %v8023 = vmax.f32 %v7711, %v7723
    %v8024 = vmax.f32 %v7712, %v7724
    %v8025 = vmax.f32 %v7713, %v7725
    %v8026 = vmax.f32 %v7714, %v7726
    %v8027 = vmax.f32 %v7715, %v7727
    %v8028 = vmax.f32 %v7716, %v7728
    %v8029 = vmax.f32 %v7717, %v7729
    %v8030 = vmax.f32 %v7718, %v7730
    %v8031 = vmax.f32 %v7719, %v7731
    %v8032 = vmax.f32 %v7720, %v7732
    %v8033 = vmax.f32 %v7721, %v7733
    %v8034 = vmax.f32 %v7722, %v7734
    %v8035 = vmax.f32 %v7723, %v7735
    %v8036 = vmax.f32 %v7724, %v7736
    %v8037 = vmax.f32 %v7725, %v7737
    %v8038 = vmax.f32 %v7726, %v7738
    %v8039 = vmax.f32 %v7727, %v7739
    %v8040 = vmax.f32 %v7728, %v7740
    %v8041 = vmax.f32 %v7729, %v7741
    %v8042 = vmax.f32 %v7730, %v7742
    %v8043 = vmax.f32 %v7731, %v7743
    %v8044 = vmax.f32 %v7732, %v7744
    %v8045 = vmax.f32 %v7733, %v7745
    %v8046 = vmax.f32 %v7734, %v7890
    %v8047 = vmax.f32 %v7735, %v7891
    %v8048 = vmax.f32 %v7736, %v7892
    %v8049 = vmax.f32 %v7737, %v7893
    %v8050 = vmax.f32 %v7738, %v7894
    %v8051 = vmax.f32 %v7739, %v7895
    %v8052 = vmax.f32 %v7740, %v7896
    %v8053 = vmax.f32 %v7741, %v7897
    %v8054 = vmax.f32 %v7742, %v7898
    %v8055 = vmax.f32 %v7743, %v7899
    %v8056 = vmax.f32 %v7744, %v7900
    %v8057 = vmax.f32 %v7745, %v7901
    %v8058 = vmax.f32 %v7746, %v7758
    %v8059 = vmax.f32 %v7747, %v7759
    %v8060 = vmax.f32 %v7748, %v7760
    %v8061 = vmax.f32 %v7749, %v7761
    %v8062 = vmax.f32 %v7750, %v7762
    %v8063 = vmax.f32 %v7751, %v7763
    %v8064 = vmax.f32 %v7752, %v7764
    %v8065 = vmax.f32 %v7753, %v7765
    %v8066 = vmax.f32 %v7754, %v7766
    %v8067 = vmax.f32 %v7755, %v7767
    %v8068 = vmax.f32 %v7756, %v7768
    %v8069 = vmax.f32 %v7757, %v7769
    %v8070 = vmax.f32 %v7758, %v7770
    %v8071 = vmax.f32 %v7759, %v7771
    %v8072 = vmax.f32 %v7760, %v7772
    %v8073 = vmax.f32 %v7761, %v7773
    %v8074 = vmax.f32 %v7762, %v7774
    %v8075 = vmax.f32 %v7763, %v7775
    %v8076 = vmax.f32 %v7764, %v7776
    %v8077 = vmax.f32 %v7765, %v7777
    %v8078 = vmax.f32 %v7766, %v7778
    %v8079 = vmax.f32 %v7767, %v7779
    %v8080 = vmax.f32 %v7768, %v7780
    %v8081 = vmax.f32 %v7769, %v7781
    %v8082 = vmax.f32 %v7770, %v7782
    %v8083 = vmax.f32 %v7771, %v7783
    %v8084 = vmax.f32 %v7772, %v7784
    %v8085 = vmax.f32 %v7773, %v7785
    %v8086 = vmax.f32 %v7774, %v7786
    %v8087 = vmax.f32 %v7775, %v7787
    %v8088 = vmax.f32 %v7776, %v7788
    %v8089 = vmax.f32 %v7777, %v7789
    %v8090 = vmax.f32 %v7778, %v7790
    %v8091 = vmax.f32 %v7779, %v7791
    %v8092 = vmax.f32 %v7780, %v7792
    %v8093 = vmax.f32 %v7781, %v7793
    %v8094 = vmax.f32 %v7782, %v7794
    %v8095 = vmax.f32 %v7783, %v7795
    %v8096 = vmax.f32 %v7784, %v7796
    %v8097 = vmax.f32 %v7785, %v7797
    %v8098 = vmax.f32 %v7786, %v7798
    %v8099 = vmax.f32 %v7787, %v7799
    %v8100 = vmax.f32 %v7788, %v7800
    %v8101 = vmax.f32 %v7789, %v7801
    %v8102 = vmax.f32 %v7790, %v7802
    %v8103 = vmax.f32 %v7791, %v7803
    %v8104 = vmax.f32 %v7792, %v7804
    %v8105 = vmax.f32 %v7793, %v7805
    %v8106 = vmax.f32 %v7794, %v7806
    %v8107 = vmax.f32 %v7795, %v7807
    %v8108 = vmax.f32 %v7796, %v7808
    %v8109 = vmax.f32 %v7797, %v7809
    %v8110 = vmax.f32 %v7798, %v7810
    %v8111 = vmax.f32 %v7799, %v7811
    %v8112 = vmax.f32 %v7800, %v7812
    %v8113 = vmax.f32 %v7801, %v7813
    %v8114 = vmax.f32 %v7802, %v7814
    %v8115 = vmax.f32 %v7803, %v7815
    %v8116 = vmax.f32 %v7804, %v7816
    %v8117 = vmax.f32 %v7805, %v7817
    %v8118 = vmax.f32 %v7806, %v7818
    %v8119 = vmax.f32 %v7807, %v7819
    %v8120 = vmax.f32 %v7808, %v7820
    %v8121 = vmax.f32 %v7809, %v7821
    %v8122 = vmax.f32 %v7810, %v7822
    %v8123 = vmax.f32 %v7811, %v7823
    %v8124 = vmax.f32 %v7812, %v7824
    %v8125 = vmax.f32 %v7813, %v7825
    %v8126 = vmax.f32 %v7814, %v7826
    %v8127 = vmax.f32 %v7815, %v7827
    %v8128 = vmax.f32 %v7816, %v7828
    %v8129 = vmax.f32 %v7817, %v7829
    %v8130 = vmax.f32 %v7818, %v7830
    %v8131 = vmax.f32 %v7819, %v7831
    %v8132 = vmax.f32 %v7820, %v7832
    %v8133 = vmax.f32 %v7821, %v7833
    %v8134 = vmax.f32 %v7822, %v7834
    %v8135 = vmax.f32 %v7823, %v7835
    %v8136 = vmax.f32 %v7824, %v7836
    %v8137 = vmax.f32 %v7825, %v7837
    %v8138 = vmax.f32 %v7826, %v7838
    %v8139 = vmax.f32 %v7827, %v7839
    %v8140 = vmax.f32 %v7828, %v7840
    %v8141 = vmax.f32 %v7829, %v7841
    %v8142 = vmax.f32 %v7830, %v7842
    %v8143 = vmax.f32 %v7831, %v7843
    %v8144 = vmax.f32 %v7832, %v7844
    %v8145 = vmax.f32 %v7833, %v7845
    %v8146 = vmax.f32 %v7834, %v7846
    %v8147 = vmax.f32 %v7835, %v7847
    %v8148 = vmax.f32 %v7836, %v7848
    %v8149 = vmax.f32 %v7837, %v7849
    %v8150 = vmax.f32 %v7838, %v7850
    %v8151 = vmax.f32 %v7839, %v7851
    %v8152 = vmax.f32 %v7840, %v7852
    %v8153 = vmax.f32 %v7841, %v7853
    %v8154 = vmax.f32 %v7842, %v7854
    %v8155 = vmax.f32 %v7843, %v7855
    %v8156 = vmax.f32 %v7844, %v7856
    %v8157 = vmax.f32 %v7845, %v7857
    %v8158 = vmax.f32 %v7846, %v7858
    %v8159 = vmax.f32 %v7847, %v7859
    %v8160 = vmax.f32 %v7848, %v7860
    %v8161 = vmax.f32 %v7849, %v7861
    %v8162 = vmax.f32 %v7850, %v7862
    %v8163 = vmax.f32 %v7851, %v7863
    %v8164 = vmax.f32 %v7852, %v7864
    %v8165 = vmax.f32 %v7853, %v7865
    %v8166 = vmax.f32 %v7854, %v7866
    %v8167 = vmax.f32 %v7855, %v7867
    %v8168 = vmax.f32 %v7856, %v7868
    %v8169 = vmax.f32 %v7857, %v7869
    %v8170 = vmax.f32 %v7858, %v7870
    %v8171 = vmax.f32 %v7859, %v7871
    %v8172 = vmax.f32 %v7860, %v7872
    %v8173 = vmax.f32 %v7861, %v7873
    %v8174 = vmax.f32 %v7862, %v7874
    %v8175 = vmax.f32 %v7863, %v7875
    %v8176 = vmax.f32 %v7864, %v7876
    %v8177 = vmax.f32 %v7865, %v7877
    %v8178 = vmax.f32 %v7866, %v7878
    %v8179 = vmax.f32 %v7867, %v7879
    %v8180 = vmax.f32 %v7868, %v7880
    %v8181 = vmax.f32 %v7869, %v7881
    %v8182 = vmax.f32 %v7870, %v7882
    %v8183 = vmax.f32 %v7871, %v7883
    %v8184 = vmax.f32 %v7872, %v7884
    %v8185 = vmax.f32 %v7873, %v7885
    %v8186 = vmax.f32 %v7874, %v7886
    %v8187 = vmax.f32 %v7875, %v7887
    %v8188 = vmax.f32 %v7876, %v7888
    %v8189 = vmax.f32 %v7877, %v7889
    %v8190 = vmax.f32 %v7878, %v7902
    %v8191 = vmax.f32 %v7879, %v7903
    %v8192 = vmax.f32 %v7880, %v7904
    %v8193 = vmax.f32 %v7881, %v7905
    %v8194 = vmax.f32 %v7882, %v7906
    %v8195 = vmax.f32 %v7883, %v7907
    %v8196 = vmax.f32 %v7884, %v7908
    %v8197 = vmax.f32 %v7885, %v7909
    %v8198 = vmax.f32 %v7886, %v7910
    %v8199 = vmax.f32 %v7887, %v7911
    %v8200 = vmax.f32 %v7888, %v7912
    %v8201 = vmax.f32 %v7889, %v7913
    %8444 = vst [vmem:[#allocation1] ss:$9 sm:$0xff] %v7914
    %s8445 = scalar_lea.vmem [#allocation1], 1
    %8446 = vst [vmem:[%s8445] ss:$9 sm:$0xff] %v7915
    %s8447 = scalar_lea.vmem [#allocation1], 2
    %8448 = vst [vmem:[%s8447] ss:$9 sm:$0xff] %v7916
    %s8449 = scalar_lea.vmem [#allocation1], 3
    %8450 = vst [vmem:[%s8449] ss:$9 sm:$0xff] %v7917
    %s8451 = scalar_lea.vmem [#allocation1], 4
    %8452 = vst [vmem:[%s8451] ss:$9 sm:$0xff] %v7918
    %s8453 = scalar_lea.vmem [#allocation1], 5
    %8454 = vst [vmem:[%s8453] ss:$9 sm:$0xff] %v7919
    %s8455 = scalar_lea.vmem [#allocation1], 6
    %8456 = vst [vmem:[%s8455] ss:$9 sm:$0xff] %v7920
    %s8457 = scalar_lea.vmem [#allocation1], 7
    %8458 = vst [vmem:[%s8457] ss:$9 sm:$0xff] %v7921
    %v8459 = vld [vmem:[#allocation1] sm:$0xff]
    %8460 = vst [vmem:[#allocation1] ss:$9 sm:$0xff] %v7922
    %8461 = vst [vmem:[%s8445] ss:$9 sm:$0xff] %v7923
    %8462 = vst [vmem:[%s8447] ss:$9 sm:$0xff] %v7924
    %v8463 = vld [vmem:[#allocation1] sm:$0xff]
    %8464 = vst [vmem:[#allocation1] ss:$9 sm:$0xff] %v7926
    %8465 = vst [vmem:[%s8445] ss:$9 sm:$0xff] %v7927
    %8466 = vst [vmem:[%s8447] ss:$9 sm:$0xff] %v7928
    %8467 = vst [vmem:[%s8449] ss:$9 sm:$0xff] %v7929
    %8468 = vst [vmem:[%s8451] ss:$9 sm:$0xff] %v7930
    %8469 = vst [vmem:[%s8453] ss:$9 sm:$0xff] %v7931
    %8470 = vst [vmem:[%s8455] ss:$9 sm:$0xff] %v7932
    %8471 = vst [vmem:[%s8457] ss:$9 sm:$0xff] %v7933
    %v8472 = vld [vmem:[#allocation1] sm:$0xff]
    %8473 = vst [vmem:[#allocation1] ss:$9 sm:$0xff] %v7934
    %8474 = vst [vmem:[%s8445] ss:$9 sm:$0xff] %v7935
    %8475 = vst [vmem:[%s8447] ss:$9 sm:$0xff] %v7936
    %v8476 = vld [vmem:[#allocation1] sm:$0xff]
    %8477 = vst [vmem:[#allocation1] ss:$9 sm:$0xff] %v7938
    %8478 = vst [vmem:[%s8445] ss:$9 sm:$0xff] %v7939
    %8479 = vst [vmem:[%s8447] ss:$9 sm:$0xff] %v7940
    %8480 = vst [vmem:[%s8449] ss:$9 sm:$0xff] %v7941
    %8481 = vst [vmem:[%s8451] ss:$9 sm:$0xff] %v7942
    %8482 = vst [vmem:[%s8453] ss:$9 sm:$0xff] %v7943
    %8483 = vst [vmem:[%s8455] ss:$9 sm:$0xff] %v7944
    %8484 = vst [vmem:[%s8457] ss:$9 sm:$0xff] %v7945
    %v8485 = vld [vmem:[#allocation1] sm:$0xff]
    %8486 = vst [vmem:[#allocation1] ss:$9 sm:$0xff] %v7946
    %8487 = vst [vmem:[%s8445] ss:$9 sm:$0xff] %v7947
    %8488 = vst [vmem:[%s8447] ss:$9 sm:$0xff] %v7948
    %v8489 = vld [vmem:[#allocation1] sm:$0xff]
    %8490 = vst [vmem:[#allocation1] ss:$9 sm:$0xff] %v7950
    %8491 = vst [vmem:[%s8445] ss:$9 sm:$0xff] %v7951
    %8492 = vst [vmem:[%s8447] ss:$9 sm:$0xff] %v7952
    %8493 = vst [vmem:[%s8449] ss:$9 sm:$0xff] %v7953
    %8494 = vst [vmem:[%s8451] ss:$9 sm:$0xff] %v7954
    %8495 = vst [vmem:[%s8453] ss:$9 sm:$0xff] %v7955
    %8496 = vst [vmem:[%s8455] ss:$9 sm:$0xff] %v7956
    %8497 = vst [vmem:[%s8457] ss:$9 sm:$0xff] %v7957
    %v8498 = vld [vmem:[#allocation1] sm:$0xff]
    %8499 = vst [vmem:[#allocation1] ss:$9 sm:$0xff] %v7958
    %8500 = vst [vmem:[%s8445] ss:$9 sm:$0xff] %v7959
    %8501 = vst [vmem:[%s8447] ss:$9 sm:$0xff] %v7960
    %v8502 = vld [vmem:[#allocation1] sm:$0xff]
    %8503 = vst [vmem:[#allocation1] ss:$9 sm:$0xff] %v7962
    %8504 = vst [vmem:[%s8445] ss:$9 sm:$0xff] %v7963
    %8505 = vst [vmem:[%s8447] ss:$9 sm:$0xff] %v7964
    %8506 = vst [vmem:[%s8449] ss:$9 sm:$0xff] %v7965
    %8507 = vst [vmem:[%s8451] ss:$9 sm:$0xff] %v7966
    %8508 = vst [vmem:[%s8453] ss:$9 sm:$0xff] %v7967
    %8509 = vst [vmem:[%s8455] ss:$9 sm:$0xff] %v7968
    %8510 = vst [vmem:[%s8457] ss:$9 sm:$0xff] %v7969
    %v8511 = vld [vmem:[#allocation1] sm:$0xff]
    %8512 = vst [vmem:[#allocation1] ss:$9 sm:$0xff] %v7970
    %8513 = vst [vmem:[%s8445] ss:$9 sm:$0xff] %v7971
    %8514 = vst [vmem:[%s8447] ss:$9 sm:$0xff] %v7972
    %v8515 = vld [vmem:[#allocation1] sm:$0xff]
    %8516 = vst [vmem:[#allocation1] ss:$9 sm:$0xff] %v7974
    %8517 = vst [vmem:[%s8445] ss:$9 sm:$0xff] %v7975
    %8518 = vst [vmem:[%s8447] ss:$9 sm:$0xff] %v7976
    %8519 = vst [vmem:[%s8449] ss:$9 sm:$0xff] %v7977
    %8520 = vst [vmem:[%s8451] ss:$9 sm:$0xff] %v7978
    %8521 = vst [vmem:[%s8453] ss:$9 sm:$0xff] %v7979
    %8522 = vst [vmem:[%s8455] ss:$9 sm:$0xff] %v7980
    %8523 = vst [vmem:[%s8457] ss:$9 sm:$0xff] %v7981
    %v8524 = vld [vmem:[#allocation1] sm:$0xff]
    %8525 = vst [vmem:[#allocation1] ss:$9 sm:$0xff] %v7982
    %8526 = vst [vmem:[%s8445] ss:$9 sm:$0xff] %v7983
    %8527 = vst [vmem:[%s8447] ss:$9 sm:$0xff] %v7984
    %v8528 = vld [vmem:[#allocation1] sm:$0xff]
    %8529 = vst [vmem:[#allocation1] ss:$9 sm:$0xff] %v7986
    %8530 = vst [vmem:[%s8445] ss:$9 sm:$0xff] %v7987
    %8531 = vst [vmem:[%s8447] ss:$9 sm:$0xff] %v7988
    %8532 = vst [vmem:[%s8449] ss:$9 sm:$0xff] %v7989
    %8533 = vst [vmem:[%s8451] ss:$9 sm:$0xff] %v7990
    %8534 = vst [vmem:[%s8453] ss:$9 sm:$0xff] %v7991
    %8535 = vst [vmem:[%s8455] ss:$9 sm:$0xff] %v7992
    %8536 = vst [vmem:[%s8457] ss:$9 sm:$0xff] %v7993
    %v8537 = vld [vmem:[#allocation1] sm:$0xff]
    %8538 = vst [vmem:[#allocation1] ss:$9 sm:$0xff] %v7994
    %8539 = vst [vmem:[%s8445] ss:$9 sm:$0xff] %v7995
    %8540 = vst [vmem:[%s8447] ss:$9 sm:$0xff] %v7996
    %v8541 = vld [vmem:[#allocation1] sm:$0xff]
    %8542 = vst [vmem:[#allocation1] ss:$9 sm:$0xff] %v7998
    %8543 = vst [vmem:[%s8445] ss:$9 sm:$0xff] %v7999
    %8544 = vst [vmem:[%s8447] ss:$9 sm:$0xff] %v8000
    %8545 = vst [vmem:[%s8449] ss:$9 sm:$0xff] %v8001
    %8546 = vst [vmem:[%s8451] ss:$9 sm:$0xff] %v8002
    %8547 = vst [vmem:[%s8453] ss:$9 sm:$0xff] %v8003
    %8548 = vst [vmem:[%s8455] ss:$9 sm:$0xff] %v8004
    %8549 = vst [vmem:[%s8457] ss:$9 sm:$0xff] %v8005
    %v8550 = vld [vmem:[#allocation1] sm:$0xff]
    %8551 = vst [vmem:[#allocation1] ss:$9 sm:$0xff] %v8006
    %8552 = vst [vmem:[%s8445] ss:$9 sm:$0xff] %v8007
    %8553 = vst [vmem:[%s8447] ss:$9 sm:$0xff] %v8008
    %v8554 = vld [vmem:[#allocation1] sm:$0xff]
    %8555 = vst [vmem:[#allocation1] ss:$9 sm:$0xff] %v8010
    %8556 = vst [vmem:[%s8445] ss:$9 sm:$0xff] %v8011
    %8557 = vst [vmem:[%s8447] ss:$9 sm:$0xff] %v8012
    %8558 = vst [vmem:[%s8449] ss:$9 sm:$0xff] %v8013
    %8559 = vst [vmem:[%s8451] ss:$9 sm:$0xff] %v8014
    %8560 = vst [vmem:[%s8453] ss:$9 sm:$0xff] %v8015
    %8561 = vst [vmem:[%s8455] ss:$9 sm:$0xff] %v8016
    %8562 = vst [vmem:[%s8457] ss:$9 sm:$0xff] %v8017
    %v8563 = vld [vmem:[#allocation1] sm:$0xff]
    %8564 = vst [vmem:[#allocation1] ss:$9 sm:$0xff] %v8018
    %8565 = vst [vmem:[%s8445] ss:$9 sm:$0xff] %v8019
    %8566 = vst [vmem:[%s8447] ss:$9 sm:$0xff] %v8020
    %v8567 = vld [vmem:[#allocation1] sm:$0xff]
    %8568 = vst [vmem:[#allocation1] ss:$9 sm:$0xff] %v8022
    %8569 = vst [vmem:[%s8445] ss:$9 sm:$0xff] %v8023
    %8570 = vst [vmem:[%s8447] ss:$9 sm:$0xff] %v8024
    %8571 = vst [vmem:[%s8449] ss:$9 sm:$0xff] %v8025
    %8572 = vst [vmem:[%s8451] ss:$9 sm:$0xff] %v8026
    %8573 = vst [vmem:[%s8453] ss:$9 sm:$0xff] %v8027
    %8574 = vst [vmem:[%s8455] ss:$9 sm:$0xff] %v8028
    %8575 = vst [vmem:[%s8457] ss:$9 sm:$0xff] %v8029
    %v8576 = vld [vmem:[#allocation1] sm:$0xff]
    %8577 = vst [vmem:[#allocation1] ss:$9 sm:$0xff] %v8030
    %8578 = vst [vmem:[%s8445] ss:$9 sm:$0xff] %v8031
    %8579 = vst [vmem:[%s8447] ss:$9 sm:$0xff] %v8032
    %v8580 = vld [vmem:[#allocation1] sm:$0xff]
    %8581 = vst [vmem:[#allocation1] ss:$9 sm:$0xff] %v8034
    %8582 = vst [vmem:[%s8445] ss:$9 sm:$0xff] %v8035
    %8583 = vst [vmem:[%s8447] ss:$9 sm:$0xff] %v8036
    %8584 = vst [vmem:[%s8449] ss:$9 sm:$0xff] %v8037
    %8585 = vst [vmem:[%s8451] ss:$9 sm:$0xff] %v8038
    %8586 = vst [vmem:[%s8453] ss:$9 sm:$0xff] %v8039
    %8587 = vst [vmem:[%s8455] ss:$9 sm:$0xff] %v8040
    %8588 = vst [vmem:[%s8457] ss:$9 sm:$0xff] %v8041
    %v8589 = vld [vmem:[#allocation1] sm:$0xff]
    %8590 = vst [vmem:[#allocation1] ss:$9 sm:$0xff] %v8042
    %8591 = vst [vmem:[%s8445] ss:$9 sm:$0xff] %v8043
    %8592 = vst [vmem:[%s8447] ss:$9 sm:$0xff] %v8044
    %v8593 = vld [vmem:[#allocation1] sm:$0xff]
    %8594 = vst [vmem:[#allocation1] ss:$9 sm:$0xff] %v8058
    %8595 = vst [vmem:[%s8445] ss:$9 sm:$0xff] %v8059
    %8596 = vst [vmem:[%s8447] ss:$9 sm:$0xff] %v8060
    %8597 = vst [vmem:[%s8449] ss:$9 sm:$0xff] %v8061
    %8598 = vst [vmem:[%s8451] ss:$9 sm:$0xff] %v8062
    %8599 = vst [vmem:[%s8453] ss:$9 sm:$0xff] %v8063
    %8600 = vst [vmem:[%s8455] ss:$9 sm:$0xff] %v8064
    %8601 = vst [vmem:[%s8457] ss:$9 sm:$0xff] %v8065
    %v8602 = vld [vmem:[#allocation1] sm:$0xff]
    %8603 = vst [vmem:[#allocation1] ss:$9 sm:$0xff] %v8066
    %8604 = vst [vmem:[%s8445] ss:$9 sm:$0xff] %v8067
    %8605 = vst [vmem:[%s8447] ss:$9 sm:$0xff] %v8068
    %v8606 = vld [vmem:[#allocation1] sm:$0xff]
    %8607 = vst [vmem:[#allocation1] ss:$9 sm:$0xff] %v8070
    %8608 = vst [vmem:[%s8445] ss:$9 sm:$0xff] %v8071
    %8609 = vst [vmem:[%s8447] ss:$9 sm:$0xff] %v8072
    %8610 = vst [vmem:[%s8449] ss:$9 sm:$0xff] %v8073
    %8611 = vst [vmem:[%s8451] ss:$9 sm:$0xff] %v8074
    %8612 = vst [vmem:[%s8453] ss:$9 sm:$0xff] %v8075
    %8613 = vst [vmem:[%s8455] ss:$9 sm:$0xff] %v8076
    %8614 = vst [vmem:[%s8457] ss:$9 sm:$0xff] %v8077
    %v8615 = vld [vmem:[#allocation1] sm:$0xff]
    %8616 = vst [vmem:[#allocation1] ss:$9 sm:$0xff] %v8078
    %8617 = vst [vmem:[%s8445] ss:$9 sm:$0xff] %v8079
    %8618 = vst [vmem:[%s8447] ss:$9 sm:$0xff] %v8080
    %v8619 = vld [vmem:[#allocation1] sm:$0xff]
    %8620 = vst [vmem:[#allocation1] ss:$9 sm:$0xff] %v8082
    %8621 = vst [vmem:[%s8445] ss:$9 sm:$0xff] %v8083
    %8622 = vst [vmem:[%s8447] ss:$9 sm:$0xff] %v8084
    %8623 = vst [vmem:[%s8449] ss:$9 sm:$0xff] %v8085
    %8624 = vst [vmem:[%s8451] ss:$9 sm:$0xff] %v8086
    %8625 = vst [vmem:[%s8453] ss:$9 sm:$0xff] %v8087
    %8626 = vst [vmem:[%s8455] ss:$9 sm:$0xff] %v8088
    %8627 = vst [vmem:[%s8457] ss:$9 sm:$0xff] %v8089
    %v8628 = vld [vmem:[#allocation1] sm:$0xff]
    %8629 = vst [vmem:[#allocation1] ss:$9 sm:$0xff] %v8090
    %8630 = vst [vmem:[%s8445] ss:$9 sm:$0xff] %v8091
    %8631 = vst [vmem:[%s8447] ss:$9 sm:$0xff] %v8092
    %v8632 = vld [vmem:[#allocation1] sm:$0xff]
    %8633 = vst [vmem:[#allocation1] ss:$9 sm:$0xff] %v8094
    %8634 = vst [vmem:[%s8445] ss:$9 sm:$0xff] %v8095
    %8635 = vst [vmem:[%s8447] ss:$9 sm:$0xff] %v8096
    %8636 = vst [vmem:[%s8449] ss:$9 sm:$0xff] %v8097
    %8637 = vst [vmem:[%s8451] ss:$9 sm:$0xff] %v8098
    %8638 = vst [vmem:[%s8453] ss:$9 sm:$0xff] %v8099
    %8639 = vst [vmem:[%s8455] ss:$9 sm:$0xff] %v8100
    %8640 = vst [vmem:[%s8457] ss:$9 sm:$0xff] %v8101
    %v8641 = vld [vmem:[#allocation1] sm:$0xff]
    %8642 = vst [vmem:[#allocation1] ss:$9 sm:$0xff] %v8102
    %8643 = vst [vmem:[%s8445] ss:$9 sm:$0xff] %v8103
    %8644 = vst [vmem:[%s8447] ss:$9 sm:$0xff] %v8104
    %v8645 = vld [vmem:[#allocation1] sm:$0xff]
    %8646 = vst [vmem:[#allocation1] ss:$9 sm:$0xff] %v8106
    %8647 = vst [vmem:[%s8445] ss:$9 sm:$0xff] %v8107
    %8648 = vst [vmem:[%s8447] ss:$9 sm:$0xff] %v8108
    %8649 = vst [vmem:[%s8449] ss:$9 sm:$0xff] %v8109
    %8650 = vst [vmem:[%s8451] ss:$9 sm:$0xff] %v8110
    %8651 = vst [vmem:[%s8453] ss:$9 sm:$0xff] %v8111
    %8652 = vst [vmem:[%s8455] ss:$9 sm:$0xff] %v8112
    %8653 = vst [vmem:[%s8457] ss:$9 sm:$0xff] %v8113
    %v8654 = vld [vmem:[#allocation1] sm:$0xff]
    %8655 = vst [vmem:[#allocation1] ss:$9 sm:$0xff] %v8114
    %8656 = vst [vmem:[%s8445] ss:$9 sm:$0xff] %v8115
    %8657 = vst [vmem:[%s8447] ss:$9 sm:$0xff] %v8116
    %v8658 = vld [vmem:[#allocation1] sm:$0xff]
    %8659 = vst [vmem:[#allocation1] ss:$9 sm:$0xff] %v8118
    %8660 = vst [vmem:[%s8445] ss:$9 sm:$0xff] %v8119
    %8661 = vst [vmem:[%s8447] ss:$9 sm:$0xff] %v8120
    %8662 = vst [vmem:[%s8449] ss:$9 sm:$0xff] %v8121
    %8663 = vst [vmem:[%s8451] ss:$9 sm:$0xff] %v8122
    %8664 = vst [vmem:[%s8453] ss:$9 sm:$0xff] %v8123
    %8665 = vst [vmem:[%s8455] ss:$9 sm:$0xff] %v8124
    %8666 = vst [vmem:[%s8457] ss:$9 sm:$0xff] %v8125
    %v8667 = vld [vmem:[#allocation1] sm:$0xff]
    %8668 = vst [vmem:[#allocation1] ss:$9 sm:$0xff] %v8126
    %8669 = vst [vmem:[%s8445] ss:$9 sm:$0xff] %v8127
    %8670 = vst [vmem:[%s8447] ss:$9 sm:$0xff] %v8128
    %v8671 = vld [vmem:[#allocation1] sm:$0xff]
    %8672 = vst [vmem:[#allocation1] ss:$9 sm:$0xff] %v8130
    %8673 = vst [vmem:[%s8445] ss:$9 sm:$0xff] %v8131
    %8674 = vst [vmem:[%s8447] ss:$9 sm:$0xff] %v8132
    %8675 = vst [vmem:[%s8449] ss:$9 sm:$0xff] %v8133
    %8676 = vst [vmem:[%s8451] ss:$9 sm:$0xff] %v8134
    %8677 = vst [vmem:[%s8453] ss:$9 sm:$0xff] %v8135
    %8678 = vst [vmem:[%s8455] ss:$9 sm:$0xff] %v8136
    %8679 = vst [vmem:[%s8457] ss:$9 sm:$0xff] %v8137
    %v8680 = vld [vmem:[#allocation1] sm:$0xff]
    %8681 = vst [vmem:[#allocation1] ss:$9 sm:$0xff] %v8138
    %8682 = vst [vmem:[%s8445] ss:$9 sm:$0xff] %v8139
    %8683 = vst [vmem:[%s8447] ss:$9 sm:$0xff] %v8140
    %v8684 = vld [vmem:[#allocation1] sm:$0xff]
    %8685 = vst [vmem:[#allocation1] ss:$9 sm:$0xff] %v8142
    %8686 = vst [vmem:[%s8445] ss:$9 sm:$0xff] %v8143
    %8687 = vst [vmem:[%s8447] ss:$9 sm:$0xff] %v8144
    %8688 = vst [vmem:[%s8449] ss:$9 sm:$0xff] %v8145
    %8689 = vst [vmem:[%s8451] ss:$9 sm:$0xff] %v8146
    %8690 = vst [vmem:[%s8453] ss:$9 sm:$0xff] %v8147
    %8691 = vst [vmem:[%s8455] ss:$9 sm:$0xff] %v8148
    %8692 = vst [vmem:[%s8457] ss:$9 sm:$0xff] %v8149
    %v8693 = vld [vmem:[#allocation1] sm:$0xff]
    %8694 = vst [vmem:[#allocation1] ss:$9 sm:$0xff] %v8150
    %8695 = vst [vmem:[%s8445] ss:$9 sm:$0xff] %v8151
    %8696 = vst [vmem:[%s8447] ss:$9 sm:$0xff] %v8152
    %v8697 = vld [vmem:[#allocation1] sm:$0xff]
    %8698 = vst [vmem:[#allocation1] ss:$9 sm:$0xff] %v8154
    %8699 = vst [vmem:[%s8445] ss:$9 sm:$0xff] %v8155
    %8700 = vst [vmem:[%s8447] ss:$9 sm:$0xff] %v8156
    %8701 = vst [vmem:[%s8449] ss:$9 sm:$0xff] %v8157
    %8702 = vst [vmem:[%s8451] ss:$9 sm:$0xff] %v8158
    %8703 = vst [vmem:[%s8453] ss:$9 sm:$0xff] %v8159
    %8704 = vst [vmem:[%s8455] ss:$9 sm:$0xff] %v8160
    %8705 = vst [vmem:[%s8457] ss:$9 sm:$0xff] %v8161
    %v8706 = vld [vmem:[#allocation1] sm:$0xff]
    %8707 = vst [vmem:[#allocation1] ss:$9 sm:$0xff] %v8162
    %8708 = vst [vmem:[%s8445] ss:$9 sm:$0xff] %v8163
    %8709 = vst [vmem:[%s8447] ss:$9 sm:$0xff] %v8164
    %v8710 = vld [vmem:[#allocation1] sm:$0xff]
    %8711 = vst [vmem:[#allocation1] ss:$9 sm:$0xff] %v8166
    %8712 = vst [vmem:[%s8445] ss:$9 sm:$0xff] %v8167
    %8713 = vst [vmem:[%s8447] ss:$9 sm:$0xff] %v8168
    %8714 = vst [vmem:[%s8449] ss:$9 sm:$0xff] %v8169
    %8715 = vst [vmem:[%s8451] ss:$9 sm:$0xff] %v8170
    %8716 = vst [vmem:[%s8453] ss:$9 sm:$0xff] %v8171
    %8717 = vst [vmem:[%s8455] ss:$9 sm:$0xff] %v8172
    %8718 = vst [vmem:[%s8457] ss:$9 sm:$0xff] %v8173
    %v8719 = vld [vmem:[#allocation1] sm:$0xff]
    %8720 = vst [vmem:[#allocation1] ss:$9 sm:$0xff] %v8174
    %8721 = vst [vmem:[%s8445] ss:$9 sm:$0xff] %v8175
    %8722 = vst [vmem:[%s8447] ss:$9 sm:$0xff] %v8176
    %v8723 = vld [vmem:[#allocation1] sm:$0xff]
    %8724 = vst [vmem:[#allocation1] ss:$9 sm:$0xff] %v8178
    %8725 = vst [vmem:[%s8445] ss:$9 sm:$0xff] %v8179
    %8726 = vst [vmem:[%s8447] ss:$9 sm:$0xff] %v8180
    %8727 = vst [vmem:[%s8449] ss:$9 sm:$0xff] %v8181
    %8728 = vst [vmem:[%s8451] ss:$9 sm:$0xff] %v8182
    %8729 = vst [vmem:[%s8453] ss:$9 sm:$0xff] %v8183
    %8730 = vst [vmem:[%s8455] ss:$9 sm:$0xff] %v8184
    %8731 = vst [vmem:[%s8457] ss:$9 sm:$0xff] %v8185
    %v8732 = vld [vmem:[#allocation1] sm:$0xff]
    %8733 = vst [vmem:[#allocation1] ss:$9 sm:$0xff] %v8186
    %8734 = vst [vmem:[%s8445] ss:$9 sm:$0xff] %v8187
    %8735 = vst [vmem:[%s8447] ss:$9 sm:$0xff] %v8188
    %v8736 = vld [vmem:[#allocation1] sm:$0xff]
    %8803 = vst [vmem:[#allocation1] ss:$9 sm:$0xff] %v7915
    %s8804 = scalar_lea.vmem [#allocation1], 1
    %8805 = vst [vmem:[%s8804] ss:$9 sm:$0xff] %v7916
    %s8806 = scalar_lea.vmem [#allocation1], 2
    %8807 = vst [vmem:[%s8806] ss:$9 sm:$0xff] %v7917
    %s8808 = scalar_lea.vmem [#allocation1], 3
    %8809 = vst [vmem:[%s8808] ss:$9 sm:$0xff] %v7918
    %s8810 = scalar_lea.vmem [#allocation1], 4
    %8811 = vst [vmem:[%s8810] ss:$9 sm:$0xff] %v7919
    %s8812 = scalar_lea.vmem [#allocation1], 5
    %8813 = vst [vmem:[%s8812] ss:$9 sm:$0xff] %v7920
    %s8814 = scalar_lea.vmem [#allocation1], 6
    %8815 = vst [vmem:[%s8814] ss:$9 sm:$0xff] %v7921
    %s8816 = scalar_lea.vmem [#allocation1], 7
    %8817 = vst [vmem:[%s8816] ss:$9 sm:$0xff] %v7922
    %v8818 = vld [vmem:[#allocation1] sm:$0xff]
    %8819 = vst [vmem:[#allocation1] ss:$9 sm:$0xff] %v7923
    %8820 = vst [vmem:[%s8804] ss:$9 sm:$0xff] %v7924
    %8821 = vst [vmem:[%s8806] ss:$9 sm:$0xff] %v7925
    %v8822 = vld [vmem:[#allocation1] sm:$0xff]
    %8823 = vst [vmem:[#allocation1] ss:$9 sm:$0xff] %v7927
    %8824 = vst [vmem:[%s8804] ss:$9 sm:$0xff] %v7928
    %8825 = vst [vmem:[%s8806] ss:$9 sm:$0xff] %v7929
    %8826 = vst [vmem:[%s8808] ss:$9 sm:$0xff] %v7930
    %8827 = vst [vmem:[%s8810] ss:$9 sm:$0xff] %v7931
    %8828 = vst [vmem:[%s8812] ss:$9 sm:$0xff] %v7932
    %8829 = vst [vmem:[%s8814] ss:$9 sm:$0xff] %v7933
    %8830 = vst [vmem:[%s8816] ss:$9 sm:$0xff] %v7934
    %v8831 = vld [vmem:[#allocation1] sm:$0xff]
    %8832 = vst [vmem:[#allocation1] ss:$9 sm:$0xff] %v7935
    %8833 = vst [vmem:[%s8804] ss:$9 sm:$0xff] %v7936
    %8834 = vst [vmem:[%s8806] ss:$9 sm:$0xff] %v7937
    %v8835 = vld [vmem:[#allocation1] sm:$0xff]
    %8836 = vst [vmem:[#allocation1] ss:$9 sm:$0xff] %v7939
    %8837 = vst [vmem:[%s8804] ss:$9 sm:$0xff] %v7940
    %8838 = vst [vmem:[%s8806] ss:$9 sm:$0xff] %v7941
    %8839 = vst [vmem:[%s8808] ss:$9 sm:$0xff] %v7942
    %8840 = vst [vmem:[%s8810] ss:$9 sm:$0xff] %v7943
    %8841 = vst [vmem:[%s8812] ss:$9 sm:$0xff] %v7944
    %8842 = vst [vmem:[%s8814] ss:$9 sm:$0xff] %v7945
    %8843 = vst [vmem:[%s8816] ss:$9 sm:$0xff] %v7946
    %v8844 = vld [vmem:[#allocation1] sm:$0xff]
    %8845 = vst [vmem:[#allocation1] ss:$9 sm:$0xff] %v7947
    %8846 = vst [vmem:[%s8804] ss:$9 sm:$0xff] %v7948
    %8847 = vst [vmem:[%s8806] ss:$9 sm:$0xff] %v7949
    %v8848 = vld [vmem:[#allocation1] sm:$0xff]
    %8849 = vst [vmem:[#allocation1] ss:$9 sm:$0xff] %v7951
    %8850 = vst [vmem:[%s8804] ss:$9 sm:$0xff] %v7952
    %8851 = vst [vmem:[%s8806] ss:$9 sm:$0xff] %v7953
    %8852 = vst [vmem:[%s8808] ss:$9 sm:$0xff] %v7954
    %8853 = vst [vmem:[%s8810] ss:$9 sm:$0xff] %v7955
    %8854 = vst [vmem:[%s8812] ss:$9 sm:$0xff] %v7956
    %8855 = vst [vmem:[%s8814] ss:$9 sm:$0xff] %v7957
    %8856 = vst [vmem:[%s8816] ss:$9 sm:$0xff] %v7958
    %v8857 = vld [vmem:[#allocation1] sm:$0xff]
    %8858 = vst [vmem:[#allocation1] ss:$9 sm:$0xff] %v7959
    %8859 = vst [vmem:[%s8804] ss:$9 sm:$0xff] %v7960
    %8860 = vst [vmem:[%s8806] ss:$9 sm:$0xff] %v7961
    %v8861 = vld [vmem:[#allocation1] sm:$0xff]
    %8862 = vst [vmem:[#allocation1] ss:$9 sm:$0xff] %v7963
    %8863 = vst [vmem:[%s8804] ss:$9 sm:$0xff] %v7964
    %8864 = vst [vmem:[%s8806] ss:$9 sm:$0xff] %v7965
    %8865 = vst [vmem:[%s8808] ss:$9 sm:$0xff] %v7966
    %8866 = vst [vmem:[%s8810] ss:$9 sm:$0xff] %v7967
    %8867 = vst [vmem:[%s8812] ss:$9 sm:$0xff] %v7968
    %8868 = vst [vmem:[%s8814] ss:$9 sm:$0xff] %v7969
    %8869 = vst [vmem:[%s8816] ss:$9 sm:$0xff] %v7970
    %v8870 = vld [vmem:[#allocation1] sm:$0xff]
    %8871 = vst [vmem:[#allocation1] ss:$9 sm:$0xff] %v7971
    %8872 = vst [vmem:[%s8804] ss:$9 sm:$0xff] %v7972
    %8873 = vst [vmem:[%s8806] ss:$9 sm:$0xff] %v7973
    %v8874 = vld [vmem:[#allocation1] sm:$0xff]
    %8875 = vst [vmem:[#allocation1] ss:$9 sm:$0xff] %v7975
    %8876 = vst [vmem:[%s8804] ss:$9 sm:$0xff] %v7976
    %8877 = vst [vmem:[%s8806] ss:$9 sm:$0xff] %v7977
    %8878 = vst [vmem:[%s8808] ss:$9 sm:$0xff] %v7978
    %8879 = vst [vmem:[%s8810] ss:$9 sm:$0xff] %v7979
    %8880 = vst [vmem:[%s8812] ss:$9 sm:$0xff] %v7980
    %8881 = vst [vmem:[%s8814] ss:$9 sm:$0xff] %v7981
    %8882 = vst [vmem:[%s8816] ss:$9 sm:$0xff] %v7982
    %v8883 = vld [vmem:[#allocation1] sm:$0xff]
    %8884 = vst [vmem:[#allocation1] ss:$9 sm:$0xff] %v7983
    %8885 = vst [vmem:[%s8804] ss:$9 sm:$0xff] %v7984
    %8886 = vst [vmem:[%s8806] ss:$9 sm:$0xff] %v7985
    %v8887 = vld [vmem:[#allocation1] sm:$0xff]
    %8888 = vst [vmem:[#allocation1] ss:$9 sm:$0xff] %v7987
    %8889 = vst [vmem:[%s8804] ss:$9 sm:$0xff] %v7988
    %8890 = vst [vmem:[%s8806] ss:$9 sm:$0xff] %v7989
    %8891 = vst [vmem:[%s8808] ss:$9 sm:$0xff] %v7990
    %8892 = vst [vmem:[%s8810] ss:$9 sm:$0xff] %v7991
    %8893 = vst [vmem:[%s8812] ss:$9 sm:$0xff] %v7992
    %8894 = vst [vmem:[%s8814] ss:$9 sm:$0xff] %v7993
    %8895 = vst [vmem:[%s8816] ss:$9 sm:$0xff] %v7994
    %v8896 = vld [vmem:[#allocation1] sm:$0xff]
    %8897 = vst [vmem:[#allocation1] ss:$9 sm:$0xff] %v7995
    %8898 = vst [vmem:[%s8804] ss:$9 sm:$0xff] %v7996
    %8899 = vst [vmem:[%s8806] ss:$9 sm:$0xff] %v7997
    %v8900 = vld [vmem:[#allocation1] sm:$0xff]
    %8901 = vst [vmem:[#allocation1] ss:$9 sm:$0xff] %v7999
    %8902 = vst [vmem:[%s8804] ss:$9 sm:$0xff] %v8000
    %8903 = vst [vmem:[%s8806] ss:$9 sm:$0xff] %v8001
    %8904 = vst [vmem:[%s8808] ss:$9 sm:$0xff] %v8002
    %8905 = vst [vmem:[%s8810] ss:$9 sm:$0xff] %v8003
    %8906 = vst [vmem:[%s8812] ss:$9 sm:$0xff] %v8004
    %8907 = vst [vmem:[%s8814] ss:$9 sm:$0xff] %v8005
    %8908 = vst [vmem:[%s8816] ss:$9 sm:$0xff] %v8006
    %v8909 = vld [vmem:[#allocation1] sm:$0xff]
    %8910 = vst [vmem:[#allocation1] ss:$9 sm:$0xff] %v8007
    %8911 = vst [vmem:[%s8804] ss:$9 sm:$0xff] %v8008
    %8912 = vst [vmem:[%s8806] ss:$9 sm:$0xff] %v8009
    %v8913 = vld [vmem:[#allocation1] sm:$0xff]
    %8914 = vst [vmem:[#allocation1] ss:$9 sm:$0xff] %v8011
    %8915 = vst [vmem:[%s8804] ss:$9 sm:$0xff] %v8012
    %8916 = vst [vmem:[%s8806] ss:$9 sm:$0xff] %v8013
    %8917 = vst [vmem:[%s8808] ss:$9 sm:$0xff] %v8014
    %8918 = vst [vmem:[%s8810] ss:$9 sm:$0xff] %v8015
    %8919 = vst [vmem:[%s8812] ss:$9 sm:$0xff] %v8016
    %8920 = vst [vmem:[%s8814] ss:$9 sm:$0xff] %v8017
    %8921 = vst [vmem:[%s8816] ss:$9 sm:$0xff] %v8018
    %v8922 = vld [vmem:[#allocation1] sm:$0xff]
    %8923 = vst [vmem:[#allocation1] ss:$9 sm:$0xff] %v8019
    %8924 = vst [vmem:[%s8804] ss:$9 sm:$0xff] %v8020
    %8925 = vst [vmem:[%s8806] ss:$9 sm:$0xff] %v8021
    %v8926 = vld [vmem:[#allocation1] sm:$0xff]
    %8927 = vst [vmem:[#allocation1] ss:$9 sm:$0xff] %v8023
    %8928 = vst [vmem:[%s8804] ss:$9 sm:$0xff] %v8024
    %8929 = vst [vmem:[%s8806] ss:$9 sm:$0xff] %v8025
    %8930 = vst [vmem:[%s8808] ss:$9 sm:$0xff] %v8026
    %8931 = vst [vmem:[%s8810] ss:$9 sm:$0xff] %v8027
    %8932 = vst [vmem:[%s8812] ss:$9 sm:$0xff] %v8028
    %8933 = vst [vmem:[%s8814] ss:$9 sm:$0xff] %v8029
    %8934 = vst [vmem:[%s8816] ss:$9 sm:$0xff] %v8030
    %v8935 = vld [vmem:[#allocation1] sm:$0xff]
    %8936 = vst [vmem:[#allocation1] ss:$9 sm:$0xff] %v8031
    %8937 = vst [vmem:[%s8804] ss:$9 sm:$0xff] %v8032
    %8938 = vst [vmem:[%s8806] ss:$9 sm:$0xff] %v8033
    %v8939 = vld [vmem:[#allocation1] sm:$0xff]
    %8940 = vst [vmem:[#allocation1] ss:$9 sm:$0xff] %v8035
    %8941 = vst [vmem:[%s8804] ss:$9 sm:$0xff] %v8036
    %8942 = vst [vmem:[%s8806] ss:$9 sm:$0xff] %v8037
    %8943 = vst [vmem:[%s8808] ss:$9 sm:$0xff] %v8038
    %8944 = vst [vmem:[%s8810] ss:$9 sm:$0xff] %v8039
    %8945 = vst [vmem:[%s8812] ss:$9 sm:$0xff] %v8040
    %8946 = vst [vmem:[%s8814] ss:$9 sm:$0xff] %v8041
    %8947 = vst [vmem:[%s8816] ss:$9 sm:$0xff] %v8042
    %v8948 = vld [vmem:[#allocation1] sm:$0xff]
    %8949 = vst [vmem:[#allocation1] ss:$9 sm:$0xff] %v8043
    %8950 = vst [vmem:[%s8804] ss:$9 sm:$0xff] %v8044
    %8951 = vst [vmem:[%s8806] ss:$9 sm:$0xff] %v8045
    %v8952 = vld [vmem:[#allocation1] sm:$0xff]
    %8953 = vst [vmem:[#allocation1] ss:$9 sm:$0xff] %v8059
    %8954 = vst [vmem:[%s8804] ss:$9 sm:$0xff] %v8060
    %8955 = vst [vmem:[%s8806] ss:$9 sm:$0xff] %v8061
    %8956 = vst [vmem:[%s8808] ss:$9 sm:$0xff] %v8062
    %8957 = vst [vmem:[%s8810] ss:$9 sm:$0xff] %v8063
    %8958 = vst [vmem:[%s8812] ss:$9 sm:$0xff] %v8064
    %8959 = vst [vmem:[%s8814] ss:$9 sm:$0xff] %v8065
    %8960 = vst [vmem:[%s8816] ss:$9 sm:$0xff] %v8066
    %v8961 = vld [vmem:[#allocation1] sm:$0xff]
    %8962 = vst [vmem:[#allocation1] ss:$9 sm:$0xff] %v8067
    %8963 = vst [vmem:[%s8804] ss:$9 sm:$0xff] %v8068
    %8964 = vst [vmem:[%s8806] ss:$9 sm:$0xff] %v8069
    %v8965 = vld [vmem:[#allocation1] sm:$0xff]
    %8966 = vst [vmem:[#allocation1] ss:$9 sm:$0xff] %v8071
    %8967 = vst [vmem:[%s8804] ss:$9 sm:$0xff] %v8072
    %8968 = vst [vmem:[%s8806] ss:$9 sm:$0xff] %v8073
    %8969 = vst [vmem:[%s8808] ss:$9 sm:$0xff] %v8074
    %8970 = vst [vmem:[%s8810] ss:$9 sm:$0xff] %v8075
    %8971 = vst [vmem:[%s8812] ss:$9 sm:$0xff] %v8076
    %8972 = vst [vmem:[%s8814] ss:$9 sm:$0xff] %v8077
    %8973 = vst [vmem:[%s8816] ss:$9 sm:$0xff] %v8078
    %v8974 = vld [vmem:[#allocation1] sm:$0xff]
    %8975 = vst [vmem:[#allocation1] ss:$9 sm:$0xff] %v8079
    %8976 = vst [vmem:[%s8804] ss:$9 sm:$0xff] %v8080
    %8977 = vst [vmem:[%s8806] ss:$9 sm:$0xff] %v8081
    %v8978 = vld [vmem:[#allocation1] sm:$0xff]
    %8979 = vst [vmem:[#allocation1] ss:$9 sm:$0xff] %v8083
    %8980 = vst [vmem:[%s8804] ss:$9 sm:$0xff] %v8084
    %8981 = vst [vmem:[%s8806] ss:$9 sm:$0xff] %v8085
    %8982 = vst [vmem:[%s8808] ss:$9 sm:$0xff] %v8086
    %8983 = vst [vmem:[%s8810] ss:$9 sm:$0xff] %v8087
    %8984 = vst [vmem:[%s8812] ss:$9 sm:$0xff] %v8088
    %8985 = vst [vmem:[%s8814] ss:$9 sm:$0xff] %v8089
    %8986 = vst [vmem:[%s8816] ss:$9 sm:$0xff] %v8090
    %v8987 = vld [vmem:[#allocation1] sm:$0xff]
    %8988 = vst [vmem:[#allocation1] ss:$9 sm:$0xff] %v8091
    %8989 = vst [vmem:[%s8804] ss:$9 sm:$0xff] %v8092
    %8990 = vst [vmem:[%s8806] ss:$9 sm:$0xff] %v8093
    %v8991 = vld [vmem:[#allocation1] sm:$0xff]
    %8992 = vst [vmem:[#allocation1] ss:$9 sm:$0xff] %v8095
    %8993 = vst [vmem:[%s8804] ss:$9 sm:$0xff] %v8096
    %8994 = vst [vmem:[%s8806] ss:$9 sm:$0xff] %v8097
    %8995 = vst [vmem:[%s8808] ss:$9 sm:$0xff] %v8098
    %8996 = vst [vmem:[%s8810] ss:$9 sm:$0xff] %v8099
    %8997 = vst [vmem:[%s8812] ss:$9 sm:$0xff] %v8100
    %8998 = vst [vmem:[%s8814] ss:$9 sm:$0xff] %v8101
    %8999 = vst [vmem:[%s8816] ss:$9 sm:$0xff] %v8102
    %v9000 = vld [vmem:[#allocation1] sm:$0xff]
    %9001 = vst [vmem:[#allocation1] ss:$9 sm:$0xff] %v8103
    %9002 = vst [vmem:[%s8804] ss:$9 sm:$0xff] %v8104
    %9003 = vst [vmem:[%s8806] ss:$9 sm:$0xff] %v8105
    %v9004 = vld [vmem:[#allocation1] sm:$0xff]
    %9005 = vst [vmem:[#allocation1] ss:$9 sm:$0xff] %v8107
    %9006 = vst [vmem:[%s8804] ss:$9 sm:$0xff] %v8108
    %9007 = vst [vmem:[%s8806] ss:$9 sm:$0xff] %v8109
    %9008 = vst [vmem:[%s8808] ss:$9 sm:$0xff] %v8110
    %9009 = vst [vmem:[%s8810] ss:$9 sm:$0xff] %v8111
    %9010 = vst [vmem:[%s8812] ss:$9 sm:$0xff] %v8112
    %9011 = vst [vmem:[%s8814] ss:$9 sm:$0xff] %v8113
    %9012 = vst [vmem:[%s8816] ss:$9 sm:$0xff] %v8114
    %v9013 = vld [vmem:[#allocation1] sm:$0xff]
    %9014 = vst [vmem:[#allocation1] ss:$9 sm:$0xff] %v8115
    %9015 = vst [vmem:[%s8804] ss:$9 sm:$0xff] %v8116
    %9016 = vst [vmem:[%s8806] ss:$9 sm:$0xff] %v8117
    %v9017 = vld [vmem:[#allocation1] sm:$0xff]
    %9018 = vst [vmem:[#allocation1] ss:$9 sm:$0xff] %v8119
    %9019 = vst [vmem:[%s8804] ss:$9 sm:$0xff] %v8120
    %9020 = vst [vmem:[%s8806] ss:$9 sm:$0xff] %v8121
    %9021 = vst [vmem:[%s8808] ss:$9 sm:$0xff] %v8122
    %9022 = vst [vmem:[%s8810] ss:$9 sm:$0xff] %v8123
    %9023 = vst [vmem:[%s8812] ss:$9 sm:$0xff] %v8124
    %9024 = vst [vmem:[%s8814] ss:$9 sm:$0xff] %v8125
    %9025 = vst [vmem:[%s8816] ss:$9 sm:$0xff] %v8126
    %v9026 = vld [vmem:[#allocation1] sm:$0xff]
    %9027 = vst [vmem:[#allocation1] ss:$9 sm:$0xff] %v8127
    %9028 = vst [vmem:[%s8804] ss:$9 sm:$0xff] %v8128
    %9029 = vst [vmem:[%s8806] ss:$9 sm:$0xff] %v8129
    %v9030 = vld [vmem:[#allocation1] sm:$0xff]
    %9031 = vst [vmem:[#allocation1] ss:$9 sm:$0xff] %v8131
    %9032 = vst [vmem:[%s8804] ss:$9 sm:$0xff] %v8132
    %9033 = vst [vmem:[%s8806] ss:$9 sm:$0xff] %v8133
    %9034 = vst [vmem:[%s8808] ss:$9 sm:$0xff] %v8134
    %9035 = vst [vmem:[%s8810] ss:$9 sm:$0xff] %v8135
    %9036 = vst [vmem:[%s8812] ss:$9 sm:$0xff] %v8136
    %9037 = vst [vmem:[%s8814] ss:$9 sm:$0xff] %v8137
    %9038 = vst [vmem:[%s8816] ss:$9 sm:$0xff] %v8138
    %v9039 = vld [vmem:[#allocation1] sm:$0xff]
    %9040 = vst [vmem:[#allocation1] ss:$9 sm:$0xff] %v8139
    %9041 = vst [vmem:[%s8804] ss:$9 sm:$0xff] %v8140
    %9042 = vst [vmem:[%s8806] ss:$9 sm:$0xff] %v8141
    %v9043 = vld [vmem:[#allocation1] sm:$0xff]
    %9044 = vst [vmem:[#allocation1] ss:$9 sm:$0xff] %v8143
    %9045 = vst [vmem:[%s8804] ss:$9 sm:$0xff] %v8144
    %9046 = vst [vmem:[%s8806] ss:$9 sm:$0xff] %v8145
    %9047 = vst [vmem:[%s8808] ss:$9 sm:$0xff] %v8146
    %9048 = vst [vmem:[%s8810] ss:$9 sm:$0xff] %v8147
    %9049 = vst [vmem:[%s8812] ss:$9 sm:$0xff] %v8148
    %9050 = vst [vmem:[%s8814] ss:$9 sm:$0xff] %v8149
    %9051 = vst [vmem:[%s8816] ss:$9 sm:$0xff] %v8150
    %v9052 = vld [vmem:[#allocation1] sm:$0xff]
    %9053 = vst [vmem:[#allocation1] ss:$9 sm:$0xff] %v8151
    %9054 = vst [vmem:[%s8804] ss:$9 sm:$0xff] %v8152
    %9055 = vst [vmem:[%s8806] ss:$9 sm:$0xff] %v8153
    %v9056 = vld [vmem:[#allocation1] sm:$0xff]
    %9057 = vst [vmem:[#allocation1] ss:$9 sm:$0xff] %v8155
    %9058 = vst [vmem:[%s8804] ss:$9 sm:$0xff] %v8156
    %9059 = vst [vmem:[%s8806] ss:$9 sm:$0xff] %v8157
    %9060 = vst [vmem:[%s8808] ss:$9 sm:$0xff] %v8158
    %9061 = vst [vmem:[%s8810] ss:$9 sm:$0xff] %v8159
    %9062 = vst [vmem:[%s8812] ss:$9 sm:$0xff] %v8160
    %9063 = vst [vmem:[%s8814] ss:$9 sm:$0xff] %v8161
    %9064 = vst [vmem:[%s8816] ss:$9 sm:$0xff] %v8162
    %v9065 = vld [vmem:[#allocation1] sm:$0xff]
    %9066 = vst [vmem:[#allocation1] ss:$9 sm:$0xff] %v8163
    %9067 = vst [vmem:[%s8804] ss:$9 sm:$0xff] %v8164
    %9068 = vst [vmem:[%s8806] ss:$9 sm:$0xff] %v8165
    %v9069 = vld [vmem:[#allocation1] sm:$0xff]
    %9070 = vst [vmem:[#allocation1] ss:$9 sm:$0xff] %v8167
    %9071 = vst [vmem:[%s8804] ss:$9 sm:$0xff] %v8168
    %9072 = vst [vmem:[%s8806] ss:$9 sm:$0xff] %v8169
    %9073 = vst [vmem:[%s8808] ss:$9 sm:$0xff] %v8170
    %9074 = vst [vmem:[%s8810] ss:$9 sm:$0xff] %v8171
    %9075 = vst [vmem:[%s8812] ss:$9 sm:$0xff] %v8172
    %9076 = vst [vmem:[%s8814] ss:$9 sm:$0xff] %v8173
    %9077 = vst [vmem:[%s8816] ss:$9 sm:$0xff] %v8174
    %v9078 = vld [vmem:[#allocation1] sm:$0xff]
    %9079 = vst [vmem:[#allocation1] ss:$9 sm:$0xff] %v8175
    %9080 = vst [vmem:[%s8804] ss:$9 sm:$0xff] %v8176
    %9081 = vst [vmem:[%s8806] ss:$9 sm:$0xff] %v8177
    %v9082 = vld [vmem:[#allocation1] sm:$0xff]
    %9083 = vst [vmem:[#allocation1] ss:$9 sm:$0xff] %v8179
    %9084 = vst [vmem:[%s8804] ss:$9 sm:$0xff] %v8180
    %9085 = vst [vmem:[%s8806] ss:$9 sm:$0xff] %v8181
    %9086 = vst [vmem:[%s8808] ss:$9 sm:$0xff] %v8182
    %9087 = vst [vmem:[%s8810] ss:$9 sm:$0xff] %v8183
    %9088 = vst [vmem:[%s8812] ss:$9 sm:$0xff] %v8184
    %9089 = vst [vmem:[%s8814] ss:$9 sm:$0xff] %v8185
    %9090 = vst [vmem:[%s8816] ss:$9 sm:$0xff] %v8186
    %v9091 = vld [vmem:[#allocation1] sm:$0xff]
    %9092 = vst [vmem:[#allocation1] ss:$9 sm:$0xff] %v8187
    %9093 = vst [vmem:[%s8804] ss:$9 sm:$0xff] %v8188
    %9094 = vst [vmem:[%s8806] ss:$9 sm:$0xff] %v8189
    %v9095 = vld [vmem:[#allocation1] sm:$0xff]
    %9096 = vrot.lane.b32.xlu0 %v8818, 32
    %v9097 = vpop.permute.xlu0 %9096
    %9098 = vrot.lane.b32.xlu0 %v8822, 32
    %v9099 = vpop.permute.xlu0 %9098
    %9100 = vrot.lane.b32.xlu0 %v8831, 32
    %v9101 = vpop.permute.xlu0 %9100
    %9102 = vrot.lane.b32.xlu0 %v8835, 32
    %v9103 = vpop.permute.xlu0 %9102
    %9104 = vrot.lane.b32.xlu0 %v8844, 32
    %v9105 = vpop.permute.xlu0 %9104
    %9106 = vrot.lane.b32.xlu0 %v8848, 32
    %v9107 = vpop.permute.xlu0 %9106
    %9108 = vrot.lane.b32.xlu0 %v8857, 32
    %v9109 = vpop.permute.xlu0 %9108
    %9110 = vrot.lane.b32.xlu0 %v8861, 32
    %v9111 = vpop.permute.xlu0 %9110
    %9112 = vrot.lane.b32.xlu0 %v8870, 32
    %v9113 = vpop.permute.xlu0 %9112
    %9114 = vrot.lane.b32.xlu0 %v8874, 32
    %v9115 = vpop.permute.xlu0 %9114
    %9116 = vrot.lane.b32.xlu0 %v8883, 32
    %v9117 = vpop.permute.xlu0 %9116
    %9118 = vrot.lane.b32.xlu0 %v8887, 32
    %v9119 = vpop.permute.xlu0 %9118
    %9120 = vrot.lane.b32.xlu0 %v8896, 32
    %v9121 = vpop.permute.xlu0 %9120
    %9122 = vrot.lane.b32.xlu0 %v8900, 32
    %v9123 = vpop.permute.xlu0 %9122
    %9124 = vrot.lane.b32.xlu0 %v8909, 32
    %v9125 = vpop.permute.xlu0 %9124
    %9126 = vrot.lane.b32.xlu0 %v8913, 32
    %v9127 = vpop.permute.xlu0 %9126
    %9128 = vrot.lane.b32.xlu0 %v8922, 32
    %v9129 = vpop.permute.xlu0 %9128
    %9130 = vrot.lane.b32.xlu0 %v8926, 32
    %v9131 = vpop.permute.xlu0 %9130
    %9132 = vrot.lane.b32.xlu0 %v8935, 32
    %v9133 = vpop.permute.xlu0 %9132
    %9134 = vrot.lane.b32.xlu0 %v8939, 32
    %v9135 = vpop.permute.xlu0 %9134
    %9136 = vrot.lane.b32.xlu0 %v8948, 32
    %v9137 = vpop.permute.xlu0 %9136
    %9138 = vrot.lane.b32.xlu0 %v8952, 32
    %v9139 = vpop.permute.xlu0 %9138
    %9140 = vrot.lane.b32.xlu0 %v8961, 32
    %v9141 = vpop.permute.xlu0 %9140
    %9142 = vrot.lane.b32.xlu0 %v8965, 32
    %v9143 = vpop.permute.xlu0 %9142
    %9144 = vrot.lane.b32.xlu0 %v8974, 32
    %v9145 = vpop.permute.xlu0 %9144
    %9146 = vrot.lane.b32.xlu0 %v8978, 32
    %v9147 = vpop.permute.xlu0 %9146
    %9148 = vrot.lane.b32.xlu0 %v8987, 32
    %v9149 = vpop.permute.xlu0 %9148
    %9150 = vrot.lane.b32.xlu0 %v8991, 32
    %v9151 = vpop.permute.xlu0 %9150
    %9152 = vrot.lane.b32.xlu0 %v9000, 32
    %v9153 = vpop.permute.xlu0 %9152
    %9154 = vrot.lane.b32.xlu0 %v9004, 32
    %v9155 = vpop.permute.xlu0 %9154
    %9156 = vrot.lane.b32.xlu0 %v9013, 32
    %v9157 = vpop.permute.xlu0 %9156
    %9158 = vrot.lane.b32.xlu0 %v9017, 32
    %v9159 = vpop.permute.xlu0 %9158
    %9160 = vrot.lane.b32.xlu0 %v9026, 32
    %v9161 = vpop.permute.xlu0 %9160
    %9162 = vrot.lane.b32.xlu0 %v9030, 32
    %v9163 = vpop.permute.xlu0 %9162
    %9164 = vrot.lane.b32.xlu0 %v9039, 32
    %v9165 = vpop.permute.xlu0 %9164
    %9166 = vrot.lane.b32.xlu0 %v9043, 32
    %v9167 = vpop.permute.xlu0 %9166
    %9168 = vrot.lane.b32.xlu0 %v9052, 32
    %v9169 = vpop.permute.xlu0 %9168
    %9170 = vrot.lane.b32.xlu0 %v9056, 32
    %v9171 = vpop.permute.xlu0 %9170
    %9172 = vrot.lane.b32.xlu0 %v9065, 32
    %v9173 = vpop.permute.xlu0 %9172
    %9174 = vrot.lane.b32.xlu0 %v9069, 32
    %v9175 = vpop.permute.xlu0 %9174
    %9176 = vrot.lane.b32.xlu0 %v9078, 32
    %v9177 = vpop.permute.xlu0 %9176
    %9178 = vrot.lane.b32.xlu0 %v9082, 32
    %v9179 = vpop.permute.xlu0 %9178
    %9180 = vrot.lane.b32.xlu0 %v9091, 32
    %v9181 = vpop.permute.xlu0 %9180
    %9182 = vrot.lane.b32.xlu0 %v9095, 32
    %v9183 = vpop.permute.xlu0 %9182
    %9250 = vst [vmem:[#allocation1] ss:$9 sm:$0xff] %v7926
    %s9251 = scalar_lea.vmem [#allocation1], 1
    %9252 = vst [vmem:[%s9251] ss:$9 sm:$0xff] %v7927
    %s9253 = scalar_lea.vmem [#allocation1], 2
    %9254 = vst [vmem:[%s9253] ss:$9 sm:$0xff] %v7928
    %s9255 = scalar_lea.vmem [#allocation1], 3
    %9256 = vst [vmem:[%s9255] ss:$9 sm:$0xff] %v7929
    %s9257 = scalar_lea.vmem [#allocation1], 4
    %9258 = vst [vmem:[%s9257] ss:$9 sm:$0xff] %v7930
    %s9259 = scalar_lea.vmem [#allocation1], 5
    %9260 = vst [vmem:[%s9259] ss:$9 sm:$0xff] %v7931
    %s9261 = scalar_lea.vmem [#allocation1], 6
    %9262 = vst [vmem:[%s9261] ss:$9 sm:$0xff] %v7932
    %s9263 = scalar_lea.vmem [#allocation1], 7
    %9264 = vst [vmem:[%s9263] ss:$9 sm:$0xff] %v7933
    %v9265 = vld [vmem:[#allocation1] sm:$0xff]
    %9266 = vst [vmem:[#allocation1] ss:$9 sm:$0xff] %v7934
    %9267 = vst [vmem:[%s9251] ss:$9 sm:$0xff] %v7935
    %9268 = vst [vmem:[%s9253] ss:$9 sm:$0xff] %v7936
    %v9269 = vld [vmem:[#allocation1] sm:$0xff]
    %9270 = vst [vmem:[#allocation1] ss:$9 sm:$0xff] %v7938
    %9271 = vst [vmem:[%s9251] ss:$9 sm:$0xff] %v7939
    %9272 = vst [vmem:[%s9253] ss:$9 sm:$0xff] %v7940
    %9273 = vst [vmem:[%s9255] ss:$9 sm:$0xff] %v7941
    %9274 = vst [vmem:[%s9257] ss:$9 sm:$0xff] %v7942
    %9275 = vst [vmem:[%s9259] ss:$9 sm:$0xff] %v7943
    %9276 = vst [vmem:[%s9261] ss:$9 sm:$0xff] %v7944
    %9277 = vst [vmem:[%s9263] ss:$9 sm:$0xff] %v7945
    %v9278 = vld [vmem:[#allocation1] sm:$0xff]
    %9279 = vst [vmem:[#allocation1] ss:$9 sm:$0xff] %v7946
    %9280 = vst [vmem:[%s9251] ss:$9 sm:$0xff] %v7947
    %9281 = vst [vmem:[%s9253] ss:$9 sm:$0xff] %v7948
    %v9282 = vld [vmem:[#allocation1] sm:$0xff]
    %9283 = vst [vmem:[#allocation1] ss:$9 sm:$0xff] %v7950
    %9284 = vst [vmem:[%s9251] ss:$9 sm:$0xff] %v7951
    %9285 = vst [vmem:[%s9253] ss:$9 sm:$0xff] %v7952
    %9286 = vst [vmem:[%s9255] ss:$9 sm:$0xff] %v7953
    %9287 = vst [vmem:[%s9257] ss:$9 sm:$0xff] %v7954
    %9288 = vst [vmem:[%s9259] ss:$9 sm:$0xff] %v7955
    %9289 = vst [vmem:[%s9261] ss:$9 sm:$0xff] %v7956
    %9290 = vst [vmem:[%s9263] ss:$9 sm:$0xff] %v7957
    %v9291 = vld [vmem:[#allocation1] sm:$0xff]
    %9292 = vst [vmem:[#allocation1] ss:$9 sm:$0xff] %v7958
    %9293 = vst [vmem:[%s9251] ss:$9 sm:$0xff] %v7959
    %9294 = vst [vmem:[%s9253] ss:$9 sm:$0xff] %v7960
    %v9295 = vld [vmem:[#allocation1] sm:$0xff]
    %9296 = vst [vmem:[#allocation1] ss:$9 sm:$0xff] %v7962
    %9297 = vst [vmem:[%s9251] ss:$9 sm:$0xff] %v7963
    %9298 = vst [vmem:[%s9253] ss:$9 sm:$0xff] %v7964
    %9299 = vst [vmem:[%s9255] ss:$9 sm:$0xff] %v7965
    %9300 = vst [vmem:[%s9257] ss:$9 sm:$0xff] %v7966
    %9301 = vst [vmem:[%s9259] ss:$9 sm:$0xff] %v7967
    %9302 = vst [vmem:[%s9261] ss:$9 sm:$0xff] %v7968
    %9303 = vst [vmem:[%s9263] ss:$9 sm:$0xff] %v7969
    %v9304 = vld [vmem:[#allocation1] sm:$0xff]
    %9305 = vst [vmem:[#allocation1] ss:$9 sm:$0xff] %v7970
    %9306 = vst [vmem:[%s9251] ss:$9 sm:$0xff] %v7971
    %9307 = vst [vmem:[%s9253] ss:$9 sm:$0xff] %v7972
    %v9308 = vld [vmem:[#allocation1] sm:$0xff]
    %9309 = vst [vmem:[#allocation1] ss:$9 sm:$0xff] %v7974
    %9310 = vst [vmem:[%s9251] ss:$9 sm:$0xff] %v7975
    %9311 = vst [vmem:[%s9253] ss:$9 sm:$0xff] %v7976
    %9312 = vst [vmem:[%s9255] ss:$9 sm:$0xff] %v7977
    %9313 = vst [vmem:[%s9257] ss:$9 sm:$0xff] %v7978
    %9314 = vst [vmem:[%s9259] ss:$9 sm:$0xff] %v7979
    %9315 = vst [vmem:[%s9261] ss:$9 sm:$0xff] %v7980
    %9316 = vst [vmem:[%s9263] ss:$9 sm:$0xff] %v7981
    %v9317 = vld [vmem:[#allocation1] sm:$0xff]
    %9318 = vst [vmem:[#allocation1] ss:$9 sm:$0xff] %v7982
    %9319 = vst [vmem:[%s9251] ss:$9 sm:$0xff] %v7983
    %9320 = vst [vmem:[%s9253] ss:$9 sm:$0xff] %v7984
    %v9321 = vld [vmem:[#allocation1] sm:$0xff]
    %9322 = vst [vmem:[#allocation1] ss:$9 sm:$0xff] %v7986
    %9323 = vst [vmem:[%s9251] ss:$9 sm:$0xff] %v7987
    %9324 = vst [vmem:[%s9253] ss:$9 sm:$0xff] %v7988
    %9325 = vst [vmem:[%s9255] ss:$9 sm:$0xff] %v7989
    %9326 = vst [vmem:[%s9257] ss:$9 sm:$0xff] %v7990
    %9327 = vst [vmem:[%s9259] ss:$9 sm:$0xff] %v7991
    %9328 = vst [vmem:[%s9261] ss:$9 sm:$0xff] %v7992
    %9329 = vst [vmem:[%s9263] ss:$9 sm:$0xff] %v7993
    %v9330 = vld [vmem:[#allocation1] sm:$0xff]
    %9331 = vst [vmem:[#allocation1] ss:$9 sm:$0xff] %v7994
    %9332 = vst [vmem:[%s9251] ss:$9 sm:$0xff] %v7995
    %9333 = vst [vmem:[%s9253] ss:$9 sm:$0xff] %v7996
    %v9334 = vld [vmem:[#allocation1] sm:$0xff]
    %9335 = vst [vmem:[#allocation1] ss:$9 sm:$0xff] %v7998
    %9336 = vst [vmem:[%s9251] ss:$9 sm:$0xff] %v7999
    %9337 = vst [vmem:[%s9253] ss:$9 sm:$0xff] %v8000
    %9338 = vst [vmem:[%s9255] ss:$9 sm:$0xff] %v8001
    %9339 = vst [vmem:[%s9257] ss:$9 sm:$0xff] %v8002
    %9340 = vst [vmem:[%s9259] ss:$9 sm:$0xff] %v8003
    %9341 = vst [vmem:[%s9261] ss:$9 sm:$0xff] %v8004
    %9342 = vst [vmem:[%s9263] ss:$9 sm:$0xff] %v8005
    %v9343 = vld [vmem:[#allocation1] sm:$0xff]
    %9344 = vst [vmem:[#allocation1] ss:$9 sm:$0xff] %v8006
    %9345 = vst [vmem:[%s9251] ss:$9 sm:$0xff] %v8007
    %9346 = vst [vmem:[%s9253] ss:$9 sm:$0xff] %v8008
    %v9347 = vld [vmem:[#allocation1] sm:$0xff]
    %9348 = vst [vmem:[#allocation1] ss:$9 sm:$0xff] %v8010
    %9349 = vst [vmem:[%s9251] ss:$9 sm:$0xff] %v8011
    %9350 = vst [vmem:[%s9253] ss:$9 sm:$0xff] %v8012
    %9351 = vst [vmem:[%s9255] ss:$9 sm:$0xff] %v8013
    %9352 = vst [vmem:[%s9257] ss:$9 sm:$0xff] %v8014
    %9353 = vst [vmem:[%s9259] ss:$9 sm:$0xff] %v8015
    %9354 = vst [vmem:[%s9261] ss:$9 sm:$0xff] %v8016
    %9355 = vst [vmem:[%s9263] ss:$9 sm:$0xff] %v8017
    %v9356 = vld [vmem:[#allocation1] sm:$0xff]
    %9357 = vst [vmem:[#allocation1] ss:$9 sm:$0xff] %v8018
    %9358 = vst [vmem:[%s9251] ss:$9 sm:$0xff] %v8019
    %9359 = vst [vmem:[%s9253] ss:$9 sm:$0xff] %v8020
    %v9360 = vld [vmem:[#allocation1] sm:$0xff]
    %9361 = vst [vmem:[#allocation1] ss:$9 sm:$0xff] %v8022
    %9362 = vst [vmem:[%s9251] ss:$9 sm:$0xff] %v8023
    %9363 = vst [vmem:[%s9253] ss:$9 sm:$0xff] %v8024
    %9364 = vst [vmem:[%s9255] ss:$9 sm:$0xff] %v8025
    %9365 = vst [vmem:[%s9257] ss:$9 sm:$0xff] %v8026
    %9366 = vst [vmem:[%s9259] ss:$9 sm:$0xff] %v8027
    %9367 = vst [vmem:[%s9261] ss:$9 sm:$0xff] %v8028
    %9368 = vst [vmem:[%s9263] ss:$9 sm:$0xff] %v8029
    %v9369 = vld [vmem:[#allocation1] sm:$0xff]
    %9370 = vst [vmem:[#allocation1] ss:$9 sm:$0xff] %v8030
    %9371 = vst [vmem:[%s9251] ss:$9 sm:$0xff] %v8031
    %9372 = vst [vmem:[%s9253] ss:$9 sm:$0xff] %v8032
    %v9373 = vld [vmem:[#allocation1] sm:$0xff]
    %9374 = vst [vmem:[#allocation1] ss:$9 sm:$0xff] %v8034
    %9375 = vst [vmem:[%s9251] ss:$9 sm:$0xff] %v8035
    %9376 = vst [vmem:[%s9253] ss:$9 sm:$0xff] %v8036
    %9377 = vst [vmem:[%s9255] ss:$9 sm:$0xff] %v8037
    %9378 = vst [vmem:[%s9257] ss:$9 sm:$0xff] %v8038
    %9379 = vst [vmem:[%s9259] ss:$9 sm:$0xff] %v8039
    %9380 = vst [vmem:[%s9261] ss:$9 sm:$0xff] %v8040
    %9381 = vst [vmem:[%s9263] ss:$9 sm:$0xff] %v8041
    %v9382 = vld [vmem:[#allocation1] sm:$0xff]
    %9383 = vst [vmem:[#allocation1] ss:$9 sm:$0xff] %v8042
    %9384 = vst [vmem:[%s9251] ss:$9 sm:$0xff] %v8043
    %9385 = vst [vmem:[%s9253] ss:$9 sm:$0xff] %v8044
    %v9386 = vld [vmem:[#allocation1] sm:$0xff]
    %9387 = vst [vmem:[#allocation1] ss:$9 sm:$0xff] %v8046
    %9388 = vst [vmem:[%s9251] ss:$9 sm:$0xff] %v8047
    %9389 = vst [vmem:[%s9253] ss:$9 sm:$0xff] %v8048
    %9390 = vst [vmem:[%s9255] ss:$9 sm:$0xff] %v8049
    %9391 = vst [vmem:[%s9257] ss:$9 sm:$0xff] %v8050
    %9392 = vst [vmem:[%s9259] ss:$9 sm:$0xff] %v8051
    %9393 = vst [vmem:[%s9261] ss:$9 sm:$0xff] %v8052
    %9394 = vst [vmem:[%s9263] ss:$9 sm:$0xff] %v8053
    %v9395 = vld [vmem:[#allocation1] sm:$0xff]
    %9396 = vst [vmem:[#allocation1] ss:$9 sm:$0xff] %v8054
    %9397 = vst [vmem:[%s9251] ss:$9 sm:$0xff] %v8055
    %9398 = vst [vmem:[%s9253] ss:$9 sm:$0xff] %v8056
    %v9399 = vld [vmem:[#allocation1] sm:$0xff]
    %9400 = vst [vmem:[#allocation1] ss:$9 sm:$0xff] %v8070
    %9401 = vst [vmem:[%s9251] ss:$9 sm:$0xff] %v8071
    %9402 = vst [vmem:[%s9253] ss:$9 sm:$0xff] %v8072
    %9403 = vst [vmem:[%s9255] ss:$9 sm:$0xff] %v8073
    %9404 = vst [vmem:[%s9257] ss:$9 sm:$0xff] %v8074
    %9405 = vst [vmem:[%s9259] ss:$9 sm:$0xff] %v8075
    %9406 = vst [vmem:[%s9261] ss:$9 sm:$0xff] %v8076
    %9407 = vst [vmem:[%s9263] ss:$9 sm:$0xff] %v8077
    %v9408 = vld [vmem:[#allocation1] sm:$0xff]
    %9409 = vst [vmem:[#allocation1] ss:$9 sm:$0xff] %v8078
    %9410 = vst [vmem:[%s9251] ss:$9 sm:$0xff] %v8079
    %9411 = vst [vmem:[%s9253] ss:$9 sm:$0xff] %v8080
    %v9412 = vld [vmem:[#allocation1] sm:$0xff]
    %9413 = vst [vmem:[#allocation1] ss:$9 sm:$0xff] %v8082
    %9414 = vst [vmem:[%s9251] ss:$9 sm:$0xff] %v8083
    %9415 = vst [vmem:[%s9253] ss:$9 sm:$0xff] %v8084
    %9416 = vst [vmem:[%s9255] ss:$9 sm:$0xff] %v8085
    %9417 = vst [vmem:[%s9257] ss:$9 sm:$0xff] %v8086
    %9418 = vst [vmem:[%s9259] ss:$9 sm:$0xff] %v8087
    %9419 = vst [vmem:[%s9261] ss:$9 sm:$0xff] %v8088
    %9420 = vst [vmem:[%s9263] ss:$9 sm:$0xff] %v8089
    %v9421 = vld [vmem:[#allocation1] sm:$0xff]
    %9422 = vst [vmem:[#allocation1] ss:$9 sm:$0xff] %v8090
    %9423 = vst [vmem:[%s9251] ss:$9 sm:$0xff] %v8091
    %9424 = vst [vmem:[%s9253] ss:$9 sm:$0xff] %v8092
    %v9425 = vld [vmem:[#allocation1] sm:$0xff]
    %9426 = vst [vmem:[#allocation1] ss:$9 sm:$0xff] %v8094
    %9427 = vst [vmem:[%s9251] ss:$9 sm:$0xff] %v8095
    %9428 = vst [vmem:[%s9253] ss:$9 sm:$0xff] %v8096
    %9429 = vst [vmem:[%s9255] ss:$9 sm:$0xff] %v8097
    %9430 = vst [vmem:[%s9257] ss:$9 sm:$0xff] %v8098
    %9431 = vst [vmem:[%s9259] ss:$9 sm:$0xff] %v8099
    %9432 = vst [vmem:[%s9261] ss:$9 sm:$0xff] %v8100
    %9433 = vst [vmem:[%s9263] ss:$9 sm:$0xff] %v8101
    %v9434 = vld [vmem:[#allocation1] sm:$0xff]
    %9435 = vst [vmem:[#allocation1] ss:$9 sm:$0xff] %v8102
    %9436 = vst [vmem:[%s9251] ss:$9 sm:$0xff] %v8103
    %9437 = vst [vmem:[%s9253] ss:$9 sm:$0xff] %v8104
    %v9438 = vld [vmem:[#allocation1] sm:$0xff]
    %9439 = vst [vmem:[#allocation1] ss:$9 sm:$0xff] %v8106
    %9440 = vst [vmem:[%s9251] ss:$9 sm:$0xff] %v8107
    %9441 = vst [vmem:[%s9253] ss:$9 sm:$0xff] %v8108
    %9442 = vst [vmem:[%s9255] ss:$9 sm:$0xff] %v8109
    %9443 = vst [vmem:[%s9257] ss:$9 sm:$0xff] %v8110
    %9444 = vst [vmem:[%s9259] ss:$9 sm:$0xff] %v8111
    %9445 = vst [vmem:[%s9261] ss:$9 sm:$0xff] %v8112
    %9446 = vst [vmem:[%s9263] ss:$9 sm:$0xff] %v8113
    %v9447 = vld [vmem:[#allocation1] sm:$0xff]
    %9448 = vst [vmem:[#allocation1] ss:$9 sm:$0xff] %v8114
    %9449 = vst [vmem:[%s9251] ss:$9 sm:$0xff] %v8115
    %9450 = vst [vmem:[%s9253] ss:$9 sm:$0xff] %v8116
    %v9451 = vld [vmem:[#allocation1] sm:$0xff]
    %9452 = vst [vmem:[#allocation1] ss:$9 sm:$0xff] %v8118
    %9453 = vst [vmem:[%s9251] ss:$9 sm:$0xff] %v8119
    %9454 = vst [vmem:[%s9253] ss:$9 sm:$0xff] %v8120
    %9455 = vst [vmem:[%s9255] ss:$9 sm:$0xff] %v8121
    %9456 = vst [vmem:[%s9257] ss:$9 sm:$0xff] %v8122
    %9457 = vst [vmem:[%s9259] ss:$9 sm:$0xff] %v8123
    %9458 = vst [vmem:[%s9261] ss:$9 sm:$0xff] %v8124
    %9459 = vst [vmem:[%s9263] ss:$9 sm:$0xff] %v8125
    %v9460 = vld [vmem:[#allocation1] sm:$0xff]
    %9461 = vst [vmem:[#allocation1] ss:$9 sm:$0xff] %v8126
    %9462 = vst [vmem:[%s9251] ss:$9 sm:$0xff] %v8127
    %9463 = vst [vmem:[%s9253] ss:$9 sm:$0xff] %v8128
    %v9464 = vld [vmem:[#allocation1] sm:$0xff]
    %9465 = vst [vmem:[#allocation1] ss:$9 sm:$0xff] %v8130
    %9466 = vst [vmem:[%s9251] ss:$9 sm:$0xff] %v8131
    %9467 = vst [vmem:[%s9253] ss:$9 sm:$0xff] %v8132
    %9468 = vst [vmem:[%s9255] ss:$9 sm:$0xff] %v8133
    %9469 = vst [vmem:[%s9257] ss:$9 sm:$0xff] %v8134
    %9470 = vst [vmem:[%s9259] ss:$9 sm:$0xff] %v8135
    %9471 = vst [vmem:[%s9261] ss:$9 sm:$0xff] %v8136
    %9472 = vst [vmem:[%s9263] ss:$9 sm:$0xff] %v8137
    %v9473 = vld [vmem:[#allocation1] sm:$0xff]
    %9474 = vst [vmem:[#allocation1] ss:$9 sm:$0xff] %v8138
    %9475 = vst [vmem:[%s9251] ss:$9 sm:$0xff] %v8139
    %9476 = vst [vmem:[%s9253] ss:$9 sm:$0xff] %v8140
    %v9477 = vld [vmem:[#allocation1] sm:$0xff]
    %9478 = vst [vmem:[#allocation1] ss:$9 sm:$0xff] %v8142
    %9479 = vst [vmem:[%s9251] ss:$9 sm:$0xff] %v8143
    %9480 = vst [vmem:[%s9253] ss:$9 sm:$0xff] %v8144
    %9481 = vst [vmem:[%s9255] ss:$9 sm:$0xff] %v8145
    %9482 = vst [vmem:[%s9257] ss:$9 sm:$0xff] %v8146
    %9483 = vst [vmem:[%s9259] ss:$9 sm:$0xff] %v8147
    %9484 = vst [vmem:[%s9261] ss:$9 sm:$0xff] %v8148
    %9485 = vst [vmem:[%s9263] ss:$9 sm:$0xff] %v8149
    %v9486 = vld [vmem:[#allocation1] sm:$0xff]
    %9487 = vst [vmem:[#allocation1] ss:$9 sm:$0xff] %v8150
    %9488 = vst [vmem:[%s9251] ss:$9 sm:$0xff] %v8151
    %9489 = vst [vmem:[%s9253] ss:$9 sm:$0xff] %v8152
    %v9490 = vld [vmem:[#allocation1] sm:$0xff]
    %9491 = vst [vmem:[#allocation1] ss:$9 sm:$0xff] %v8154
    %9492 = vst [vmem:[%s9251] ss:$9 sm:$0xff] %v8155
    %9493 = vst [vmem:[%s9253] ss:$9 sm:$0xff] %v8156
    %9494 = vst [vmem:[%s9255] ss:$9 sm:$0xff] %v8157
    %9495 = vst [vmem:[%s9257] ss:$9 sm:$0xff] %v8158
    %9496 = vst [vmem:[%s9259] ss:$9 sm:$0xff] %v8159
    %9497 = vst [vmem:[%s9261] ss:$9 sm:$0xff] %v8160
    %9498 = vst [vmem:[%s9263] ss:$9 sm:$0xff] %v8161
    %v9499 = vld [vmem:[#allocation1] sm:$0xff]
    %9500 = vst [vmem:[#allocation1] ss:$9 sm:$0xff] %v8162
    %9501 = vst [vmem:[%s9251] ss:$9 sm:$0xff] %v8163
    %9502 = vst [vmem:[%s9253] ss:$9 sm:$0xff] %v8164
    %v9503 = vld [vmem:[#allocation1] sm:$0xff]
    %9504 = vst [vmem:[#allocation1] ss:$9 sm:$0xff] %v8166
    %9505 = vst [vmem:[%s9251] ss:$9 sm:$0xff] %v8167
    %9506 = vst [vmem:[%s9253] ss:$9 sm:$0xff] %v8168
    %9507 = vst [vmem:[%s9255] ss:$9 sm:$0xff] %v8169
    %9508 = vst [vmem:[%s9257] ss:$9 sm:$0xff] %v8170
    %9509 = vst [vmem:[%s9259] ss:$9 sm:$0xff] %v8171
    %9510 = vst [vmem:[%s9261] ss:$9 sm:$0xff] %v8172
    %9511 = vst [vmem:[%s9263] ss:$9 sm:$0xff] %v8173
    %v9512 = vld [vmem:[#allocation1] sm:$0xff]
    %9513 = vst [vmem:[#allocation1] ss:$9 sm:$0xff] %v8174
    %9514 = vst [vmem:[%s9251] ss:$9 sm:$0xff] %v8175
    %9515 = vst [vmem:[%s9253] ss:$9 sm:$0xff] %v8176
    %v9516 = vld [vmem:[#allocation1] sm:$0xff]
    %9517 = vst [vmem:[#allocation1] ss:$9 sm:$0xff] %v8178
    %9518 = vst [vmem:[%s9251] ss:$9 sm:$0xff] %v8179
    %9519 = vst [vmem:[%s9253] ss:$9 sm:$0xff] %v8180
    %9520 = vst [vmem:[%s9255] ss:$9 sm:$0xff] %v8181
    %9521 = vst [vmem:[%s9257] ss:$9 sm:$0xff] %v8182
    %9522 = vst [vmem:[%s9259] ss:$9 sm:$0xff] %v8183
    %9523 = vst [vmem:[%s9261] ss:$9 sm:$0xff] %v8184
    %9524 = vst [vmem:[%s9263] ss:$9 sm:$0xff] %v8185
    %v9525 = vld [vmem:[#allocation1] sm:$0xff]
    %9526 = vst [vmem:[#allocation1] ss:$9 sm:$0xff] %v8186
    %9527 = vst [vmem:[%s9251] ss:$9 sm:$0xff] %v8187
    %9528 = vst [vmem:[%s9253] ss:$9 sm:$0xff] %v8188
    %v9529 = vld [vmem:[#allocation1] sm:$0xff]
    %9530 = vst [vmem:[#allocation1] ss:$9 sm:$0xff] %v8190
    %9531 = vst [vmem:[%s9251] ss:$9 sm:$0xff] %v8191
    %9532 = vst [vmem:[%s9253] ss:$9 sm:$0xff] %v8192
    %9533 = vst [vmem:[%s9255] ss:$9 sm:$0xff] %v8193
    %9534 = vst [vmem:[%s9257] ss:$9 sm:$0xff] %v8194
    %9535 = vst [vmem:[%s9259] ss:$9 sm:$0xff] %v8195
    %9536 = vst [vmem:[%s9261] ss:$9 sm:$0xff] %v8196
    %9537 = vst [vmem:[%s9263] ss:$9 sm:$0xff] %v8197
    %v9538 = vld [vmem:[#allocation1] sm:$0xff]
    %9539 = vst [vmem:[#allocation1] ss:$9 sm:$0xff] %v8198
    %9540 = vst [vmem:[%s9251] ss:$9 sm:$0xff] %v8199
    %9541 = vst [vmem:[%s9253] ss:$9 sm:$0xff] %v8200
    %v9542 = vld [vmem:[#allocation1] sm:$0xff]
    %9543 = vrot.lane.b32.xlu0 %v9265, 64
    %v9544 = vpop.permute.xlu0 %9543
    %9545 = vrot.lane.b32.xlu0 %v9269, 64
    %v9546 = vpop.permute.xlu0 %9545
    %9547 = vrot.lane.b32.xlu0 %v9278, 64
    %v9548 = vpop.permute.xlu0 %9547
    %9549 = vrot.lane.b32.xlu0 %v9282, 64
    %v9550 = vpop.permute.xlu0 %9549
    %9551 = vrot.lane.b32.xlu0 %v9291, 64
    %v9552 = vpop.permute.xlu0 %9551
    %9553 = vrot.lane.b32.xlu0 %v9295, 64
    %v9554 = vpop.permute.xlu0 %9553
    %9555 = vrot.lane.b32.xlu0 %v9304, 64
    %v9556 = vpop.permute.xlu0 %9555
    %9557 = vrot.lane.b32.xlu0 %v9308, 64
    %v9558 = vpop.permute.xlu0 %9557
    %9559 = vrot.lane.b32.xlu0 %v9317, 64
    %v9560 = vpop.permute.xlu0 %9559
    %9561 = vrot.lane.b32.xlu0 %v9321, 64
    %v9562 = vpop.permute.xlu0 %9561
    %9563 = vrot.lane.b32.xlu0 %v9330, 64
    %v9564 = vpop.permute.xlu0 %9563
    %9565 = vrot.lane.b32.xlu0 %v9334, 64
    %v9566 = vpop.permute.xlu0 %9565
    %9567 = vrot.lane.b32.xlu0 %v9343, 64
    %v9568 = vpop.permute.xlu0 %9567
    %9569 = vrot.lane.b32.xlu0 %v9347, 64
    %v9570 = vpop.permute.xlu0 %9569
    %9571 = vrot.lane.b32.xlu0 %v9356, 64
    %v9572 = vpop.permute.xlu0 %9571
    %9573 = vrot.lane.b32.xlu0 %v9360, 64
    %v9574 = vpop.permute.xlu0 %9573
    %9575 = vrot.lane.b32.xlu0 %v9369, 64
    %v9576 = vpop.permute.xlu0 %9575
    %9577 = vrot.lane.b32.xlu0 %v9373, 64
    %v9578 = vpop.permute.xlu0 %9577
    %9579 = vrot.lane.b32.xlu0 %v9382, 64
    %v9580 = vpop.permute.xlu0 %9579
    %9581 = vrot.lane.b32.xlu0 %v9386, 64
    %v9582 = vpop.permute.xlu0 %9581
    %9583 = vrot.lane.b32.xlu0 %v9395, 64
    %v9584 = vpop.permute.xlu0 %9583
    %9585 = vrot.lane.b32.xlu0 %v9399, 64
    %v9586 = vpop.permute.xlu0 %9585
    %9587 = vrot.lane.b32.xlu0 %v9408, 64
    %v9588 = vpop.permute.xlu0 %9587
    %9589 = vrot.lane.b32.xlu0 %v9412, 64
    %v9590 = vpop.permute.xlu0 %9589
    %9591 = vrot.lane.b32.xlu0 %v9421, 64
    %v9592 = vpop.permute.xlu0 %9591
    %9593 = vrot.lane.b32.xlu0 %v9425, 64
    %v9594 = vpop.permute.xlu0 %9593
    %9595 = vrot.lane.b32.xlu0 %v9434, 64
    %v9596 = vpop.permute.xlu0 %9595
    %9597 = vrot.lane.b32.xlu0 %v9438, 64
    %v9598 = vpop.permute.xlu0 %9597
    %9599 = vrot.lane.b32.xlu0 %v9447, 64
    %v9600 = vpop.permute.xlu0 %9599
    %9601 = vrot.lane.b32.xlu0 %v9451, 64
    %v9602 = vpop.permute.xlu0 %9601
    %9603 = vrot.lane.b32.xlu0 %v9460, 64
    %v9604 = vpop.permute.xlu0 %9603
    %9605 = vrot.lane.b32.xlu0 %v9464, 64
    %v9606 = vpop.permute.xlu0 %9605
    %9607 = vrot.lane.b32.xlu0 %v9473, 64
    %v9608 = vpop.permute.xlu0 %9607
    %9609 = vrot.lane.b32.xlu0 %v9477, 64
    %v9610 = vpop.permute.xlu0 %9609
    %9611 = vrot.lane.b32.xlu0 %v9486, 64
    %v9612 = vpop.permute.xlu0 %9611
    %9613 = vrot.lane.b32.xlu0 %v9490, 64
    %v9614 = vpop.permute.xlu0 %9613
    %9615 = vrot.lane.b32.xlu0 %v9499, 64
    %v9616 = vpop.permute.xlu0 %9615
    %9617 = vrot.lane.b32.xlu0 %v9503, 64
    %v9618 = vpop.permute.xlu0 %9617
    %9619 = vrot.lane.b32.xlu0 %v9512, 64
    %v9620 = vpop.permute.xlu0 %9619
    %9621 = vrot.lane.b32.xlu0 %v9516, 64
    %v9622 = vpop.permute.xlu0 %9621
    %9623 = vrot.lane.b32.xlu0 %v9525, 64
    %v9624 = vpop.permute.xlu0 %9623
    %9625 = vrot.lane.b32.xlu0 %v9529, 64
    %v9626 = vpop.permute.xlu0 %9625
    %9627 = vrot.lane.b32.xlu0 %v9538, 64
    %v9628 = vpop.permute.xlu0 %9627
    %9629 = vrot.lane.b32.xlu0 %v9542, 64
    %v9630 = vpop.permute.xlu0 %9629
    %9677 = vst [vmem:[#allocation1] ss:$9 sm:$0xff] %v7927
    %s9678 = scalar_lea.vmem [#allocation1], 1
    %9679 = vst [vmem:[%s9678] ss:$9 sm:$0xff] %v7928
    %s9680 = scalar_lea.vmem [#allocation1], 2
    %9681 = vst [vmem:[%s9680] ss:$9 sm:$0xff] %v7929
    %s9682 = scalar_lea.vmem [#allocation1], 3
    %9683 = vst [vmem:[%s9682] ss:$9 sm:$0xff] %v7930
    %s9684 = scalar_lea.vmem [#allocation1], 4
    %9685 = vst [vmem:[%s9684] ss:$9 sm:$0xff] %v7931
    %s9686 = scalar_lea.vmem [#allocation1], 5
    %9687 = vst [vmem:[%s9686] ss:$9 sm:$0xff] %v7932
    %s9688 = scalar_lea.vmem [#allocation1], 6
    %9689 = vst [vmem:[%s9688] ss:$9 sm:$0xff] %v7933
    %s9690 = scalar_lea.vmem [#allocation1], 7
    %9691 = vst [vmem:[%s9690] ss:$9 sm:$0xff] %v7934
    %v9692 = vld [vmem:[#allocation1] sm:$0xff]
    %9693 = vst [vmem:[#allocation1] ss:$9 sm:$0xff] %v7935
    %9694 = vst [vmem:[%s9678] ss:$9 sm:$0xff] %v7936
    %9695 = vst [vmem:[%s9680] ss:$9 sm:$0xff] %v7937
    %v9696 = vld [vmem:[#allocation1] sm:$0xff]
    %9697 = vst [vmem:[#allocation1] ss:$9 sm:$0xff] %v7939
    %9698 = vst [vmem:[%s9678] ss:$9 sm:$0xff] %v7940
    %9699 = vst [vmem:[%s9680] ss:$9 sm:$0xff] %v7941
    %9700 = vst [vmem:[%s9682] ss:$9 sm:$0xff] %v7942
    %9701 = vst [vmem:[%s9684] ss:$9 sm:$0xff] %v7943
    %9702 = vst [vmem:[%s9686] ss:$9 sm:$0xff] %v7944
    %9703 = vst [vmem:[%s9688] ss:$9 sm:$0xff] %v7945
    %9704 = vst [vmem:[%s9690] ss:$9 sm:$0xff] %v7946
    %v9705 = vld [vmem:[#allocation1] sm:$0xff]
    %9706 = vst [vmem:[#allocation1] ss:$9 sm:$0xff] %v7947
    %9707 = vst [vmem:[%s9678] ss:$9 sm:$0xff] %v7948
    %9708 = vst [vmem:[%s9680] ss:$9 sm:$0xff] %v7949
    %v9709 = vld [vmem:[#allocation1] sm:$0xff]
    %9710 = vst [vmem:[#allocation1] ss:$9 sm:$0xff] %v7951
    %9711 = vst [vmem:[%s9678] ss:$9 sm:$0xff] %v7952
    %9712 = vst [vmem:[%s9680] ss:$9 sm:$0xff] %v7953
    %9713 = vst [vmem:[%s9682] ss:$9 sm:$0xff] %v7954
    %9714 = vst [vmem:[%s9684] ss:$9 sm:$0xff] %v7955
    %9715 = vst [vmem:[%s9686] ss:$9 sm:$0xff] %v7956
    %9716 = vst [vmem:[%s9688] ss:$9 sm:$0xff] %v7957
    %9717 = vst [vmem:[%s9690] ss:$9 sm:$0xff] %v7958
    %v9718 = vld [vmem:[#allocation1] sm:$0xff]
    %9719 = vst [vmem:[#allocation1] ss:$9 sm:$0xff] %v7959
    %9720 = vst [vmem:[%s9678] ss:$9 sm:$0xff] %v7960
    %9721 = vst [vmem:[%s9680] ss:$9 sm:$0xff] %v7961
    %v9722 = vld [vmem:[#allocation1] sm:$0xff]
    %9723 = vst [vmem:[#allocation1] ss:$9 sm:$0xff] %v7963
    %9724 = vst [vmem:[%s9678] ss:$9 sm:$0xff] %v7964
    %9725 = vst [vmem:[%s9680] ss:$9 sm:$0xff] %v7965
    %9726 = vst [vmem:[%s9682] ss:$9 sm:$0xff] %v7966
    %9727 = vst [vmem:[%s9684] ss:$9 sm:$0xff] %v7967
    %9728 = vst [vmem:[%s9686] ss:$9 sm:$0xff] %v7968
    %9729 = vst [vmem:[%s9688] ss:$9 sm:$0xff] %v7969
    %9730 = vst [vmem:[%s9690] ss:$9 sm:$0xff] %v7970
    %v9731 = vld [vmem:[#allocation1] sm:$0xff]
    %9732 = vst [vmem:[#allocation1] ss:$9 sm:$0xff] %v7971
    %9733 = vst [vmem:[%s9678] ss:$9 sm:$0xff] %v7972
    %9734 = vst [vmem:[%s9680] ss:$9 sm:$0xff] %v7973
    %v9735 = vld [vmem:[#allocation1] sm:$0xff]
    %9736 = vst [vmem:[#allocation1] ss:$9 sm:$0xff] %v7975
    %9737 = vst [vmem:[%s9678] ss:$9 sm:$0xff] %v7976
    %9738 = vst [vmem:[%s9680] ss:$9 sm:$0xff] %v7977
    %9739 = vst [vmem:[%s9682] ss:$9 sm:$0xff] %v7978
    %9740 = vst [vmem:[%s9684] ss:$9 sm:$0xff] %v7979
    %9741 = vst [vmem:[%s9686] ss:$9 sm:$0xff] %v7980
    %9742 = vst [vmem:[%s9688] ss:$9 sm:$0xff] %v7981
    %9743 = vst [vmem:[%s9690] ss:$9 sm:$0xff] %v7982
    %v9744 = vld [vmem:[#allocation1] sm:$0xff]
    %9745 = vst [vmem:[#allocation1] ss:$9 sm:$0xff] %v7983
    %9746 = vst [vmem:[%s9678] ss:$9 sm:$0xff] %v7984
    %9747 = vst [vmem:[%s9680] ss:$9 sm:$0xff] %v7985
    %v9748 = vld [vmem:[#allocation1] sm:$0xff]
    %9749 = vst [vmem:[#allocation1] ss:$9 sm:$0xff] %v7987
    %9750 = vst [vmem:[%s9678] ss:$9 sm:$0xff] %v7988
    %9751 = vst [vmem:[%s9680] ss:$9 sm:$0xff] %v7989
    %9752 = vst [vmem:[%s9682] ss:$9 sm:$0xff] %v7990
    %9753 = vst [vmem:[%s9684] ss:$9 sm:$0xff] %v7991
    %9754 = vst [vmem:[%s9686] ss:$9 sm:$0xff] %v7992
    %9755 = vst [vmem:[%s9688] ss:$9 sm:$0xff] %v7993
    %9756 = vst [vmem:[%s9690] ss:$9 sm:$0xff] %v7994
    %v9757 = vld [vmem:[#allocation1] sm:$0xff]
    %9758 = vst [vmem:[#allocation1] ss:$9 sm:$0xff] %v7995
    %9759 = vst [vmem:[%s9678] ss:$9 sm:$0xff] %v7996
    %9760 = vst [vmem:[%s9680] ss:$9 sm:$0xff] %v7997
    %v9761 = vld [vmem:[#allocation1] sm:$0xff]
    %9762 = vst [vmem:[#allocation1] ss:$9 sm:$0xff] %v7999
    %9763 = vst [vmem:[%s9678] ss:$9 sm:$0xff] %v8000
    %9764 = vst [vmem:[%s9680] ss:$9 sm:$0xff] %v8001
    %9765 = vst [vmem:[%s9682] ss:$9 sm:$0xff] %v8002
    %9766 = vst [vmem:[%s9684] ss:$9 sm:$0xff] %v8003
    %9767 = vst [vmem:[%s9686] ss:$9 sm:$0xff] %v8004
    %9768 = vst [vmem:[%s9688] ss:$9 sm:$0xff] %v8005
    %9769 = vst [vmem:[%s9690] ss:$9 sm:$0xff] %v8006
    %v9770 = vld [vmem:[#allocation1] sm:$0xff]
    %9771 = vst [vmem:[#allocation1] ss:$9 sm:$0xff] %v8007
    %9772 = vst [vmem:[%s9678] ss:$9 sm:$0xff] %v8008
    %9773 = vst [vmem:[%s9680] ss:$9 sm:$0xff] %v8009
    %v9774 = vld [vmem:[#allocation1] sm:$0xff]
    %9775 = vst [vmem:[#allocation1] ss:$9 sm:$0xff] %v8011
    %9776 = vst [vmem:[%s9678] ss:$9 sm:$0xff] %v8012
    %9777 = vst [vmem:[%s9680] ss:$9 sm:$0xff] %v8013
    %9778 = vst [vmem:[%s9682] ss:$9 sm:$0xff] %v8014
    %9779 = vst [vmem:[%s9684] ss:$9 sm:$0xff] %v8015
    %9780 = vst [vmem:[%s9686] ss:$9 sm:$0xff] %v8016
    %9781 = vst [vmem:[%s9688] ss:$9 sm:$0xff] %v8017
    %9782 = vst [vmem:[%s9690] ss:$9 sm:$0xff] %v8018
    %v9783 = vld [vmem:[#allocation1] sm:$0xff]
    %9784 = vst [vmem:[#allocation1] ss:$9 sm:$0xff] %v8019
    %9785 = vst [vmem:[%s9678] ss:$9 sm:$0xff] %v8020
    %9786 = vst [vmem:[%s9680] ss:$9 sm:$0xff] %v8021
    %v9787 = vld [vmem:[#allocation1] sm:$0xff]
    %9788 = vst [vmem:[#allocation1] ss:$9 sm:$0xff] %v8023
    %9789 = vst [vmem:[%s9678] ss:$9 sm:$0xff] %v8024
    %9790 = vst [vmem:[%s9680] ss:$9 sm:$0xff] %v8025
    %9791 = vst [vmem:[%s9682] ss:$9 sm:$0xff] %v8026
    %9792 = vst [vmem:[%s9684] ss:$9 sm:$0xff] %v8027
    %9793 = vst [vmem:[%s9686] ss:$9 sm:$0xff] %v8028
    %9794 = vst [vmem:[%s9688] ss:$9 sm:$0xff] %v8029
    %9795 = vst [vmem:[%s9690] ss:$9 sm:$0xff] %v8030
    %v9796 = vld [vmem:[#allocation1] sm:$0xff]
    %9797 = vst [vmem:[#allocation1] ss:$9 sm:$0xff] %v8031
    %9798 = vst [vmem:[%s9678] ss:$9 sm:$0xff] %v8032
    %9799 = vst [vmem:[%s9680] ss:$9 sm:$0xff] %v8033
    %v9800 = vld [vmem:[#allocation1] sm:$0xff]
    %9801 = vst [vmem:[#allocation1] ss:$9 sm:$0xff] %v8035
    %9802 = vst [vmem:[%s9678] ss:$9 sm:$0xff] %v8036
    %9803 = vst [vmem:[%s9680] ss:$9 sm:$0xff] %v8037
    %9804 = vst [vmem:[%s9682] ss:$9 sm:$0xff] %v8038
    %9805 = vst [vmem:[%s9684] ss:$9 sm:$0xff] %v8039
    %9806 = vst [vmem:[%s9686] ss:$9 sm:$0xff] %v8040
    %9807 = vst [vmem:[%s9688] ss:$9 sm:$0xff] %v8041
    %9808 = vst [vmem:[%s9690] ss:$9 sm:$0xff] %v8042
    %v9809 = vld [vmem:[#allocation1] sm:$0xff]
    %9810 = vst [vmem:[#allocation1] ss:$9 sm:$0xff] %v8043
    %9811 = vst [vmem:[%s9678] ss:$9 sm:$0xff] %v8044
    %9812 = vst [vmem:[%s9680] ss:$9 sm:$0xff] %v8045
    %v9813 = vld [vmem:[#allocation1] sm:$0xff]
    %9814 = vst [vmem:[#allocation1] ss:$9 sm:$0xff] %v8047
    %9815 = vst [vmem:[%s9678] ss:$9 sm:$0xff] %v8048
    %9816 = vst [vmem:[%s9680] ss:$9 sm:$0xff] %v8049
    %9817 = vst [vmem:[%s9682] ss:$9 sm:$0xff] %v8050
    %9818 = vst [vmem:[%s9684] ss:$9 sm:$0xff] %v8051
    %9819 = vst [vmem:[%s9686] ss:$9 sm:$0xff] %v8052
    %9820 = vst [vmem:[%s9688] ss:$9 sm:$0xff] %v8053
    %9821 = vst [vmem:[%s9690] ss:$9 sm:$0xff] %v8054
    %v9822 = vld [vmem:[#allocation1] sm:$0xff]
    %9823 = vst [vmem:[#allocation1] ss:$9 sm:$0xff] %v8055
    %9824 = vst [vmem:[%s9678] ss:$9 sm:$0xff] %v8056
    %9825 = vst [vmem:[%s9680] ss:$9 sm:$0xff] %v8057
    %v9826 = vld [vmem:[#allocation1] sm:$0xff]
    %9827 = vst [vmem:[#allocation1] ss:$9 sm:$0xff] %v8071
    %9828 = vst [vmem:[%s9678] ss:$9 sm:$0xff] %v8072
    %9829 = vst [vmem:[%s9680] ss:$9 sm:$0xff] %v8073
    %9830 = vst [vmem:[%s9682] ss:$9 sm:$0xff] %v8074
    %9831 = vst [vmem:[%s9684] ss:$9 sm:$0xff] %v8075
    %9832 = vst [vmem:[%s9686] ss:$9 sm:$0xff] %v8076
    %9833 = vst [vmem:[%s9688] ss:$9 sm:$0xff] %v8077
    %9834 = vst [vmem:[%s9690] ss:$9 sm:$0xff] %v8078
    %v9835 = vld [vmem:[#allocation1] sm:$0xff]
    %9836 = vst [vmem:[#allocation1] ss:$9 sm:$0xff] %v8079
    %9837 = vst [vmem:[%s9678] ss:$9 sm:$0xff] %v8080
    %9838 = vst [vmem:[%s9680] ss:$9 sm:$0xff] %v8081
    %v9839 = vld [vmem:[#allocation1] sm:$0xff]
    %9840 = vst [vmem:[#allocation1] ss:$9 sm:$0xff] %v8083
    %9841 = vst [vmem:[%s9678] ss:$9 sm:$0xff] %v8084
    %9842 = vst [vmem:[%s9680] ss:$9 sm:$0xff] %v8085
    %9843 = vst [vmem:[%s9682] ss:$9 sm:$0xff] %v8086
    %9844 = vst [vmem:[%s9684] ss:$9 sm:$0xff] %v8087
    %9845 = vst [vmem:[%s9686] ss:$9 sm:$0xff] %v8088
    %9846 = vst [vmem:[%s9688] ss:$9 sm:$0xff] %v8089
    %9847 = vst [vmem:[%s9690] ss:$9 sm:$0xff] %v8090
    %v9848 = vld [vmem:[#allocation1] sm:$0xff]
    %9849 = vst [vmem:[#allocation1] ss:$9 sm:$0xff] %v8091
    %9850 = vst [vmem:[%s9678] ss:$9 sm:$0xff] %v8092
    %9851 = vst [vmem:[%s9680] ss:$9 sm:$0xff] %v8093
    %v9852 = vld [vmem:[#allocation1] sm:$0xff]
    %9853 = vst [vmem:[#allocation1] ss:$9 sm:$0xff] %v8095
    %9854 = vst [vmem:[%s9678] ss:$9 sm:$0xff] %v8096
    %9855 = vst [vmem:[%s9680] ss:$9 sm:$0xff] %v8097
    %9856 = vst [vmem:[%s9682] ss:$9 sm:$0xff] %v8098
    %9857 = vst [vmem:[%s9684] ss:$9 sm:$0xff] %v8099
    %9858 = vst [vmem:[%s9686] ss:$9 sm:$0xff] %v8100
    %9859 = vst [vmem:[%s9688] ss:$9 sm:$0xff] %v8101
    %9860 = vst [vmem:[%s9690] ss:$9 sm:$0xff] %v8102
    %v9861 = vld [vmem:[#allocation1] sm:$0xff]
    %9862 = vst [vmem:[#allocation1] ss:$9 sm:$0xff] %v8103
    %9863 = vst [vmem:[%s9678] ss:$9 sm:$0xff] %v8104
    %9864 = vst [vmem:[%s9680] ss:$9 sm:$0xff] %v8105
    %v9865 = vld [vmem:[#allocation1] sm:$0xff]
    %9866 = vst [vmem:[#allocation1] ss:$9 sm:$0xff] %v8107
    %9867 = vst [vmem:[%s9678] ss:$9 sm:$0xff] %v8108
    %9868 = vst [vmem:[%s9680] ss:$9 sm:$0xff] %v8109
    %9869 = vst [vmem:[%s9682] ss:$9 sm:$0xff] %v8110
    %9870 = vst [vmem:[%s9684] ss:$9 sm:$0xff] %v8111
    %9871 = vst [vmem:[%s9686] ss:$9 sm:$0xff] %v8112
    %9872 = vst [vmem:[%s9688] ss:$9 sm:$0xff] %v8113
    %9873 = vst [vmem:[%s9690] ss:$9 sm:$0xff] %v8114
    %v9874 = vld [vmem:[#allocation1] sm:$0xff]
    %9875 = vst [vmem:[#allocation1] ss:$9 sm:$0xff] %v8115
    %9876 = vst [vmem:[%s9678] ss:$9 sm:$0xff] %v8116
    %9877 = vst [vmem:[%s9680] ss:$9 sm:$0xff] %v8117
    %v9878 = vld [vmem:[#allocation1] sm:$0xff]
    %9879 = vst [vmem:[#allocation1] ss:$9 sm:$0xff] %v8119
    %9880 = vst [vmem:[%s9678] ss:$9 sm:$0xff] %v8120
    %9881 = vst [vmem:[%s9680] ss:$9 sm:$0xff] %v8121
    %9882 = vst [vmem:[%s9682] ss:$9 sm:$0xff] %v8122
    %9883 = vst [vmem:[%s9684] ss:$9 sm:$0xff] %v8123
    %9884 = vst [vmem:[%s9686] ss:$9 sm:$0xff] %v8124
    %9885 = vst [vmem:[%s9688] ss:$9 sm:$0xff] %v8125
    %9886 = vst [vmem:[%s9690] ss:$9 sm:$0xff] %v8126
    %v9887 = vld [vmem:[#allocation1] sm:$0xff]
    %9888 = vst [vmem:[#allocation1] ss:$9 sm:$0xff] %v8127
    %9889 = vst [vmem:[%s9678] ss:$9 sm:$0xff] %v8128
    %9890 = vst [vmem:[%s9680] ss:$9 sm:$0xff] %v8129
    %v9891 = vld [vmem:[#allocation1] sm:$0xff]
    %9892 = vst [vmem:[#allocation1] ss:$9 sm:$0xff] %v8131
    %9893 = vst [vmem:[%s9678] ss:$9 sm:$0xff] %v8132
    %9894 = vst [vmem:[%s9680] ss:$9 sm:$0xff] %v8133
    %9895 = vst [vmem:[%s9682] ss:$9 sm:$0xff] %v8134
    %9896 = vst [vmem:[%s9684] ss:$9 sm:$0xff] %v8135
    %9897 = vst [vmem:[%s9686] ss:$9 sm:$0xff] %v8136
    %9898 = vst [vmem:[%s9688] ss:$9 sm:$0xff] %v8137
    %9899 = vst [vmem:[%s9690] ss:$9 sm:$0xff] %v8138
    %v9900 = vld [vmem:[#allocation1] sm:$0xff]
    %9901 = vst [vmem:[#allocation1] ss:$9 sm:$0xff] %v8139
    %9902 = vst [vmem:[%s9678] ss:$9 sm:$0xff] %v8140
    %9903 = vst [vmem:[%s9680] ss:$9 sm:$0xff] %v8141
    %v9904 = vld [vmem:[#allocation1] sm:$0xff]
    %9905 = vst [vmem:[#allocation1] ss:$9 sm:$0xff] %v8143
    %9906 = vst [vmem:[%s9678] ss:$9 sm:$0xff] %v8144
    %9907 = vst [vmem:[%s9680] ss:$9 sm:$0xff] %v8145
    %9908 = vst [vmem:[%s9682] ss:$9 sm:$0xff] %v8146
    %9909 = vst [vmem:[%s9684] ss:$9 sm:$0xff] %v8147
    %9910 = vst [vmem:[%s9686] ss:$9 sm:$0xff] %v8148
    %9911 = vst [vmem:[%s9688] ss:$9 sm:$0xff] %v8149
    %9912 = vst [vmem:[%s9690] ss:$9 sm:$0xff] %v8150
    %v9913 = vld [vmem:[#allocation1] sm:$0xff]
    %9914 = vst [vmem:[#allocation1] ss:$9 sm:$0xff] %v8151
    %9915 = vst [vmem:[%s9678] ss:$9 sm:$0xff] %v8152
    %9916 = vst [vmem:[%s9680] ss:$9 sm:$0xff] %v8153
    %v9917 = vld [vmem:[#allocation1] sm:$0xff]
    %9918 = vst [vmem:[#allocation1] ss:$9 sm:$0xff] %v8155
    %9919 = vst [vmem:[%s9678] ss:$9 sm:$0xff] %v8156
    %9920 = vst [vmem:[%s9680] ss:$9 sm:$0xff] %v8157
    %9921 = vst [vmem:[%s9682] ss:$9 sm:$0xff] %v8158
    %9922 = vst [vmem:[%s9684] ss:$9 sm:$0xff] %v8159
    %9923 = vst [vmem:[%s9686] ss:$9 sm:$0xff] %v8160
    %9924 = vst [vmem:[%s9688] ss:$9 sm:$0xff] %v8161
    %9925 = vst [vmem:[%s9690] ss:$9 sm:$0xff] %v8162
    %v9926 = vld [vmem:[#allocation1] sm:$0xff]
    %9927 = vst [vmem:[#allocation1] ss:$9 sm:$0xff] %v8163
    %9928 = vst [vmem:[%s9678] ss:$9 sm:$0xff] %v8164
    %9929 = vst [vmem:[%s9680] ss:$9 sm:$0xff] %v8165
    %v9930 = vld [vmem:[#allocation1] sm:$0xff]
    %9931 = vst [vmem:[#allocation1] ss:$9 sm:$0xff] %v8167
    %9932 = vst [vmem:[%s9678] ss:$9 sm:$0xff] %v8168
    %9933 = vst [vmem:[%s9680] ss:$9 sm:$0xff] %v8169
    %9934 = vst [vmem:[%s9682] ss:$9 sm:$0xff] %v8170
    %9935 = vst [vmem:[%s9684] ss:$9 sm:$0xff] %v8171
    %9936 = vst [vmem:[%s9686] ss:$9 sm:$0xff] %v8172
    %9937 = vst [vmem:[%s9688] ss:$9 sm:$0xff] %v8173
    %9938 = vst [vmem:[%s9690] ss:$9 sm:$0xff] %v8174
    %v9939 = vld [vmem:[#allocation1] sm:$0xff]
    %9940 = vst [vmem:[#allocation1] ss:$9 sm:$0xff] %v8175
    %9941 = vst [vmem:[%s9678] ss:$9 sm:$0xff] %v8176
    %9942 = vst [vmem:[%s9680] ss:$9 sm:$0xff] %v8177
    %v9943 = vld [vmem:[#allocation1] sm:$0xff]
    %9944 = vst [vmem:[#allocation1] ss:$9 sm:$0xff] %v8179
    %9945 = vst [vmem:[%s9678] ss:$9 sm:$0xff] %v8180
    %9946 = vst [vmem:[%s9680] ss:$9 sm:$0xff] %v8181
    %9947 = vst [vmem:[%s9682] ss:$9 sm:$0xff] %v8182
    %9948 = vst [vmem:[%s9684] ss:$9 sm:$0xff] %v8183
    %9949 = vst [vmem:[%s9686] ss:$9 sm:$0xff] %v8184
    %9950 = vst [vmem:[%s9688] ss:$9 sm:$0xff] %v8185
    %9951 = vst [vmem:[%s9690] ss:$9 sm:$0xff] %v8186
    %v9952 = vld [vmem:[#allocation1] sm:$0xff]
    %9953 = vst [vmem:[#allocation1] ss:$9 sm:$0xff] %v8187
    %9954 = vst [vmem:[%s9678] ss:$9 sm:$0xff] %v8188
    %9955 = vst [vmem:[%s9680] ss:$9 sm:$0xff] %v8189
    %v9956 = vld [vmem:[#allocation1] sm:$0xff]
    %9957 = vst [vmem:[#allocation1] ss:$9 sm:$0xff] %v8191
    %9958 = vst [vmem:[%s9678] ss:$9 sm:$0xff] %v8192
    %9959 = vst [vmem:[%s9680] ss:$9 sm:$0xff] %v8193
    %9960 = vst [vmem:[%s9682] ss:$9 sm:$0xff] %v8194
    %9961 = vst [vmem:[%s9684] ss:$9 sm:$0xff] %v8195
    %9962 = vst [vmem:[%s9686] ss:$9 sm:$0xff] %v8196
    %9963 = vst [vmem:[%s9688] ss:$9 sm:$0xff] %v8197
    %9964 = vst [vmem:[%s9690] ss:$9 sm:$0xff] %v8198
    %v9965 = vld [vmem:[#allocation1] sm:$0xff]
    %9966 = vst [vmem:[#allocation1] ss:$9 sm:$0xff] %v8199
    %9967 = vst [vmem:[%s9678] ss:$9 sm:$0xff] %v8200
    %9968 = vst [vmem:[%s9680] ss:$9 sm:$0xff] %v8201
    %v9969 = vld [vmem:[#allocation1] sm:$0xff]
    %9970 = vrot.lane.b32.xlu0 %v9692, 96
    %v9971 = vpop.permute.xlu0 %9970
    %9972 = vrot.lane.b32.xlu0 %v9696, 96
    %v9973 = vpop.permute.xlu0 %9972
    %9974 = vrot.lane.b32.xlu0 %v9705, 96
    %v9975 = vpop.permute.xlu0 %9974
    %9976 = vrot.lane.b32.xlu0 %v9709, 96
    %v9977 = vpop.permute.xlu0 %9976
    %9978 = vrot.lane.b32.xlu0 %v9718, 96
    %v9979 = vpop.permute.xlu0 %9978
    %9980 = vrot.lane.b32.xlu0 %v9722, 96
    %v9981 = vpop.permute.xlu0 %9980
    %9982 = vrot.lane.b32.xlu0 %v9731, 96
    %v9983 = vpop.permute.xlu0 %9982
    %9984 = vrot.lane.b32.xlu0 %v9735, 96
    %v9985 = vpop.permute.xlu0 %9984
    %9986 = vrot.lane.b32.xlu0 %v9744, 96
    %v9987 = vpop.permute.xlu0 %9986
    %9988 = vrot.lane.b32.xlu0 %v9748, 96
    %v9989 = vpop.permute.xlu0 %9988
    %9990 = vrot.lane.b32.xlu0 %v9757, 96
    %v9991 = vpop.permute.xlu0 %9990
    %9992 = vrot.lane.b32.xlu0 %v9761, 96
    %v9993 = vpop.permute.xlu0 %9992
    %9994 = vrot.lane.b32.xlu0 %v9770, 96
    %v9995 = vpop.permute.xlu0 %9994
    %9996 = vrot.lane.b32.xlu0 %v9774, 96
    %v9997 = vpop.permute.xlu0 %9996
    %9998 = vrot.lane.b32.xlu0 %v9783, 96
    %v9999 = vpop.permute.xlu0 %9998
    %10000 = vrot.lane.b32.xlu0 %v9787, 96
    %v10001 = vpop.permute.xlu0 %10000
    %10002 = vrot.lane.b32.xlu0 %v9796, 96
    %v10003 = vpop.permute.xlu0 %10002
    %10004 = vrot.lane.b32.xlu0 %v9800, 96
    %v10005 = vpop.permute.xlu0 %10004
    %10006 = vrot.lane.b32.xlu0 %v9809, 96
    %v10007 = vpop.permute.xlu0 %10006
    %10008 = vrot.lane.b32.xlu0 %v9813, 96
    %v10009 = vpop.permute.xlu0 %10008
    %10010 = vrot.lane.b32.xlu0 %v9822, 96
    %v10011 = vpop.permute.xlu0 %10010
    %10012 = vrot.lane.b32.xlu0 %v9826, 96
    %v10013 = vpop.permute.xlu0 %10012
    %10014 = vrot.lane.b32.xlu0 %v9835, 96
    %v10015 = vpop.permute.xlu0 %10014
    %10016 = vrot.lane.b32.xlu0 %v9839, 96
    %v10017 = vpop.permute.xlu0 %10016
    %10018 = vrot.lane.b32.xlu0 %v9848, 96
    %v10019 = vpop.permute.xlu0 %10018
    %10020 = vrot.lane.b32.xlu0 %v9852, 96
    %v10021 = vpop.permute.xlu0 %10020
    %10022 = vrot.lane.b32.xlu0 %v9861, 96
    %v10023 = vpop.permute.xlu0 %10022
    %10024 = vrot.lane.b32.xlu0 %v9865, 96
    %v10025 = vpop.permute.xlu0 %10024
    %10026 = vrot.lane.b32.xlu0 %v9874, 96
    %v10027 = vpop.permute.xlu0 %10026
    %10028 = vrot.lane.b32.xlu0 %v9878, 96
    %v10029 = vpop.permute.xlu0 %10028
    %10030 = vrot.lane.b32.xlu0 %v9887, 96
    %v10031 = vpop.permute.xlu0 %10030
    %10032 = vrot.lane.b32.xlu0 %v9891, 96
    %v10033 = vpop.permute.xlu0 %10032
    %10034 = vrot.lane.b32.xlu0 %v9900, 96
    %v10035 = vpop.permute.xlu0 %10034
    %10036 = vrot.lane.b32.xlu0 %v9904, 96
    %v10037 = vpop.permute.xlu0 %10036
    %10038 = vrot.lane.b32.xlu0 %v9913, 96
    %v10039 = vpop.permute.xlu0 %10038
    %10040 = vrot.lane.b32.xlu0 %v9917, 96
    %v10041 = vpop.permute.xlu0 %10040
    %10042 = vrot.lane.b32.xlu0 %v9926, 96
    %v10043 = vpop.permute.xlu0 %10042
    %10044 = vrot.lane.b32.xlu0 %v9930, 96
    %v10045 = vpop.permute.xlu0 %10044
    %10046 = vrot.lane.b32.xlu0 %v9939, 96
    %v10047 = vpop.permute.xlu0 %10046
    %10048 = vrot.lane.b32.xlu0 %v9943, 96
    %v10049 = vpop.permute.xlu0 %10048
    %10050 = vrot.lane.b32.xlu0 %v9952, 96
    %v10051 = vpop.permute.xlu0 %10050
    %10052 = vrot.lane.b32.xlu0 %v9956, 96
    %v10053 = vpop.permute.xlu0 %10052
    %10054 = vrot.lane.b32.xlu0 %v9965, 96
    %v10055 = vpop.permute.xlu0 %10054
    %10056 = vrot.lane.b32.xlu0 %v9969, 96
    %v10057 = vpop.permute.xlu0 %10056
    %v10102 = vsel %vm5759, %v8459, %v9097
    %v10103 = vsel %vm5759, %v8463, %v9099
    %v10104 = vsel %vm5759, %v8472, %v9101
    %v10105 = vsel %vm5759, %v8476, %v9103
    %v10106 = vsel %vm5759, %v8485, %v9105
    %v10107 = vsel %vm5759, %v8489, %v9107
    %v10108 = vsel %vm5759, %v8498, %v9109
    %v10109 = vsel %vm5759, %v8502, %v9111
    %v10110 = vsel %vm5759, %v8511, %v9113
    %v10111 = vsel %vm5759, %v8515, %v9115
    %v10112 = vsel %vm5759, %v8524, %v9117
    %v10113 = vsel %vm5759, %v8528, %v9119
    %v10114 = vsel %vm5759, %v8537, %v9121
    %v10115 = vsel %vm5759, %v8541, %v9123
    %v10116 = vsel %vm5759, %v8550, %v9125
    %v10117 = vsel %vm5759, %v8554, %v9127
    %v10118 = vsel %vm5759, %v8563, %v9129
    %v10119 = vsel %vm5759, %v8567, %v9131
    %v10120 = vsel %vm5759, %v8576, %v9133
    %v10121 = vsel %vm5759, %v8580, %v9135
    %v10122 = vsel %vm5759, %v8589, %v9137
    %v10123 = vsel %vm5759, %v8593, %v9139
    %v10124 = vsel %vm5759, %v8602, %v9141
    %v10125 = vsel %vm5759, %v8606, %v9143
    %v10126 = vsel %vm5759, %v8615, %v9145
    %v10127 = vsel %vm5759, %v8619, %v9147
    %v10128 = vsel %vm5759, %v8628, %v9149
    %v10129 = vsel %vm5759, %v8632, %v9151
    %v10130 = vsel %vm5759, %v8641, %v9153
    %v10131 = vsel %vm5759, %v8645, %v9155
    %v10132 = vsel %vm5759, %v8654, %v9157
    %v10133 = vsel %vm5759, %v8658, %v9159
    %v10134 = vsel %vm5759, %v8667, %v9161
    %v10135 = vsel %vm5759, %v8671, %v9163
    %v10136 = vsel %vm5759, %v8680, %v9165
    %v10137 = vsel %vm5759, %v8684, %v9167
    %v10138 = vsel %vm5759, %v8693, %v9169
    %v10139 = vsel %vm5759, %v8697, %v9171
    %v10140 = vsel %vm5759, %v8706, %v9173
    %v10141 = vsel %vm5759, %v8710, %v9175
    %v10142 = vsel %vm5759, %v8719, %v9177
    %v10143 = vsel %vm5759, %v8723, %v9179
    %v10144 = vsel %vm5759, %v8732, %v9181
    %v10145 = vsel %vm5759, %v8736, %v9183
    %v10146 = vsel %vm6599, %v10102, %v9544
    %v10147 = vsel %vm6599, %v10103, %v9546
    %v10148 = vsel %vm6599, %v10104, %v9548
    %v10149 = vsel %vm6599, %v10105, %v9550
    %v10150 = vsel %vm6599, %v10106, %v9552
    %v10151 = vsel %vm6599, %v10107, %v9554
    %v10152 = vsel %vm6599, %v10108, %v9556
    %v10153 = vsel %vm6599, %v10109, %v9558
    %v10154 = vsel %vm6599, %v10110, %v9560
    %v10155 = vsel %vm6599, %v10111, %v9562
    %v10156 = vsel %vm6599, %v10112, %v9564
    %v10157 = vsel %vm6599, %v10113, %v9566
    %v10158 = vsel %vm6599, %v10114, %v9568
    %v10159 = vsel %vm6599, %v10115, %v9570
    %v10160 = vsel %vm6599, %v10116, %v9572
    %v10161 = vsel %vm6599, %v10117, %v9574
    %v10162 = vsel %vm6599, %v10118, %v9576
    %v10163 = vsel %vm6599, %v10119, %v9578
    %v10164 = vsel %vm6599, %v10120, %v9580
    %v10165 = vsel %vm6599, %v10121, %v9582
    %v10166 = vsel %vm6599, %v10122, %v9584
    %v10167 = vsel %vm6599, %v10123, %v9586
    %v10168 = vsel %vm6599, %v10124, %v9588
    %v10169 = vsel %vm6599, %v10125, %v9590
    %v10170 = vsel %vm6599, %v10126, %v9592
    %v10171 = vsel %vm6599, %v10127, %v9594
    %v10172 = vsel %vm6599, %v10128, %v9596
    %v10173 = vsel %vm6599, %v10129, %v9598
    %v10174 = vsel %vm6599, %v10130, %v9600
    %v10175 = vsel %vm6599, %v10131, %v9602
    %v10176 = vsel %vm6599, %v10132, %v9604
    %v10177 = vsel %vm6599, %v10133, %v9606
    %v10178 = vsel %vm6599, %v10134, %v9608
    %v10179 = vsel %vm6599, %v10135, %v9610
    %v10180 = vsel %vm6599, %v10136, %v9612
    %v10181 = vsel %vm6599, %v10137, %v9614
    %v10182 = vsel %vm6599, %v10138, %v9616
    %v10183 = vsel %vm6599, %v10139, %v9618
    %v10184 = vsel %vm6599, %v10140, %v9620
    %v10185 = vsel %vm6599, %v10141, %v9622
    %v10186 = vsel %vm6599, %v10142, %v9624
    %v10187 = vsel %vm6599, %v10143, %v9626
    %v10188 = vsel %vm6599, %v10144, %v9628
    %v10189 = vsel %vm6599, %v10145, %v9630
    %vm10190 = vcmask 785408
    %v10191 = vsel %vm10190, %v10146, %v9971
    %v10192 = vsel %vm10190, %v10147, %v9973
    %v10193 = vsel %vm10190, %v10148, %v9975
    %v10194 = vsel %vm10190, %v10149, %v9977
    %v10195 = vsel %vm10190, %v10150, %v9979
    %v10196 = vsel %vm10190, %v10151, %v9981
    %v10197 = vsel %vm10190, %v10152, %v9983
    %v10198 = vsel %vm10190, %v10153, %v9985
    %v10199 = vsel %vm10190, %v10154, %v9987
    %v10200 = vsel %vm10190, %v10155, %v9989
    %v10201 = vsel %vm10190, %v10156, %v9991
    %v10202 = vsel %vm10190, %v10157, %v9993
    %v10203 = vsel %vm10190, %v10158, %v9995
    %v10204 = vsel %vm10190, %v10159, %v9997
    %v10205 = vsel %vm10190, %v10160, %v9999
    %v10206 = vsel %vm10190, %v10161, %v10001
    %v10207 = vsel %vm10190, %v10162, %v10003
    %v10208 = vsel %vm10190, %v10163, %v10005
    %v10209 = vsel %vm10190, %v10164, %v10007
    %v10210 = vsel %vm10190, %v10165, %v10009
    %v10211 = vsel %vm10190, %v10166, %v10011
    %v10212 = vsel %vm10190, %v10167, %v10013
    %v10213 = vsel %vm10190, %v10168, %v10015
    %v10214 = vsel %vm10190, %v10169, %v10017
    %v10215 = vsel %vm10190, %v10170, %v10019
    %v10216 = vsel %vm10190, %v10171, %v10021
    %v10217 = vsel %vm10190, %v10172, %v10023
    %v10218 = vsel %vm10190, %v10173, %v10025
    %v10219 = vsel %vm10190, %v10174, %v10027
    %v10220 = vsel %vm10190, %v10175, %v10029
    %v10221 = vsel %vm10190, %v10176, %v10031
    %v10222 = vsel %vm10190, %v10177, %v10033
    %v10223 = vsel %vm10190, %v10178, %v10035
    %v10224 = vsel %vm10190, %v10179, %v10037
    %v10225 = vsel %vm10190, %v10180, %v10039
    %v10226 = vsel %vm10190, %v10181, %v10041
    %v10227 = vsel %vm10190, %v10182, %v10043
    %v10228 = vsel %vm10190, %v10183, %v10045
    %v10229 = vsel %vm10190, %v10184, %v10047
    %v10230 = vsel %vm10190, %v10185, %v10049
    %v10231 = vsel %vm10190, %v10186, %v10051
    %v10232 = vsel %vm10190, %v10187, %v10053
    %v10233 = vsel %vm10190, %v10188, %v10055
    %v10234 = vsel %vm10190, %v10189, %v10057
    %v10279 = vrot.slane %v10191, 1
    %v10280 = vrot.slane %v10191, 2
    %v10281 = vrot.slane %v10191, 3
    %v10282 = vrot.slane %v10191, 4
    %v10283 = vrot.slane %v10191, 5
    %v10284 = vrot.slane %v10191, 6
    %v10285 = vrot.slane %v10191, 7
    %v10286 = vrot.slane %v10192, 1
    %v10287 = vrot.slane %v10192, 2
    %v10288 = vrot.slane %v10193, 1
    %v10289 = vrot.slane %v10193, 2
    %v10290 = vrot.slane %v10193, 3
    %v10291 = vrot.slane %v10193, 4
    %v10292 = vrot.slane %v10193, 5
    %v10293 = vrot.slane %v10193, 6
    %v10294 = vrot.slane %v10193, 7
    %v10295 = vrot.slane %v10194, 1
    %v10296 = vrot.slane %v10194, 2
    %v10297 = vrot.slane %v10195, 1
    %v10298 = vrot.slane %v10195, 2
    %v10299 = vrot.slane %v10195, 3
    %v10300 = vrot.slane %v10195, 4
    %v10301 = vrot.slane %v10195, 5
    %v10302 = vrot.slane %v10195, 6
    %v10303 = vrot.slane %v10195, 7
    %v10304 = vrot.slane %v10196, 1
    %v10305 = vrot.slane %v10196, 2
    %v10306 = vrot.slane %v10197, 1
    %v10307 = vrot.slane %v10197, 2
    %v10308 = vrot.slane %v10197, 3
    %v10309 = vrot.slane %v10197, 4
    %v10310 = vrot.slane %v10197, 5
    %v10311 = vrot.slane %v10197, 6
    %v10312 = vrot.slane %v10197, 7
    %v10313 = vrot.slane %v10198, 1
    %v10314 = vrot.slane %v10198, 2
    %v10315 = vrot.slane %v10199, 1
    %v10316 = vrot.slane %v10199, 2
    %v10317 = vrot.slane %v10199, 3
    %v10318 = vrot.slane %v10199, 4
    %v10319 = vrot.slane %v10199, 5
    %v10320 = vrot.slane %v10199, 6
    %v10321 = vrot.slane %v10199, 7
    %v10322 = vrot.slane %v10200, 1
    %v10323 = vrot.slane %v10200, 2
    %v10324 = vrot.slane %v10201, 1
    %v10325 = vrot.slane %v10201, 2
    %v10326 = vrot.slane %v10201, 3
    %v10327 = vrot.slane %v10201, 4
    %v10328 = vrot.slane %v10201, 5
    %v10329 = vrot.slane %v10201, 6
    %v10330 = vrot.slane %v10201, 7
    %v10331 = vrot.slane %v10202, 1
    %v10332 = vrot.slane %v10202, 2
    %v10333 = vrot.slane %v10203, 1
    %v10334 = vrot.slane %v10203, 2
    %v10335 = vrot.slane %v10203, 3
    %v10336 = vrot.slane %v10203, 4
    %v10337 = vrot.slane %v10203, 5
    %v10338 = vrot.slane %v10203, 6
    %v10339 = vrot.slane %v10203, 7
    %v10340 = vrot.slane %v10204, 1
    %v10341 = vrot.slane %v10204, 2
    %v10342 = vrot.slane %v10205, 1
    %v10343 = vrot.slane %v10205, 2
    %v10344 = vrot.slane %v10205, 3
    %v10345 = vrot.slane %v10205, 4
    %v10346 = vrot.slane %v10205, 5
    %v10347 = vrot.slane %v10205, 6
    %v10348 = vrot.slane %v10205, 7
    %v10349 = vrot.slane %v10206, 1
    %v10350 = vrot.slane %v10206, 2
    %v10351 = vrot.slane %v10207, 1
    %v10352 = vrot.slane %v10207, 2
    %v10353 = vrot.slane %v10207, 3
    %v10354 = vrot.slane %v10207, 4
    %v10355 = vrot.slane %v10207, 5
    %v10356 = vrot.slane %v10207, 6
    %v10357 = vrot.slane %v10207, 7
    %v10358 = vrot.slane %v10208, 1
    %v10359 = vrot.slane %v10208, 2
    %v10360 = vrot.slane %v10209, 1
    %v10361 = vrot.slane %v10209, 2
    %v10362 = vrot.slane %v10209, 3
    %v10363 = vrot.slane %v10209, 4
    %v10364 = vrot.slane %v10209, 5
    %v10365 = vrot.slane %v10209, 6
    %v10366 = vrot.slane %v10209, 7
    %v10367 = vrot.slane %v10210, 1
    %v10368 = vrot.slane %v10210, 2
    %v10369 = vrot.slane %v10211, 1
    %v10370 = vrot.slane %v10211, 2
    %v10371 = vrot.slane %v10211, 3
    %v10372 = vrot.slane %v10211, 4
    %v10373 = vrot.slane %v10211, 5
    %v10374 = vrot.slane %v10211, 6
    %v10375 = vrot.slane %v10211, 7
    %v10376 = vrot.slane %v10212, 1
    %v10377 = vrot.slane %v10212, 2
    %v10378 = vrot.slane %v10213, 1
    %v10379 = vrot.slane %v10213, 2
    %v10380 = vrot.slane %v10213, 3
    %v10381 = vrot.slane %v10213, 4
    %v10382 = vrot.slane %v10213, 5
    %v10383 = vrot.slane %v10213, 6
    %v10384 = vrot.slane %v10213, 7
    %v10385 = vrot.slane %v10214, 1
    %v10386 = vrot.slane %v10214, 2
    %v10387 = vrot.slane %v10215, 1
    %v10388 = vrot.slane %v10215, 2
    %v10389 = vrot.slane %v10215, 3
    %v10390 = vrot.slane %v10215, 4
    %v10391 = vrot.slane %v10215, 5
    %v10392 = vrot.slane %v10215, 6
    %v10393 = vrot.slane %v10215, 7
    %v10394 = vrot.slane %v10216, 1
    %v10395 = vrot.slane %v10216, 2
    %v10396 = vrot.slane %v10217, 1
    %v10397 = vrot.slane %v10217, 2
    %v10398 = vrot.slane %v10217, 3
    %v10399 = vrot.slane %v10217, 4
    %v10400 = vrot.slane %v10217, 5
    %v10401 = vrot.slane %v10217, 6
    %v10402 = vrot.slane %v10217, 7
    %v10403 = vrot.slane %v10218, 1
    %v10404 = vrot.slane %v10218, 2
    %v10405 = vrot.slane %v10219, 1
    %v10406 = vrot.slane %v10219, 2
    %v10407 = vrot.slane %v10219, 3
    %v10408 = vrot.slane %v10219, 4
    %v10409 = vrot.slane %v10219, 5
    %v10410 = vrot.slane %v10219, 6
    %v10411 = vrot.slane %v10219, 7
    %v10412 = vrot.slane %v10220, 1
    %v10413 = vrot.slane %v10220, 2
    %v10414 = vrot.slane %v10221, 1
    %v10415 = vrot.slane %v10221, 2
    %v10416 = vrot.slane %v10221, 3
    %v10417 = vrot.slane %v10221, 4
    %v10418 = vrot.slane %v10221, 5
    %v10419 = vrot.slane %v10221, 6
    %v10420 = vrot.slane %v10221, 7
    %v10421 = vrot.slane %v10222, 1
    %v10422 = vrot.slane %v10222, 2
    %v10423 = vrot.slane %v10223, 1
    %v10424 = vrot.slane %v10223, 2
    %v10425 = vrot.slane %v10223, 3
    %v10426 = vrot.slane %v10223, 4
    %v10427 = vrot.slane %v10223, 5
    %v10428 = vrot.slane %v10223, 6
    %v10429 = vrot.slane %v10223, 7
    %v10430 = vrot.slane %v10224, 1
    %v10431 = vrot.slane %v10224, 2
    %v10432 = vrot.slane %v10225, 1
    %v10433 = vrot.slane %v10225, 2
    %v10434 = vrot.slane %v10225, 3
    %v10435 = vrot.slane %v10225, 4
    %v10436 = vrot.slane %v10225, 5
    %v10437 = vrot.slane %v10225, 6
    %v10438 = vrot.slane %v10225, 7
    %v10439 = vrot.slane %v10226, 1
    %v10440 = vrot.slane %v10226, 2
    %v10441 = vrot.slane %v10227, 1
    %v10442 = vrot.slane %v10227, 2
    %v10443 = vrot.slane %v10227, 3
    %v10444 = vrot.slane %v10227, 4
    %v10445 = vrot.slane %v10227, 5
    %v10446 = vrot.slane %v10227, 6
    %v10447 = vrot.slane %v10227, 7
    %v10448 = vrot.slane %v10228, 1
    %v10449 = vrot.slane %v10228, 2
    %v10450 = vrot.slane %v10229, 1
    %v10451 = vrot.slane %v10229, 2
    %v10452 = vrot.slane %v10229, 3
    %v10453 = vrot.slane %v10229, 4
    %v10454 = vrot.slane %v10229, 5
    %v10455 = vrot.slane %v10229, 6
    %v10456 = vrot.slane %v10229, 7
    %v10457 = vrot.slane %v10230, 1
    %v10458 = vrot.slane %v10230, 2
    %v10459 = vrot.slane %v10231, 1
    %v10460 = vrot.slane %v10231, 2
    %v10461 = vrot.slane %v10231, 3
    %v10462 = vrot.slane %v10231, 4
    %v10463 = vrot.slane %v10231, 5
    %v10464 = vrot.slane %v10231, 6
    %v10465 = vrot.slane %v10231, 7
    %v10466 = vrot.slane %v10232, 1
    %v10467 = vrot.slane %v10232, 2
    %v10468 = vrot.slane %v10233, 1
    %v10469 = vrot.slane %v10233, 2
    %v10470 = vrot.slane %v10233, 3
    %v10471 = vrot.slane %v10233, 4
    %v10472 = vrot.slane %v10233, 5
    %v10473 = vrot.slane %v10233, 6
    %v10474 = vrot.slane %v10233, 7
    %v10475 = vrot.slane %v10234, 1
    %v10476 = vrot.slane %v10234, 2
    %v10477 = vld [vmem:[%s7] sm:$0xff]
    %v10478 = vld [vmem:[%s7 + $0x8] sm:$0xff]
    %v10479 = vld [vmem:[%s7 + $0x10] sm:$0xff]
    %v10480 = vld [vmem:[%s7 + $0x18] sm:$0xff]
    %v10481 = vld [vmem:[%s7 + $0x20] sm:$0xff]
    %v10482 = vld [vmem:[%s7 + $0x28] sm:$0xff]
    %v10483 = vld [vmem:[%s7 + $0x30] sm:$0xff]
    %v10484 = vld [vmem:[%s7 + $0x38] sm:$0xff]
    %v10485 = vld [vmem:[%s7 + $0x40] sm:$0xff]
    %v10486 = vld [vmem:[%s7 + $0x48] sm:$0xff]
    %v10487 = vld [vmem:[%s7 + $0x50] sm:$0xff]
    %v10488 = vld [vmem:[%s7 + $0x58] sm:$0xff]
    %v10489 = vld [vmem:[%s7 + $0x60] sm:$0xff]
    %v10490 = vld [vmem:[%s7 + $0x68] sm:$0xff]
    %v10491 = vld [vmem:[%s7 + $0x70] sm:$0xff]
    %v10492 = vld [vmem:[%s7 + $0x78] sm:$0xff]
    %10493 = vst [vmem:[#allocation1] ss:$9 sm:$0xff] %v10191
    %s10494 = scalar_lea.vmem [#allocation1], 1
    %10495 = vst [vmem:[%s10494] ss:$9 sm:$0xff] %v10279
    %s10496 = scalar_lea.vmem [#allocation1], 2
    %10497 = vst [vmem:[%s10496] ss:$9 sm:$0xff] %v10280
    %s10498 = scalar_lea.vmem [#allocation1], 3
    %10499 = vst [vmem:[%s10498] ss:$9 sm:$0xff] %v10281
    %s10500 = scalar_lea.vmem [#allocation1], 4
    %10501 = vst [vmem:[%s10500] ss:$9 sm:$0xff] %v10282
    %s10502 = scalar_lea.vmem [#allocation1], 5
    %10503 = vst [vmem:[%s10502] ss:$9 sm:$0xff] %v10283
    %s10504 = scalar_lea.vmem [#allocation1], 6
    %10505 = vst [vmem:[%s10504] ss:$9 sm:$0xff] %v10284
    %s10506 = scalar_lea.vmem [#allocation1], 7
    %10507 = vst [vmem:[%s10506] ss:$9 sm:$0xff] %v10285
    %v10508 = vld [vmem:[#allocation1] sm:$0xff]
    %10509 = vst [vmem:[#allocation1] ss:$9 sm:$0xff] %v10192
    %10510 = vst [vmem:[%s10494] ss:$9 sm:$0xff] %v10286
    %10511 = vst [vmem:[%s10496] ss:$9 sm:$0xff] %v10287
    %10512 = vst [vmem:[%s10498] ss:$9 sm:$0xff] %v10193
    %10513 = vst [vmem:[%s10500] ss:$9 sm:$0xff] %v10288
    %10514 = vst [vmem:[%s10502] ss:$9 sm:$0xff] %v10289
    %10515 = vst [vmem:[%s10504] ss:$9 sm:$0xff] %v10290
    %10516 = vst [vmem:[%s10506] ss:$9 sm:$0xff] %v10291
    %v10517 = vld [vmem:[#allocation1] sm:$0xff]
    %10518 = vst [vmem:[#allocation1] ss:$9 sm:$0xff] %v10292
    %10519 = vst [vmem:[%s10494] ss:$9 sm:$0xff] %v10293
    %10520 = vst [vmem:[%s10496] ss:$9 sm:$0xff] %v10294
    %10521 = vst [vmem:[%s10498] ss:$9 sm:$0xff] %v10194
    %10522 = vst [vmem:[%s10500] ss:$9 sm:$0xff] %v10295
    %10523 = vst [vmem:[%s10502] ss:$9 sm:$0xff] %v10296
    %10524 = vst [vmem:[%s10504] ss:$9 sm:$0xff] %v10195
    %10525 = vst [vmem:[%s10506] ss:$9 sm:$0xff] %v10297
    %v10526 = vld [vmem:[#allocation1] sm:$0xff]
    %10527 = vst [vmem:[#allocation1] ss:$9 sm:$0xff] %v10298
    %10528 = vst [vmem:[%s10494] ss:$9 sm:$0xff] %v10299
    %10529 = vst [vmem:[%s10496] ss:$9 sm:$0xff] %v10300
    %10530 = vst [vmem:[%s10498] ss:$9 sm:$0xff] %v10301
    %10531 = vst [vmem:[%s10500] ss:$9 sm:$0xff] %v10302
    %10532 = vst [vmem:[%s10502] ss:$9 sm:$0xff] %v10303
    %10533 = vst [vmem:[%s10504] ss:$9 sm:$0xff] %v10196
    %10534 = vst [vmem:[%s10506] ss:$9 sm:$0xff] %v10304
    %v10535 = vld [vmem:[#allocation1] sm:$0xff]
    %10536 = vst [vmem:[#allocation1] ss:$9 sm:$0xff] %v10305
    %10537 = vst [vmem:[%s10494] ss:$9 sm:$0xff] %v10197
    %10538 = vst [vmem:[%s10496] ss:$9 sm:$0xff] %v10306
    %10539 = vst [vmem:[%s10498] ss:$9 sm:$0xff] %v10307
    %10540 = vst [vmem:[%s10500] ss:$9 sm:$0xff] %v10308
    %10541 = vst [vmem:[%s10502] ss:$9 sm:$0xff] %v10309
    %10542 = vst [vmem:[%s10504] ss:$9 sm:$0xff] %v10310
    %10543 = vst [vmem:[%s10506] ss:$9 sm:$0xff] %v10311
    %v10544 = vld [vmem:[#allocation1] sm:$0xff]
    %10545 = vst [vmem:[#allocation1] ss:$9 sm:$0xff] %v10312
    %10546 = vst [vmem:[%s10494] ss:$9 sm:$0xff] %v10198
    %10547 = vst [vmem:[%s10496] ss:$9 sm:$0xff] %v10313
    %10548 = vst [vmem:[%s10498] ss:$9 sm:$0xff] %v10314
    %10549 = vst [vmem:[%s10500] ss:$9 sm:$0xff] %v10199
    %10550 = vst [vmem:[%s10502] ss:$9 sm:$0xff] %v10315
    %10551 = vst [vmem:[%s10504] ss:$9 sm:$0xff] %v10316
    %10552 = vst [vmem:[%s10506] ss:$9 sm:$0xff] %v10317
    %v10553 = vld [vmem:[#allocation1] sm:$0xff]
    %10554 = vst [vmem:[#allocation1] ss:$9 sm:$0xff] %v10318
    %10555 = vst [vmem:[%s10494] ss:$9 sm:$0xff] %v10319
    %10556 = vst [vmem:[%s10496] ss:$9 sm:$0xff] %v10320
    %10557 = vst [vmem:[%s10498] ss:$9 sm:$0xff] %v10321
    %10558 = vst [vmem:[%s10500] ss:$9 sm:$0xff] %v10200
    %10559 = vst [vmem:[%s10502] ss:$9 sm:$0xff] %v10322
    %10560 = vst [vmem:[%s10504] ss:$9 sm:$0xff] %v10323
    %10561 = vst [vmem:[%s10506] ss:$9 sm:$0xff] %v10201
    %v10562 = vld [vmem:[#allocation1] sm:$0xff]
    %10563 = vst [vmem:[#allocation1] ss:$9 sm:$0xff] %v10324
    %10564 = vst [vmem:[%s10494] ss:$9 sm:$0xff] %v10325
    %10565 = vst [vmem:[%s10496] ss:$9 sm:$0xff] %v10326
    %10566 = vst [vmem:[%s10498] ss:$9 sm:$0xff] %v10327
    %10567 = vst [vmem:[%s10500] ss:$9 sm:$0xff] %v10328
    %10568 = vst [vmem:[%s10502] ss:$9 sm:$0xff] %v10329
    %10569 = vst [vmem:[%s10504] ss:$9 sm:$0xff] %v10330
    %10570 = vst [vmem:[%s10506] ss:$9 sm:$0xff] %v10202
    %v10571 = vld [vmem:[#allocation1] sm:$0xff]
    %10572 = vst [vmem:[#allocation1] ss:$9 sm:$0xff] %v10331
    %10573 = vst [vmem:[%s10494] ss:$9 sm:$0xff] %v10332
    %10574 = vst [vmem:[%s10496] ss:$9 sm:$0xff] %v10203
    %10575 = vst [vmem:[%s10498] ss:$9 sm:$0xff] %v10333
    %10576 = vst [vmem:[%s10500] ss:$9 sm:$0xff] %v10334
    %10577 = vst [vmem:[%s10502] ss:$9 sm:$0xff] %v10335
    %10578 = vst [vmem:[%s10504] ss:$9 sm:$0xff] %v10336
    %10579 = vst [vmem:[%s10506] ss:$9 sm:$0xff] %v10337
    %v10580 = vld [vmem:[#allocation1] sm:$0xff]
    %10581 = vst [vmem:[#allocation1] ss:$9 sm:$0xff] %v10338
    %10582 = vst [vmem:[%s10494] ss:$9 sm:$0xff] %v10339
    %10583 = vst [vmem:[%s10496] ss:$9 sm:$0xff] %v10204
    %10584 = vst [vmem:[%s10498] ss:$9 sm:$0xff] %v10340
    %10585 = vst [vmem:[%s10500] ss:$9 sm:$0xff] %v10341
    %10586 = vst [vmem:[%s10502] ss:$9 sm:$0xff] %v10205
    %10587 = vst [vmem:[%s10504] ss:$9 sm:$0xff] %v10342
    %10588 = vst [vmem:[%s10506] ss:$9 sm:$0xff] %v10343
    %v10589 = vld [vmem:[#allocation1] sm:$0xff]
    %10590 = vst [vmem:[#allocation1] ss:$9 sm:$0xff] %v10344
    %10591 = vst [vmem:[%s10494] ss:$9 sm:$0xff] %v10345
    %10592 = vst [vmem:[%s10496] ss:$9 sm:$0xff] %v10346
    %10593 = vst [vmem:[%s10498] ss:$9 sm:$0xff] %v10347
    %10594 = vst [vmem:[%s10500] ss:$9 sm:$0xff] %v10348
    %10595 = vst [vmem:[%s10502] ss:$9 sm:$0xff] %v10206
    %10596 = vst [vmem:[%s10504] ss:$9 sm:$0xff] %v10349
    %10597 = vst [vmem:[%s10506] ss:$9 sm:$0xff] %v10350
    %v10598 = vld [vmem:[#allocation1] sm:$0xff]
    %10599 = vst [vmem:[#allocation1] ss:$9 sm:$0xff] %v10207
    %10600 = vst [vmem:[%s10494] ss:$9 sm:$0xff] %v10351
    %10601 = vst [vmem:[%s10496] ss:$9 sm:$0xff] %v10352
    %10602 = vst [vmem:[%s10498] ss:$9 sm:$0xff] %v10353
    %10603 = vst [vmem:[%s10500] ss:$9 sm:$0xff] %v10354
    %10604 = vst [vmem:[%s10502] ss:$9 sm:$0xff] %v10355
    %10605 = vst [vmem:[%s10504] ss:$9 sm:$0xff] %v10356
    %10606 = vst [vmem:[%s10506] ss:$9 sm:$0xff] %v10357
    %v10607 = vld [vmem:[#allocation1] sm:$0xff]
    %10608 = vst [vmem:[#allocation1] ss:$9 sm:$0xff] %v10208
    %10609 = vst [vmem:[%s10494] ss:$9 sm:$0xff] %v10358
    %10610 = vst [vmem:[%s10496] ss:$9 sm:$0xff] %v10359
    %10611 = vst [vmem:[%s10498] ss:$9 sm:$0xff] %v10209
    %10612 = vst [vmem:[%s10500] ss:$9 sm:$0xff] %v10360
    %10613 = vst [vmem:[%s10502] ss:$9 sm:$0xff] %v10361
    %10614 = vst [vmem:[%s10504] ss:$9 sm:$0xff] %v10362
    %10615 = vst [vmem:[%s10506] ss:$9 sm:$0xff] %v10363
    %v10616 = vld [vmem:[#allocation1] sm:$0xff]
    %10617 = vst [vmem:[#allocation1] ss:$9 sm:$0xff] %v10364
    %10618 = vst [vmem:[%s10494] ss:$9 sm:$0xff] %v10365
    %10619 = vst [vmem:[%s10496] ss:$9 sm:$0xff] %v10366
    %10620 = vst [vmem:[%s10498] ss:$9 sm:$0xff] %v10210
    %10621 = vst [vmem:[%s10500] ss:$9 sm:$0xff] %v10367
    %10622 = vst [vmem:[%s10502] ss:$9 sm:$0xff] %v10368
    %10623 = vst [vmem:[%s10504] ss:$9 sm:$0xff] %v10211
    %10624 = vst [vmem:[%s10506] ss:$9 sm:$0xff] %v10369
    %v10625 = vld [vmem:[#allocation1] sm:$0xff]
    %10626 = vst [vmem:[#allocation1] ss:$9 sm:$0xff] %v10370
    %10627 = vst [vmem:[%s10494] ss:$9 sm:$0xff] %v10371
    %10628 = vst [vmem:[%s10496] ss:$9 sm:$0xff] %v10372
    %10629 = vst [vmem:[%s10498] ss:$9 sm:$0xff] %v10373
    %10630 = vst [vmem:[%s10500] ss:$9 sm:$0xff] %v10374
    %10631 = vst [vmem:[%s10502] ss:$9 sm:$0xff] %v10375
    %10632 = vst [vmem:[%s10504] ss:$9 sm:$0xff] %v10212
    %10633 = vst [vmem:[%s10506] ss:$9 sm:$0xff] %v10376
    %v10634 = vld [vmem:[#allocation1] sm:$0xff]
    %10635 = vst [vmem:[#allocation1] ss:$9 sm:$0xff] %v10377
    %10636 = vst [vmem:[%s10494] ss:$9 sm:$0xff] %v10213
    %10637 = vst [vmem:[%s10496] ss:$9 sm:$0xff] %v10378
    %10638 = vst [vmem:[%s10498] ss:$9 sm:$0xff] %v10379
    %10639 = vst [vmem:[%s10500] ss:$9 sm:$0xff] %v10380
    %10640 = vst [vmem:[%s10502] ss:$9 sm:$0xff] %v10381
    %10641 = vst [vmem:[%s10504] ss:$9 sm:$0xff] %v10382
    %10642 = vst [vmem:[%s10506] ss:$9 sm:$0xff] %v10383
    %v10643 = vld [vmem:[#allocation1] sm:$0xff]
    %10644 = vst [vmem:[#allocation1] ss:$9 sm:$0xff] %v10384
    %10645 = vst [vmem:[%s10494] ss:$9 sm:$0xff] %v10214
    %10646 = vst [vmem:[%s10496] ss:$9 sm:$0xff] %v10385
    %10647 = vst [vmem:[%s10498] ss:$9 sm:$0xff] %v10386
    %10648 = vst [vmem:[%s10500] ss:$9 sm:$0xff] %v10215
    %10649 = vst [vmem:[%s10502] ss:$9 sm:$0xff] %v10387
    %10650 = vst [vmem:[%s10504] ss:$9 sm:$0xff] %v10388
    %10651 = vst [vmem:[%s10506] ss:$9 sm:$0xff] %v10389
    %v10652 = vld [vmem:[#allocation1] sm:$0xff]
    %10653 = vst [vmem:[#allocation1] ss:$9 sm:$0xff] %v10390
    %10654 = vst [vmem:[%s10494] ss:$9 sm:$0xff] %v10391
    %10655 = vst [vmem:[%s10496] ss:$9 sm:$0xff] %v10392
    %10656 = vst [vmem:[%s10498] ss:$9 sm:$0xff] %v10393
    %10657 = vst [vmem:[%s10500] ss:$9 sm:$0xff] %v10216
    %10658 = vst [vmem:[%s10502] ss:$9 sm:$0xff] %v10394
    %10659 = vst [vmem:[%s10504] ss:$9 sm:$0xff] %v10395
    %10660 = vst [vmem:[%s10506] ss:$9 sm:$0xff] %v10217
    %v10661 = vld [vmem:[#allocation1] sm:$0xff]
    %10662 = vst [vmem:[#allocation1] ss:$9 sm:$0xff] %v10396
    %10663 = vst [vmem:[%s10494] ss:$9 sm:$0xff] %v10397
    %10664 = vst [vmem:[%s10496] ss:$9 sm:$0xff] %v10398
    %10665 = vst [vmem:[%s10498] ss:$9 sm:$0xff] %v10399
    %10666 = vst [vmem:[%s10500] ss:$9 sm:$0xff] %v10400
    %10667 = vst [vmem:[%s10502] ss:$9 sm:$0xff] %v10401
    %10668 = vst [vmem:[%s10504] ss:$9 sm:$0xff] %v10402
    %10669 = vst [vmem:[%s10506] ss:$9 sm:$0xff] %v10218
    %v10670 = vld [vmem:[#allocation1] sm:$0xff]
    %10671 = vst [vmem:[#allocation1] ss:$9 sm:$0xff] %v10403
    %10672 = vst [vmem:[%s10494] ss:$9 sm:$0xff] %v10404
    %10673 = vst [vmem:[%s10496] ss:$9 sm:$0xff] %v10219
    %10674 = vst [vmem:[%s10498] ss:$9 sm:$0xff] %v10405
    %10675 = vst [vmem:[%s10500] ss:$9 sm:$0xff] %v10406
    %10676 = vst [vmem:[%s10502] ss:$9 sm:$0xff] %v10407
    %10677 = vst [vmem:[%s10504] ss:$9 sm:$0xff] %v10408
    %10678 = vst [vmem:[%s10506] ss:$9 sm:$0xff] %v10409
    %v10679 = vld [vmem:[#allocation1] sm:$0xff]
    %10680 = vst [vmem:[#allocation1] ss:$9 sm:$0xff] %v10410
    %10681 = vst [vmem:[%s10494] ss:$9 sm:$0xff] %v10411
    %10682 = vst [vmem:[%s10496] ss:$9 sm:$0xff] %v10220
    %10683 = vst [vmem:[%s10498] ss:$9 sm:$0xff] %v10412
    %10684 = vst [vmem:[%s10500] ss:$9 sm:$0xff] %v10413
    %10685 = vst [vmem:[%s10502] ss:$9 sm:$0xff] %v10221
    %10686 = vst [vmem:[%s10504] ss:$9 sm:$0xff] %v10414
    %10687 = vst [vmem:[%s10506] ss:$9 sm:$0xff] %v10415
    %v10688 = vld [vmem:[#allocation1] sm:$0xff]
    %10689 = vst [vmem:[#allocation1] ss:$9 sm:$0xff] %v10416
    %10690 = vst [vmem:[%s10494] ss:$9 sm:$0xff] %v10417
    %10691 = vst [vmem:[%s10496] ss:$9 sm:$0xff] %v10418
    %10692 = vst [vmem:[%s10498] ss:$9 sm:$0xff] %v10419
    %10693 = vst [vmem:[%s10500] ss:$9 sm:$0xff] %v10420
    %10694 = vst [vmem:[%s10502] ss:$9 sm:$0xff] %v10222
    %10695 = vst [vmem:[%s10504] ss:$9 sm:$0xff] %v10421
    %10696 = vst [vmem:[%s10506] ss:$9 sm:$0xff] %v10422
    %v10697 = vld [vmem:[#allocation1] sm:$0xff]
    %10698 = vst [vmem:[#allocation1] ss:$9 sm:$0xff] %v10223
    %10699 = vst [vmem:[%s10494] ss:$9 sm:$0xff] %v10423
    %10700 = vst [vmem:[%s10496] ss:$9 sm:$0xff] %v10424
    %10701 = vst [vmem:[%s10498] ss:$9 sm:$0xff] %v10425
    %10702 = vst [vmem:[%s10500] ss:$9 sm:$0xff] %v10426
    %10703 = vst [vmem:[%s10502] ss:$9 sm:$0xff] %v10427
    %10704 = vst [vmem:[%s10504] ss:$9 sm:$0xff] %v10428
    %10705 = vst [vmem:[%s10506] ss:$9 sm:$0xff] %v10429
    %v10706 = vld [vmem:[#allocation1] sm:$0xff]
    %10707 = vst [vmem:[#allocation1] ss:$9 sm:$0xff] %v10224
    %10708 = vst [vmem:[%s10494] ss:$9 sm:$0xff] %v10430
    %10709 = vst [vmem:[%s10496] ss:$9 sm:$0xff] %v10431
    %10710 = vst [vmem:[%s10498] ss:$9 sm:$0xff] %v10225
    %10711 = vst [vmem:[%s10500] ss:$9 sm:$0xff] %v10432
    %10712 = vst [vmem:[%s10502] ss:$9 sm:$0xff] %v10433
    %10713 = vst [vmem:[%s10504] ss:$9 sm:$0xff] %v10434
    %10714 = vst [vmem:[%s10506] ss:$9 sm:$0xff] %v10435
    %v10715 = vld [vmem:[#allocation1] sm:$0xff]
    %10716 = vst [vmem:[#allocation1] ss:$9 sm:$0xff] %v10436
    %10717 = vst [vmem:[%s10494] ss:$9 sm:$0xff] %v10437
    %10718 = vst [vmem:[%s10496] ss:$9 sm:$0xff] %v10438
    %10719 = vst [vmem:[%s10498] ss:$9 sm:$0xff] %v10226
    %10720 = vst [vmem:[%s10500] ss:$9 sm:$0xff] %v10439
    %10721 = vst [vmem:[%s10502] ss:$9 sm:$0xff] %v10440
    %10722 = vst [vmem:[%s10504] ss:$9 sm:$0xff] %v10227
    %10723 = vst [vmem:[%s10506] ss:$9 sm:$0xff] %v10441
    %v10724 = vld [vmem:[#allocation1] sm:$0xff]
    %10725 = vst [vmem:[#allocation1] ss:$9 sm:$0xff] %v10442
    %10726 = vst [vmem:[%s10494] ss:$9 sm:$0xff] %v10443
    %10727 = vst [vmem:[%s10496] ss:$9 sm:$0xff] %v10444
    %10728 = vst [vmem:[%s10498] ss:$9 sm:$0xff] %v10445
    %10729 = vst [vmem:[%s10500] ss:$9 sm:$0xff] %v10446
    %10730 = vst [vmem:[%s10502] ss:$9 sm:$0xff] %v10447
    %10731 = vst [vmem:[%s10504] ss:$9 sm:$0xff] %v10228
    %10732 = vst [vmem:[%s10506] ss:$9 sm:$0xff] %v10448
    %v10733 = vld [vmem:[#allocation1] sm:$0xff]
    %10734 = vst [vmem:[#allocation1] ss:$9 sm:$0xff] %v10449
    %10735 = vst [vmem:[%s10494] ss:$9 sm:$0xff] %v10229
    %10736 = vst [vmem:[%s10496] ss:$9 sm:$0xff] %v10450
    %10737 = vst [vmem:[%s10498] ss:$9 sm:$0xff] %v10451
    %10738 = vst [vmem:[%s10500] ss:$9 sm:$0xff] %v10452
    %10739 = vst [vmem:[%s10502] ss:$9 sm:$0xff] %v10453
    %10740 = vst [vmem:[%s10504] ss:$9 sm:$0xff] %v10454
    %10741 = vst [vmem:[%s10506] ss:$9 sm:$0xff] %v10455
    %v10742 = vld [vmem:[#allocation1] sm:$0xff]
    %10743 = vst [vmem:[#allocation1] ss:$9 sm:$0xff] %v10456
    %10744 = vst [vmem:[%s10494] ss:$9 sm:$0xff] %v10230
    %10745 = vst [vmem:[%s10496] ss:$9 sm:$0xff] %v10457
    %10746 = vst [vmem:[%s10498] ss:$9 sm:$0xff] %v10458
    %10747 = vst [vmem:[%s10500] ss:$9 sm:$0xff] %v10231
    %10748 = vst [vmem:[%s10502] ss:$9 sm:$0xff] %v10459
    %10749 = vst [vmem:[%s10504] ss:$9 sm:$0xff] %v10460
    %10750 = vst [vmem:[%s10506] ss:$9 sm:$0xff] %v10461
    %v10751 = vld [vmem:[#allocation1] sm:$0xff]
    %10752 = vst [vmem:[#allocation1] ss:$9 sm:$0xff] %v10462
    %10753 = vst [vmem:[%s10494] ss:$9 sm:$0xff] %v10463
    %10754 = vst [vmem:[%s10496] ss:$9 sm:$0xff] %v10464
    %10755 = vst [vmem:[%s10498] ss:$9 sm:$0xff] %v10465
    %10756 = vst [vmem:[%s10500] ss:$9 sm:$0xff] %v10232
    %10757 = vst [vmem:[%s10502] ss:$9 sm:$0xff] %v10466
    %10758 = vst [vmem:[%s10504] ss:$9 sm:$0xff] %v10467
    %10759 = vst [vmem:[%s10506] ss:$9 sm:$0xff] %v10233
    %v10760 = vld [vmem:[#allocation1] sm:$0xff]
    %10761 = vst [vmem:[#allocation1] ss:$9 sm:$0xff] %v10468
    %10762 = vst [vmem:[%s10494] ss:$9 sm:$0xff] %v10469
    %10763 = vst [vmem:[%s10496] ss:$9 sm:$0xff] %v10470
    %10764 = vst [vmem:[%s10498] ss:$9 sm:$0xff] %v10471
    %10765 = vst [vmem:[%s10500] ss:$9 sm:$0xff] %v10472
    %10766 = vst [vmem:[%s10502] ss:$9 sm:$0xff] %v10473
    %10767 = vst [vmem:[%s10504] ss:$9 sm:$0xff] %v10474
    %10768 = vst [vmem:[%s10506] ss:$9 sm:$0xff] %v10234
    %v10769 = vld [vmem:[#allocation1] sm:$0xff]
    %10770 = vst [vmem:[#allocation1] ss:$9 sm:$0xff] %v10475
    %10771 = vst [vmem:[%s10494] ss:$9 sm:$0xff] %v10476
    %v10772 = vld [vmem:[#allocation1] sm:$0xff]
    %10804 = vmatpush.msra.mxu0 %v10492
    %10805 = vmatpush.msra.mxu0 %v10491
    %10806 = vmatpush.msra.mxu0 %v10490
    %10807 = vmatpush.msra.mxu0 %v10489
    %10808 = vmatpush.msra.mxu0 %v10488
    %10809 = vmatpush.msra.mxu0 %v10487
    %10810 = vmatpush.msra.mxu0 %v10486
    %10811 = vmatpush.msra.mxu0 %v10485
    %10812 = vmatpush.msra.mxu0 %v10484
    %10813 = vmatpush.msra.mxu0 %v10483
    %10814 = vmatpush.msra.mxu0 %v10482
    %10815 = vmatpush.msra.mxu0 %v10481
    %10816 = vmatpush.msra.mxu0 %v10480
    %10817 = vmatpush.msra.mxu0 %v10479
    %10818 = vmatpush.msra.mxu0 %v10478
    %10819 = vmatpush.msra.mxu0 %v10477
    %10820 = vmatmul.f32.gmra.mxu0 %v10508
    %v10821 = vpop.f32.mrf.mxu0
    %v10822 = vadd.f32 0.0, %v10821
    %10823 = vmatmul.f32.gmra.mxu0 %v10517
    %v10824 = vpop.f32.mrf.mxu0
    %v10825 = vadd.f32 0.0, %v10824
    %10826 = vmatmul.f32.gmra.mxu0 %v10526
    %v10827 = vpop.f32.mrf.mxu0
    %v10828 = vadd.f32 0.0, %v10827
    %10829 = vmatmul.f32.gmra.mxu0 %v10535
    %v10830 = vpop.f32.mrf.mxu0
    %v10831 = vadd.f32 0.0, %v10830
    %10832 = vmatmul.f32.gmra.mxu0 %v10544
    %v10833 = vpop.f32.mrf.mxu0
    %v10834 = vadd.f32 0.0, %v10833
    %10835 = vmatmul.f32.gmra.mxu0 %v10553
    %v10836 = vpop.f32.mrf.mxu0
    %v10837 = vadd.f32 0.0, %v10836
    %10838 = vmatmul.f32.gmra.mxu0 %v10562
    %v10839 = vpop.f32.mrf.mxu0
    %v10840 = vadd.f32 0.0, %v10839
    %10841 = vmatmul.f32.gmra.mxu0 %v10571
    %v10842 = vpop.f32.mrf.mxu0
    %v10843 = vadd.f32 0.0, %v10842
    %10844 = vmatmul.f32.gmra.mxu0 %v10580
    %v10845 = vpop.f32.mrf.mxu0
    %v10846 = vadd.f32 0.0, %v10845
    %10847 = vmatmul.f32.gmra.mxu0 %v10589
    %v10848 = vpop.f32.mrf.mxu0
    %v10849 = vadd.f32 0.0, %v10848
    %10850 = vmatmul.f32.gmra.mxu0 %v10598
    %v10851 = vpop.f32.mrf.mxu0
    %v10852 = vadd.f32 0.0, %v10851
    %10853 = vmatmul.f32.gmra.mxu0 %v10607
    %v10854 = vpop.f32.mrf.mxu0
    %v10855 = vadd.f32 0.0, %v10854
    %10856 = vmatmul.f32.gmra.mxu0 %v10616
    %v10857 = vpop.f32.mrf.mxu0
    %v10858 = vadd.f32 0.0, %v10857
    %10859 = vmatmul.f32.gmra.mxu0 %v10625
    %v10860 = vpop.f32.mrf.mxu0
    %v10861 = vadd.f32 0.0, %v10860
    %10862 = vmatmul.f32.gmra.mxu0 %v10634
    %v10863 = vpop.f32.mrf.mxu0
    %v10864 = vadd.f32 0.0, %v10863
    %10865 = vmatmul.f32.gmra.mxu0 %v10643
    %v10866 = vpop.f32.mrf.mxu0
    %v10867 = vadd.f32 0.0, %v10866
    %10868 = vmatmul.f32.gmra.mxu0 %v10652
    %v10869 = vpop.f32.mrf.mxu0
    %v10870 = vadd.f32 0.0, %v10869
    %10871 = vmatmul.f32.gmra.mxu0 %v10661
    %v10872 = vpop.f32.mrf.mxu0
    %v10873 = vadd.f32 0.0, %v10872
    %10874 = vmatmul.f32.gmra.mxu0 %v10670
    %v10875 = vpop.f32.mrf.mxu0
    %v10876 = vadd.f32 0.0, %v10875
    %10877 = vmatmul.f32.gmra.mxu0 %v10679
    %v10878 = vpop.f32.mrf.mxu0
    %v10879 = vadd.f32 0.0, %v10878
    %10880 = vmatmul.f32.gmra.mxu0 %v10688
    %v10881 = vpop.f32.mrf.mxu0
    %v10882 = vadd.f32 0.0, %v10881
    %10883 = vmatmul.f32.gmra.mxu0 %v10697
    %v10884 = vpop.f32.mrf.mxu0
    %v10885 = vadd.f32 0.0, %v10884
    %10886 = vmatmul.f32.gmra.mxu0 %v10706
    %v10887 = vpop.f32.mrf.mxu0
    %v10888 = vadd.f32 0.0, %v10887
    %10889 = vmatmul.f32.gmra.mxu0 %v10715
    %v10890 = vpop.f32.mrf.mxu0
    %v10891 = vadd.f32 0.0, %v10890
    %10892 = vmatmul.f32.gmra.mxu0 %v10724
    %v10893 = vpop.f32.mrf.mxu0
    %v10894 = vadd.f32 0.0, %v10893
    %10895 = vmatmul.f32.gmra.mxu0 %v10733
    %v10896 = vpop.f32.mrf.mxu0
    %v10897 = vadd.f32 0.0, %v10896
    %10898 = vmatmul.f32.gmra.mxu0 %v10742
    %v10899 = vpop.f32.mrf.mxu0
    %v10900 = vadd.f32 0.0, %v10899
    %10901 = vmatmul.f32.gmra.mxu0 %v10751
    %v10902 = vpop.f32.mrf.mxu0
    %v10903 = vadd.f32 0.0, %v10902
    %10904 = vmatmul.f32.gmra.mxu0 %v10760
    %v10905 = vpop.f32.mrf.mxu0
    %v10906 = vadd.f32 0.0, %v10905
    %10907 = vmatmul.f32.gmra.mxu0 %v10769
    %v10908 = vpop.f32.mrf.mxu0
    %v10909 = vadd.f32 0.0, %v10908
    %10910 = vmatmul.f32.gmra.mxu0 %v10772
    %v10911 = vpop.f32.mrf.mxu0
    %v10912 = vadd.f32 0.0, %v10911
    %10913 = vdwg.mxu0
    %v10914 = vld [vmem:[%s8] sm:$0x1]
    %v10916 = vperm.slane %v10914, 0
    %v10918 = vmul.f32 %v10822, %v10916
    %v10919 = vmul.f32 %v10825, %v10916
    %v10920 = vmul.f32 %v10828, %v10916
    %v10921 = vmul.f32 %v10831, %v10916
    %v10922 = vmul.f32 %v10834, %v10916
    %v10923 = vmul.f32 %v10837, %v10916
    %v10924 = vmul.f32 %v10840, %v10916
    %v10925 = vmul.f32 %v10843, %v10916
    %v10926 = vmul.f32 %v10846, %v10916
    %v10927 = vmul.f32 %v10849, %v10916
    %v10928 = vmul.f32 %v10852, %v10916
    %v10929 = vmul.f32 %v10855, %v10916
    %v10930 = vmul.f32 %v10858, %v10916
    %v10931 = vmul.f32 %v10861, %v10916
    %v10932 = vmul.f32 %v10864, %v10916
    %v10933 = vmul.f32 %v10867, %v10916
    %v10934 = vmul.f32 %v10870, %v10916
    %v10935 = vmul.f32 %v10873, %v10916
    %v10936 = vmul.f32 %v10876, %v10916
    %v10937 = vmul.f32 %v10879, %v10916
    %v10938 = vmul.f32 %v10882, %v10916
    %v10939 = vmul.f32 %v10885, %v10916
    %v10940 = vmul.f32 %v10888, %v10916
    %v10941 = vmul.f32 %v10891, %v10916
    %v10942 = vmul.f32 %v10894, %v10916
    %v10943 = vmul.f32 %v10897, %v10916
    %v10944 = vmul.f32 %v10900, %v10916
    %v10945 = vmul.f32 %v10903, %v10916
    %v10946 = vmul.f32 %v10906, %v10916
    %v10947 = vmul.f32 %v10909, %v10916
    %v10948 = vmul.f32 %v10912, %v10916
    %v10949 = vld [vmem:[%s9] sm:$0x1]
    %v10951 = vperm.slane %v10949, 0
    %v10953 = vadd.f32 %v10918, %v10951
    %v10954 = vadd.f32 %v10919, %v10951
    %v10955 = vadd.f32 %v10920, %v10951
    %v10956 = vadd.f32 %v10921, %v10951
    %v10957 = vadd.f32 %v10922, %v10951
    %v10958 = vadd.f32 %v10923, %v10951
    %v10959 = vadd.f32 %v10924, %v10951
    %v10960 = vadd.f32 %v10925, %v10951
    %v10961 = vadd.f32 %v10926, %v10951
    %v10962 = vadd.f32 %v10927, %v10951
    %v10963 = vadd.f32 %v10928, %v10951
    %v10964 = vadd.f32 %v10929, %v10951
    %v10965 = vadd.f32 %v10930, %v10951
    %v10966 = vadd.f32 %v10931, %v10951
    %v10967 = vadd.f32 %v10932, %v10951
    %v10968 = vadd.f32 %v10933, %v10951
    %v10969 = vadd.f32 %v10934, %v10951
    %v10970 = vadd.f32 %v10935, %v10951
    %v10971 = vadd.f32 %v10936, %v10951
    %v10972 = vadd.f32 %v10937, %v10951
    %v10973 = vadd.f32 %v10938, %v10951
    %v10974 = vadd.f32 %v10939, %v10951
    %v10975 = vadd.f32 %v10940, %v10951
    %v10976 = vadd.f32 %v10941, %v10951
    %v10977 = vadd.f32 %v10942, %v10951
    %v10978 = vadd.f32 %v10943, %v10951
    %v10979 = vadd.f32 %v10944, %v10951
    %v10980 = vadd.f32 %v10945, %v10951
    %v10981 = vadd.f32 %v10946, %v10951
    %v10982 = vadd.f32 %v10947, %v10951
    %v10983 = vadd.f32 %v10948, %v10951
    %v10984 = vmax.f32 %v10953, 0.0
    %v10985 = vmax.f32 %v10954, 0.0
    %v10986 = vmax.f32 %v10955, 0.0
    %v10987 = vmax.f32 %v10956, 0.0
    %v10988 = vmax.f32 %v10957, 0.0
    %v10989 = vmax.f32 %v10958, 0.0
    %v10990 = vmax.f32 %v10959, 0.0
    %v10991 = vmax.f32 %v10960, 0.0
    %v10992 = vmax.f32 %v10961, 0.0
    %v10993 = vmax.f32 %v10962, 0.0
    %v10994 = vmax.f32 %v10963, 0.0
    %v10995 = vmax.f32 %v10964, 0.0
    %v10996 = vmax.f32 %v10965, 0.0
    %v10997 = vmax.f32 %v10966, 0.0
    %v10998 = vmax.f32 %v10967, 0.0
    %v10999 = vmax.f32 %v10968, 0.0
    %v11000 = vmax.f32 %v10969, 0.0
    %v11001 = vmax.f32 %v10970, 0.0
    %v11002 = vmax.f32 %v10971, 0.0
    %v11003 = vmax.f32 %v10972, 0.0
    %v11004 = vmax.f32 %v10973, 0.0
    %v11005 = vmax.f32 %v10974, 0.0
    %v11006 = vmax.f32 %v10975, 0.0
    %v11007 = vmax.f32 %v10976, 0.0
    %v11008 = vmax.f32 %v10977, 0.0
    %v11009 = vmax.f32 %v10978, 0.0
    %v11010 = vmax.f32 %v10979, 0.0
    %v11011 = vmax.f32 %v10980, 0.0
    %v11012 = vmax.f32 %v10981, 0.0
    %v11013 = vmax.f32 %v10982, 0.0
    %v11014 = vmax.f32 %v10983, 0.0
    %v11046 = vrot.slane %v10984, 1
    %v11047 = vrot.slane %v10984, 2
    %v11048 = vrot.slane %v10984, 3
    %v11049 = vrot.slane %v10984, 4
    %v11050 = vrot.slane %v10984, 5
    %v11051 = vrot.slane %v10984, 6
    %v11052 = vrot.slane %v10984, 7
    %v11053 = vrot.slane %v10985, 1
    %v11054 = vrot.slane %v10985, 2
    %v11055 = vrot.slane %v10985, 3
    %v11056 = vrot.slane %v10985, 4
    %v11057 = vrot.slane %v10985, 5
    %v11058 = vrot.slane %v10985, 6
    %v11059 = vrot.slane %v10985, 7
    %v11060 = vrot.slane %v10986, 1
    %v11061 = vrot.slane %v10986, 2
    %v11062 = vrot.slane %v10986, 3
    %v11063 = vrot.slane %v10986, 4
    %v11064 = vrot.slane %v10986, 5
    %v11065 = vrot.slane %v10986, 6
    %v11066 = vrot.slane %v10986, 7
    %v11067 = vrot.slane %v10987, 1
    %v11068 = vrot.slane %v10987, 2
    %v11069 = vrot.slane %v10987, 3
    %v11070 = vrot.slane %v10987, 4
    %v11071 = vrot.slane %v10987, 5
    %v11072 = vrot.slane %v10987, 6
    %v11073 = vrot.slane %v10987, 7
    %v11074 = vrot.slane %v10988, 1
    %v11075 = vrot.slane %v10988, 2
    %v11076 = vrot.slane %v10988, 3
    %v11077 = vrot.slane %v10988, 4
    %v11078 = vrot.slane %v10988, 5
    %v11079 = vrot.slane %v10988, 6
    %v11080 = vrot.slane %v10988, 7
    %v11081 = vrot.slane %v10989, 1
    %v11082 = vrot.slane %v10989, 2
    %v11083 = vrot.slane %v10989, 3
    %v11084 = vrot.slane %v10989, 4
    %v11085 = vrot.slane %v10989, 5
    %v11086 = vrot.slane %v10989, 6
    %v11087 = vrot.slane %v10989, 7
    %v11088 = vrot.slane %v10990, 1
    %v11089 = vrot.slane %v10990, 2
    %v11090 = vrot.slane %v10990, 3
    %v11091 = vrot.slane %v10990, 4
    %v11092 = vrot.slane %v10990, 5
    %v11093 = vrot.slane %v10990, 6
    %v11094 = vrot.slane %v10990, 7
    %v11095 = vrot.slane %v10991, 1
    %v11096 = vrot.slane %v10991, 2
    %v11097 = vrot.slane %v10991, 3
    %v11098 = vrot.slane %v10991, 4
    %v11099 = vrot.slane %v10991, 5
    %v11100 = vrot.slane %v10991, 6
    %v11101 = vrot.slane %v10991, 7
    %v11102 = vrot.slane %v10992, 1
    %v11103 = vrot.slane %v10992, 2
    %v11104 = vrot.slane %v10992, 3
    %v11105 = vrot.slane %v10992, 4
    %v11106 = vrot.slane %v10992, 5
    %v11107 = vrot.slane %v10992, 6
    %v11108 = vrot.slane %v10992, 7
    %v11109 = vrot.slane %v10993, 1
    %v11110 = vrot.slane %v10993, 2
    %v11111 = vrot.slane %v10993, 3
    %v11112 = vrot.slane %v10993, 4
    %v11113 = vrot.slane %v10993, 5
    %v11114 = vrot.slane %v10993, 6
    %v11115 = vrot.slane %v10993, 7
    %v11116 = vrot.slane %v10994, 1
    %v11117 = vrot.slane %v10994, 2
    %v11118 = vrot.slane %v10994, 3
    %v11119 = vrot.slane %v10994, 4
    %v11120 = vrot.slane %v10994, 5
    %v11121 = vrot.slane %v10994, 6
    %v11122 = vrot.slane %v10994, 7
    %v11123 = vrot.slane %v10995, 1
    %v11124 = vrot.slane %v10995, 2
    %v11125 = vrot.slane %v10995, 3
    %v11126 = vrot.slane %v10995, 4
    %v11127 = vrot.slane %v10995, 5
    %v11128 = vrot.slane %v10995, 6
    %v11129 = vrot.slane %v10995, 7
    %v11130 = vrot.slane %v10996, 1
    %v11131 = vrot.slane %v10996, 2
    %v11132 = vrot.slane %v10996, 3
    %v11133 = vrot.slane %v10996, 4
    %v11134 = vrot.slane %v10996, 5
    %v11135 = vrot.slane %v10996, 6
    %v11136 = vrot.slane %v10996, 7
    %v11137 = vrot.slane %v10997, 1
    %v11138 = vrot.slane %v10997, 2
    %v11139 = vrot.slane %v10997, 3
    %v11140 = vrot.slane %v10997, 4
    %v11141 = vrot.slane %v10997, 5
    %v11142 = vrot.slane %v10997, 6
    %v11143 = vrot.slane %v10997, 7
    %v11144 = vrot.slane %v10998, 1
    %v11145 = vrot.slane %v10998, 2
    %v11146 = vrot.slane %v10998, 3
    %v11147 = vrot.slane %v10998, 4
    %v11148 = vrot.slane %v10998, 5
    %v11149 = vrot.slane %v10998, 6
    %v11150 = vrot.slane %v10998, 7
    %v11151 = vrot.slane %v10999, 1
    %v11152 = vrot.slane %v10999, 2
    %v11153 = vrot.slane %v10999, 3
    %v11154 = vrot.slane %v10999, 4
    %v11155 = vrot.slane %v10999, 5
    %v11156 = vrot.slane %v10999, 6
    %v11157 = vrot.slane %v10999, 7
    %v11158 = vrot.slane %v11000, 1
    %v11159 = vrot.slane %v11000, 2
    %v11160 = vrot.slane %v11000, 3
    %v11161 = vrot.slane %v11000, 4
    %v11162 = vrot.slane %v11000, 5
    %v11163 = vrot.slane %v11000, 6
    %v11164 = vrot.slane %v11000, 7
    %v11165 = vrot.slane %v11001, 1
    %v11166 = vrot.slane %v11001, 2
    %v11167 = vrot.slane %v11001, 3
    %v11168 = vrot.slane %v11001, 4
    %v11169 = vrot.slane %v11001, 5
    %v11170 = vrot.slane %v11001, 6
    %v11171 = vrot.slane %v11001, 7
    %v11172 = vrot.slane %v11002, 1
    %v11173 = vrot.slane %v11002, 2
    %v11174 = vrot.slane %v11002, 3
    %v11175 = vrot.slane %v11002, 4
    %v11176 = vrot.slane %v11002, 5
    %v11177 = vrot.slane %v11002, 6
    %v11178 = vrot.slane %v11002, 7
    %v11179 = vrot.slane %v11003, 1
    %v11180 = vrot.slane %v11003, 2
    %v11181 = vrot.slane %v11003, 3
    %v11182 = vrot.slane %v11003, 4
    %v11183 = vrot.slane %v11003, 5
    %v11184 = vrot.slane %v11003, 6
    %v11185 = vrot.slane %v11003, 7
    %v11186 = vrot.slane %v11004, 1
    %v11187 = vrot.slane %v11004, 2
    %v11188 = vrot.slane %v11004, 3
    %v11189 = vrot.slane %v11004, 4
    %v11190 = vrot.slane %v11004, 5
    %v11191 = vrot.slane %v11004, 6
    %v11192 = vrot.slane %v11004, 7
    %v11193 = vrot.slane %v11005, 1
    %v11194 = vrot.slane %v11005, 2
    %v11195 = vrot.slane %v11005, 3
    %v11196 = vrot.slane %v11005, 4
    %v11197 = vrot.slane %v11005, 5
    %v11198 = vrot.slane %v11005, 6
    %v11199 = vrot.slane %v11005, 7
    %v11200 = vrot.slane %v11006, 1
    %v11201 = vrot.slane %v11006, 2
    %v11202 = vrot.slane %v11006, 3
    %v11203 = vrot.slane %v11006, 4
    %v11204 = vrot.slane %v11006, 5
    %v11205 = vrot.slane %v11006, 6
    %v11206 = vrot.slane %v11006, 7
    %v11207 = vrot.slane %v11007, 1
    %v11208 = vrot.slane %v11007, 2
    %v11209 = vrot.slane %v11007, 3
    %v11210 = vrot.slane %v11007, 4
    %v11211 = vrot.slane %v11007, 5
    %v11212 = vrot.slane %v11007, 6
    %v11213 = vrot.slane %v11007, 7
    %v11214 = vrot.slane %v11008, 1
    %v11215 = vrot.slane %v11008, 2
    %v11216 = vrot.slane %v11008, 3
    %v11217 = vrot.slane %v11008, 4
    %v11218 = vrot.slane %v11008, 5
    %v11219 = vrot.slane %v11008, 6
    %v11220 = vrot.slane %v11008, 7
    %v11221 = vrot.slane %v11009, 1
    %v11222 = vrot.slane %v11009, 2
    %v11223 = vrot.slane %v11009, 3
    %v11224 = vrot.slane %v11009, 4
    %v11225 = vrot.slane %v11009, 5
    %v11226 = vrot.slane %v11009, 6
    %v11227 = vrot.slane %v11009, 7
    %v11228 = vrot.slane %v11010, 1
    %v11229 = vrot.slane %v11010, 2
    %v11230 = vrot.slane %v11010, 3
    %v11231 = vrot.slane %v11010, 4
    %v11232 = vrot.slane %v11010, 5
    %v11233 = vrot.slane %v11010, 6
    %v11234 = vrot.slane %v11010, 7
    %v11235 = vrot.slane %v11011, 1
    %v11236 = vrot.slane %v11011, 2
    %v11237 = vrot.slane %v11011, 3
    %v11238 = vrot.slane %v11011, 4
    %v11239 = vrot.slane %v11011, 5
    %v11240 = vrot.slane %v11011, 6
    %v11241 = vrot.slane %v11011, 7
    %v11242 = vrot.slane %v11012, 1
    %v11243 = vrot.slane %v11012, 2
    %v11244 = vrot.slane %v11012, 3
    %v11245 = vrot.slane %v11012, 4
    %v11246 = vrot.slane %v11012, 5
    %v11247 = vrot.slane %v11012, 6
    %v11248 = vrot.slane %v11012, 7
    %v11249 = vrot.slane %v11013, 1
    %v11250 = vrot.slane %v11013, 2
    %v11251 = vrot.slane %v11013, 3
    %v11252 = vrot.slane %v11013, 4
    %v11253 = vrot.slane %v11013, 5
    %v11254 = vrot.slane %v11013, 6
    %v11255 = vrot.slane %v11013, 7
    %v11256 = vrot.slane %v11014, 1
    %11257 = vst [vmem:[#allocation1] ss:$9 sm:$0xff] %v10984
    %s11258 = scalar_lea.vmem [#allocation1], 1
    %11259 = vst [vmem:[%s11258] ss:$9 sm:$0xff] %v11046
    %s11260 = scalar_lea.vmem [#allocation1], 2
    %11261 = vst [vmem:[%s11260] ss:$9 sm:$0xff] %v11047
    %s11262 = scalar_lea.vmem [#allocation1], 3
    %11263 = vst [vmem:[%s11262] ss:$9 sm:$0xff] %v11048
    %s11264 = scalar_lea.vmem [#allocation1], 4
    %11265 = vst [vmem:[%s11264] ss:$9 sm:$0xff] %v11049
    %s11266 = scalar_lea.vmem [#allocation1], 5
    %11267 = vst [vmem:[%s11266] ss:$9 sm:$0xff] %v11050
    %s11268 = scalar_lea.vmem [#allocation1], 6
    %11269 = vst [vmem:[%s11268] ss:$9 sm:$0xff] %v11051
    %s11270 = scalar_lea.vmem [#allocation1], 7
    %11271 = vst [vmem:[%s11270] ss:$9 sm:$0xff] %v11052
    %v11272 = vld [vmem:[#allocation1] sm:$0xff]
    %11273 = vst [vmem:[#allocation1] ss:$9 sm:$0xff] %v10985
    %11274 = vst [vmem:[%s11258] ss:$9 sm:$0xff] %v11053
    %11275 = vst [vmem:[%s11260] ss:$9 sm:$0xff] %v11054
    %11276 = vst [vmem:[%s11262] ss:$9 sm:$0xff] %v11055
    %11277 = vst [vmem:[%s11264] ss:$9 sm:$0xff] %v11056
    %11278 = vst [vmem:[%s11266] ss:$9 sm:$0xff] %v11057
    %11279 = vst [vmem:[%s11268] ss:$9 sm:$0xff] %v11058
    %11280 = vst [vmem:[%s11270] ss:$9 sm:$0xff] %v11059
    %v11281 = vld [vmem:[#allocation1] sm:$0xff]
    %11282 = vst [vmem:[#allocation1] ss:$9 sm:$0xff] %v10986
    %11283 = vst [vmem:[%s11258] ss:$9 sm:$0xff] %v11060
    %11284 = vst [vmem:[%s11260] ss:$9 sm:$0xff] %v11061
    %11285 = vst [vmem:[%s11262] ss:$9 sm:$0xff] %v11062
    %11286 = vst [vmem:[%s11264] ss:$9 sm:$0xff] %v11063
    %11287 = vst [vmem:[%s11266] ss:$9 sm:$0xff] %v11064
    %11288 = vst [vmem:[%s11268] ss:$9 sm:$0xff] %v11065
    %11289 = vst [vmem:[%s11270] ss:$9 sm:$0xff] %v11066
    %v11290 = vld [vmem:[#allocation1] sm:$0xff]
    %11291 = vst [vmem:[#allocation1] ss:$9 sm:$0xff] %v10987
    %11292 = vst [vmem:[%s11258] ss:$9 sm:$0xff] %v11067
    %11293 = vst [vmem:[%s11260] ss:$9 sm:$0xff] %v11068
    %11294 = vst [vmem:[%s11262] ss:$9 sm:$0xff] %v11069
    %11295 = vst [vmem:[%s11264] ss:$9 sm:$0xff] %v11070
    %11296 = vst [vmem:[%s11266] ss:$9 sm:$0xff] %v11071
    %11297 = vst [vmem:[%s11268] ss:$9 sm:$0xff] %v11072
    %11298 = vst [vmem:[%s11270] ss:$9 sm:$0xff] %v11073
    %v11299 = vld [vmem:[#allocation1] sm:$0xff]
    %11300 = vst [vmem:[#allocation1] ss:$9 sm:$0xff] %v10988
    %11301 = vst [vmem:[%s11258] ss:$9 sm:$0xff] %v11074
    %11302 = vst [vmem:[%s11260] ss:$9 sm:$0xff] %v11075
    %11303 = vst [vmem:[%s11262] ss:$9 sm:$0xff] %v11076
    %11304 = vst [vmem:[%s11264] ss:$9 sm:$0xff] %v11077
    %11305 = vst [vmem:[%s11266] ss:$9 sm:$0xff] %v11078
    %11306 = vst [vmem:[%s11268] ss:$9 sm:$0xff] %v11079
    %11307 = vst [vmem:[%s11270] ss:$9 sm:$0xff] %v11080
    %v11308 = vld [vmem:[#allocation1] sm:$0xff]
    %11309 = vst [vmem:[#allocation1] ss:$9 sm:$0xff] %v10989
    %11310 = vst [vmem:[%s11258] ss:$9 sm:$0xff] %v11081
    %11311 = vst [vmem:[%s11260] ss:$9 sm:$0xff] %v11082
    %11312 = vst [vmem:[%s11262] ss:$9 sm:$0xff] %v11083
    %11313 = vst [vmem:[%s11264] ss:$9 sm:$0xff] %v11084
    %11314 = vst [vmem:[%s11266] ss:$9 sm:$0xff] %v11085
    %11315 = vst [vmem:[%s11268] ss:$9 sm:$0xff] %v11086
    %11316 = vst [vmem:[%s11270] ss:$9 sm:$0xff] %v11087
    %v11317 = vld [vmem:[#allocation1] sm:$0xff]
    %11318 = vst [vmem:[#allocation1] ss:$9 sm:$0xff] %v10990
    %11319 = vst [vmem:[%s11258] ss:$9 sm:$0xff] %v11088
    %11320 = vst [vmem:[%s11260] ss:$9 sm:$0xff] %v11089
    %11321 = vst [vmem:[%s11262] ss:$9 sm:$0xff] %v11090
    %11322 = vst [vmem:[%s11264] ss:$9 sm:$0xff] %v11091
    %11323 = vst [vmem:[%s11266] ss:$9 sm:$0xff] %v11092
    %11324 = vst [vmem:[%s11268] ss:$9 sm:$0xff] %v11093
    %11325 = vst [vmem:[%s11270] ss:$9 sm:$0xff] %v11094
    %v11326 = vld [vmem:[#allocation1] sm:$0xff]
    %11327 = vst [vmem:[#allocation1] ss:$9 sm:$0xff] %v10991
    %11328 = vst [vmem:[%s11258] ss:$9 sm:$0xff] %v11095
    %11329 = vst [vmem:[%s11260] ss:$9 sm:$0xff] %v11096
    %11330 = vst [vmem:[%s11262] ss:$9 sm:$0xff] %v11097
    %11331 = vst [vmem:[%s11264] ss:$9 sm:$0xff] %v11098
    %11332 = vst [vmem:[%s11266] ss:$9 sm:$0xff] %v11099
    %11333 = vst [vmem:[%s11268] ss:$9 sm:$0xff] %v11100
    %11334 = vst [vmem:[%s11270] ss:$9 sm:$0xff] %v11101
    %v11335 = vld [vmem:[#allocation1] sm:$0xff]
    %11336 = vst [vmem:[#allocation1] ss:$9 sm:$0xff] %v10992
    %11337 = vst [vmem:[%s11258] ss:$9 sm:$0xff] %v11102
    %11338 = vst [vmem:[%s11260] ss:$9 sm:$0xff] %v11103
    %11339 = vst [vmem:[%s11262] ss:$9 sm:$0xff] %v11104
    %11340 = vst [vmem:[%s11264] ss:$9 sm:$0xff] %v11105
    %11341 = vst [vmem:[%s11266] ss:$9 sm:$0xff] %v11106
    %11342 = vst [vmem:[%s11268] ss:$9 sm:$0xff] %v11107
    %11343 = vst [vmem:[%s11270] ss:$9 sm:$0xff] %v11108
    %v11344 = vld [vmem:[#allocation1] sm:$0xff]
    %11345 = vst [vmem:[#allocation1] ss:$9 sm:$0xff] %v10993
    %11346 = vst [vmem:[%s11258] ss:$9 sm:$0xff] %v11109
    %11347 = vst [vmem:[%s11260] ss:$9 sm:$0xff] %v11110
    %11348 = vst [vmem:[%s11262] ss:$9 sm:$0xff] %v11111
    %11349 = vst [vmem:[%s11264] ss:$9 sm:$0xff] %v11112
    %11350 = vst [vmem:[%s11266] ss:$9 sm:$0xff] %v11113
    %11351 = vst [vmem:[%s11268] ss:$9 sm:$0xff] %v11114
    %11352 = vst [vmem:[%s11270] ss:$9 sm:$0xff] %v11115
    %v11353 = vld [vmem:[#allocation1] sm:$0xff]
    %11354 = vst [vmem:[#allocation1] ss:$9 sm:$0xff] %v10994
    %11355 = vst [vmem:[%s11258] ss:$9 sm:$0xff] %v11116
    %11356 = vst [vmem:[%s11260] ss:$9 sm:$0xff] %v11117
    %11357 = vst [vmem:[%s11262] ss:$9 sm:$0xff] %v11118
    %11358 = vst [vmem:[%s11264] ss:$9 sm:$0xff] %v11119
    %11359 = vst [vmem:[%s11266] ss:$9 sm:$0xff] %v11120
    %11360 = vst [vmem:[%s11268] ss:$9 sm:$0xff] %v11121
    %11361 = vst [vmem:[%s11270] ss:$9 sm:$0xff] %v11122
    %v11362 = vld [vmem:[#allocation1] sm:$0xff]
    %11363 = vst [vmem:[#allocation1] ss:$9 sm:$0xff] %v10995
    %11364 = vst [vmem:[%s11258] ss:$9 sm:$0xff] %v11123
    %11365 = vst [vmem:[%s11260] ss:$9 sm:$0xff] %v11124
    %11366 = vst [vmem:[%s11262] ss:$9 sm:$0xff] %v11125
    %11367 = vst [vmem:[%s11264] ss:$9 sm:$0xff] %v11126
    %11368 = vst [vmem:[%s11266] ss:$9 sm:$0xff] %v11127
    %11369 = vst [vmem:[%s11268] ss:$9 sm:$0xff] %v11128
    %11370 = vst [vmem:[%s11270] ss:$9 sm:$0xff] %v11129
    %v11371 = vld [vmem:[#allocation1] sm:$0xff]
    %11372 = vst [vmem:[#allocation1] ss:$9 sm:$0xff] %v10996
    %11373 = vst [vmem:[%s11258] ss:$9 sm:$0xff] %v11130
    %11374 = vst [vmem:[%s11260] ss:$9 sm:$0xff] %v11131
    %11375 = vst [vmem:[%s11262] ss:$9 sm:$0xff] %v11132
    %11376 = vst [vmem:[%s11264] ss:$9 sm:$0xff] %v11133
    %11377 = vst [vmem:[%s11266] ss:$9 sm:$0xff] %v11134
    %11378 = vst [vmem:[%s11268] ss:$9 sm:$0xff] %v11135
    %11379 = vst [vmem:[%s11270] ss:$9 sm:$0xff] %v11136
    %v11380 = vld [vmem:[#allocation1] sm:$0xff]
    %11381 = vst [vmem:[#allocation1] ss:$9 sm:$0xff] %v10997
    %11382 = vst [vmem:[%s11258] ss:$9 sm:$0xff] %v11137
    %11383 = vst [vmem:[%s11260] ss:$9 sm:$0xff] %v11138
    %11384 = vst [vmem:[%s11262] ss:$9 sm:$0xff] %v11139
    %11385 = vst [vmem:[%s11264] ss:$9 sm:$0xff] %v11140
    %11386 = vst [vmem:[%s11266] ss:$9 sm:$0xff] %v11141
    %11387 = vst [vmem:[%s11268] ss:$9 sm:$0xff] %v11142
    %11388 = vst [vmem:[%s11270] ss:$9 sm:$0xff] %v11143
    %v11389 = vld [vmem:[#allocation1] sm:$0xff]
    %11390 = vst [vmem:[#allocation1] ss:$9 sm:$0xff] %v10998
    %11391 = vst [vmem:[%s11258] ss:$9 sm:$0xff] %v11144
    %11392 = vst [vmem:[%s11260] ss:$9 sm:$0xff] %v11145
    %11393 = vst [vmem:[%s11262] ss:$9 sm:$0xff] %v11146
    %11394 = vst [vmem:[%s11264] ss:$9 sm:$0xff] %v11147
    %11395 = vst [vmem:[%s11266] ss:$9 sm:$0xff] %v11148
    %11396 = vst [vmem:[%s11268] ss:$9 sm:$0xff] %v11149
    %11397 = vst [vmem:[%s11270] ss:$9 sm:$0xff] %v11150
    %v11398 = vld [vmem:[#allocation1] sm:$0xff]
    %11399 = vst [vmem:[#allocation1] ss:$9 sm:$0xff] %v10999
    %v11400 = vld [vmem:[#allocation1] sm:$0xff]
    %11401 = vst [vmem:[#allocation1] ss:$9 sm:$0xff] %v11151
    %11402 = vst [vmem:[%s11258] ss:$9 sm:$0xff] %v11152
    %11403 = vst [vmem:[%s11260] ss:$9 sm:$0xff] %v11153
    %11404 = vst [vmem:[%s11262] ss:$9 sm:$0xff] %v11154
    %11405 = vst [vmem:[%s11264] ss:$9 sm:$0xff] %v11155
    %11406 = vst [vmem:[%s11266] ss:$9 sm:$0xff] %v11156
    %11407 = vst [vmem:[%s11268] ss:$9 sm:$0xff] %v11157
    %11408 = vst [vmem:[%s11270] ss:$9 sm:$0xff] %v11000
    %v11409 = vld [vmem:[#allocation1] sm:$0xff]
    %11410 = vst [vmem:[#allocation1] ss:$9 sm:$0xff] %v11158
    %11411 = vst [vmem:[%s11258] ss:$9 sm:$0xff] %v11159
    %11412 = vst [vmem:[%s11260] ss:$9 sm:$0xff] %v11160
    %11413 = vst [vmem:[%s11262] ss:$9 sm:$0xff] %v11161
    %11414 = vst [vmem:[%s11264] ss:$9 sm:$0xff] %v11162
    %11415 = vst [vmem:[%s11266] ss:$9 sm:$0xff] %v11163
    %11416 = vst [vmem:[%s11268] ss:$9 sm:$0xff] %v11164
    %11417 = vst [vmem:[%s11270] ss:$9 sm:$0xff] %v11001
    %v11418 = vld [vmem:[#allocation1] sm:$0xff]
    %11419 = vst [vmem:[#allocation1] ss:$9 sm:$0xff] %v11165
    %11420 = vst [vmem:[%s11258] ss:$9 sm:$0xff] %v11166
    %11421 = vst [vmem:[%s11260] ss:$9 sm:$0xff] %v11167
    %11422 = vst [vmem:[%s11262] ss:$9 sm:$0xff] %v11168
    %11423 = vst [vmem:[%s11264] ss:$9 sm:$0xff] %v11169
    %11424 = vst [vmem:[%s11266] ss:$9 sm:$0xff] %v11170
    %11425 = vst [vmem:[%s11268] ss:$9 sm:$0xff] %v11171
    %11426 = vst [vmem:[%s11270] ss:$9 sm:$0xff] %v11002
    %v11427 = vld [vmem:[#allocation1] sm:$0xff]
    %11428 = vst [vmem:[#allocation1] ss:$9 sm:$0xff] %v11172
    %11429 = vst [vmem:[%s11258] ss:$9 sm:$0xff] %v11173
    %11430 = vst [vmem:[%s11260] ss:$9 sm:$0xff] %v11174
    %11431 = vst [vmem:[%s11262] ss:$9 sm:$0xff] %v11175
    %11432 = vst [vmem:[%s11264] ss:$9 sm:$0xff] %v11176
    %11433 = vst [vmem:[%s11266] ss:$9 sm:$0xff] %v11177
    %11434 = vst [vmem:[%s11268] ss:$9 sm:$0xff] %v11178
    %11435 = vst [vmem:[%s11270] ss:$9 sm:$0xff] %v11003
    %v11436 = vld [vmem:[#allocation1] sm:$0xff]
    %11437 = vst [vmem:[#allocation1] ss:$9 sm:$0xff] %v11179
    %11438 = vst [vmem:[%s11258] ss:$9 sm:$0xff] %v11180
    %11439 = vst [vmem:[%s11260] ss:$9 sm:$0xff] %v11181
    %11440 = vst [vmem:[%s11262] ss:$9 sm:$0xff] %v11182
    %11441 = vst [vmem:[%s11264] ss:$9 sm:$0xff] %v11183
    %11442 = vst [vmem:[%s11266] ss:$9 sm:$0xff] %v11184
    %11443 = vst [vmem:[%s11268] ss:$9 sm:$0xff] %v11185
    %11444 = vst [vmem:[%s11270] ss:$9 sm:$0xff] %v11004
    %v11445 = vld [vmem:[#allocation1] sm:$0xff]
    %11446 = vst [vmem:[#allocation1] ss:$9 sm:$0xff] %v11186
    %11447 = vst [vmem:[%s11258] ss:$9 sm:$0xff] %v11187
    %11448 = vst [vmem:[%s11260] ss:$9 sm:$0xff] %v11188
    %11449 = vst [vmem:[%s11262] ss:$9 sm:$0xff] %v11189
    %11450 = vst [vmem:[%s11264] ss:$9 sm:$0xff] %v11190
    %11451 = vst [vmem:[%s11266] ss:$9 sm:$0xff] %v11191
    %11452 = vst [vmem:[%s11268] ss:$9 sm:$0xff] %v11192
    %11453 = vst [vmem:[%s11270] ss:$9 sm:$0xff] %v11005
    %v11454 = vld [vmem:[#allocation1] sm:$0xff]
    %11455 = vst [vmem:[#allocation1] ss:$9 sm:$0xff] %v11193
    %11456 = vst [vmem:[%s11258] ss:$9 sm:$0xff] %v11194
    %11457 = vst [vmem:[%s11260] ss:$9 sm:$0xff] %v11195
    %11458 = vst [vmem:[%s11262] ss:$9 sm:$0xff] %v11196
    %11459 = vst [vmem:[%s11264] ss:$9 sm:$0xff] %v11197
    %11460 = vst [vmem:[%s11266] ss:$9 sm:$0xff] %v11198
    %11461 = vst [vmem:[%s11268] ss:$9 sm:$0xff] %v11199
    %11462 = vst [vmem:[%s11270] ss:$9 sm:$0xff] %v11006
    %v11463 = vld [vmem:[#allocation1] sm:$0xff]
    %11464 = vst [vmem:[#allocation1] ss:$9 sm:$0xff] %v11200
    %11465 = vst [vmem:[%s11258] ss:$9 sm:$0xff] %v11201
    %11466 = vst [vmem:[%s11260] ss:$9 sm:$0xff] %v11202
    %11467 = vst [vmem:[%s11262] ss:$9 sm:$0xff] %v11203
    %11468 = vst [vmem:[%s11264] ss:$9 sm:$0xff] %v11204
    %11469 = vst [vmem:[%s11266] ss:$9 sm:$0xff] %v11205
    %11470 = vst [vmem:[%s11268] ss:$9 sm:$0xff] %v11206
    %11471 = vst [vmem:[%s11270] ss:$9 sm:$0xff] %v11007
    %v11472 = vld [vmem:[#allocation1] sm:$0xff]
    %11473 = vst [vmem:[#allocation1] ss:$9 sm:$0xff] %v11207
    %11474 = vst [vmem:[%s11258] ss:$9 sm:$0xff] %v11208
    %11475 = vst [vmem:[%s11260] ss:$9 sm:$0xff] %v11209
    %11476 = vst [vmem:[%s11262] ss:$9 sm:$0xff] %v11210
    %11477 = vst [vmem:[%s11264] ss:$9 sm:$0xff] %v11211
    %11478 = vst [vmem:[%s11266] ss:$9 sm:$0xff] %v11212
    %11479 = vst [vmem:[%s11268] ss:$9 sm:$0xff] %v11213
    %11480 = vst [vmem:[%s11270] ss:$9 sm:$0xff] %v11008
    %v11481 = vld [vmem:[#allocation1] sm:$0xff]
    %11482 = vst [vmem:[#allocation1] ss:$9 sm:$0xff] %v11214
    %11483 = vst [vmem:[%s11258] ss:$9 sm:$0xff] %v11215
    %11484 = vst [vmem:[%s11260] ss:$9 sm:$0xff] %v11216
    %11485 = vst [vmem:[%s11262] ss:$9 sm:$0xff] %v11217
    %11486 = vst [vmem:[%s11264] ss:$9 sm:$0xff] %v11218
    %11487 = vst [vmem:[%s11266] ss:$9 sm:$0xff] %v11219
    %11488 = vst [vmem:[%s11268] ss:$9 sm:$0xff] %v11220
    %11489 = vst [vmem:[%s11270] ss:$9 sm:$0xff] %v11009
    %v11490 = vld [vmem:[#allocation1] sm:$0xff]
    %11491 = vst [vmem:[#allocation1] ss:$9 sm:$0xff] %v11221
    %11492 = vst [vmem:[%s11258] ss:$9 sm:$0xff] %v11222
    %11493 = vst [vmem:[%s11260] ss:$9 sm:$0xff] %v11223
    %11494 = vst [vmem:[%s11262] ss:$9 sm:$0xff] %v11224
    %11495 = vst [vmem:[%s11264] ss:$9 sm:$0xff] %v11225
    %11496 = vst [vmem:[%s11266] ss:$9 sm:$0xff] %v11226
    %11497 = vst [vmem:[%s11268] ss:$9 sm:$0xff] %v11227
    %11498 = vst [vmem:[%s11270] ss:$9 sm:$0xff] %v11010
    %v11499 = vld [vmem:[#allocation1] sm:$0xff]
    %11500 = vst [vmem:[#allocation1] ss:$9 sm:$0xff] %v11228
    %11501 = vst [vmem:[%s11258] ss:$9 sm:$0xff] %v11229
    %11502 = vst [vmem:[%s11260] ss:$9 sm:$0xff] %v11230
    %11503 = vst [vmem:[%s11262] ss:$9 sm:$0xff] %v11231
    %11504 = vst [vmem:[%s11264] ss:$9 sm:$0xff] %v11232
    %11505 = vst [vmem:[%s11266] ss:$9 sm:$0xff] %v11233
    %11506 = vst [vmem:[%s11268] ss:$9 sm:$0xff] %v11234
    %11507 = vst [vmem:[%s11270] ss:$9 sm:$0xff] %v11011
    %v11508 = vld [vmem:[#allocation1] sm:$0xff]
    %11509 = vst [vmem:[#allocation1] ss:$9 sm:$0xff] %v11235
    %11510 = vst [vmem:[%s11258] ss:$9 sm:$0xff] %v11236
    %11511 = vst [vmem:[%s11260] ss:$9 sm:$0xff] %v11237
    %11512 = vst [vmem:[%s11262] ss:$9 sm:$0xff] %v11238
    %11513 = vst [vmem:[%s11264] ss:$9 sm:$0xff] %v11239
    %11514 = vst [vmem:[%s11266] ss:$9 sm:$0xff] %v11240
    %11515 = vst [vmem:[%s11268] ss:$9 sm:$0xff] %v11241
    %11516 = vst [vmem:[%s11270] ss:$9 sm:$0xff] %v11012
    %v11517 = vld [vmem:[#allocation1] sm:$0xff]
    %11518 = vst [vmem:[#allocation1] ss:$9 sm:$0xff] %v11242
    %11519 = vst [vmem:[%s11258] ss:$9 sm:$0xff] %v11243
    %11520 = vst [vmem:[%s11260] ss:$9 sm:$0xff] %v11244
    %11521 = vst [vmem:[%s11262] ss:$9 sm:$0xff] %v11245
    %11522 = vst [vmem:[%s11264] ss:$9 sm:$0xff] %v11246
    %11523 = vst [vmem:[%s11266] ss:$9 sm:$0xff] %v11247
    %11524 = vst [vmem:[%s11268] ss:$9 sm:$0xff] %v11248
    %11525 = vst [vmem:[%s11270] ss:$9 sm:$0xff] %v11013
    %v11526 = vld [vmem:[#allocation1] sm:$0xff]
    %11527 = vst [vmem:[#allocation1] ss:$9 sm:$0xff] %v11249
    %11528 = vst [vmem:[%s11258] ss:$9 sm:$0xff] %v11250
    %11529 = vst [vmem:[%s11260] ss:$9 sm:$0xff] %v11251
    %11530 = vst [vmem:[%s11262] ss:$9 sm:$0xff] %v11252
    %11531 = vst [vmem:[%s11264] ss:$9 sm:$0xff] %v11253
    %11532 = vst [vmem:[%s11266] ss:$9 sm:$0xff] %v11254
    %11533 = vst [vmem:[%s11268] ss:$9 sm:$0xff] %v11255
    %11534 = vst [vmem:[%s11270] ss:$9 sm:$0xff] %v11014
    %v11535 = vld [vmem:[#allocation1] sm:$0xff]
    %11536 = vst [vmem:[#allocation1] ss:$9 sm:$0xff] %v11256
    %v11537 = vld [vmem:[#allocation1] sm:$0xff]
    %v11570 = vsel %vm6599, %v11272, 0.0
    %v11571 = vsel %vm6599, %v11281, 0.0
    %v11572 = vadd.f32 %v11570, %v11571
    %v11573 = vsel %vm6599, %v11290, 0.0
    %v11574 = vadd.f32 %v11572, %v11573
    %v11575 = vsel %vm6599, %v11299, 0.0
    %v11576 = vadd.f32 %v11574, %v11575
    %v11577 = vsel %vm6599, %v11308, 0.0
    %v11578 = vadd.f32 %v11576, %v11577
    %v11579 = vsel %vm6599, %v11317, 0.0
    %v11580 = vadd.f32 %v11578, %v11579
    %v11581 = vsel %vm6599, %v11326, 0.0
    %v11582 = vadd.f32 %v11580, %v11581
    %v11583 = vsel %vm6599, %v11335, 0.0
    %v11584 = vadd.f32 %v11582, %v11583
    %v11585 = vsel %vm6599, %v11344, 0.0
    %v11586 = vadd.f32 %v11584, %v11585
    %v11587 = vsel %vm6599, %v11353, 0.0
    %v11588 = vadd.f32 %v11586, %v11587
    %v11589 = vsel %vm6599, %v11362, 0.0
    %v11590 = vadd.f32 %v11588, %v11589
    %v11591 = vsel %vm6599, %v11371, 0.0
    %v11592 = vadd.f32 %v11590, %v11591
    %v11593 = vsel %vm6599, %v11380, 0.0
    %v11594 = vadd.f32 %v11592, %v11593
    %v11595 = vsel %vm6599, %v11389, 0.0
    %v11596 = vadd.f32 %v11594, %v11595
    %v11597 = vsel %vm6599, %v11398, 0.0
    %v11598 = vadd.f32 %v11596, %v11597
    %vm11599 = vcmask 516096
    %v11600 = vsel %vm11599, %v11400, 0.0
    %v11601 = vadd.f32 %v11598, %v11600
    %v11602 = vrot.slane %v11601, 4
    %v11603 = vadd.f32 %v11601, %v11602
    %v11604 = vrot.slane %v11603, 2
    %v11605 = vadd.f32 %v11603, %v11604
    %v11606 = vrot.slane %v11605, 1
    %v11607 = vadd.f32 %v11605, %v11606
    %v11608 = vsel %vm6599, %v11409, 0.0
    %v11609 = vsel %vm6599, %v11418, 0.0
    %v11610 = vadd.f32 %v11608, %v11609
    %v11611 = vsel %vm6599, %v11427, 0.0
    %v11612 = vadd.f32 %v11610, %v11611
    %v11613 = vsel %vm6599, %v11436, 0.0
    %v11614 = vadd.f32 %v11612, %v11613
    %v11615 = vsel %vm6599, %v11445, 0.0
    %v11616 = vadd.f32 %v11614, %v11615
    %v11617 = vsel %vm6599, %v11454, 0.0
    %v11618 = vadd.f32 %v11616, %v11617
    %v11619 = vsel %vm6599, %v11463, 0.0
    %v11620 = vadd.f32 %v11618, %v11619
    %v11621 = vsel %vm6599, %v11472, 0.0
    %v11622 = vadd.f32 %v11620, %v11621
    %v11623 = vsel %vm6599, %v11481, 0.0
    %v11624 = vadd.f32 %v11622, %v11623
    %v11625 = vsel %vm6599, %v11490, 0.0
    %v11626 = vadd.f32 %v11624, %v11625
    %v11627 = vsel %vm6599, %v11499, 0.0
    %v11628 = vadd.f32 %v11626, %v11627
    %v11629 = vsel %vm6599, %v11508, 0.0
    %v11630 = vadd.f32 %v11628, %v11629
    %v11631 = vsel %vm6599, %v11517, 0.0
    %v11632 = vadd.f32 %v11630, %v11631
    %v11633 = vsel %vm6599, %v11526, 0.0
    %v11634 = vadd.f32 %v11632, %v11633
    %v11635 = vsel %vm6599, %v11535, 0.0
    %v11636 = vadd.f32 %v11634, %v11635
    %v11637 = vsel %vm11599, %v11537, 0.0
    %v11638 = vadd.f32 %v11636, %v11637
    %v11639 = vrot.slane %v11638, 4
    %v11640 = vadd.f32 %v11638, %v11639
    %v11641 = vrot.slane %v11640, 2
    %v11642 = vadd.f32 %v11640, %v11641
    %v11643 = vrot.slane %v11642, 1
    %v11644 = vadd.f32 %v11642, %v11643
    %v11645 = vmul.f32 %v11607, 0.008264462
    %v11646 = vmul.f32 %v11644, 0.008264462
    %v11647 = vld [vmem:[%s10] sm:$0xff]
    %v11648 = vld [vmem:[%s10 + $0x8] sm:$0xff]
    %v11649 = vld [vmem:[%s10 + $0x10] sm:$0xff]
    %v11650 = vld [vmem:[%s10 + $0x18] sm:$0xff]
    %v11651 = vld [vmem:[%s10 + $0x20] sm:$0xff]
    %v11652 = vld [vmem:[%s10 + $0x28] sm:$0xff]
    %v11653 = vld [vmem:[%s10 + $0x30] sm:$0xff]
    %v11654 = vld [vmem:[%s10 + $0x38] sm:$0xff]
    %v11655 = vld [vmem:[%s11] sm:$0x1]
    %v11657 = vperm.slane %v11655, 0
    %vm11661 = vcmask 1041409
    %v11662 = vsel %vm11661, %v11646, %v11645
    %v11663 = vsel %vm6599, %v11662, 0
    %11665 = vmatpush.msra.mxu0 0.0
    %11666 = vmatpush.msra.mxu0 0.0
    %11667 = vmatpush.msra.mxu0 0.0
    %11668 = vmatpush.msra.mxu0 0.0
    %11669 = vmatpush.msra.mxu0 0.0
    %11670 = vmatpush.msra.mxu0 0.0
    %11671 = vmatpush.msra.mxu0 0.0
    %11672 = vmatpush.msra.mxu0 0.0
    %11673 = vmatpush.msra.mxu0 %v11654
    %11674 = vmatpush.msra.mxu0 %v11653
    %11675 = vmatpush.msra.mxu0 %v11652
    %11676 = vmatpush.msra.mxu0 %v11651
    %11677 = vmatpush.msra.mxu0 %v11650
    %11678 = vmatpush.msra.mxu0 %v11649
    %11679 = vmatpush.msra.mxu0 %v11648
    %11680 = vmatpush.msra.mxu0 %v11647
    %11681 = vmatmul.f32.gmra.mxu0 %v11663
    %v11682 = vpop.f32.mrf.mxu0
    %v11683 = vadd.f32 %v11657, %v11682
    %11684 = vdwg.mxu0
    %vm11685 = vcmask 1041408
    %v11686 = vsel %vm11685, %v11683, -inf
    %11687 = vmax.xlane.f32.xlu0 %v11686
    %v11688 = vpop.xlane.xlu0 %11687
    %v11689 = vsub.f32 %v11683, %v11688
    %v11690 = vmul.f32 %v11689, 1.442695
    %v11691 = vpow.pop %v11690
    %v11692 = vsel %vm11685, %v11691, 0.0
    %11693 = vadd.xlane.f32.xlu0 %v11692
    %v11694 = vpop.xlane.xlu0 %11693
    %v11695 = vrcp.pop %v11694
    %v11696 = vmul.f32 %v11694, %v11695
    %v11697 = vsub.f32 1.0, %v11696
    %v11698 = vmul.f32 %v11695, %v11697
    %v11699 = vadd.f32 %v11695, %v11698
    %vm11700 = vweird.f32 %v11694
    %vm11701 = vweird.f32 %v11695
    %vm11702 = vmor %vm11700, %vm11701
    %v11703 = vsel %vm11702, %v11695, %v11699
    %v11704 = vand.u32 2147483647, %v11694
    %vm11705 = vcmp.eq.f32.partialorder %v11704, 8.507059e+37
    %v11706 = vand.u32 %v11694, 2147483648
    %v11707 = vor.u32 1.1754944e-38, %v11706
    %v11708 = vsel %vm11705, %v11707, %v11703
    %v11709 = vmul.f32 %v11691, %v11708
    %11710 = vst [vmem:[#allocation2] sm:$0x3] %v11709
    // Predicated region
    $region50: #{tpu_custom_call.1} parent=1 // pred_check
      _
    $region51: #{tpu_custom_call.1} parent=1 // pred_check_branch
      %11712 = sbr.rel (0) target = $region53
    $region52: #{tpu_custom_call.1} parent=1 // pred_region
      %11714 = vsyncadd [#allocation3], 0
      %s11716 = sshll.u32 [#allocation2], 4
      %s11717 = int_to_ptr.vmem [resolvable:$true] %s11716
      %s11718 = sshll.u32 %s12, 4
      %s11719 = int_to_ptr.hbm [resolvable:$true] %s11718
      %11721 = dma.vmem_to_hbm [thread:$0]  %s11717, 32, %s11719, [#allocation3]
    $region53: #{tpu_custom_call.1} parent=1 // pred_fallthru
      _
    // Predicated region
    $region54: #{tpu_custom_call.1} parent=1 // pred_check
      _
    $region55: #{tpu_custom_call.1} parent=1 // pred_check_branch
      %11723 = sbr.rel (0) target = $region57
    $region56: #{tpu_custom_call.1} parent=1 // pred_region
      %11725 = dma.done [#allocation3], 32
    $region57: #{tpu_custom_call.1} parent=1 // pred_fallthru
      _
    %11726 = vsyncpa [#allocation3], 1

</llo_original>
